<compile_context>
chip_gen: v6e
topology: v6e:2x2x1
jax: 0.10.0
libtpu: 0.0.40
codegen_flags: <defaults>
</compile_context>

<pallas_src>
import math

import jax
import jax.numpy as jnp
from jax.experimental import pallas as pl
from jax.experimental.pallas import tpu as pltpu

LANE = 128                      # TPU lane width; internal channel padding.
CHANNELS = (3, 8, 8, 16, 16)    # logical channel widths of the stand-in stack
C_OUT = CHANNELS[-1]


# ----------------------------------------------------------------------------
# Fused Pallas kernel: conv1 -> conv2 -> pool -> conv3 -> conv4 -> pool
# ----------------------------------------------------------------------------
def _encoder_fused_kernel(x_ref, w1_ref, b1_ref, w2_ref, b2_ref,
                          w3_ref, b3_ref, w4_ref, b4_ref, o_ref,
                          xp1_ref, xp2_ref, xp3_ref, xp4_ref):
    """One image per grid step; everything stays in VMEM.

    x_ref : (1, S, S, 3)          f32   input image tile
    w1_ref: (9, 3, 128)           f32   conv1 weights, taps-major (kh*3+kw)
    w{2,3,4}_ref: (3, 3*128, 128) bf16  kh-major, kw/cin merged into K
    b*_ref: (1, 128)              f32   lane-padded biases
    o_ref : (1, (S//4)^2, 16)     f32   flattened NHWC features
    xp*_ref: VMEM scratch holding the zero-padded ('same' halo) layer inputs.
    """
    S = x_ref.shape[1]
    H1 = S
    H2 = S // 2

    def fill_padded(xpad_ref, val):
        # Zero halo + interior write; replaces wrapper-side jnp.pad.
        H, W, _ = val.shape
        xpad_ref[...] = jnp.zeros_like(xpad_ref)
        xpad_ref[1:H + 1, 1:W + 1, :] = val.astype(xpad_ref.dtype)

    def conv_first(xpad_ref, w_ref, b_ref, H, W):
        # Cin = 3 (not lane aligned): keep 9 tiny shifted matmuls (K = 3).
        cin = xpad_ref.shape[-1]
        acc = jnp.zeros((H * W, LANE), jnp.float32)
        for kh in range(3):
            for kw in range(3):
                patch = xpad_ref[kh:kh + H, kw:kw + W, :].reshape(H * W, cin)
                acc += jnp.dot(patch, w_ref[kh * 3 + kw],
                               preferred_element_type=jnp.float32)
        return jnp.maximum(acc + b_ref[...], 0.0).reshape(H, W, LANE)

    def conv_merged(xpad_ref, w_ref, b_ref, H, W):
        # Lane-dense conv: kw taps merged into a single K = 3*128 contraction
        # (concat is at 128-lane boundaries -> no lane relayout), bf16 MXU
        # inputs, f32 accumulation over the 3 kh taps.
        acc = jnp.zeros((H * W, LANE), jnp.float32)
        for kh in range(3):
            rows = [xpad_ref[kh:kh + H, kw:kw + W, :] for kw in range(3)]
            patches = jnp.concatenate(rows, axis=-1).reshape(H * W, 3 * LANE)
            acc = acc + jnp.dot(patches.astype(jnp.bfloat16), w_ref[kh],
                                preferred_element_type=jnp.float32)
        return jnp.maximum(acc + b_ref[...], 0.0).reshape(H, W, LANE)

    def pool2x2(x):
        # 2x2 max pool on a VMEM-resident value (fused; no HBM round trip).
        H, W, C = x.shape
        x = x.reshape(H // 2, 2, W, C)
        m = jnp.maximum(x[:, 0], x[:, 1])
        m = m.reshape(H // 2, W // 2, 2, C)
        return jnp.maximum(m[:, :, 0, :], m[:, :, 1, :])

    # ---- stage 1: S x S ------------------------------------------------
    fill_padded(xp1_ref, x_ref[0])                       # (S, S, 3)
    a1 = conv_first(xp1_ref, w1_ref, b1_ref, H1, H1)     # (S, S, 128) f32
    fill_padded(xp2_ref, a1)
    a2 = conv_merged(xp2_ref, w2_ref, b2_ref, H1, H1)
    p1 = pool2x2(a2)                                     # (S/2, S/2, 128)

    # ---- stage 2: S/2 x S/2 --------------------------------------------
    fill_padded(xp3_ref, p1)
    a3 = conv_merged(xp3_ref, w3_ref, b3_ref, H2, H2)
    fill_padded(xp4_ref, a3)
    a4 = conv_merged(xp4_ref, w4_ref, b4_ref, H2, H2)
    p2 = pool2x2(a4)                                     # (S/4, S/4, 128)

    # PyTorch: permute(0,2,3,1).view(B, -1, C). Already NHWC -> flatten HW and
    # drop the zero lane padding.
    P = (H2 // 2) * (H2 // 2)
    o_ref[...] = p2[:, :, :C_OUT].reshape(1, P, C_OUT).astype(o_ref.dtype)


# ----------------------------------------------------------------------------
# Parameters (deterministic, synthetic) + lane-dense packing done once at init
# ----------------------------------------------------------------------------
def init_encoder_params(key):
    """Logical (unpadded) conv weights/biases, like a torchvision .features."""
    keys = jax.random.split(key, 4)
    params = []
    for k, cin, cout in zip(keys, CHANNELS[:-1], CHANNELS[1:]):
        wk, bk = jax.random.split(k)
        w = jax.random.normal(wk, (3, 3, cin, cout), jnp.float32) / math.sqrt(9 * cin)
        b = 0.01 * jax.random.normal(bk, (cout,), jnp.float32)
        params.append((w, b))
    return tuple(params)


def pack_encoder_params(params):
    """Pad channels to 128 lanes, merge kw taps into K, cast MXU weights bf16."""
    (w1, b1), (w2, b2), (w3, b3), (w4, b4) = params

    def pack_bias(b):
        return jnp.zeros((1, LANE), jnp.float32).at[0, :b.shape[0]].set(b)

    def pack_first(w):
        cin, cout = w.shape[2], w.shape[3]
        wp = jnp.zeros((3, 3, cin, LANE), jnp.float32).at[:, :, :, :cout].set(w)
        return wp.reshape(9, cin, LANE)                      # f32, tiny

    def pack_merged(w):
        cin, cout = w.shape[2], w.shape[3]
        wp = jnp.zeros((3, 3, LANE, LANE), jnp.float32)
        wp = wp.at[:, :, :cin, :cout].set(w)
        return wp.reshape(3, 3 * LANE, LANE).astype(jnp.bfloat16)

    return (pack_first(w1), pack_bias(b1),
            pack_merged(w2), pack_bias(b2),
            pack_merged(w3), pack_bias(b3),
            pack_merged(w4), pack_bias(b4))


# ----------------------------------------------------------------------------
# Forward pass (single fused pallas_call)
# ----------------------------------------------------------------------------
def encoder_cnn_forward(images_nchw, packed_params):
    """images_nchw: (B, 3, S, S) f32 -> (B, (S/4)^2, 16) f32."""
    x = jnp.transpose(images_nchw, (0, 2, 3, 1)).astype(jnp.float32)  # NHWC
    B, S, _, cin = x.shape
    assert cin == 3 and S % 4 == 0
    P = (S // 4) * (S // 4)
    w1, b1, w2, b2, w3, b3, w4, b4 = packed_params

    return pl.pallas_call(
        _encoder_fused_kernel,
        out_shape=jax.ShapeDtypeStruct((B, P, C_OUT), jnp.float32),
        grid=(B,),
        in_specs=[
            pl.BlockSpec((1, S, S, cin), lambda i: (i, 0, 0, 0)),
            pl.BlockSpec(w1.shape, lambda i: (0, 0, 0)),
            pl.BlockSpec(b1.shape, lambda i: (0, 0)),
            pl.BlockSpec(w2.shape, lambda i: (0, 0, 0)),
            pl.BlockSpec(b2.shape, lambda i: (0, 0)),
            pl.BlockSpec(w3.shape, lambda i: (0, 0, 0)),
            pl.BlockSpec(b3.shape, lambda i: (0, 0)),
            pl.BlockSpec(w4.shape, lambda i: (0, 0, 0)),
            pl.BlockSpec(b4.shape, lambda i: (0, 0)),
        ],
        out_specs=pl.BlockSpec((1, P, C_OUT), lambda i: (i, 0, 0)),
        scratch_shapes=[
            pltpu.VMEM((S + 2, S + 2, cin), jnp.float32),          # conv1 in
            pltpu.VMEM((S + 2, S + 2, LANE), jnp.float32),         # conv2 in
            pltpu.VMEM((S // 2 + 2, S // 2 + 2, LANE), jnp.float32),  # conv3 in
            pltpu.VMEM((S // 2 + 2, S // 2 + 2, LANE), jnp.float32),  # conv4 in
        ],
        compiler_params=pltpu.CompilerParams(
            dimension_semantics=("parallel",)),
    )(x, w1, b1, w2, b2, w3, b3, w4, b4)


# ----------------------------------------------------------------------------
# Pure-JAX reference (correctness check)
# ----------------------------------------------------------------------------
def _ref_conv(x, w, b):
    y = jax.lax.conv_general_dilated(
        x, w, window_strides=(1, 1), padding="SAME",
        dimension_numbers=("NHWC", "HWIO", "NHWC"))
    return jax.nn.relu(y + b)


def _ref_pool(x):
    B, H, W, C = x.shape
    return x.reshape(B, H // 2, 2, W // 2, 2, C).max(axis=(2, 4))


def encoder_cnn_reference(images_nchw, params):
    x = jnp.transpose(images_nchw, (0, 2, 3, 1)).astype(jnp.float32)
    (w1, b1), (w2, b2), (w3, b3), (w4, b4) = params
    x = _ref_conv(x, w1, b1)
    x = _ref_conv(x, w2, b2)
    x = _ref_pool(x)
    x = _ref_conv(x, w3, b3)
    x = _ref_conv(x, w4, b4)
    x = _ref_pool(x)
    B, H, W, C = x.shape
    return x.reshape(B, H * W, C)


if __name__ == "__main__":
    key = jax.random.PRNGKey(0)
    pkey, xkey = jax.random.split(key)

    params = init_encoder_params(pkey)
    packed = pack_encoder_params(params)
    images = jax.random.normal(xkey, (2, 3, 16, 16), jnp.float32)  # (B,3,S,S)

    feats = encoder_cnn_forward(images, packed)
    feats = jax.block_until_ready(feats)

    assert feats.shape == (2, 16, 16), feats.shape          # (B, (S/4)^2, C)

    ref = encoder_cnn_reference(images, params)
    max_err = float(jnp.max(jnp.abs(feats - ref)))
    assert max_err < 0.25, f"max abs error vs reference: {max_err}"

    print("KERNEL_OK")
</pallas_src>

<mosaic_0001>
module attributes {stable_mosaic.version = 11 : i64} {
  func.func @_encoder_fused_kernel(%arg0: i32, %arg1: memref<1x16x16x3xf32, #tpu.memory_space<vmem>>, %arg2: memref<9x3x128xf32, #tpu.memory_space<vmem>>, %arg3: memref<1x128xf32, #tpu.memory_space<vmem>>, %arg4: memref<3x384x128xbf16, #tpu.memory_space<vmem>>, %arg5: memref<1x128xf32, #tpu.memory_space<vmem>>, %arg6: memref<3x384x128xbf16, #tpu.memory_space<vmem>>, %arg7: memref<1x128xf32, #tpu.memory_space<vmem>>, %arg8: memref<3x384x128xbf16, #tpu.memory_space<vmem>>, %arg9: memref<1x128xf32, #tpu.memory_space<vmem>>, %arg10: memref<1x16x16xf32, #tpu.memory_space<vmem>>, %arg11: memref<18x18x3xf32, #tpu.memory_space<vmem>>, %arg12: memref<18x18x128xf32, #tpu.memory_space<vmem>>, %arg13: memref<10x10x128xf32, #tpu.memory_space<vmem>>, %arg14: memref<10x10x128xf32, #tpu.memory_space<vmem>>) attributes {dimension_semantics = [#tpu.dimension_semantics<parallel>], iteration_bounds = array<i64: 2>, scalar_prefetch = 0 : i64, scratch_operands = 4 : i64, tpu.core_type = #tpu.core_type<tc>, window_params = [{transform_indices = @transform_0, window_bounds = array<i64: 1, 16, 16, 3>}, {pipeline_mode = #tpu.pipeline_mode<synchronous>, transform_indices = @transform_1, window_bounds = array<i64: 9, 3, 128>}, {pipeline_mode = #tpu.pipeline_mode<synchronous>, transform_indices = @transform_2, window_bounds = array<i64: 1, 128>}, {pipeline_mode = #tpu.pipeline_mode<synchronous>, transform_indices = @transform_3, window_bounds = array<i64: 3, 384, 128>}, {pipeline_mode = #tpu.pipeline_mode<synchronous>, transform_indices = @transform_4, window_bounds = array<i64: 1, 128>}, {pipeline_mode = #tpu.pipeline_mode<synchronous>, transform_indices = @transform_5, window_bounds = array<i64: 3, 384, 128>}, {pipeline_mode = #tpu.pipeline_mode<synchronous>, transform_indices = @transform_6, window_bounds = array<i64: 1, 128>}, {pipeline_mode = #tpu.pipeline_mode<synchronous>, transform_indices = @transform_7, window_bounds = array<i64: 3, 384, 128>}, {pipeline_mode = #tpu.pipeline_mode<synchronous>, transform_indices = @transform_8, window_bounds = array<i64: 1, 128>}, {transform_indices = @transform_9, window_bounds = array<i64: 1, 16, 16>}]} {
    %c0 = arith.constant 0 : index
    %c0_0 = arith.constant 0 : index
    %c0_1 = arith.constant 0 : index
    %c0_2 = arith.constant 0 : index
    %0 = vector.load %arg1[%c0, %c0_0, %c0_1, %c0_2] : memref<1x16x16x3xf32, #tpu.memory_space<vmem>>, vector<1x16x16x3xf32>
    %1 = vector.shape_cast %0 : vector<1x16x16x3xf32> to vector<16x16x3xf32>
    %cst = arith.constant 0.000000e+00 : f32
    %2 = vector.broadcast %cst : f32 to vector<18x18x3xf32>
    %c0_3 = arith.constant 0 : index
    %c0_4 = arith.constant 0 : index
    %c0_5 = arith.constant 0 : index
    %3 = vector.load %arg11[%c0_3, %c0_4, %c0_5] : memref<18x18x3xf32, #tpu.memory_space<vmem>>, vector<18x18x3xf32>
    tpu.vector_store %arg11[%c0_3, %c0_4, %c0_5], %2 {strides = array<i32>} : memref<18x18x3xf32, #tpu.memory_space<vmem>>, vector<18x18x3xf32>,
    %c1 = arith.constant 1 : index
    %c1_6 = arith.constant 1 : index
    %c0_7 = arith.constant 0 : index
    %4 = vector.load %arg11[%c1, %c1_6, %c0_7] : memref<18x18x3xf32, #tpu.memory_space<vmem>>, vector<16x16x3xf32>
    tpu.vector_store %arg11[%c1, %c1_6, %c0_7], %1 {strides = array<i32>} : memref<18x18x3xf32, #tpu.memory_space<vmem>>, vector<16x16x3xf32>,
    %cst_8 = arith.constant 0.000000e+00 : f32
    %5 = vector.broadcast %cst_8 : f32 to vector<256x128xf32>
    %c0_9 = arith.constant 0 : index
    %c0_10 = arith.constant 0 : index
    %c0_11 = arith.constant 0 : index
    %6 = vector.load %arg11[%c0_9, %c0_10, %c0_11] : memref<18x18x3xf32, #tpu.memory_space<vmem>>, vector<16x16x3xf32>
    %7 = vector.shape_cast %6 : vector<16x16x3xf32> to vector<256x3xf32>
    %c0_12 = arith.constant 0 : index
    %c0_13 = arith.constant 0 : index
    %c0_14 = arith.constant 0 : index
    %8 = vector.load %arg2[%c0_12, %c0_13, %c0_14] : memref<9x3x128xf32, #tpu.memory_space<vmem>>, vector<1x3x128xf32>
    %9 = vector.shape_cast %8 : vector<1x3x128xf32> to vector<3x128xf32>
    %cst_15 = arith.constant dense<0.000000e+00> : vector<256x128xf32>
    %10 = tpu.matmul %7, %9, %cst_15 {dimension_numbers = #tpu.dot_dimension_numbers<[1], [0], [0], [1], [0, 0, 1, 1], [], []>} : vector<256x3xf32>, vector<3x128xf32>, vector<256x128xf32> -> vector<256x128xf32>
    %11 = arith.addf %5, %10 : vector<256x128xf32>
    %c0_16 = arith.constant 0 : index
    %c1_17 = arith.constant 1 : index
    %c0_18 = arith.constant 0 : index
    %12 = vector.load %arg11[%c0_16, %c1_17, %c0_18] : memref<18x18x3xf32, #tpu.memory_space<vmem>>, vector<16x16x3xf32>
    %13 = vector.shape_cast %12 : vector<16x16x3xf32> to vector<256x3xf32>
    %c1_19 = arith.constant 1 : index
    %c0_20 = arith.constant 0 : index
    %c0_21 = arith.constant 0 : index
    %14 = vector.load %arg2[%c1_19, %c0_20, %c0_21] : memref<9x3x128xf32, #tpu.memory_space<vmem>>, vector<1x3x128xf32>
    %15 = vector.shape_cast %14 : vector<1x3x128xf32> to vector<3x128xf32>
    %cst_22 = arith.constant dense<0.000000e+00> : vector<256x128xf32>
    %16 = tpu.matmul %13, %15, %cst_22 {dimension_numbers = #tpu.dot_dimension_numbers<[1], [0], [0], [1], [0, 0, 1, 1], [], []>} : vector<256x3xf32>, vector<3x128xf32>, vector<256x128xf32> -> vector<256x128xf32>
    %17 = arith.addf %11, %16 : vector<256x128xf32>
    %c0_23 = arith.constant 0 : index
    %c2 = arith.constant 2 : index
    %c0_24 = arith.constant 0 : index
    %18 = vector.load %arg11[%c0_23, %c2, %c0_24] : memref<18x18x3xf32, #tpu.memory_space<vmem>>, vector<16x16x3xf32>
    %19 = vector.shape_cast %18 : vector<16x16x3xf32> to vector<256x3xf32>
    %c2_25 = arith.constant 2 : index
    %c0_26 = arith.constant 0 : index
    %c0_27 = arith.constant 0 : index
    %20 = vector.load %arg2[%c2_25, %c0_26, %c0_27] : memref<9x3x128xf32, #tpu.memory_space<vmem>>, vector<1x3x128xf32>
    %21 = vector.shape_cast %20 : vector<1x3x128xf32> to vector<3x128xf32>
    %cst_28 = arith.constant dense<0.000000e+00> : vector<256x128xf32>
    %22 = tpu.matmul %19, %21, %cst_28 {dimension_numbers = #tpu.dot_dimension_numbers<[1], [0], [0], [1], [0, 0, 1, 1], [], []>} : vector<256x3xf32>, vector<3x128xf32>, vector<256x128xf32> -> vector<256x128xf32>
    %23 = arith.addf %17, %22 : vector<256x128xf32>
    %c1_29 = arith.constant 1 : index
    %c0_30 = arith.constant 0 : index
    %c0_31 = arith.constant 0 : index
    %24 = vector.load %arg11[%c1_29, %c0_30, %c0_31] : memref<18x18x3xf32, #tpu.memory_space<vmem>>, vector<16x16x3xf32>
    %25 = vector.shape_cast %24 : vector<16x16x3xf32> to vector<256x3xf32>
    %c3 = arith.constant 3 : index
    %c0_32 = arith.constant 0 : index
    %c0_33 = arith.constant 0 : index
    %26 = vector.load %arg2[%c3, %c0_32, %c0_33] : memref<9x3x128xf32, #tpu.memory_space<vmem>>, vector<1x3x128xf32>
    %27 = vector.shape_cast %26 : vector<1x3x128xf32> to vector<3x128xf32>
    %cst_34 = arith.constant dense<0.000000e+00> : vector<256x128xf32>
    %28 = tpu.matmul %25, %27, %cst_34 {dimension_numbers = #tpu.dot_dimension_numbers<[1], [0], [0], [1], [0, 0, 1, 1], [], []>} : vector<256x3xf32>, vector<3x128xf32>, vector<256x128xf32> -> vector<256x128xf32>
    %29 = arith.addf %23, %28 : vector<256x128xf32>
    %c1_35 = arith.constant 1 : index
    %c1_36 = arith.constant 1 : index
    %c0_37 = arith.constant 0 : index
    %30 = vector.load %arg11[%c1_35, %c1_36, %c0_37] : memref<18x18x3xf32, #tpu.memory_space<vmem>>, vector<16x16x3xf32>
    %31 = vector.shape_cast %30 : vector<16x16x3xf32> to vector<256x3xf32>
    %c4 = arith.constant 4 : index
    %c0_38 = arith.constant 0 : index
    %c0_39 = arith.constant 0 : index
    %32 = vector.load %arg2[%c4, %c0_38, %c0_39] : memref<9x3x128xf32, #tpu.memory_space<vmem>>, vector<1x3x128xf32>
    %33 = vector.shape_cast %32 : vector<1x3x128xf32> to vector<3x128xf32>
    %cst_40 = arith.constant dense<0.000000e+00> : vector<256x128xf32>
    %34 = tpu.matmul %31, %33, %cst_40 {dimension_numbers = #tpu.dot_dimension_numbers<[1], [0], [0], [1], [0, 0, 1, 1], [], []>} : vector<256x3xf32>, vector<3x128xf32>, vector<256x128xf32> -> vector<256x128xf32>
    %35 = arith.addf %29, %34 : vector<256x128xf32>
    %c1_41 = arith.constant 1 : index
    %c2_42 = arith.constant 2 : index
    %c0_43 = arith.constant 0 : index
    %36 = vector.load %arg11[%c1_41, %c2_42, %c0_43] : memref<18x18x3xf32, #tpu.memory_space<vmem>>, vector<16x16x3xf32>
    %37 = vector.shape_cast %36 : vector<16x16x3xf32> to vector<256x3xf32>
    %c5 = arith.constant 5 : index
    %c0_44 = arith.constant 0 : index
    %c0_45 = arith.constant 0 : index
    %38 = vector.load %arg2[%c5, %c0_44, %c0_45] : memref<9x3x128xf32, #tpu.memory_space<vmem>>, vector<1x3x128xf32>
    %39 = vector.shape_cast %38 : vector<1x3x128xf32> to vector<3x128xf32>
    %cst_46 = arith.constant dense<0.000000e+00> : vector<256x128xf32>
    %40 = tpu.matmul %37, %39, %cst_46 {dimension_numbers = #tpu.dot_dimension_numbers<[1], [0], [0], [1], [0, 0, 1, 1], [], []>} : vector<256x3xf32>, vector<3x128xf32>, vector<256x128xf32> -> vector<256x128xf32>
    %41 = arith.addf %35, %40 : vector<256x128xf32>
    %c2_47 = arith.constant 2 : index
    %c0_48 = arith.constant 0 : index
    %c0_49 = arith.constant 0 : index
    %42 = vector.load %arg11[%c2_47, %c0_48, %c0_49] : memref<18x18x3xf32, #tpu.memory_space<vmem>>, vector<16x16x3xf32>
    %43 = vector.shape_cast %42 : vector<16x16x3xf32> to vector<256x3xf32>
    %c6 = arith.constant 6 : index
    %c0_50 = arith.constant 0 : index
    %c0_51 = arith.constant 0 : index
    %44 = vector.load %arg2[%c6, %c0_50, %c0_51] : memref<9x3x128xf32, #tpu.memory_space<vmem>>, vector<1x3x128xf32>
    %45 = vector.shape_cast %44 : vector<1x3x128xf32> to vector<3x128xf32>
    %cst_52 = arith.constant dense<0.000000e+00> : vector<256x128xf32>
    %46 = tpu.matmul %43, %45, %cst_52 {dimension_numbers = #tpu.dot_dimension_numbers<[1], [0], [0], [1], [0, 0, 1, 1], [], []>} : vector<256x3xf32>, vector<3x128xf32>, vector<256x128xf32> -> vector<256x128xf32>
    %47 = arith.addf %41, %46 : vector<256x128xf32>
    %c2_53 = arith.constant 2 : index
    %c1_54 = arith.constant 1 : index
    %c0_55 = arith.constant 0 : index
    %48 = vector.load %arg11[%c2_53, %c1_54, %c0_55] : memref<18x18x3xf32, #tpu.memory_space<vmem>>, vector<16x16x3xf32>
    %49 = vector.shape_cast %48 : vector<16x16x3xf32> to vector<256x3xf32>
    %c7 = arith.constant 7 : index
    %c0_56 = arith.constant 0 : index
    %c0_57 = arith.constant 0 : index
    %50 = vector.load %arg2[%c7, %c0_56, %c0_57] : memref<9x3x128xf32, #tpu.memory_space<vmem>>, vector<1x3x128xf32>
    %51 = vector.shape_cast %50 : vector<1x3x128xf32> to vector<3x128xf32>
    %cst_58 = arith.constant dense<0.000000e+00> : vector<256x128xf32>
    %52 = tpu.matmul %49, %51, %cst_58 {dimension_numbers = #tpu.dot_dimension_numbers<[1], [0], [0], [1], [0, 0, 1, 1], [], []>} : vector<256x3xf32>, vector<3x128xf32>, vector<256x128xf32> -> vector<256x128xf32>
    %53 = arith.addf %47, %52 : vector<256x128xf32>
    %c2_59 = arith.constant 2 : index
    %c2_60 = arith.constant 2 : index
    %c0_61 = arith.constant 0 : index
    %54 = vector.load %arg11[%c2_59, %c2_60, %c0_61] : memref<18x18x3xf32, #tpu.memory_space<vmem>>, vector<16x16x3xf32>
    %55 = vector.shape_cast %54 : vector<16x16x3xf32> to vector<256x3xf32>
    %c8 = arith.constant 8 : index
    %c0_62 = arith.constant 0 : index
    %c0_63 = arith.constant 0 : index
    %56 = vector.load %arg2[%c8, %c0_62, %c0_63] : memref<9x3x128xf32, #tpu.memory_space<vmem>>, vector<1x3x128xf32>
    %57 = vector.shape_cast %56 : vector<1x3x128xf32> to vector<3x128xf32>
    %cst_64 = arith.constant dense<0.000000e+00> : vector<256x128xf32>
    %58 = tpu.matmul %55, %57, %cst_64 {dimension_numbers = #tpu.dot_dimension_numbers<[1], [0], [0], [1], [0, 0, 1, 1], [], []>} : vector<256x3xf32>, vector<3x128xf32>, vector<256x128xf32> -> vector<256x128xf32>
    %59 = arith.addf %53, %58 : vector<256x128xf32>
    %c0_65 = arith.constant 0 : index
    %c0_66 = arith.constant 0 : index
    %60 = vector.load %arg3[%c0_65, %c0_66] : memref<1x128xf32, #tpu.memory_space<vmem>>, vector<1x128xf32>
    %61 = vector.broadcast %60 : vector<1x128xf32> to vector<256x128xf32>
    %62 = arith.addf %59, %61 : vector<256x128xf32>
    %cst_67 = arith.constant 0.000000e+00 : f32
    %63 = vector.broadcast %cst_67 : f32 to vector<256x128xf32>
    %64 = arith.maximumf %62, %63 : vector<256x128xf32>
    %65 = vector.shape_cast %64 : vector<256x128xf32> to vector<16x16x128xf32>
    %cst_68 = arith.constant 0.000000e+00 : f32
    %66 = vector.broadcast %cst_68 : f32 to vector<18x18x128xf32>
    %c0_69 = arith.constant 0 : index
    %c0_70 = arith.constant 0 : index
    %c0_71 = arith.constant 0 : index
    %67 = vector.load %arg12[%c0_69, %c0_70, %c0_71] : memref<18x18x128xf32, #tpu.memory_space<vmem>>, vector<18x18x128xf32>
    tpu.vector_store %arg12[%c0_69, %c0_70, %c0_71], %66 {strides = array<i32>} : memref<18x18x128xf32, #tpu.memory_space<vmem>>, vector<18x18x128xf32>,
    %c1_72 = arith.constant 1 : index
    %c1_73 = arith.constant 1 : index
    %c0_74 = arith.constant 0 : index
    %68 = vector.load %arg12[%c1_72, %c1_73, %c0_74] : memref<18x18x128xf32, #tpu.memory_space<vmem>>, vector<16x16x128xf32>
    tpu.vector_store %arg12[%c1_72, %c1_73, %c0_74], %65 {strides = array<i32>} : memref<18x18x128xf32, #tpu.memory_space<vmem>>, vector<16x16x128xf32>,
    %cst_75 = arith.constant 0.000000e+00 : f32
    %69 = vector.broadcast %cst_75 : f32 to vector<256x128xf32>
    %c0_76 = arith.constant 0 : index
    %c0_77 = arith.constant 0 : index
    %c0_78 = arith.constant 0 : index
    %70 = vector.load %arg12[%c0_76, %c0_77, %c0_78] : memref<18x18x128xf32, #tpu.memory_space<vmem>>, vector<16x16x128xf32>
    %c0_79 = arith.constant 0 : index
    %c1_80 = arith.constant 1 : index
    %c0_81 = arith.constant 0 : index
    %71 = vector.load %arg12[%c0_79, %c1_80, %c0_81] : memref<18x18x128xf32, #tpu.memory_space<vmem>>, vector<16x16x128xf32>
    %c0_82 = arith.constant 0 : index
    %c2_83 = arith.constant 2 : index
    %c0_84 = arith.constant 0 : index
    %72 = vector.load %arg12[%c0_82, %c2_83, %c0_84] : memref<18x18x128xf32, #tpu.memory_space<vmem>>, vector<16x16x128xf32>
    %73 = tpu.concatenate %70, %71, %72 in 2 : vector<16x16x128xf32>, vector<16x16x128xf32>, vector<16x16x128xf32> -> vector<16x16x384xf32>
    %74 = vector.shape_cast %73 : vector<16x16x384xf32> to vector<256x384xf32>
    %75 = arith.truncf %74 : vector<256x384xf32> to vector<256x384xbf16>
    %c0_85 = arith.constant 0 : index
    %c0_86 = arith.constant 0 : index
    %c0_87 = arith.constant 0 : index
    %76 = vector.load %arg4[%c0_85, %c0_86, %c0_87] : memref<3x384x128xbf16, #tpu.memory_space<vmem>>, vector<1x384x128xbf16>
    %77 = vector.shape_cast %76 : vector<1x384x128xbf16> to vector<384x128xbf16>
    %cst_88 = arith.constant dense<0.000000e+00> : vector<256x128xf32>
    %78 = tpu.matmul %75, %77, %cst_88 {dimension_numbers = #tpu.dot_dimension_numbers<[1], [0], [0], [1], [0, 0, 1, 1], [], []>} : vector<256x384xbf16>, vector<384x128xbf16>, vector<256x128xf32> -> vector<256x128xf32>
    %79 = arith.addf %69, %78 : vector<256x128xf32>
    %c1_89 = arith.constant 1 : index
    %c0_90 = arith.constant 0 : index
    %c0_91 = arith.constant 0 : index
    %80 = vector.load %arg12[%c1_89, %c0_90, %c0_91] : memref<18x18x128xf32, #tpu.memory_space<vmem>>, vector<16x16x128xf32>
    %c1_92 = arith.constant 1 : index
    %c1_93 = arith.constant 1 : index
    %c0_94 = arith.constant 0 : index
    %81 = vector.load %arg12[%c1_92, %c1_93, %c0_94] : memref<18x18x128xf32, #tpu.memory_space<vmem>>, vector<16x16x128xf32>
    %c1_95 = arith.constant 1 : index
    %c2_96 = arith.constant 2 : index
    %c0_97 = arith.constant 0 : index
    %82 = vector.load %arg12[%c1_95, %c2_96, %c0_97] : memref<18x18x128xf32, #tpu.memory_space<vmem>>, vector<16x16x128xf32>
    %83 = tpu.concatenate %80, %81, %82 in 2 : vector<16x16x128xf32>, vector<16x16x128xf32>, vector<16x16x128xf32> -> vector<16x16x384xf32>
    %84 = vector.shape_cast %83 : vector<16x16x384xf32> to vector<256x384xf32>
    %85 = arith.truncf %84 : vector<256x384xf32> to vector<256x384xbf16>
    %c1_98 = arith.constant 1 : index
    %c0_99 = arith.constant 0 : index
    %c0_100 = arith.constant 0 : index
    %86 = vector.load %arg4[%c1_98, %c0_99, %c0_100] : memref<3x384x128xbf16, #tpu.memory_space<vmem>>, vector<1x384x128xbf16>
    %87 = vector.shape_cast %86 : vector<1x384x128xbf16> to vector<384x128xbf16>
    %cst_101 = arith.constant dense<0.000000e+00> : vector<256x128xf32>
    %88 = tpu.matmul %85, %87, %cst_101 {dimension_numbers = #tpu.dot_dimension_numbers<[1], [0], [0], [1], [0, 0, 1, 1], [], []>} : vector<256x384xbf16>, vector<384x128xbf16>, vector<256x128xf32> -> vector<256x128xf32>
    %89 = arith.addf %79, %88 : vector<256x128xf32>
    %c2_102 = arith.constant 2 : index
    %c0_103 = arith.constant 0 : index
    %c0_104 = arith.constant 0 : index
    %90 = vector.load %arg12[%c2_102, %c0_103, %c0_104] : memref<18x18x128xf32, #tpu.memory_space<vmem>>, vector<16x16x128xf32>
    %c2_105 = arith.constant 2 : index
    %c1_106 = arith.constant 1 : index
    %c0_107 = arith.constant 0 : index
    %91 = vector.load %arg12[%c2_105, %c1_106, %c0_107] : memref<18x18x128xf32, #tpu.memory_space<vmem>>, vector<16x16x128xf32>
    %c2_108 = arith.constant 2 : index
    %c2_109 = arith.constant 2 : index
    %c0_110 = arith.constant 0 : index
    %92 = vector.load %arg12[%c2_108, %c2_109, %c0_110] : memref<18x18x128xf32, #tpu.memory_space<vmem>>, vector<16x16x128xf32>
    %93 = tpu.concatenate %90, %91, %92 in 2 : vector<16x16x128xf32>, vector<16x16x128xf32>, vector<16x16x128xf32> -> vector<16x16x384xf32>
    %94 = vector.shape_cast %93 : vector<16x16x384xf32> to vector<256x384xf32>
    %95 = arith.truncf %94 : vector<256x384xf32> to vector<256x384xbf16>
    %c2_111 = arith.constant 2 : index
    %c0_112 = arith.constant 0 : index
    %c0_113 = arith.constant 0 : index
    %96 = vector.load %arg4[%c2_111, %c0_112, %c0_113] : memref<3x384x128xbf16, #tpu.memory_space<vmem>>, vector<1x384x128xbf16>
    %97 = vector.shape_cast %96 : vector<1x384x128xbf16> to vector<384x128xbf16>
    %cst_114 = arith.constant dense<0.000000e+00> : vector<256x128xf32>
    %98 = tpu.matmul %95, %97, %cst_114 {dimension_numbers = #tpu.dot_dimension_numbers<[1], [0], [0], [1], [0, 0, 1, 1], [], []>} : vector<256x384xbf16>, vector<384x128xbf16>, vector<256x128xf32> -> vector<256x128xf32>
    %99 = arith.addf %89, %98 : vector<256x128xf32>
    %c0_115 = arith.constant 0 : index
    %c0_116 = arith.constant 0 : index
    %100 = vector.load %arg5[%c0_115, %c0_116] : memref<1x128xf32, #tpu.memory_space<vmem>>, vector<1x128xf32>
    %101 = vector.broadcast %100 : vector<1x128xf32> to vector<256x128xf32>
    %102 = arith.addf %99, %101 : vector<256x128xf32>
    %cst_117 = arith.constant 0.000000e+00 : f32
    %103 = vector.broadcast %cst_117 : f32 to vector<256x128xf32>
    %104 = arith.maximumf %102, %103 : vector<256x128xf32>
    %105 = vector.shape_cast %104 : vector<256x128xf32> to vector<16x16x128xf32>
    %106 = vector.shape_cast %105 : vector<16x16x128xf32> to vector<8x2x16x128xf32>
    %107 = vector.extract_strided_slice %106 {offsets = [0, 0, 0, 0], sizes = [8, 1, 16, 128], strides = [1, 1, 1, 1]} : vector<8x2x16x128xf32> to vector<8x1x16x128xf32>
    %108 = vector.shape_cast %107 : vector<8x1x16x128xf32> to vector<8x16x128xf32>
    %109 = vector.extract_strided_slice %106 {offsets = [0, 1, 0, 0], sizes = [8, 1, 16, 128], strides = [1, 1, 1, 1]} : vector<8x2x16x128xf32> to vector<8x1x16x128xf32>
    %110 = vector.shape_cast %109 : vector<8x1x16x128xf32> to vector<8x16x128xf32>
    %111 = arith.maximumf %108, %110 : vector<8x16x128xf32>
    %112 = vector.shape_cast %111 : vector<8x16x128xf32> to vector<8x8x2x128xf32>
    %113 = vector.extract_strided_slice %112 {offsets = [0, 0, 0, 0], sizes = [8, 8, 1, 128], strides = [1, 1, 1, 1]} : vector<8x8x2x128xf32> to vector<8x8x1x128xf32>
    %114 = vector.shape_cast %113 : vector<8x8x1x128xf32> to vector<8x8x128xf32>
    %115 = vector.extract_strided_slice %112 {offsets = [0, 0, 1, 0], sizes = [8, 8, 1, 128], strides = [1, 1, 1, 1]} : vector<8x8x2x128xf32> to vector<8x8x1x128xf32>
    %116 = vector.shape_cast %115 : vector<8x8x1x128xf32> to vector<8x8x128xf32>
    %117 = arith.maximumf %114, %116 : vector<8x8x128xf32>
    %cst_118 = arith.constant 0.000000e+00 : f32
    %118 = vector.broadcast %cst_118 : f32 to vector<10x10x128xf32>
    %c0_119 = arith.constant 0 : index
    %c0_120 = arith.constant 0 : index
    %c0_121 = arith.constant 0 : index
    %119 = vector.load %arg13[%c0_119, %c0_120, %c0_121] : memref<10x10x128xf32, #tpu.memory_space<vmem>>, vector<10x10x128xf32>
    tpu.vector_store %arg13[%c0_119, %c0_120, %c0_121], %118 {strides = array<i32>} : memref<10x10x128xf32, #tpu.memory_space<vmem>>, vector<10x10x128xf32>,
    %c1_122 = arith.constant 1 : index
    %c1_123 = arith.constant 1 : index
    %c0_124 = arith.constant 0 : index
    %120 = vector.load %arg13[%c1_122, %c1_123, %c0_124] : memref<10x10x128xf32, #tpu.memory_space<vmem>>, vector<8x8x128xf32>
    tpu.vector_store %arg13[%c1_122, %c1_123, %c0_124], %117 {strides = array<i32>} : memref<10x10x128xf32, #tpu.memory_space<vmem>>, vector<8x8x128xf32>,
    %cst_125 = arith.constant 0.000000e+00 : f32
    %121 = vector.broadcast %cst_125 : f32 to vector<64x128xf32>
    %c0_126 = arith.constant 0 : index
    %c0_127 = arith.constant 0 : index
    %c0_128 = arith.constant 0 : index
    %122 = vector.load %arg13[%c0_126, %c0_127, %c0_128] : memref<10x10x128xf32, #tpu.memory_space<vmem>>, vector<8x8x128xf32>
    %c0_129 = arith.constant 0 : index
    %c1_130 = arith.constant 1 : index
    %c0_131 = arith.constant 0 : index
    %123 = vector.load %arg13[%c0_129, %c1_130, %c0_131] : memref<10x10x128xf32, #tpu.memory_space<vmem>>, vector<8x8x128xf32>
    %c0_132 = arith.constant 0 : index
    %c2_133 = arith.constant 2 : index
    %c0_134 = arith.constant 0 : index
    %124 = vector.load %arg13[%c0_132, %c2_133, %c0_134] : memref<10x10x128xf32, #tpu.memory_space<vmem>>, vector<8x8x128xf32>
    %125 = tpu.concatenate %122, %123, %124 in 2 : vector<8x8x128xf32>, vector<8x8x128xf32>, vector<8x8x128xf32> -> vector<8x8x384xf32>
    %126 = vector.shape_cast %125 : vector<8x8x384xf32> to vector<64x384xf32>
    %127 = arith.truncf %126 : vector<64x384xf32> to vector<64x384xbf16>
    %c0_135 = arith.constant 0 : index
    %c0_136 = arith.constant 0 : index
    %c0_137 = arith.constant 0 : index
    %128 = vector.load %arg6[%c0_135, %c0_136, %c0_137] : memref<3x384x128xbf16, #tpu.memory_space<vmem>>, vector<1x384x128xbf16>
    %129 = vector.shape_cast %128 : vector<1x384x128xbf16> to vector<384x128xbf16>
    %cst_138 = arith.constant dense<0.000000e+00> : vector<64x128xf32>
    %130 = tpu.matmul %127, %129, %cst_138 {dimension_numbers = #tpu.dot_dimension_numbers<[1], [0], [0], [1], [0, 0, 1, 1], [], []>} : vector<64x384xbf16>, vector<384x128xbf16>, vector<64x128xf32> -> vector<64x128xf32>
    %131 = arith.addf %121, %130 : vector<64x128xf32>
    %c1_139 = arith.constant 1 : index
    %c0_140 = arith.constant 0 : index
    %c0_141 = arith.constant 0 : index
    %132 = vector.load %arg13[%c1_139, %c0_140, %c0_141] : memref<10x10x128xf32, #tpu.memory_space<vmem>>, vector<8x8x128xf32>
    %c1_142 = arith.constant 1 : index
    %c1_143 = arith.constant 1 : index
    %c0_144 = arith.constant 0 : index
    %133 = vector.load %arg13[%c1_142, %c1_143, %c0_144] : memref<10x10x128xf32, #tpu.memory_space<vmem>>, vector<8x8x128xf32>
    %c1_145 = arith.constant 1 : index
    %c2_146 = arith.constant 2 : index
    %c0_147 = arith.constant 0 : index
    %134 = vector.load %arg13[%c1_145, %c2_146, %c0_147] : memref<10x10x128xf32, #tpu.memory_space<vmem>>, vector<8x8x128xf32>
    %135 = tpu.concatenate %132, %133, %134 in 2 : vector<8x8x128xf32>, vector<8x8x128xf32>, vector<8x8x128xf32> -> vector<8x8x384xf32>
    %136 = vector.shape_cast %135 : vector<8x8x384xf32> to vector<64x384xf32>
    %137 = arith.truncf %136 : vector<64x384xf32> to vector<64x384xbf16>
    %c1_148 = arith.constant 1 : index
    %c0_149 = arith.constant 0 : index
    %c0_150 = arith.constant 0 : index
    %138 = vector.load %arg6[%c1_148, %c0_149, %c0_150] : memref<3x384x128xbf16, #tpu.memory_space<vmem>>, vector<1x384x128xbf16>
    %139 = vector.shape_cast %138 : vector<1x384x128xbf16> to vector<384x128xbf16>
    %cst_151 = arith.constant dense<0.000000e+00> : vector<64x128xf32>
    %140 = tpu.matmul %137, %139, %cst_151 {dimension_numbers = #tpu.dot_dimension_numbers<[1], [0], [0], [1], [0, 0, 1, 1], [], []>} : vector<64x384xbf16>, vector<384x128xbf16>, vector<64x128xf32> -> vector<64x128xf32>
    %141 = arith.addf %131, %140 : vector<64x128xf32>
    %c2_152 = arith.constant 2 : index
    %c0_153 = arith.constant 0 : index
    %c0_154 = arith.constant 0 : index
    %142 = vector.load %arg13[%c2_152, %c0_153, %c0_154] : memref<10x10x128xf32, #tpu.memory_space<vmem>>, vector<8x8x128xf32>
    %c2_155 = arith.constant 2 : index
    %c1_156 = arith.constant 1 : index
    %c0_157 = arith.constant 0 : index
    %143 = vector.load %arg13[%c2_155, %c1_156, %c0_157] : memref<10x10x128xf32, #tpu.memory_space<vmem>>, vector<8x8x128xf32>
    %c2_158 = arith.constant 2 : index
    %c2_159 = arith.constant 2 : index
    %c0_160 = arith.constant 0 : index
    %144 = vector.load %arg13[%c2_158, %c2_159, %c0_160] : memref<10x10x128xf32, #tpu.memory_space<vmem>>, vector<8x8x128xf32>
    %145 = tpu.concatenate %142, %143, %144 in 2 : vector<8x8x128xf32>, vector<8x8x128xf32>, vector<8x8x128xf32> -> vector<8x8x384xf32>
    %146 = vector.shape_cast %145 : vector<8x8x384xf32> to vector<64x384xf32>
    %147 = arith.truncf %146 : vector<64x384xf32> to vector<64x384xbf16>
    %c2_161 = arith.constant 2 : index
    %c0_162 = arith.constant 0 : index
    %c0_163 = arith.constant 0 : index
    %148 = vector.load %arg6[%c2_161, %c0_162, %c0_163] : memref<3x384x128xbf16, #tpu.memory_space<vmem>>, vector<1x384x128xbf16>
    %149 = vector.shape_cast %148 : vector<1x384x128xbf16> to vector<384x128xbf16>
    %cst_164 = arith.constant dense<0.000000e+00> : vector<64x128xf32>
    %150 = tpu.matmul %147, %149, %cst_164 {dimension_numbers = #tpu.dot_dimension_numbers<[1], [0], [0], [1], [0, 0, 1, 1], [], []>} : vector<64x384xbf16>, vector<384x128xbf16>, vector<64x128xf32> -> vector<64x128xf32>
    %151 = arith.addf %141, %150 : vector<64x128xf32>
    %c0_165 = arith.constant 0 : index
    %c0_166 = arith.constant 0 : index
    %152 = vector.load %arg7[%c0_165, %c0_166] : memref<1x128xf32, #tpu.memory_space<vmem>>, vector<1x128xf32>
    %153 = vector.broadcast %152 : vector<1x128xf32> to vector<64x128xf32>
    %154 = arith.addf %151, %153 : vector<64x128xf32>
    %cst_167 = arith.constant 0.000000e+00 : f32
    %155 = vector.broadcast %cst_167 : f32 to vector<64x128xf32>
    %156 = arith.maximumf %154, %155 : vector<64x128xf32>
    %157 = vector.shape_cast %156 : vector<64x128xf32> to vector<8x8x128xf32>
    %cst_168 = arith.constant 0.000000e+00 : f32
    %158 = vector.broadcast %cst_168 : f32 to vector<10x10x128xf32>
    %c0_169 = arith.constant 0 : index
    %c0_170 = arith.constant 0 : index
    %c0_171 = arith.constant 0 : index
    %159 = vector.load %arg14[%c0_169, %c0_170, %c0_171] : memref<10x10x128xf32, #tpu.memory_space<vmem>>, vector<10x10x128xf32>
    tpu.vector_store %arg14[%c0_169, %c0_170, %c0_171], %158 {strides = array<i32>} : memref<10x10x128xf32, #tpu.memory_space<vmem>>, vector<10x10x128xf32>,
    %c1_172 = arith.constant 1 : index
    %c1_173 = arith.constant 1 : index
    %c0_174 = arith.constant 0 : index
    %160 = vector.load %arg14[%c1_172, %c1_173, %c0_174] : memref<10x10x128xf32, #tpu.memory_space<vmem>>, vector<8x8x128xf32>
    tpu.vector_store %arg14[%c1_172, %c1_173, %c0_174], %157 {strides = array<i32>} : memref<10x10x128xf32, #tpu.memory_space<vmem>>, vector<8x8x128xf32>,
    %cst_175 = arith.constant 0.000000e+00 : f32
    %161 = vector.broadcast %cst_175 : f32 to vector<64x128xf32>
    %c0_176 = arith.constant 0 : index
    %c0_177 = arith.constant 0 : index
    %c0_178 = arith.constant 0 : index
    %162 = vector.load %arg14[%c0_176, %c0_177, %c0_178] : memref<10x10x128xf32, #tpu.memory_space<vmem>>, vector<8x8x128xf32>
    %c0_179 = arith.constant 0 : index
    %c1_180 = arith.constant 1 : index
    %c0_181 = arith.constant 0 : index
    %163 = vector.load %arg14[%c0_179, %c1_180, %c0_181] : memref<10x10x128xf32, #tpu.memory_space<vmem>>, vector<8x8x128xf32>
    %c0_182 = arith.constant 0 : index
    %c2_183 = arith.constant 2 : index
    %c0_184 = arith.constant 0 : index
    %164 = vector.load %arg14[%c0_182, %c2_183, %c0_184] : memref<10x10x128xf32, #tpu.memory_space<vmem>>, vector<8x8x128xf32>
    %165 = tpu.concatenate %162, %163, %164 in 2 : vector<8x8x128xf32>, vector<8x8x128xf32>, vector<8x8x128xf32> -> vector<8x8x384xf32>
    %166 = vector.shape_cast %165 : vector<8x8x384xf32> to vector<64x384xf32>
    %167 = arith.truncf %166 : vector<64x384xf32> to vector<64x384xbf16>
    %c0_185 = arith.constant 0 : index
    %c0_186 = arith.constant 0 : index
    %c0_187 = arith.constant 0 : index
    %168 = vector.load %arg8[%c0_185, %c0_186, %c0_187] : memref<3x384x128xbf16, #tpu.memory_space<vmem>>, vector<1x384x128xbf16>
    %169 = vector.shape_cast %168 : vector<1x384x128xbf16> to vector<384x128xbf16>
    %cst_188 = arith.constant dense<0.000000e+00> : vector<64x128xf32>
    %170 = tpu.matmul %167, %169, %cst_188 {dimension_numbers = #tpu.dot_dimension_numbers<[1], [0], [0], [1], [0, 0, 1, 1], [], []>} : vector<64x384xbf16>, vector<384x128xbf16>, vector<64x128xf32> -> vector<64x128xf32>
    %171 = arith.addf %161, %170 : vector<64x128xf32>
    %c1_189 = arith.constant 1 : index
    %c0_190 = arith.constant 0 : index
    %c0_191 = arith.constant 0 : index
    %172 = vector.load %arg14[%c1_189, %c0_190, %c0_191] : memref<10x10x128xf32, #tpu.memory_space<vmem>>, vector<8x8x128xf32>
    %c1_192 = arith.constant 1 : index
    %c1_193 = arith.constant 1 : index
    %c0_194 = arith.constant 0 : index
    %173 = vector.load %arg14[%c1_192, %c1_193, %c0_194] : memref<10x10x128xf32, #tpu.memory_space<vmem>>, vector<8x8x128xf32>
    %c1_195 = arith.constant 1 : index
    %c2_196 = arith.constant 2 : index
    %c0_197 = arith.constant 0 : index
    %174 = vector.load %arg14[%c1_195, %c2_196, %c0_197] : memref<10x10x128xf32, #tpu.memory_space<vmem>>, vector<8x8x128xf32>
    %175 = tpu.concatenate %172, %173, %174 in 2 : vector<8x8x128xf32>, vector<8x8x128xf32>, vector<8x8x128xf32> -> vector<8x8x384xf32>
    %176 = vector.shape_cast %175 : vector<8x8x384xf32> to vector<64x384xf32>
    %177 = arith.truncf %176 : vector<64x384xf32> to vector<64x384xbf16>
    %c1_198 = arith.constant 1 : index
    %c0_199 = arith.constant 0 : index
    %c0_200 = arith.constant 0 : index
    %178 = vector.load %arg8[%c1_198, %c0_199, %c0_200] : memref<3x384x128xbf16, #tpu.memory_space<vmem>>, vector<1x384x128xbf16>
    %179 = vector.shape_cast %178 : vector<1x384x128xbf16> to vector<384x128xbf16>
    %cst_201 = arith.constant dense<0.000000e+00> : vector<64x128xf32>
    %180 = tpu.matmul %177, %179, %cst_201 {dimension_numbers = #tpu.dot_dimension_numbers<[1], [0], [0], [1], [0, 0, 1, 1], [], []>} : vector<64x384xbf16>, vector<384x128xbf16>, vector<64x128xf32> -> vector<64x128xf32>
    %181 = arith.addf %171, %180 : vector<64x128xf32>
    %c2_202 = arith.constant 2 : index
    %c0_203 = arith.constant 0 : index
    %c0_204 = arith.constant 0 : index
    %182 = vector.load %arg14[%c2_202, %c0_203, %c0_204] : memref<10x10x128xf32, #tpu.memory_space<vmem>>, vector<8x8x128xf32>
    %c2_205 = arith.constant 2 : index
    %c1_206 = arith.constant 1 : index
    %c0_207 = arith.constant 0 : index
    %183 = vector.load %arg14[%c2_205, %c1_206, %c0_207] : memref<10x10x128xf32, #tpu.memory_space<vmem>>, vector<8x8x128xf32>
    %c2_208 = arith.constant 2 : index
    %c2_209 = arith.constant 2 : index
    %c0_210 = arith.constant 0 : index
    %184 = vector.load %arg14[%c2_208, %c2_209, %c0_210] : memref<10x10x128xf32, #tpu.memory_space<vmem>>, vector<8x8x128xf32>
    %185 = tpu.concatenate %182, %183, %184 in 2 : vector<8x8x128xf32>, vector<8x8x128xf32>, vector<8x8x128xf32> -> vector<8x8x384xf32>
    %186 = vector.shape_cast %185 : vector<8x8x384xf32> to vector<64x384xf32>
    %187 = arith.truncf %186 : vector<64x384xf32> to vector<64x384xbf16>
    %c2_211 = arith.constant 2 : index
    %c0_212 = arith.constant 0 : index
    %c0_213 = arith.constant 0 : index
    %188 = vector.load %arg8[%c2_211, %c0_212, %c0_213] : memref<3x384x128xbf16, #tpu.memory_space<vmem>>, vector<1x384x128xbf16>
    %189 = vector.shape_cast %188 : vector<1x384x128xbf16> to vector<384x128xbf16>
    %cst_214 = arith.constant dense<0.000000e+00> : vector<64x128xf32>
    %190 = tpu.matmul %187, %189, %cst_214 {dimension_numbers = #tpu.dot_dimension_numbers<[1], [0], [0], [1], [0, 0, 1, 1], [], []>} : vector<64x384xbf16>, vector<384x128xbf16>, vector<64x128xf32> -> vector<64x128xf32>
    %191 = arith.addf %181, %190 : vector<64x128xf32>
    %c0_215 = arith.constant 0 : index
    %c0_216 = arith.constant 0 : index
    %192 = vector.load %arg9[%c0_215, %c0_216] : memref<1x128xf32, #tpu.memory_space<vmem>>, vector<1x128xf32>
    %193 = vector.broadcast %192 : vector<1x128xf32> to vector<64x128xf32>
    %194 = arith.addf %191, %193 : vector<64x128xf32>
    %cst_217 = arith.constant 0.000000e+00 : f32
    %195 = vector.broadcast %cst_217 : f32 to vector<64x128xf32>
    %196 = arith.maximumf %194, %195 : vector<64x128xf32>
    %197 = vector.shape_cast %196 : vector<64x128xf32> to vector<8x8x128xf32>
    %198 = vector.shape_cast %197 : vector<8x8x128xf32> to vector<4x2x8x128xf32>
    %199 = vector.extract_strided_slice %198 {offsets = [0, 0, 0, 0], sizes = [4, 1, 8, 128], strides = [1, 1, 1, 1]} : vector<4x2x8x128xf32> to vector<4x1x8x128xf32>
    %200 = vector.shape_cast %199 : vector<4x1x8x128xf32> to vector<4x8x128xf32>
    %201 = vector.extract_strided_slice %198 {offsets = [0, 1, 0, 0], sizes = [4, 1, 8, 128], strides = [1, 1, 1, 1]} : vector<4x2x8x128xf32> to vector<4x1x8x128xf32>
    %202 = vector.shape_cast %201 : vector<4x1x8x128xf32> to vector<4x8x128xf32>
    %203 = arith.maximumf %200, %202 : vector<4x8x128xf32>
    %204 = vector.shape_cast %203 : vector<4x8x128xf32> to vector<4x4x2x128xf32>
    %205 = vector.extract_strided_slice %204 {offsets = [0, 0, 0, 0], sizes = [4, 4, 1, 128], strides = [1, 1, 1, 1]} : vector<4x4x2x128xf32> to vector<4x4x1x128xf32>
    %206 = vector.shape_cast %205 : vector<4x4x1x128xf32> to vector<4x4x128xf32>
    %207 = vector.extract_strided_slice %204 {offsets = [0, 0, 1, 0], sizes = [4, 4, 1, 128], strides = [1, 1, 1, 1]} : vector<4x4x2x128xf32> to vector<4x4x1x128xf32>
    %208 = vector.shape_cast %207 : vector<4x4x1x128xf32> to vector<4x4x128xf32>
    %209 = arith.maximumf %206, %208 : vector<4x4x128xf32>
    %210 = vector.extract_strided_slice %209 {offsets = [0, 0, 0], sizes = [4, 4, 16], strides = [1, 1, 1]} : vector<4x4x128xf32> to vector<4x4x16xf32>
    %211 = vector.shape_cast %210 : vector<4x4x16xf32> to vector<1x16x16xf32>
    %c0_218 = arith.constant 0 : index
    %c0_219 = arith.constant 0 : index
    %c0_220 = arith.constant 0 : index
    %212 = vector.load %arg10[%c0_218, %c0_219, %c0_220] : memref<1x16x16xf32, #tpu.memory_space<vmem>>, vector<1x16x16xf32>
    tpu.vector_store %arg10[%c0_218, %c0_219, %c0_220], %211 {strides = array<i32>} : memref<1x16x16xf32, #tpu.memory_space<vmem>>, vector<1x16x16xf32>,
    return
  }
  func.func @transform_0(%arg0: i32) -> (i32, i32, i32, i32) {
    %c0_i32 = arith.constant 0 : i32
    %c0_i32_0 = arith.constant 0 : i32
    %c0_i32_1 = arith.constant 0 : i32
    %c0_i32_2 = arith.constant 0 : i32
    return %arg0, %c0_i32, %c0_i32_0, %c0_i32_1 : i32, i32, i32, i32
  }
  func.func @transform_1(%arg0: i32) -> (i32, i32, i32) {
    %c0_i32 = arith.constant 0 : i32
    %c0_i32_0 = arith.constant 0 : i32
    %c0_i32_1 = arith.constant 0 : i32
    %c0_i32_2 = arith.constant 0 : i32
    return %c0_i32, %c0_i32_0, %c0_i32_1 : i32, i32, i32
  }
  func.func @transform_2(%arg0: i32) -> (i32, i32) {
    %c0_i32 = arith.constant 0 : i32
    %c0_i32_0 = arith.constant 0 : i32
    %c0_i32_1 = arith.constant 0 : i32
    return %c0_i32, %c0_i32_0 : i32, i32
  }
  func.func @transform_3(%arg0: i32) -> (i32, i32, i32) {
    %c0_i32 = arith.constant 0 : i32
    %c0_i32_0 = arith.constant 0 : i32
    %c0_i32_1 = arith.constant 0 : i32
    %c0_i32_2 = arith.constant 0 : i32
    return %c0_i32, %c0_i32_0, %c0_i32_1 : i32, i32, i32
  }
  func.func @transform_4(%arg0: i32) -> (i32, i32) {
    %c0_i32 = arith.constant 0 : i32
    %c0_i32_0 = arith.constant 0 : i32
    %c0_i32_1 = arith.constant 0 : i32
    return %c0_i32, %c0_i32_0 : i32, i32
  }
  func.func @transform_5(%arg0: i32) -> (i32, i32, i32) {
    %c0_i32 = arith.constant 0 : i32
    %c0_i32_0 = arith.constant 0 : i32
    %c0_i32_1 = arith.constant 0 : i32
    %c0_i32_2 = arith.constant 0 : i32
    return %c0_i32, %c0_i32_0, %c0_i32_1 : i32, i32, i32
  }
  func.func @transform_6(%arg0: i32) -> (i32, i32) {
    %c0_i32 = arith.constant 0 : i32
    %c0_i32_0 = arith.constant 0 : i32
    %c0_i32_1 = arith.constant 0 : i32
    return %c0_i32, %c0_i32_0 : i32, i32
  }
  func.func @transform_7(%arg0: i32) -> (i32, i32, i32) {
    %c0_i32 = arith.constant 0 : i32
    %c0_i32_0 = arith.constant 0 : i32
    %c0_i32_1 = arith.constant 0 : i32
    %c0_i32_2 = arith.constant 0 : i32
    return %c0_i32, %c0_i32_0, %c0_i32_1 : i32, i32, i32
  }
  func.func @transform_8(%arg0: i32) -> (i32, i32) {
    %c0_i32 = arith.constant 0 : i32
    %c0_i32_0 = arith.constant 0 : i32
    %c0_i32_1 = arith.constant 0 : i32
    return %c0_i32, %c0_i32_0 : i32, i32
  }
  func.func @transform_9(%arg0: i32) -> (i32, i32, i32) {
    %c0_i32 = arith.constant 0 : i32
    %c0_i32_0 = arith.constant 0 : i32
    %c0_i32_1 = arith.constant 0 : i32
    return %arg0, %c0_i32, %c0_i32_0 : i32, i32, i32
  }
}

</mosaic_0001>

<llo_original>
// kernel: tpu_custom_call.1
$region0: #{tpu_custom_call.1}
  #allocation0 [shape = 'u32[]', space=smem, size = 0x4, offset = 0x4, fixed_abs, tag = 'smem constant byte address 0x4 - core index']
  #allocation1 [shape = 'u32[144,128]{1,0:T(1,128)}', space=vmem, size = 0x12000, scoped, tag = 'internal scratch']
  #allocation2 [shape = 'f32[18,18,3]{2,1,0:T(8,128)}', space=vmem, size = 0x36000, scoped, tag = 'scratch operand']
  #allocation3 [shape = 'f32[18,18,128]{2,1,0:T(8,128)}', space=vmem, size = 0x36000, scoped, tag = 'scratch operand']
  #allocation4 [shape = 'f32[10,10,128]{2,1,0:T(8,128)}', space=vmem, size = 0x14000, scoped, tag = 'scratch operand']
  #allocation5 [shape = 'f32[10,10,128]{2,1,0:T(8,128)}', space=vmem, size = 0x14000, scoped, tag = 'scratch operand']
  %s0 = inlined_call_operand.vmem [shape: f32[2,16,16,3], index: 0, kind: input, shape index: {}]
  %s1 = inlined_call_operand.vmem [shape: f32[9,3,128], index: 1, kind: input, shape index: {}]
  %s2 = inlined_call_operand.vmem [shape: f32[1,128], index: 2, kind: input, shape index: {}]
  %s3 = inlined_call_operand.vmem [shape: bf16[3,384,128], index: 3, kind: input, shape index: {}]
  %s4 = inlined_call_operand.vmem [shape: f32[1,128], index: 4, kind: input, shape index: {}]
  %s5 = inlined_call_operand.hbm [shape: bf16[3,384,128], index: 5, kind: input, shape index: {}]
  %s6 = inlined_call_operand.vmem [shape: f32[1,128], index: 6, kind: input, shape index: {}]
  %s7 = inlined_call_operand.hbm [shape: bf16[3,384,128], index: 7, kind: input, shape index: {}]
  %s8 = inlined_call_operand.vmem [shape: f32[1,128], index: 8, kind: input, shape index: {}]
  %s9 = inlined_call_operand.hbm [shape: f32[2,16,16], index: 9, kind: output, shape index: {}]
  %s10 = sld [smem:[#allocation0]]
  $region77: #{tpu_custom_call.1} parent=0
    _
  %s12 = ssub.s32 1, %s10
  %s13 = scalar_select 0, %s12, %s10
  $region1: #{tpu_custom_call.1} parent=0
    #allocation6 [shape = 'u8[294912]{0}', space=vmem, size = 0x48000, scoped, tag = 'input window, operand 5, single buffered']
    #allocation7 [shape = 's32[2]{0}', space=sflag, size = 0x8, scoped, tag = 'scoped memory for tpu_custom_call.1']
    #allocation8 [shape = 's32[2]{0}', space=sflag, size = 0x8, scoped, tag = 'scoped memory for tpu_custom_call.1']
    #allocation9 [shape = 'u8[294912]{0}', space=vmem, size = 0x48000, scoped, tag = 'input window, operand 7, single buffered']
    #allocation10 [shape = 's32[1]{0}', space=sflag, size = 0x4, scoped, tag = 'scoped memory for tpu_custom_call.1']
    #allocation11 [shape = 'u8[16384]{0}', space=vmem, size = 0x4000, scoped, tag = 'output window, operand 0']
    %14 = vsyncpa [#allocation7], 0
    %15 = vsyncpa [#allocation10], 0
    %16 = vsyncpa [#allocation8], 0
    %s17 = scalar_lea.sflag [#allocation8], 1
    %18 = vsyncpa %s17, 0
    loop: start=0, step=1, limit=4
    $region2: #{tpu_custom_call.1} parent=1 // loop_pre_header
      _
    $region3: #{tpu_custom_call.1} parent=1 // loop_header
      %s20 = sphi 0, %s24
      %p21 = scmp.ge.s32.totalorder %s20, 4
      %s30 = sphi 0, %s32
      %s33 = sphi 0, %s30
      %s34 = sphi 0, %s33
      %s50 = sphi 0, %s34
      %s54 = sphi 0, %s54
      %s56 = sphi 0, %s54
      %s57 = sphi 0, %s56
      %s71 = sphi 0, %s57
      %s75 = sphi 0, %s75
      %s77 = sphi 0, %s75
      %s78 = sphi 0, %s77
      %s92 = sphi 0, %s78
      %s96 = sphi 0, %s96
      %s98 = sphi 0, %s96
      %s99 = sphi 0, %s98
      %s113 = sphi 0, %s99
      %s117 = sphi 0, %s117
      %s119 = sphi 0, %s117
      %s120 = sphi 0, %s119
      %s134 = sphi 0, %s120
      %s138 = sphi 0, %s138
      %s140 = sphi 0, %s138
      %s141 = sphi 0, %s140
      %s155 = sphi 0, %s141
      %s159 = sphi 0, %s159
      %s161 = sphi 0, %s159
      %s162 = sphi 0, %s161
      %s176 = sphi 0, %s162
      %s180 = sphi 0, %s180
      %s182 = sphi 0, %s180
      %s183 = sphi 0, %s182
      %s197 = sphi 0, %s183
      %s201 = sphi 0, %s201
      %s203 = sphi 0, %s201
      %s204 = sphi 0, %s203
      %s218 = sphi 0, %s204
      %s224 = sphi 0, %s226
      %s227 = sphi 0, %s224
      %s228 = sphi 0, %s227
      %s244 = sphi 0, %s228
    $region4: #{tpu_custom_call.1} parent=1 // loop_header_branch
      %23 = sbr.rel (%p21) target = $region8
    $region5: #{tpu_custom_call.1} parent=1 // loop_body
      %s25 = ssub.s32 %s20, 1
      %s26 = ssub.s32 %s20, 2
      %s27 = sadd.s32 %s20, 1
      %s28 = ssub.s32 %s20, %s27
      %p29 = scmp.eq.s32.totalorder %s28, 0
      %s31 = sadd.s32 %s30, 1
      %s32 = scalar_select %p29, %s30, %s31
      %p35 = pneg %p29
      %p36 = scmp.eq.s32.totalorder %s20, 1
      %p37 = por %p35, %p36
      %p38 = scmp.ne.s32.totalorder %s30, %s33
      %p39 = scmp.eq.s32.totalorder %s20, 0
      %p40 = por %p38, %p39
      %p41 = scmp.ne.s32.totalorder %s30, %s33
      %p42 = scmp.eq.s32.totalorder %s25, 1
      %p43 = por %p41, %p42
      %p44 = scmp.ne.s32.totalorder %s33, %s34
      %p45 = scmp.eq.s32.totalorder %s25, 0
      %p46 = por %p44, %p45
      %p47 = scmp.ne.s32.totalorder %s33, %s34
      %p48 = scmp.eq.s32.totalorder %s26, 1
      %p49 = por %p47, %p48
      %p51 = scmp.ne.s32.totalorder %s34, %s50
      %p52 = scmp.eq.s32.totalorder %s26, 0
      %p53 = por %p51, %p52
      %s55 = sadd.s32 %s54, 1
      %p58 = scmp.eq.s32.totalorder %s20, 1
      %p59 = scmp.ne.s32.totalorder %s54, %s56
      %p60 = scmp.eq.s32.totalorder %s20, 0
      %p61 = por %p59, %p60
      %p62 = scmp.ne.s32.totalorder %s54, %s56
      %p63 = scmp.eq.s32.totalorder %s25, 1
      %p64 = por %p62, %p63
      %p65 = scmp.ne.s32.totalorder %s56, %s57
      %p66 = scmp.eq.s32.totalorder %s25, 0
      %p67 = por %p65, %p66
      %p68 = scmp.ne.s32.totalorder %s56, %s57
      %p69 = scmp.eq.s32.totalorder %s26, 1
      %p70 = por %p68, %p69
      %p72 = scmp.ne.s32.totalorder %s57, %s71
      %p73 = scmp.eq.s32.totalorder %s26, 0
      %p74 = por %p72, %p73
      %s76 = sadd.s32 %s75, 1
      %p79 = scmp.eq.s32.totalorder %s20, 1
      %p80 = scmp.ne.s32.totalorder %s75, %s77
      %p81 = scmp.eq.s32.totalorder %s20, 0
      %p82 = por %p80, %p81
      %p83 = scmp.ne.s32.totalorder %s75, %s77
      %p84 = scmp.eq.s32.totalorder %s25, 1
      %p85 = por %p83, %p84
      %p86 = scmp.ne.s32.totalorder %s77, %s78
      %p87 = scmp.eq.s32.totalorder %s25, 0
      %p88 = por %p86, %p87
      %p89 = scmp.ne.s32.totalorder %s77, %s78
      %p90 = scmp.eq.s32.totalorder %s26, 1
      %p91 = por %p89, %p90
      %p93 = scmp.ne.s32.totalorder %s78, %s92
      %p94 = scmp.eq.s32.totalorder %s26, 0
      %p95 = por %p93, %p94
      %s97 = sadd.s32 %s96, 1
      %p100 = scmp.eq.s32.totalorder %s20, 1
      %p101 = scmp.ne.s32.totalorder %s96, %s98
      %p102 = scmp.eq.s32.totalorder %s20, 0
      %p103 = por %p101, %p102
      %p104 = scmp.ne.s32.totalorder %s96, %s98
      %p105 = scmp.eq.s32.totalorder %s25, 1
      %p106 = por %p104, %p105
      %p107 = scmp.ne.s32.totalorder %s98, %s99
      %p108 = scmp.eq.s32.totalorder %s25, 0
      %p109 = por %p107, %p108
      %p110 = scmp.ne.s32.totalorder %s98, %s99
      %p111 = scmp.eq.s32.totalorder %s26, 1
      %p112 = por %p110, %p111
      %p114 = scmp.ne.s32.totalorder %s99, %s113
      %p115 = scmp.eq.s32.totalorder %s26, 0
      %p116 = por %p114, %p115
      %s118 = sadd.s32 %s117, 1
      %p121 = scmp.eq.s32.totalorder %s20, 1
      %p122 = scmp.ne.s32.totalorder %s117, %s119
      %p123 = scmp.eq.s32.totalorder %s20, 0
      %p124 = por %p122, %p123
      %p125 = scmp.ne.s32.totalorder %s117, %s119
      %p126 = scmp.eq.s32.totalorder %s25, 1
      %p127 = por %p125, %p126
      %p128 = scmp.ne.s32.totalorder %s119, %s120
      %p129 = scmp.eq.s32.totalorder %s25, 0
      %p130 = por %p128, %p129
      %p131 = scmp.ne.s32.totalorder %s119, %s120
      %p132 = scmp.eq.s32.totalorder %s26, 1
      %p133 = por %p131, %p132
      %p135 = scmp.ne.s32.totalorder %s120, %s134
      %p136 = scmp.eq.s32.totalorder %s26, 0
      %p137 = por %p135, %p136
      %s139 = sadd.s32 %s138, 1
      %p142 = scmp.eq.s32.totalorder %s20, 1
      %p143 = scmp.ne.s32.totalorder %s138, %s140
      %p144 = scmp.eq.s32.totalorder %s20, 0
      %p145 = por %p143, %p144
      %p146 = scmp.ne.s32.totalorder %s138, %s140
      %p147 = scmp.eq.s32.totalorder %s25, 1
      %p148 = por %p146, %p147
      %p149 = scmp.ne.s32.totalorder %s140, %s141
      %p150 = scmp.eq.s32.totalorder %s25, 0
      %p151 = por %p149, %p150
      %p152 = scmp.ne.s32.totalorder %s140, %s141
      %p153 = scmp.eq.s32.totalorder %s26, 1
      %p154 = por %p152, %p153
      %p156 = scmp.ne.s32.totalorder %s141, %s155
      %p157 = scmp.eq.s32.totalorder %s26, 0
      %p158 = por %p156, %p157
      %s160 = sadd.s32 %s159, 1
      %p163 = scmp.eq.s32.totalorder %s20, 1
      %p164 = scmp.ne.s32.totalorder %s159, %s161
      %p165 = scmp.eq.s32.totalorder %s20, 0
      %p166 = por %p164, %p165
      %p167 = scmp.ne.s32.totalorder %s159, %s161
      %p168 = scmp.eq.s32.totalorder %s25, 1
      %p169 = por %p167, %p168
      %p170 = scmp.ne.s32.totalorder %s161, %s162
      %p171 = scmp.eq.s32.totalorder %s25, 0
      %p172 = por %p170, %p171
      %p173 = scmp.ne.s32.totalorder %s161, %s162
      %p174 = scmp.eq.s32.totalorder %s26, 1
      %p175 = por %p173, %p174
      %p177 = scmp.ne.s32.totalorder %s162, %s176
      %p178 = scmp.eq.s32.totalorder %s26, 0
      %p179 = por %p177, %p178
      %s181 = sadd.s32 %s180, 1
      %p184 = scmp.eq.s32.totalorder %s20, 1
      %p185 = scmp.ne.s32.totalorder %s180, %s182
      %p186 = scmp.eq.s32.totalorder %s20, 0
      %p187 = por %p185, %p186
      %p188 = scmp.ne.s32.totalorder %s180, %s182
      %p189 = scmp.eq.s32.totalorder %s25, 1
      %p190 = por %p188, %p189
      %p191 = scmp.ne.s32.totalorder %s182, %s183
      %p192 = scmp.eq.s32.totalorder %s25, 0
      %p193 = por %p191, %p192
      %p194 = scmp.ne.s32.totalorder %s182, %s183
      %p195 = scmp.eq.s32.totalorder %s26, 1
      %p196 = por %p194, %p195
      %p198 = scmp.ne.s32.totalorder %s183, %s197
      %p199 = scmp.eq.s32.totalorder %s26, 0
      %p200 = por %p198, %p199
      %s202 = sadd.s32 %s201, 1
      %p205 = scmp.eq.s32.totalorder %s20, 1
      %p206 = scmp.ne.s32.totalorder %s201, %s203
      %p207 = scmp.eq.s32.totalorder %s20, 0
      %p208 = por %p206, %p207
      %p209 = scmp.ne.s32.totalorder %s201, %s203
      %p210 = scmp.eq.s32.totalorder %s25, 1
      %p211 = por %p209, %p210
      %p212 = scmp.ne.s32.totalorder %s203, %s204
      %p213 = scmp.eq.s32.totalorder %s25, 0
      %p214 = por %p212, %p213
      %p215 = scmp.ne.s32.totalorder %s203, %s204
      %p216 = scmp.eq.s32.totalorder %s26, 1
      %p217 = por %p215, %p216
      %p219 = scmp.ne.s32.totalorder %s204, %s218
      %p220 = scmp.eq.s32.totalorder %s26, 0
      %p221 = por %p219, %p220
      %s222 = ssub.s32 %s20, %s27
      %p223 = scmp.eq.s32.totalorder %s222, 0
      %s225 = sadd.s32 %s224, 1
      %s226 = scalar_select %p223, %s224, %s225
      %p229 = pneg %p223
      %p230 = scmp.eq.s32.totalorder %s20, 1
      %p231 = por %p229, %p230
      %p232 = scmp.ne.s32.totalorder %s224, %s227
      %p233 = scmp.eq.s32.totalorder %s20, 0
      %p234 = por %p232, %p233
      %p235 = scmp.ne.s32.totalorder %s224, %s227
      %p236 = scmp.eq.s32.totalorder %s25, 1
      %p237 = por %p235, %p236
      %p238 = scmp.ne.s32.totalorder %s227, %s228
      %p239 = scmp.eq.s32.totalorder %s25, 0
      %p240 = por %p238, %p239
      %p241 = scmp.ne.s32.totalorder %s227, %s228
      %p242 = scmp.eq.s32.totalorder %s26, 1
      %p243 = por %p241, %p242
      %p245 = scmp.ne.s32.totalorder %s228, %s244
      %p246 = scmp.eq.s32.totalorder %s26, 0
      %p247 = por %p245, %p246
      %p248 = scmp.le.s32.totalorder 1, %s20
      %p249 = scmp.lt.s32.totalorder %s20, 3
      %p250 = pnand %p248, %p249
      %p251 = pneg %p250
      // Predicated region
      $region9: #{tpu_custom_call.1} parent=5 // pred_check
        _
      $region10: #{tpu_custom_call.1} parent=5 // pred_check_branch
        %253 = sbr.rel (%p250) target = $region12
      $region11: #{tpu_custom_call.1} parent=5 // pred_region
        %s254 = ssub.s32 %s20, 1
        // Predicated region
        $region13: #{tpu_custom_call.1} parent=11 // pred_check
          %p255 = pneg %p67
        $region14: #{tpu_custom_call.1} parent=11 // pred_check_branch
          %257 = sbr.rel (%p255) target = $region16
        $region15: #{tpu_custom_call.1} parent=11 // pred_region
          _
        $region16: #{tpu_custom_call.1} parent=11 // pred_fallthru
          _
        // Predicated region
        $region17: #{tpu_custom_call.1} parent=11 // pred_check
          %p258 = pneg %p88
        $region18: #{tpu_custom_call.1} parent=11 // pred_check_branch
          %260 = sbr.rel (%p258) target = $region20
        $region19: #{tpu_custom_call.1} parent=11 // pred_region
          _
        $region20: #{tpu_custom_call.1} parent=11 // pred_fallthru
          _
        // Predicated region
        $region21: #{tpu_custom_call.1} parent=11 // pred_check
          %p261 = pneg %p109
        $region22: #{tpu_custom_call.1} parent=11 // pred_check_branch
          %263 = sbr.rel (%p261) target = $region24
        $region23: #{tpu_custom_call.1} parent=11 // pred_region
          _
        $region24: #{tpu_custom_call.1} parent=11 // pred_fallthru
          _
        // Predicated region
        $region25: #{tpu_custom_call.1} parent=11 // pred_check
          %p264 = pneg %p130
        $region26: #{tpu_custom_call.1} parent=11 // pred_check_branch
          %266 = sbr.rel (%p264) target = $region28
        $region27: #{tpu_custom_call.1} parent=11 // pred_region
          _
        $region28: #{tpu_custom_call.1} parent=11 // pred_fallthru
          _
        // Predicated region
        $region29: #{tpu_custom_call.1} parent=11 // pred_check
          %p267 = pneg %p151
        $region30: #{tpu_custom_call.1} parent=11 // pred_check_branch
          %269 = sbr.rel (%p267) target = $region32
        $region31: #{tpu_custom_call.1} parent=11 // pred_region
          %s271 = ssub.s32 9216, 9216
          %272 = vsyncadd [#allocation7], %s271
          %s273 = sshll.u32 [#allocation6], 4
          %s274 = int_to_ptr.vmem [resolvable:$true] %s273
          %279 = dma.hbm_to_vmem [thread:$0]  %s5, 9216, %s274, [#allocation7], 64, 64, 4
        $region32: #{tpu_custom_call.1} parent=11 // pred_fallthru
          _
        // Predicated region
        $region33: #{tpu_custom_call.1} parent=11 // pred_check
          %p280 = pneg %p172
        $region34: #{tpu_custom_call.1} parent=11 // pred_check_branch
          %282 = sbr.rel (%p280) target = $region36
        $region35: #{tpu_custom_call.1} parent=11 // pred_region
          _
        $region36: #{tpu_custom_call.1} parent=11 // pred_fallthru
          _
        // Predicated region
        $region37: #{tpu_custom_call.1} parent=11 // pred_check
          %p283 = pneg %p193
        $region38: #{tpu_custom_call.1} parent=11 // pred_check_branch
          %285 = sbr.rel (%p283) target = $region40
        $region39: #{tpu_custom_call.1} parent=11 // pred_region
          %s287 = ssub.s32 9216, 9216
          %288 = vsyncadd [#allocation10], %s287
          %s289 = sshll.u32 [#allocation9], 4
          %s290 = int_to_ptr.vmem [resolvable:$true] %s289
          %295 = dma.hbm_to_vmem [thread:$0]  %s7, 9216, %s290, [#allocation10], 64, 64, 4
        $region40: #{tpu_custom_call.1} parent=11 // pred_fallthru
          _
        // Predicated region
        $region41: #{tpu_custom_call.1} parent=11 // pred_check
          %p296 = pneg %p214
        $region42: #{tpu_custom_call.1} parent=11 // pred_check_branch
          %298 = sbr.rel (%p296) target = $region44
        $region43: #{tpu_custom_call.1} parent=11 // pred_region
          _
        $region44: #{tpu_custom_call.1} parent=11 // pred_fallthru
          _
      $region12: #{tpu_custom_call.1} parent=5 // pred_fallthru
        _
      %p299 = scmp.lt.s32.totalorder %s20, 2
      // Predicated region
      $region45: #{tpu_custom_call.1} parent=5 // pred_check
        %p300 = pneg %p299
      $region46: #{tpu_custom_call.1} parent=5 // pred_check_branch
        %302 = sbr.rel (%p300) target = $region48
      $region47: #{tpu_custom_call.1} parent=5 // pred_region
        // Predicated region
        $region49: #{tpu_custom_call.1} parent=47 // pred_check
          %p303 = pneg %p40
        $region50: #{tpu_custom_call.1} parent=47 // pred_check_branch
          %305 = sbr.rel (%p303) target = $region52
        $region51: #{tpu_custom_call.1} parent=47 // pred_region
          %p306 = scmp.lt.s32.totalorder %s20, 1
          %s307 = scalar_select %p306, %s20, 1
          %s308 = smul.addr %s307, 32
          %s309 = smul.addr %s308, 8
          %s310 = scalar_lea.vmem %s0, %s309
        $region52: #{tpu_custom_call.1} parent=47 // pred_fallthru
          _
      $region48: #{tpu_custom_call.1} parent=5 // pred_fallthru
        _
      %p311 = scmp.le.s32.totalorder 1, %s20
      %p312 = scmp.lt.s32.totalorder %s20, 3
      %p313 = pnand %p311, %p312
      %p314 = pneg %p313
      // Predicated region
      $region53: #{tpu_custom_call.1} parent=5 // pred_check
        _
      $region54: #{tpu_custom_call.1} parent=5 // pred_check_branch
        %316 = sbr.rel (%p313) target = $region56
      $region55: #{tpu_custom_call.1} parent=5 // pred_region
        %s317 = ssub.s32 %s20, 1
        // Predicated region
        $region57: #{tpu_custom_call.1} parent=55 // pred_check
          %p318 = pneg %p151
        $region58: #{tpu_custom_call.1} parent=55 // pred_check_branch
          %320 = sbr.rel (%p318) target = $region60
        $region59: #{tpu_custom_call.1} parent=55 // pred_region
          %321 = dma.done [#allocation7], 9216
        $region60: #{tpu_custom_call.1} parent=55 // pred_fallthru
          _
        // Predicated region
        $region61: #{tpu_custom_call.1} parent=55 // pred_check
          %p322 = pneg %p193
        $region62: #{tpu_custom_call.1} parent=55 // pred_check_branch
          %324 = sbr.rel (%p322) target = $region64
        $region63: #{tpu_custom_call.1} parent=55 // pred_region
          %325 = dma.done [#allocation10], 9216
        $region64: #{tpu_custom_call.1} parent=55 // pred_fallthru
          _
        %p326 = scmp.lt.s32.totalorder %s25, 1
        %s327 = scalar_select %p326, %s25, 1
        %s328 = smul.addr %s327, 32
        %s329 = smul.addr %s328, 8
        %s330 = scalar_lea.vmem %s0, %s329
        %p331 = pneg %p46
        %p332 = pneg %p43
        %p333 = pneg %p67
        %p334 = pneg %p64
        %p335 = pneg %p88
        %p336 = pneg %p85
        %p337 = pneg %p109
        %p338 = pneg %p106
        %p339 = pneg %p130
        %p340 = pneg %p127
        %p341 = pneg %p151
        %p342 = pneg %p148
        %p343 = pneg %p172
        %p344 = pneg %p169
        %p345 = pneg %p193
        %p346 = pneg %p190
        %p347 = pneg %p214
        %p348 = pneg %p211
        %p349 = pneg %p240
        %p350 = pneg %p237
        %s351 = sand.u32 %s227, 1
        %s352 = scalar_lea.sflag [#allocation8], %s351
        %s353 = sand.u32 %s227, 1
        %s354 = smul.addr %s353, 16
        %s355 = scalar_lea.vmem [#allocation11], %s354
        %p356 = scmp.lt.s32.totalorder %s25, 1
        %s357 = scalar_select %p356, %s25, 1
        %s358 = smul.addr %s357, 32
        %s359 = smul.addr %s358, 8
        %s360 = scalar_lea.vmem %s0, %s359
        %v362 = vld [vmem:[%s360] sm:$0xff]
        %v363 = vld [vmem:[%s360 + $0x8] sm:$0xff]
        %v364 = vld [vmem:[%s360 + $0x10] sm:$0xff]
        %v365 = vld [vmem:[%s360 + $0x18] sm:$0xff]
        %v366 = vld [vmem:[%s360 + $0x20] sm:$0xff]
        %v367 = vld [vmem:[%s360 + $0x28] sm:$0xff]
        %v368 = vld [vmem:[%s360 + $0x30] sm:$0xff]
        %v369 = vld [vmem:[%s360 + $0x38] sm:$0xff]
        %v370 = vld [vmem:[%s360 + $0x40] sm:$0xff]
        %v371 = vld [vmem:[%s360 + $0x48] sm:$0xff]
        %v372 = vld [vmem:[%s360 + $0x50] sm:$0xff]
        %v373 = vld [vmem:[%s360 + $0x58] sm:$0xff]
        %v374 = vld [vmem:[%s360 + $0x60] sm:$0xff]
        %v375 = vld [vmem:[%s360 + $0x68] sm:$0xff]
        %v376 = vld [vmem:[%s360 + $0x70] sm:$0xff]
        %v377 = vld [vmem:[%s360 + $0x78] sm:$0xff]
        %v378 = vld [vmem:[%s360 + $0x80] sm:$0xff]
        %v379 = vld [vmem:[%s360 + $0x88] sm:$0xff]
        %v380 = vld [vmem:[%s360 + $0x90] sm:$0xff]
        %v381 = vld [vmem:[%s360 + $0x98] sm:$0xff]
        %v382 = vld [vmem:[%s360 + $0xa0] sm:$0xff]
        %v383 = vld [vmem:[%s360 + $0xa8] sm:$0xff]
        %v384 = vld [vmem:[%s360 + $0xb0] sm:$0xff]
        %v385 = vld [vmem:[%s360 + $0xb8] sm:$0xff]
        %v386 = vld [vmem:[%s360 + $0xc0] sm:$0xff]
        %v387 = vld [vmem:[%s360 + $0xc8] sm:$0xff]
        %v388 = vld [vmem:[%s360 + $0xd0] sm:$0xff]
        %v389 = vld [vmem:[%s360 + $0xd8] sm:$0xff]
        %v390 = vld [vmem:[%s360 + $0xe0] sm:$0xff]
        %v391 = vld [vmem:[%s360 + $0xe8] sm:$0xff]
        %v392 = vld [vmem:[%s360 + $0xf0] sm:$0xff]
        %v393 = vld [vmem:[%s360 + $0xf8] sm:$0xff]
        %vm394 = vcmask 23552
        %395 = vst.msk [vmem:[#allocation2] sm:$0xff] %vm394, 0.0
        %396 = vst.msk [vmem:[#allocation2 + $0x8] sm:$0xff] %vm394, 0.0
        %vm397 = vcmask 17408
        %398 = vst.msk [vmem:[#allocation2 + $0x10] sm:$0x3] %vm397, 0.0
        %399 = vst.msk [vmem:[#allocation2 + $0x18] sm:$0xff] %vm394, 0.0
        %400 = vst.msk [vmem:[#allocation2 + $0x20] sm:$0xff] %vm394, 0.0
        %401 = vst.msk [vmem:[#allocation2 + $0x28] sm:$0x3] %vm397, 0.0
        %402 = vst.msk [vmem:[#allocation2 + $0x30] sm:$0xff] %vm394, 0.0
        %403 = vst.msk [vmem:[#allocation2 + $0x38] sm:$0xff] %vm394, 0.0
        %404 = vst.msk [vmem:[#allocation2 + $0x40] sm:$0x3] %vm397, 0.0
        %405 = vst.msk [vmem:[#allocation2 + $0x48] sm:$0xff] %vm394, 0.0
        %406 = vst.msk [vmem:[#allocation2 + $0x50] sm:$0xff] %vm394, 0.0
        %407 = vst.msk [vmem:[#allocation2 + $0x58] sm:$0x3] %vm397, 0.0
        %408 = vst.msk [vmem:[#allocation2 + $0x60] sm:$0xff] %vm394, 0.0
        %409 = vst.msk [vmem:[#allocation2 + $0x68] sm:$0xff] %vm394, 0.0
        %410 = vst.msk [vmem:[#allocation2 + $0x70] sm:$0x3] %vm397, 0.0
        %411 = vst.msk [vmem:[#allocation2 + $0x78] sm:$0xff] %vm394, 0.0
        %412 = vst.msk [vmem:[#allocation2 + $0x80] sm:$0xff] %vm394, 0.0
        %413 = vst.msk [vmem:[#allocation2 + $0x88] sm:$0x3] %vm397, 0.0
        %414 = vst.msk [vmem:[#allocation2 + $0x90] sm:$0xff] %vm394, 0.0
        %415 = vst.msk [vmem:[#allocation2 + $0x98] sm:$0xff] %vm394, 0.0
        %416 = vst.msk [vmem:[#allocation2 + $0xa0] sm:$0x3] %vm397, 0.0
        %417 = vst.msk [vmem:[#allocation2 + $0xa8] sm:$0xff] %vm394, 0.0
        %418 = vst.msk [vmem:[#allocation2 + $0xb0] sm:$0xff] %vm394, 0.0
        %419 = vst.msk [vmem:[#allocation2 + $0xb8] sm:$0x3] %vm397, 0.0
        %420 = vst.msk [vmem:[#allocation2 + $0xc0] sm:$0xff] %vm394, 0.0
        %421 = vst.msk [vmem:[#allocation2 + $0xc8] sm:$0xff] %vm394, 0.0
        %422 = vst.msk [vmem:[#allocation2 + $0xd0] sm:$0x3] %vm397, 0.0
        %423 = vst.msk [vmem:[#allocation2 + $0xd8] sm:$0xff] %vm394, 0.0
        %424 = vst.msk [vmem:[#allocation2 + $0xe0] sm:$0xff] %vm394, 0.0
        %425 = vst.msk [vmem:[#allocation2 + $0xe8] sm:$0x3] %vm397, 0.0
        %426 = vst.msk [vmem:[#allocation2 + $0xf0] sm:$0xff] %vm394, 0.0
        %427 = vst.msk [vmem:[#allocation2 + $0xf8] sm:$0xff] %vm394, 0.0
        %428 = vst.msk [vmem:[#allocation2 + $0x100] sm:$0x3] %vm397, 0.0
        %429 = vst.msk [vmem:[#allocation2 + $0x108] sm:$0xff] %vm394, 0.0
        %430 = vst.msk [vmem:[#allocation2 + $0x110] sm:$0xff] %vm394, 0.0
        %431 = vst.msk [vmem:[#allocation2 + $0x118] sm:$0x3] %vm397, 0.0
        %432 = vst.msk [vmem:[#allocation2 + $0x120] sm:$0xff] %vm394, 0.0
        %433 = vst.msk [vmem:[#allocation2 + $0x128] sm:$0xff] %vm394, 0.0
        %434 = vst.msk [vmem:[#allocation2 + $0x130] sm:$0x3] %vm397, 0.0
        %435 = vst.msk [vmem:[#allocation2 + $0x138] sm:$0xff] %vm394, 0.0
        %436 = vst.msk [vmem:[#allocation2 + $0x140] sm:$0xff] %vm394, 0.0
        %437 = vst.msk [vmem:[#allocation2 + $0x148] sm:$0x3] %vm397, 0.0
        %438 = vst.msk [vmem:[#allocation2 + $0x150] sm:$0xff] %vm394, 0.0
        %439 = vst.msk [vmem:[#allocation2 + $0x158] sm:$0xff] %vm394, 0.0
        %440 = vst.msk [vmem:[#allocation2 + $0x160] sm:$0x3] %vm397, 0.0
        %441 = vst.msk [vmem:[#allocation2 + $0x168] sm:$0xff] %vm394, 0.0
        %442 = vst.msk [vmem:[#allocation2 + $0x170] sm:$0xff] %vm394, 0.0
        %443 = vst.msk [vmem:[#allocation2 + $0x178] sm:$0x3] %vm397, 0.0
        %444 = vst.msk [vmem:[#allocation2 + $0x180] sm:$0xff] %vm394, 0.0
        %445 = vst.msk [vmem:[#allocation2 + $0x188] sm:$0xff] %vm394, 0.0
        %446 = vst.msk [vmem:[#allocation2 + $0x190] sm:$0x3] %vm397, 0.0
        %447 = vst.msk [vmem:[#allocation2 + $0x198] sm:$0xff] %vm394, 0.0
        %448 = vst.msk [vmem:[#allocation2 + $0x1a0] sm:$0xff] %vm394, 0.0
        %449 = vst.msk [vmem:[#allocation2 + $0x1a8] sm:$0x3] %vm397, 0.0
        %s450 = scalar_lea.vmem [#allocation2], 24
        %451 = vst.msk [vmem:[%s450 + $0x1] sm:$0xff] %vm394, %v362
        %452 = vst.msk [vmem:[%s450 + $0x9] sm:$0xff] %vm394, %v363
        %453 = vst.msk [vmem:[%s450 + $0x19] sm:$0xff] %vm394, %v364
        %454 = vst.msk [vmem:[%s450 + $0x21] sm:$0xff] %vm394, %v365
        %455 = vst.msk [vmem:[%s450 + $0x31] sm:$0xff] %vm394, %v366
        %456 = vst.msk [vmem:[%s450 + $0x39] sm:$0xff] %vm394, %v367
        %457 = vst.msk [vmem:[%s450 + $0x49] sm:$0xff] %vm394, %v368
        %458 = vst.msk [vmem:[%s450 + $0x51] sm:$0xff] %vm394, %v369
        %459 = vst.msk [vmem:[%s450 + $0x61] sm:$0xff] %vm394, %v370
        %460 = vst.msk [vmem:[%s450 + $0x69] sm:$0xff] %vm394, %v371
        %461 = vst.msk [vmem:[%s450 + $0x79] sm:$0xff] %vm394, %v372
        %462 = vst.msk [vmem:[%s450 + $0x81] sm:$0xff] %vm394, %v373
        %463 = vst.msk [vmem:[%s450 + $0x91] sm:$0xff] %vm394, %v374
        %464 = vst.msk [vmem:[%s450 + $0x99] sm:$0xff] %vm394, %v375
        %465 = vst.msk [vmem:[%s450 + $0xa9] sm:$0xff] %vm394, %v376
        %466 = vst.msk [vmem:[%s450 + $0xb1] sm:$0xff] %vm394, %v377
        %467 = vst.msk [vmem:[%s450 + $0xc1] sm:$0xff] %vm394, %v378
        %468 = vst.msk [vmem:[%s450 + $0xc9] sm:$0xff] %vm394, %v379
        %469 = vst.msk [vmem:[%s450 + $0xd9] sm:$0xff] %vm394, %v380
        %470 = vst.msk [vmem:[%s450 + $0xe1] sm:$0xff] %vm394, %v381
        %471 = vst.msk [vmem:[%s450 + $0xf1] sm:$0xff] %vm394, %v382
        %472 = vst.msk [vmem:[%s450 + $0xf9] sm:$0xff] %vm394, %v383
        %473 = vst.msk [vmem:[%s450 + $0x109] sm:$0xff] %vm394, %v384
        %474 = vst.msk [vmem:[%s450 + $0x111] sm:$0xff] %vm394, %v385
        %475 = vst.msk [vmem:[%s450 + $0x121] sm:$0xff] %vm394, %v386
        %476 = vst.msk [vmem:[%s450 + $0x129] sm:$0xff] %vm394, %v387
        %477 = vst.msk [vmem:[%s450 + $0x139] sm:$0xff] %vm394, %v388
        %478 = vst.msk [vmem:[%s450 + $0x141] sm:$0xff] %vm394, %v389
        %479 = vst.msk [vmem:[%s450 + $0x151] sm:$0xff] %vm394, %v390
        %480 = vst.msk [vmem:[%s450 + $0x159] sm:$0xff] %vm394, %v391
        %481 = vst.msk [vmem:[%s450 + $0x169] sm:$0xff] %vm394, %v392
        %482 = vst.msk [vmem:[%s450 + $0x171] sm:$0xff] %vm394, %v393
        %v483 = vld [vmem:[#allocation2] sm:$0xff]
        %v484 = vld [vmem:[#allocation2 + $0x8] sm:$0xff]
        %v485 = vld [vmem:[#allocation2 + $0x18] sm:$0xff]
        %v486 = vld [vmem:[#allocation2 + $0x20] sm:$0xff]
        %v487 = vld [vmem:[#allocation2 + $0x30] sm:$0xff]
        %v488 = vld [vmem:[#allocation2 + $0x38] sm:$0xff]
        %v489 = vld [vmem:[#allocation2 + $0x48] sm:$0xff]
        %v490 = vld [vmem:[#allocation2 + $0x50] sm:$0xff]
        %v491 = vld [vmem:[#allocation2 + $0x60] sm:$0xff]
        %v492 = vld [vmem:[#allocation2 + $0x68] sm:$0xff]
        %v493 = vld [vmem:[#allocation2 + $0x78] sm:$0xff]
        %v494 = vld [vmem:[#allocation2 + $0x80] sm:$0xff]
        %v495 = vld [vmem:[#allocation2 + $0x90] sm:$0xff]
        %v496 = vld [vmem:[#allocation2 + $0x98] sm:$0xff]
        %v497 = vld [vmem:[#allocation2 + $0xa8] sm:$0xff]
        %v498 = vld [vmem:[#allocation2 + $0xb0] sm:$0xff]
        %v499 = vld [vmem:[#allocation2 + $0xc0] sm:$0xff]
        %v500 = vld [vmem:[#allocation2 + $0xc8] sm:$0xff]
        %v501 = vld [vmem:[#allocation2 + $0xd8] sm:$0xff]
        %v502 = vld [vmem:[#allocation2 + $0xe0] sm:$0xff]
        %v503 = vld [vmem:[#allocation2 + $0xf0] sm:$0xff]
        %v504 = vld [vmem:[#allocation2 + $0xf8] sm:$0xff]
        %v505 = vld [vmem:[#allocation2 + $0x108] sm:$0xff]
        %v506 = vld [vmem:[#allocation2 + $0x110] sm:$0xff]
        %v507 = vld [vmem:[#allocation2 + $0x120] sm:$0xff]
        %v508 = vld [vmem:[#allocation2 + $0x128] sm:$0xff]
        %v509 = vld [vmem:[#allocation2 + $0x138] sm:$0xff]
        %v510 = vld [vmem:[#allocation2 + $0x140] sm:$0xff]
        %v511 = vld [vmem:[#allocation2 + $0x150] sm:$0xff]
        %v512 = vld [vmem:[#allocation2 + $0x158] sm:$0xff]
        %v513 = vld [vmem:[#allocation2 + $0x168] sm:$0xff]
        %v514 = vld [vmem:[#allocation2 + $0x170] sm:$0xff]
        %v515 = vld [vmem:[%s1] sm:$0x7]
        %v516 = vld [vmem:[#allocation2 + $0x1] sm:$0xff]
        %v517 = vld [vmem:[#allocation2 + $0x9] sm:$0xff]
        %v518 = vld [vmem:[#allocation2 + $0x19] sm:$0xff]
        %v519 = vld [vmem:[#allocation2 + $0x21] sm:$0xff]
        %v520 = vld [vmem:[#allocation2 + $0x31] sm:$0xff]
        %v521 = vld [vmem:[#allocation2 + $0x39] sm:$0xff]
        %v522 = vld [vmem:[#allocation2 + $0x49] sm:$0xff]
        %v523 = vld [vmem:[#allocation2 + $0x51] sm:$0xff]
        %v524 = vld [vmem:[#allocation2 + $0x61] sm:$0xff]
        %v525 = vld [vmem:[#allocation2 + $0x69] sm:$0xff]
        %v526 = vld [vmem:[#allocation2 + $0x79] sm:$0xff]
        %v527 = vld [vmem:[#allocation2 + $0x81] sm:$0xff]
        %v528 = vld [vmem:[#allocation2 + $0x91] sm:$0xff]
        %v529 = vld [vmem:[#allocation2 + $0x99] sm:$0xff]
        %v530 = vld [vmem:[#allocation2 + $0xa9] sm:$0xff]
        %v531 = vld [vmem:[#allocation2 + $0xb1] sm:$0xff]
        %v532 = vld [vmem:[#allocation2 + $0xc1] sm:$0xff]
        %v533 = vld [vmem:[#allocation2 + $0xc9] sm:$0xff]
        %v534 = vld [vmem:[#allocation2 + $0xd9] sm:$0xff]
        %v535 = vld [vmem:[#allocation2 + $0xe1] sm:$0xff]
        %v536 = vld [vmem:[#allocation2 + $0xf1] sm:$0xff]
        %v537 = vld [vmem:[#allocation2 + $0xf9] sm:$0xff]
        %v538 = vld [vmem:[#allocation2 + $0x109] sm:$0xff]
        %v539 = vld [vmem:[#allocation2 + $0x111] sm:$0xff]
        %v540 = vld [vmem:[#allocation2 + $0x121] sm:$0xff]
        %v541 = vld [vmem:[#allocation2 + $0x129] sm:$0xff]
        %v542 = vld [vmem:[#allocation2 + $0x139] sm:$0xff]
        %v543 = vld [vmem:[#allocation2 + $0x141] sm:$0xff]
        %v544 = vld [vmem:[#allocation2 + $0x151] sm:$0xff]
        %v545 = vld [vmem:[#allocation2 + $0x159] sm:$0xff]
        %v546 = vld [vmem:[#allocation2 + $0x169] sm:$0xff]
        %v547 = vld [vmem:[#allocation2 + $0x171] sm:$0xff]
        %s548 = scalar_lea.vmem %s1, 4
        %v549 = vld [vmem:[%s548] sm:$0x7]
        %v551 = vsel %vm394, %v516, 0
        %v554 = vsel %vm394, %v517, 0
        %v557 = vsel %vm394, %v518, 0
        %v560 = vsel %vm394, %v519, 0
        %v563 = vsel %vm394, %v520, 0
        %v566 = vsel %vm394, %v521, 0
        %v569 = vsel %vm394, %v522, 0
        %v572 = vsel %vm394, %v523, 0
        %v575 = vsel %vm394, %v524, 0
        %v578 = vsel %vm394, %v525, 0
        %v581 = vsel %vm394, %v526, 0
        %v584 = vsel %vm394, %v527, 0
        %v587 = vsel %vm394, %v528, 0
        %v590 = vsel %vm394, %v529, 0
        %v593 = vsel %vm394, %v530, 0
        %v596 = vsel %vm394, %v531, 0
        %v599 = vsel %vm394, %v532, 0
        %v602 = vsel %vm394, %v533, 0
        %v605 = vsel %vm394, %v534, 0
        %v608 = vsel %vm394, %v535, 0
        %v611 = vsel %vm394, %v536, 0
        %v614 = vsel %vm394, %v537, 0
        %v617 = vsel %vm394, %v538, 0
        %v620 = vsel %vm394, %v539, 0
        %v623 = vsel %vm394, %v540, 0
        %v626 = vsel %vm394, %v541, 0
        %v629 = vsel %vm394, %v542, 0
        %v632 = vsel %vm394, %v543, 0
        %v635 = vsel %vm394, %v544, 0
        %v638 = vsel %vm394, %v545, 0
        %v641 = vsel %vm394, %v546, 0
        %v644 = vsel %vm394, %v547, 0
        %vm646 = vcmask 1042432
        %v648 = vsel %vm646, %v549, 0
        %650 = vmatprep.subr.mxu0 0.0
        %651 = vmatpush1.msra.mxu0 0.0
        %652 = vmatprep.subr.mxu0 0.0
        %653 = vmatpush1.msra.mxu0 0.0
        %654 = vmatprep.subr.mxu0 0.0
        %655 = vmatpush1.msra.mxu0 0.0
        %656 = vmatprep.subr.mxu0 0.0
        %657 = vmatpush1.msra.mxu0 0.0
        %658 = vmatprep.subr.mxu0 0.0
        %659 = vmatpush1.msra.mxu0 0.0
        %660 = vmatprep.subr.mxu0 0.0
        %661 = vmatpush1.msra.mxu0 0.0
        %662 = vmatprep.subr.mxu0 0.0
        %663 = vmatpush1.msra.mxu0 0.0
        %664 = vmatprep.subr.mxu0 0.0
        %665 = vmatpush1.msra.mxu0 0.0
        %666 = vmatprep.subr.mxu0 0.0
        %667 = vmatpush1.msra.mxu0 0.0
        %668 = vmatprep.subr.mxu0 0.0
        %669 = vmatpush1.msra.mxu0 0.0
        %670 = vmatprep.subr.mxu0 0.0
        %671 = vmatpush1.msra.mxu0 0.0
        %672 = vmatprep.subr.mxu0 0.0
        %673 = vmatpush1.msra.mxu0 0.0
        %674 = vmatprep.subr.mxu0 0.0
        %675 = vmatpush1.msra.mxu0 0.0
        %676 = vmatprep.subr.mxu0 0.0
        %677 = vmatpush1.msra.mxu0 0.0
        %678 = vmatprep.subr.mxu0 0.0
        %679 = vmatpush1.msra.mxu0 0.0
        %680 = vmatprep.subr.mxu0 0.0
        %681 = vmatpush1.msra.mxu0 %v648
        %682 = vmatprep.subr.mxu0 0.0
        %683 = vmatpush2.msra.mxu0 0.0
        %684 = vmatprep.subr.mxu0 0.0
        %685 = vmatpush2.msra.mxu0 0.0
        %686 = vmatprep.subr.mxu0 0.0
        %687 = vmatpush2.msra.mxu0 0.0
        %688 = vmatprep.subr.mxu0 0.0
        %689 = vmatpush2.msra.mxu0 0.0
        %690 = vmatprep.subr.mxu0 0.0
        %691 = vmatpush2.msra.mxu0 0.0
        %692 = vmatprep.subr.mxu0 0.0
        %693 = vmatpush2.msra.mxu0 0.0
        %694 = vmatprep.subr.mxu0 0.0
        %695 = vmatpush2.msra.mxu0 0.0
        %696 = vmatprep.subr.mxu0 0.0
        %697 = vmatpush2.msra.mxu0 0.0
        %698 = vmatprep.subr.mxu0 0.0
        %699 = vmatpush2.msra.mxu0 0.0
        %700 = vmatprep.subr.mxu0 0.0
        %701 = vmatpush2.msra.mxu0 0.0
        %702 = vmatprep.subr.mxu0 0.0
        %703 = vmatpush2.msra.mxu0 0.0
        %704 = vmatprep.subr.mxu0 0.0
        %705 = vmatpush2.msra.mxu0 0.0
        %706 = vmatprep.subr.mxu0 0.0
        %707 = vmatpush2.msra.mxu0 0.0
        %708 = vmatprep.subr.mxu0 0.0
        %709 = vmatpush2.msra.mxu0 0.0
        %710 = vmatprep.subr.mxu0 0.0
        %711 = vmatpush2.msra.mxu0 0.0
        %712 = vmatprep.subr.mxu0 0.0
        %713 = vmatpush2.msra.mxu0 0.0
        %714 = vmatprep.mubr.f32.mxu0 0.0
        %715 = vmatmul.mubr.f32.gmra.mxu0 %v551
        %v716 = vpop.f32.mrf.mxu0
        %v717 = vadd.f32 0.0, %v716
        %v718 = vpop.f32.mrf.mxu0
        %719 = vmatprep.mubr.f32.mxu0 0.0
        %720 = vmatmul.mubr.f32.gmra.mxu0 %v554
        %v721 = vpop.f32.mrf.mxu0
        %v722 = vadd.f32 0.0, %v721
        %v723 = vpop.f32.mrf.mxu0
        %724 = vmatprep.mubr.f32.mxu0 0.0
        %725 = vmatmul.mubr.f32.gmra.mxu0 %v557
        %v726 = vpop.f32.mrf.mxu0
        %v727 = vadd.f32 0.0, %v726
        %v728 = vpop.f32.mrf.mxu0
        %729 = vmatprep.mubr.f32.mxu0 0.0
        %730 = vmatmul.mubr.f32.gmra.mxu0 %v560
        %v731 = vpop.f32.mrf.mxu0
        %v732 = vadd.f32 0.0, %v731
        %v733 = vpop.f32.mrf.mxu0
        %734 = vmatprep.mubr.f32.mxu0 0.0
        %735 = vmatmul.mubr.f32.gmra.mxu0 %v563
        %v736 = vpop.f32.mrf.mxu0
        %v737 = vadd.f32 0.0, %v736
        %v738 = vpop.f32.mrf.mxu0
        %739 = vmatprep.mubr.f32.mxu0 0.0
        %740 = vmatmul.mubr.f32.gmra.mxu0 %v566
        %v741 = vpop.f32.mrf.mxu0
        %v742 = vadd.f32 0.0, %v741
        %v743 = vpop.f32.mrf.mxu0
        %744 = vmatprep.mubr.f32.mxu0 0.0
        %745 = vmatmul.mubr.f32.gmra.mxu0 %v569
        %v746 = vpop.f32.mrf.mxu0
        %v747 = vadd.f32 0.0, %v746
        %v748 = vpop.f32.mrf.mxu0
        %749 = vmatprep.mubr.f32.mxu0 0.0
        %750 = vmatmul.mubr.f32.gmra.mxu0 %v572
        %v751 = vpop.f32.mrf.mxu0
        %v752 = vadd.f32 0.0, %v751
        %v753 = vpop.f32.mrf.mxu0
        %754 = vmatprep.mubr.f32.mxu0 0.0
        %755 = vmatmul.mubr.f32.gmra.mxu0 %v575
        %v756 = vpop.f32.mrf.mxu0
        %v757 = vadd.f32 0.0, %v756
        %v758 = vpop.f32.mrf.mxu0
        %759 = vmatprep.mubr.f32.mxu0 0.0
        %760 = vmatmul.mubr.f32.gmra.mxu0 %v578
        %v761 = vpop.f32.mrf.mxu0
        %v762 = vadd.f32 0.0, %v761
        %v763 = vpop.f32.mrf.mxu0
        %764 = vmatprep.mubr.f32.mxu0 0.0
        %765 = vmatmul.mubr.f32.gmra.mxu0 %v581
        %v766 = vpop.f32.mrf.mxu0
        %v767 = vadd.f32 0.0, %v766
        %v768 = vpop.f32.mrf.mxu0
        %769 = vmatprep.mubr.f32.mxu0 0.0
        %770 = vmatmul.mubr.f32.gmra.mxu0 %v584
        %v771 = vpop.f32.mrf.mxu0
        %v772 = vadd.f32 0.0, %v771
        %v773 = vpop.f32.mrf.mxu0
        %774 = vmatprep.mubr.f32.mxu0 0.0
        %775 = vmatmul.mubr.f32.gmra.mxu0 %v587
        %v776 = vpop.f32.mrf.mxu0
        %v777 = vadd.f32 0.0, %v776
        %v778 = vpop.f32.mrf.mxu0
        %779 = vmatprep.mubr.f32.mxu0 0.0
        %780 = vmatmul.mubr.f32.gmra.mxu0 %v590
        %v781 = vpop.f32.mrf.mxu0
        %v782 = vadd.f32 0.0, %v781
        %v783 = vpop.f32.mrf.mxu0
        %784 = vmatprep.mubr.f32.mxu0 0.0
        %785 = vmatmul.mubr.f32.gmra.mxu0 %v593
        %v786 = vpop.f32.mrf.mxu0
        %v787 = vadd.f32 0.0, %v786
        %v788 = vpop.f32.mrf.mxu0
        %789 = vmatprep.mubr.f32.mxu0 0.0
        %790 = vmatmul.mubr.f32.gmra.mxu0 %v596
        %v791 = vpop.f32.mrf.mxu0
        %v792 = vadd.f32 0.0, %v791
        %v793 = vpop.f32.mrf.mxu0
        %794 = vmatprep.mubr.f32.mxu0 0.0
        %795 = vmatmul.mubr.f32.gmra.mxu0 %v599
        %v796 = vpop.f32.mrf.mxu0
        %v797 = vadd.f32 0.0, %v796
        %v798 = vpop.f32.mrf.mxu0
        %799 = vmatprep.mubr.f32.mxu0 0.0
        %800 = vmatmul.mubr.f32.gmra.mxu0 %v602
        %v801 = vpop.f32.mrf.mxu0
        %v802 = vadd.f32 0.0, %v801
        %v803 = vpop.f32.mrf.mxu0
        %804 = vmatprep.mubr.f32.mxu0 0.0
        %805 = vmatmul.mubr.f32.gmra.mxu0 %v605
        %v806 = vpop.f32.mrf.mxu0
        %v807 = vadd.f32 0.0, %v806
        %v808 = vpop.f32.mrf.mxu0
        %809 = vmatprep.mubr.f32.mxu0 0.0
        %810 = vmatmul.mubr.f32.gmra.mxu0 %v608
        %v811 = vpop.f32.mrf.mxu0
        %v812 = vadd.f32 0.0, %v811
        %v813 = vpop.f32.mrf.mxu0
        %814 = vmatprep.mubr.f32.mxu0 0.0
        %815 = vmatmul.mubr.f32.gmra.mxu0 %v611
        %v816 = vpop.f32.mrf.mxu0
        %v817 = vadd.f32 0.0, %v816
        %v818 = vpop.f32.mrf.mxu0
        %819 = vmatprep.mubr.f32.mxu0 0.0
        %820 = vmatmul.mubr.f32.gmra.mxu0 %v614
        %v821 = vpop.f32.mrf.mxu0
        %v822 = vadd.f32 0.0, %v821
        %v823 = vpop.f32.mrf.mxu0
        %824 = vmatprep.mubr.f32.mxu0 0.0
        %825 = vmatmul.mubr.f32.gmra.mxu0 %v617
        %v826 = vpop.f32.mrf.mxu0
        %v827 = vadd.f32 0.0, %v826
        %v828 = vpop.f32.mrf.mxu0
        %829 = vmatprep.mubr.f32.mxu0 0.0
        %830 = vmatmul.mubr.f32.gmra.mxu0 %v620
        %v831 = vpop.f32.mrf.mxu0
        %v832 = vadd.f32 0.0, %v831
        %v833 = vpop.f32.mrf.mxu0
        %834 = vmatprep.mubr.f32.mxu0 0.0
        %835 = vmatmul.mubr.f32.gmra.mxu0 %v623
        %v836 = vpop.f32.mrf.mxu0
        %v837 = vadd.f32 0.0, %v836
        %v838 = vpop.f32.mrf.mxu0
        %839 = vmatprep.mubr.f32.mxu0 0.0
        %840 = vmatmul.mubr.f32.gmra.mxu0 %v626
        %v841 = vpop.f32.mrf.mxu0
        %v842 = vadd.f32 0.0, %v841
        %v843 = vpop.f32.mrf.mxu0
        %844 = vmatprep.mubr.f32.mxu0 0.0
        %845 = vmatmul.mubr.f32.gmra.mxu0 %v629
        %v846 = vpop.f32.mrf.mxu0
        %v847 = vadd.f32 0.0, %v846
        %v848 = vpop.f32.mrf.mxu0
        %849 = vmatprep.mubr.f32.mxu0 0.0
        %850 = vmatmul.mubr.f32.gmra.mxu0 %v632
        %v851 = vpop.f32.mrf.mxu0
        %v852 = vadd.f32 0.0, %v851
        %v853 = vpop.f32.mrf.mxu0
        %854 = vmatprep.mubr.f32.mxu0 0.0
        %855 = vmatmul.mubr.f32.gmra.mxu0 %v635
        %v856 = vpop.f32.mrf.mxu0
        %v857 = vadd.f32 0.0, %v856
        %v858 = vpop.f32.mrf.mxu0
        %859 = vmatprep.mubr.f32.mxu0 0.0
        %860 = vmatmul.mubr.f32.gmra.mxu0 %v638
        %v861 = vpop.f32.mrf.mxu0
        %v862 = vadd.f32 0.0, %v861
        %v863 = vpop.f32.mrf.mxu0
        %864 = vmatprep.mubr.f32.mxu0 0.0
        %865 = vmatmul.mubr.f32.gmra.mxu0 %v641
        %v866 = vpop.f32.mrf.mxu0
        %v867 = vadd.f32 0.0, %v866
        %v868 = vpop.f32.mrf.mxu0
        %869 = vmatprep.mubr.f32.mxu0 0.0
        %870 = vmatmul.mubr.f32.gmra.mxu0 %v644
        %v871 = vpop.f32.mrf.mxu0
        %v872 = vadd.f32 0.0, %v871
        %v873 = vpop.f32.mrf.mxu0
        %874 = vdwg.mxu0
        %v876 = vsel %vm394, %v483, 0
        %v879 = vsel %vm394, %v484, 0
        %v882 = vsel %vm394, %v485, 0
        %v885 = vsel %vm394, %v486, 0
        %v888 = vsel %vm394, %v487, 0
        %v891 = vsel %vm394, %v488, 0
        %v894 = vsel %vm394, %v489, 0
        %v897 = vsel %vm394, %v490, 0
        %v900 = vsel %vm394, %v491, 0
        %v903 = vsel %vm394, %v492, 0
        %v906 = vsel %vm394, %v493, 0
        %v909 = vsel %vm394, %v494, 0
        %v912 = vsel %vm394, %v495, 0
        %v915 = vsel %vm394, %v496, 0
        %v918 = vsel %vm394, %v497, 0
        %v921 = vsel %vm394, %v498, 0
        %v924 = vsel %vm394, %v499, 0
        %v927 = vsel %vm394, %v500, 0
        %v930 = vsel %vm394, %v501, 0
        %v933 = vsel %vm394, %v502, 0
        %v936 = vsel %vm394, %v503, 0
        %v939 = vsel %vm394, %v504, 0
        %v942 = vsel %vm394, %v505, 0
        %v945 = vsel %vm394, %v506, 0
        %v948 = vsel %vm394, %v507, 0
        %v951 = vsel %vm394, %v508, 0
        %v954 = vsel %vm394, %v509, 0
        %v957 = vsel %vm394, %v510, 0
        %v960 = vsel %vm394, %v511, 0
        %v963 = vsel %vm394, %v512, 0
        %v966 = vsel %vm394, %v513, 0
        %v969 = vsel %vm394, %v514, 0
        %v972 = vsel %vm646, %v515, 0
        %974 = vmatprep.subr.mxu0 0.0
        %975 = vmatpush1.msra.mxu0 0.0
        %976 = vmatprep.subr.mxu0 0.0
        %977 = vmatpush1.msra.mxu0 0.0
        %978 = vmatprep.subr.mxu0 0.0
        %979 = vmatpush1.msra.mxu0 0.0
        %980 = vmatprep.subr.mxu0 0.0
        %981 = vmatpush1.msra.mxu0 0.0
        %982 = vmatprep.subr.mxu0 0.0
        %983 = vmatpush1.msra.mxu0 0.0
        %984 = vmatprep.subr.mxu0 0.0
        %985 = vmatpush1.msra.mxu0 0.0
        %986 = vmatprep.subr.mxu0 0.0
        %987 = vmatpush1.msra.mxu0 0.0
        %988 = vmatprep.subr.mxu0 0.0
        %989 = vmatpush1.msra.mxu0 0.0
        %990 = vmatprep.subr.mxu0 0.0
        %991 = vmatpush1.msra.mxu0 0.0
        %992 = vmatprep.subr.mxu0 0.0
        %993 = vmatpush1.msra.mxu0 0.0
        %994 = vmatprep.subr.mxu0 0.0
        %995 = vmatpush1.msra.mxu0 0.0
        %996 = vmatprep.subr.mxu0 0.0
        %997 = vmatpush1.msra.mxu0 0.0
        %998 = vmatprep.subr.mxu0 0.0
        %999 = vmatpush1.msra.mxu0 0.0
        %1000 = vmatprep.subr.mxu0 0.0
        %1001 = vmatpush1.msra.mxu0 0.0
        %1002 = vmatprep.subr.mxu0 0.0
        %1003 = vmatpush1.msra.mxu0 0.0
        %1004 = vmatprep.subr.mxu0 0.0
        %1005 = vmatpush1.msra.mxu0 %v972
        %1006 = vmatprep.subr.mxu0 0.0
        %1007 = vmatpush2.msra.mxu0 0.0
        %1008 = vmatprep.subr.mxu0 0.0
        %1009 = vmatpush2.msra.mxu0 0.0
        %1010 = vmatprep.subr.mxu0 0.0
        %1011 = vmatpush2.msra.mxu0 0.0
        %1012 = vmatprep.subr.mxu0 0.0
        %1013 = vmatpush2.msra.mxu0 0.0
        %1014 = vmatprep.subr.mxu0 0.0
        %1015 = vmatpush2.msra.mxu0 0.0
        %1016 = vmatprep.subr.mxu0 0.0
        %1017 = vmatpush2.msra.mxu0 0.0
        %1018 = vmatprep.subr.mxu0 0.0
        %1019 = vmatpush2.msra.mxu0 0.0
        %1020 = vmatprep.subr.mxu0 0.0
        %1021 = vmatpush2.msra.mxu0 0.0
        %1022 = vmatprep.subr.mxu0 0.0
        %1023 = vmatpush2.msra.mxu0 0.0
        %1024 = vmatprep.subr.mxu0 0.0
        %1025 = vmatpush2.msra.mxu0 0.0
        %1026 = vmatprep.subr.mxu0 0.0
        %1027 = vmatpush2.msra.mxu0 0.0
        %1028 = vmatprep.subr.mxu0 0.0
        %1029 = vmatpush2.msra.mxu0 0.0
        %1030 = vmatprep.subr.mxu0 0.0
        %1031 = vmatpush2.msra.mxu0 0.0
        %1032 = vmatprep.subr.mxu0 0.0
        %1033 = vmatpush2.msra.mxu0 0.0
        %1034 = vmatprep.subr.mxu0 0.0
        %1035 = vmatpush2.msra.mxu0 0.0
        %1036 = vmatprep.subr.mxu0 0.0
        %1037 = vmatpush2.msra.mxu0 0.0
        %1038 = vmatprep.mubr.f32.mxu0 0.0
        %1039 = vmatmul.mubr.f32.gmra.mxu0 %v876
        %v1040 = vpop.f32.mrf.mxu0
        %v1041 = vadd.f32 %v717, %v1040
        %v1042 = vpop.f32.mrf.mxu0
        %1043 = vmatprep.mubr.f32.mxu0 0.0
        %1044 = vmatmul.mubr.f32.gmra.mxu0 %v879
        %v1045 = vpop.f32.mrf.mxu0
        %v1046 = vadd.f32 %v722, %v1045
        %v1047 = vpop.f32.mrf.mxu0
        %1048 = vmatprep.mubr.f32.mxu0 0.0
        %1049 = vmatmul.mubr.f32.gmra.mxu0 %v882
        %v1050 = vpop.f32.mrf.mxu0
        %v1051 = vadd.f32 %v727, %v1050
        %v1052 = vpop.f32.mrf.mxu0
        %1053 = vmatprep.mubr.f32.mxu0 0.0
        %1054 = vmatmul.mubr.f32.gmra.mxu0 %v885
        %v1055 = vpop.f32.mrf.mxu0
        %v1056 = vadd.f32 %v732, %v1055
        %v1057 = vpop.f32.mrf.mxu0
        %1058 = vmatprep.mubr.f32.mxu0 0.0
        %1059 = vmatmul.mubr.f32.gmra.mxu0 %v888
        %v1060 = vpop.f32.mrf.mxu0
        %v1061 = vadd.f32 %v737, %v1060
        %v1062 = vpop.f32.mrf.mxu0
        %1063 = vmatprep.mubr.f32.mxu0 0.0
        %1064 = vmatmul.mubr.f32.gmra.mxu0 %v891
        %v1065 = vpop.f32.mrf.mxu0
        %v1066 = vadd.f32 %v742, %v1065
        %v1067 = vpop.f32.mrf.mxu0
        %1068 = vmatprep.mubr.f32.mxu0 0.0
        %1069 = vmatmul.mubr.f32.gmra.mxu0 %v894
        %v1070 = vpop.f32.mrf.mxu0
        %v1071 = vadd.f32 %v747, %v1070
        %v1072 = vpop.f32.mrf.mxu0
        %1073 = vmatprep.mubr.f32.mxu0 0.0
        %1074 = vmatmul.mubr.f32.gmra.mxu0 %v897
        %v1075 = vpop.f32.mrf.mxu0
        %v1076 = vadd.f32 %v752, %v1075
        %v1077 = vpop.f32.mrf.mxu0
        %1078 = vmatprep.mubr.f32.mxu0 0.0
        %1079 = vmatmul.mubr.f32.gmra.mxu0 %v900
        %v1080 = vpop.f32.mrf.mxu0
        %v1081 = vadd.f32 %v757, %v1080
        %v1082 = vpop.f32.mrf.mxu0
        %1083 = vmatprep.mubr.f32.mxu0 0.0
        %1084 = vmatmul.mubr.f32.gmra.mxu0 %v903
        %v1085 = vpop.f32.mrf.mxu0
        %v1086 = vadd.f32 %v762, %v1085
        %v1087 = vpop.f32.mrf.mxu0
        %1088 = vmatprep.mubr.f32.mxu0 0.0
        %1089 = vmatmul.mubr.f32.gmra.mxu0 %v906
        %v1090 = vpop.f32.mrf.mxu0
        %v1091 = vadd.f32 %v767, %v1090
        %v1092 = vpop.f32.mrf.mxu0
        %1093 = vmatprep.mubr.f32.mxu0 0.0
        %1094 = vmatmul.mubr.f32.gmra.mxu0 %v909
        %v1095 = vpop.f32.mrf.mxu0
        %v1096 = vadd.f32 %v772, %v1095
        %v1097 = vpop.f32.mrf.mxu0
        %1098 = vmatprep.mubr.f32.mxu0 0.0
        %1099 = vmatmul.mubr.f32.gmra.mxu0 %v912
        %v1100 = vpop.f32.mrf.mxu0
        %v1101 = vadd.f32 %v777, %v1100
        %v1102 = vpop.f32.mrf.mxu0
        %1103 = vmatprep.mubr.f32.mxu0 0.0
        %1104 = vmatmul.mubr.f32.gmra.mxu0 %v915
        %v1105 = vpop.f32.mrf.mxu0
        %v1106 = vadd.f32 %v782, %v1105
        %v1107 = vpop.f32.mrf.mxu0
        %1108 = vmatprep.mubr.f32.mxu0 0.0
        %1109 = vmatmul.mubr.f32.gmra.mxu0 %v918
        %v1110 = vpop.f32.mrf.mxu0
        %v1111 = vadd.f32 %v787, %v1110
        %v1112 = vpop.f32.mrf.mxu0
        %1113 = vmatprep.mubr.f32.mxu0 0.0
        %1114 = vmatmul.mubr.f32.gmra.mxu0 %v921
        %v1115 = vpop.f32.mrf.mxu0
        %v1116 = vadd.f32 %v792, %v1115
        %v1117 = vpop.f32.mrf.mxu0
        %1118 = vmatprep.mubr.f32.mxu0 0.0
        %1119 = vmatmul.mubr.f32.gmra.mxu0 %v924
        %v1120 = vpop.f32.mrf.mxu0
        %v1121 = vadd.f32 %v797, %v1120
        %v1122 = vpop.f32.mrf.mxu0
        %1123 = vmatprep.mubr.f32.mxu0 0.0
        %1124 = vmatmul.mubr.f32.gmra.mxu0 %v927
        %v1125 = vpop.f32.mrf.mxu0
        %v1126 = vadd.f32 %v802, %v1125
        %v1127 = vpop.f32.mrf.mxu0
        %1128 = vmatprep.mubr.f32.mxu0 0.0
        %1129 = vmatmul.mubr.f32.gmra.mxu0 %v930
        %v1130 = vpop.f32.mrf.mxu0
        %v1131 = vadd.f32 %v807, %v1130
        %v1132 = vpop.f32.mrf.mxu0
        %1133 = vmatprep.mubr.f32.mxu0 0.0
        %1134 = vmatmul.mubr.f32.gmra.mxu0 %v933
        %v1135 = vpop.f32.mrf.mxu0
        %v1136 = vadd.f32 %v812, %v1135
        %v1137 = vpop.f32.mrf.mxu0
        %1138 = vmatprep.mubr.f32.mxu0 0.0
        %1139 = vmatmul.mubr.f32.gmra.mxu0 %v936
        %v1140 = vpop.f32.mrf.mxu0
        %v1141 = vadd.f32 %v817, %v1140
        %v1142 = vpop.f32.mrf.mxu0
        %1143 = vmatprep.mubr.f32.mxu0 0.0
        %1144 = vmatmul.mubr.f32.gmra.mxu0 %v939
        %v1145 = vpop.f32.mrf.mxu0
        %v1146 = vadd.f32 %v822, %v1145
        %v1147 = vpop.f32.mrf.mxu0
        %1148 = vmatprep.mubr.f32.mxu0 0.0
        %1149 = vmatmul.mubr.f32.gmra.mxu0 %v942
        %v1150 = vpop.f32.mrf.mxu0
        %v1151 = vadd.f32 %v827, %v1150
        %v1152 = vpop.f32.mrf.mxu0
        %1153 = vmatprep.mubr.f32.mxu0 0.0
        %1154 = vmatmul.mubr.f32.gmra.mxu0 %v945
        %v1155 = vpop.f32.mrf.mxu0
        %v1156 = vadd.f32 %v832, %v1155
        %v1157 = vpop.f32.mrf.mxu0
        %1158 = vmatprep.mubr.f32.mxu0 0.0
        %1159 = vmatmul.mubr.f32.gmra.mxu0 %v948
        %v1160 = vpop.f32.mrf.mxu0
        %v1161 = vadd.f32 %v837, %v1160
        %v1162 = vpop.f32.mrf.mxu0
        %1163 = vmatprep.mubr.f32.mxu0 0.0
        %1164 = vmatmul.mubr.f32.gmra.mxu0 %v951
        %v1165 = vpop.f32.mrf.mxu0
        %v1166 = vadd.f32 %v842, %v1165
        %v1167 = vpop.f32.mrf.mxu0
        %1168 = vmatprep.mubr.f32.mxu0 0.0
        %1169 = vmatmul.mubr.f32.gmra.mxu0 %v954
        %v1170 = vpop.f32.mrf.mxu0
        %v1171 = vadd.f32 %v847, %v1170
        %v1172 = vpop.f32.mrf.mxu0
        %1173 = vmatprep.mubr.f32.mxu0 0.0
        %1174 = vmatmul.mubr.f32.gmra.mxu0 %v957
        %v1175 = vpop.f32.mrf.mxu0
        %v1176 = vadd.f32 %v852, %v1175
        %v1177 = vpop.f32.mrf.mxu0
        %1178 = vmatprep.mubr.f32.mxu0 0.0
        %1179 = vmatmul.mubr.f32.gmra.mxu0 %v960
        %v1180 = vpop.f32.mrf.mxu0
        %v1181 = vadd.f32 %v857, %v1180
        %v1182 = vpop.f32.mrf.mxu0
        %1183 = vmatprep.mubr.f32.mxu0 0.0
        %1184 = vmatmul.mubr.f32.gmra.mxu0 %v963
        %v1185 = vpop.f32.mrf.mxu0
        %v1186 = vadd.f32 %v862, %v1185
        %v1187 = vpop.f32.mrf.mxu0
        %1188 = vmatprep.mubr.f32.mxu0 0.0
        %1189 = vmatmul.mubr.f32.gmra.mxu0 %v966
        %v1190 = vpop.f32.mrf.mxu0
        %v1191 = vadd.f32 %v867, %v1190
        %v1192 = vpop.f32.mrf.mxu0
        %1193 = vmatprep.mubr.f32.mxu0 0.0
        %1194 = vmatmul.mubr.f32.gmra.mxu0 %v969
        %v1195 = vpop.f32.mrf.mxu0
        %v1196 = vadd.f32 %v872, %v1195
        %v1197 = vpop.f32.mrf.mxu0
        %1198 = vdwg.mxu0
        %v1199 = vld [vmem:[#allocation2 + $0x2] sm:$0xff]
        %v1200 = vld [vmem:[#allocation2 + $0xa] sm:$0xff]
        %v1201 = vld [vmem:[#allocation2 + $0x1a] sm:$0xff]
        %v1202 = vld [vmem:[#allocation2 + $0x22] sm:$0xff]
        %v1203 = vld [vmem:[#allocation2 + $0x32] sm:$0xff]
        %v1204 = vld [vmem:[#allocation2 + $0x3a] sm:$0xff]
        %v1205 = vld [vmem:[#allocation2 + $0x4a] sm:$0xff]
        %v1206 = vld [vmem:[#allocation2 + $0x52] sm:$0xff]
        %v1207 = vld [vmem:[#allocation2 + $0x62] sm:$0xff]
        %v1208 = vld [vmem:[#allocation2 + $0x6a] sm:$0xff]
        %v1209 = vld [vmem:[#allocation2 + $0x7a] sm:$0xff]
        %v1210 = vld [vmem:[#allocation2 + $0x82] sm:$0xff]
        %v1211 = vld [vmem:[#allocation2 + $0x92] sm:$0xff]
        %v1212 = vld [vmem:[#allocation2 + $0x9a] sm:$0xff]
        %v1213 = vld [vmem:[#allocation2 + $0xaa] sm:$0xff]
        %v1214 = vld [vmem:[#allocation2 + $0xb2] sm:$0xff]
        %v1215 = vld [vmem:[#allocation2 + $0xc2] sm:$0xff]
        %v1216 = vld [vmem:[#allocation2 + $0xca] sm:$0xff]
        %v1217 = vld [vmem:[#allocation2 + $0xda] sm:$0xff]
        %v1218 = vld [vmem:[#allocation2 + $0xe2] sm:$0xff]
        %v1219 = vld [vmem:[#allocation2 + $0xf2] sm:$0xff]
        %v1220 = vld [vmem:[#allocation2 + $0xfa] sm:$0xff]
        %v1221 = vld [vmem:[#allocation2 + $0x10a] sm:$0xff]
        %v1222 = vld [vmem:[#allocation2 + $0x112] sm:$0xff]
        %v1223 = vld [vmem:[#allocation2 + $0x122] sm:$0xff]
        %v1224 = vld [vmem:[#allocation2 + $0x12a] sm:$0xff]
        %v1225 = vld [vmem:[#allocation2 + $0x13a] sm:$0xff]
        %v1226 = vld [vmem:[#allocation2 + $0x142] sm:$0xff]
        %v1227 = vld [vmem:[#allocation2 + $0x152] sm:$0xff]
        %v1228 = vld [vmem:[#allocation2 + $0x15a] sm:$0xff]
        %v1229 = vld [vmem:[#allocation2 + $0x16a] sm:$0xff]
        %v1230 = vld [vmem:[#allocation2 + $0x172] sm:$0xff]
        %s1231 = scalar_lea.vmem %s1, 8
        %v1232 = vld [vmem:[%s1231] sm:$0x7]
        %v1234 = vsel %vm394, %v1199, 0
        %v1237 = vsel %vm394, %v1200, 0
        %v1240 = vsel %vm394, %v1201, 0
        %v1243 = vsel %vm394, %v1202, 0
        %v1246 = vsel %vm394, %v1203, 0
        %v1249 = vsel %vm394, %v1204, 0
        %v1252 = vsel %vm394, %v1205, 0
        %v1255 = vsel %vm394, %v1206, 0
        %v1258 = vsel %vm394, %v1207, 0
        %v1261 = vsel %vm394, %v1208, 0
        %v1264 = vsel %vm394, %v1209, 0
        %v1267 = vsel %vm394, %v1210, 0
        %v1270 = vsel %vm394, %v1211, 0
        %v1273 = vsel %vm394, %v1212, 0
        %v1276 = vsel %vm394, %v1213, 0
        %v1279 = vsel %vm394, %v1214, 0
        %v1282 = vsel %vm394, %v1215, 0
        %v1285 = vsel %vm394, %v1216, 0
        %v1288 = vsel %vm394, %v1217, 0
        %v1291 = vsel %vm394, %v1218, 0
        %v1294 = vsel %vm394, %v1219, 0
        %v1297 = vsel %vm394, %v1220, 0
        %v1300 = vsel %vm394, %v1221, 0
        %v1303 = vsel %vm394, %v1222, 0
        %v1306 = vsel %vm394, %v1223, 0
        %v1309 = vsel %vm394, %v1224, 0
        %v1312 = vsel %vm394, %v1225, 0
        %v1315 = vsel %vm394, %v1226, 0
        %v1318 = vsel %vm394, %v1227, 0
        %v1321 = vsel %vm394, %v1228, 0
        %v1324 = vsel %vm394, %v1229, 0
        %v1327 = vsel %vm394, %v1230, 0
        %v1330 = vsel %vm646, %v1232, 0
        %1332 = vmatprep.subr.mxu0 0.0
        %1333 = vmatpush1.msra.mxu0 0.0
        %1334 = vmatprep.subr.mxu0 0.0
        %1335 = vmatpush1.msra.mxu0 0.0
        %1336 = vmatprep.subr.mxu0 0.0
        %1337 = vmatpush1.msra.mxu0 0.0
        %1338 = vmatprep.subr.mxu0 0.0
        %1339 = vmatpush1.msra.mxu0 0.0
        %1340 = vmatprep.subr.mxu0 0.0
        %1341 = vmatpush1.msra.mxu0 0.0
        %1342 = vmatprep.subr.mxu0 0.0
        %1343 = vmatpush1.msra.mxu0 0.0
        %1344 = vmatprep.subr.mxu0 0.0
        %1345 = vmatpush1.msra.mxu0 0.0
        %1346 = vmatprep.subr.mxu0 0.0
        %1347 = vmatpush1.msra.mxu0 0.0
        %1348 = vmatprep.subr.mxu0 0.0
        %1349 = vmatpush1.msra.mxu0 0.0
        %1350 = vmatprep.subr.mxu0 0.0
        %1351 = vmatpush1.msra.mxu0 0.0
        %1352 = vmatprep.subr.mxu0 0.0
        %1353 = vmatpush1.msra.mxu0 0.0
        %1354 = vmatprep.subr.mxu0 0.0
        %1355 = vmatpush1.msra.mxu0 0.0
        %1356 = vmatprep.subr.mxu0 0.0
        %1357 = vmatpush1.msra.mxu0 0.0
        %1358 = vmatprep.subr.mxu0 0.0
        %1359 = vmatpush1.msra.mxu0 0.0
        %1360 = vmatprep.subr.mxu0 0.0
        %1361 = vmatpush1.msra.mxu0 0.0
        %1362 = vmatprep.subr.mxu0 0.0
        %1363 = vmatpush1.msra.mxu0 %v1330
        %1364 = vmatprep.subr.mxu0 0.0
        %1365 = vmatpush2.msra.mxu0 0.0
        %1366 = vmatprep.subr.mxu0 0.0
        %1367 = vmatpush2.msra.mxu0 0.0
        %1368 = vmatprep.subr.mxu0 0.0
        %1369 = vmatpush2.msra.mxu0 0.0
        %1370 = vmatprep.subr.mxu0 0.0
        %1371 = vmatpush2.msra.mxu0 0.0
        %1372 = vmatprep.subr.mxu0 0.0
        %1373 = vmatpush2.msra.mxu0 0.0
        %1374 = vmatprep.subr.mxu0 0.0
        %1375 = vmatpush2.msra.mxu0 0.0
        %1376 = vmatprep.subr.mxu0 0.0
        %1377 = vmatpush2.msra.mxu0 0.0
        %1378 = vmatprep.subr.mxu0 0.0
        %1379 = vmatpush2.msra.mxu0 0.0
        %1380 = vmatprep.subr.mxu0 0.0
        %1381 = vmatpush2.msra.mxu0 0.0
        %1382 = vmatprep.subr.mxu0 0.0
        %1383 = vmatpush2.msra.mxu0 0.0
        %1384 = vmatprep.subr.mxu0 0.0
        %1385 = vmatpush2.msra.mxu0 0.0
        %1386 = vmatprep.subr.mxu0 0.0
        %1387 = vmatpush2.msra.mxu0 0.0
        %1388 = vmatprep.subr.mxu0 0.0
        %1389 = vmatpush2.msra.mxu0 0.0
        %1390 = vmatprep.subr.mxu0 0.0
        %1391 = vmatpush2.msra.mxu0 0.0
        %1392 = vmatprep.subr.mxu0 0.0
        %1393 = vmatpush2.msra.mxu0 0.0
        %1394 = vmatprep.subr.mxu0 0.0
        %1395 = vmatpush2.msra.mxu0 0.0
        %1396 = vmatprep.mubr.f32.mxu0 0.0
        %1397 = vmatmul.mubr.f32.gmra.mxu0 %v1234
        %v1398 = vpop.f32.mrf.mxu0
        %v1399 = vadd.f32 0.0, %v1398
        %v1400 = vpop.f32.mrf.mxu0
        %1401 = vmatprep.mubr.f32.mxu0 0.0
        %1402 = vmatmul.mubr.f32.gmra.mxu0 %v1237
        %v1403 = vpop.f32.mrf.mxu0
        %v1404 = vadd.f32 0.0, %v1403
        %v1405 = vpop.f32.mrf.mxu0
        %1406 = vmatprep.mubr.f32.mxu0 0.0
        %1407 = vmatmul.mubr.f32.gmra.mxu0 %v1240
        %v1408 = vpop.f32.mrf.mxu0
        %v1409 = vadd.f32 0.0, %v1408
        %v1410 = vpop.f32.mrf.mxu0
        %1411 = vmatprep.mubr.f32.mxu0 0.0
        %1412 = vmatmul.mubr.f32.gmra.mxu0 %v1243
        %v1413 = vpop.f32.mrf.mxu0
        %v1414 = vadd.f32 0.0, %v1413
        %v1415 = vpop.f32.mrf.mxu0
        %1416 = vmatprep.mubr.f32.mxu0 0.0
        %1417 = vmatmul.mubr.f32.gmra.mxu0 %v1246
        %v1418 = vpop.f32.mrf.mxu0
        %v1419 = vadd.f32 0.0, %v1418
        %v1420 = vpop.f32.mrf.mxu0
        %1421 = vmatprep.mubr.f32.mxu0 0.0
        %1422 = vmatmul.mubr.f32.gmra.mxu0 %v1249
        %v1423 = vpop.f32.mrf.mxu0
        %v1424 = vadd.f32 0.0, %v1423
        %v1425 = vpop.f32.mrf.mxu0
        %1426 = vmatprep.mubr.f32.mxu0 0.0
        %1427 = vmatmul.mubr.f32.gmra.mxu0 %v1252
        %v1428 = vpop.f32.mrf.mxu0
        %v1429 = vadd.f32 0.0, %v1428
        %v1430 = vpop.f32.mrf.mxu0
        %1431 = vmatprep.mubr.f32.mxu0 0.0
        %1432 = vmatmul.mubr.f32.gmra.mxu0 %v1255
        %v1433 = vpop.f32.mrf.mxu0
        %v1434 = vadd.f32 0.0, %v1433
        %v1435 = vpop.f32.mrf.mxu0
        %1436 = vmatprep.mubr.f32.mxu0 0.0
        %1437 = vmatmul.mubr.f32.gmra.mxu0 %v1258
        %v1438 = vpop.f32.mrf.mxu0
        %v1439 = vadd.f32 0.0, %v1438
        %v1440 = vpop.f32.mrf.mxu0
        %1441 = vmatprep.mubr.f32.mxu0 0.0
        %1442 = vmatmul.mubr.f32.gmra.mxu0 %v1261
        %v1443 = vpop.f32.mrf.mxu0
        %v1444 = vadd.f32 0.0, %v1443
        %v1445 = vpop.f32.mrf.mxu0
        %1446 = vmatprep.mubr.f32.mxu0 0.0
        %1447 = vmatmul.mubr.f32.gmra.mxu0 %v1264
        %v1448 = vpop.f32.mrf.mxu0
        %v1449 = vadd.f32 0.0, %v1448
        %v1450 = vpop.f32.mrf.mxu0
        %1451 = vmatprep.mubr.f32.mxu0 0.0
        %1452 = vmatmul.mubr.f32.gmra.mxu0 %v1267
        %v1453 = vpop.f32.mrf.mxu0
        %v1454 = vadd.f32 0.0, %v1453
        %v1455 = vpop.f32.mrf.mxu0
        %1456 = vmatprep.mubr.f32.mxu0 0.0
        %1457 = vmatmul.mubr.f32.gmra.mxu0 %v1270
        %v1458 = vpop.f32.mrf.mxu0
        %v1459 = vadd.f32 0.0, %v1458
        %v1460 = vpop.f32.mrf.mxu0
        %1461 = vmatprep.mubr.f32.mxu0 0.0
        %1462 = vmatmul.mubr.f32.gmra.mxu0 %v1273
        %v1463 = vpop.f32.mrf.mxu0
        %v1464 = vadd.f32 0.0, %v1463
        %v1465 = vpop.f32.mrf.mxu0
        %1466 = vmatprep.mubr.f32.mxu0 0.0
        %1467 = vmatmul.mubr.f32.gmra.mxu0 %v1276
        %v1468 = vpop.f32.mrf.mxu0
        %v1469 = vadd.f32 0.0, %v1468
        %v1470 = vpop.f32.mrf.mxu0
        %1471 = vmatprep.mubr.f32.mxu0 0.0
        %1472 = vmatmul.mubr.f32.gmra.mxu0 %v1279
        %v1473 = vpop.f32.mrf.mxu0
        %v1474 = vadd.f32 0.0, %v1473
        %v1475 = vpop.f32.mrf.mxu0
        %1476 = vmatprep.mubr.f32.mxu0 0.0
        %1477 = vmatmul.mubr.f32.gmra.mxu0 %v1282
        %v1478 = vpop.f32.mrf.mxu0
        %v1479 = vadd.f32 0.0, %v1478
        %v1480 = vpop.f32.mrf.mxu0
        %1481 = vmatprep.mubr.f32.mxu0 0.0
        %1482 = vmatmul.mubr.f32.gmra.mxu0 %v1285
        %v1483 = vpop.f32.mrf.mxu0
        %v1484 = vadd.f32 0.0, %v1483
        %v1485 = vpop.f32.mrf.mxu0
        %1486 = vmatprep.mubr.f32.mxu0 0.0
        %1487 = vmatmul.mubr.f32.gmra.mxu0 %v1288
        %v1488 = vpop.f32.mrf.mxu0
        %v1489 = vadd.f32 0.0, %v1488
        %v1490 = vpop.f32.mrf.mxu0
        %1491 = vmatprep.mubr.f32.mxu0 0.0
        %1492 = vmatmul.mubr.f32.gmra.mxu0 %v1291
        %v1493 = vpop.f32.mrf.mxu0
        %v1494 = vadd.f32 0.0, %v1493
        %v1495 = vpop.f32.mrf.mxu0
        %1496 = vmatprep.mubr.f32.mxu0 0.0
        %1497 = vmatmul.mubr.f32.gmra.mxu0 %v1294
        %v1498 = vpop.f32.mrf.mxu0
        %v1499 = vadd.f32 0.0, %v1498
        %v1500 = vpop.f32.mrf.mxu0
        %1501 = vmatprep.mubr.f32.mxu0 0.0
        %1502 = vmatmul.mubr.f32.gmra.mxu0 %v1297
        %v1503 = vpop.f32.mrf.mxu0
        %v1504 = vadd.f32 0.0, %v1503
        %v1505 = vpop.f32.mrf.mxu0
        %1506 = vmatprep.mubr.f32.mxu0 0.0
        %1507 = vmatmul.mubr.f32.gmra.mxu0 %v1300
        %v1508 = vpop.f32.mrf.mxu0
        %v1509 = vadd.f32 0.0, %v1508
        %v1510 = vpop.f32.mrf.mxu0
        %1511 = vmatprep.mubr.f32.mxu0 0.0
        %1512 = vmatmul.mubr.f32.gmra.mxu0 %v1303
        %v1513 = vpop.f32.mrf.mxu0
        %v1514 = vadd.f32 0.0, %v1513
        %v1515 = vpop.f32.mrf.mxu0
        %1516 = vmatprep.mubr.f32.mxu0 0.0
        %1517 = vmatmul.mubr.f32.gmra.mxu0 %v1306
        %v1518 = vpop.f32.mrf.mxu0
        %v1519 = vadd.f32 0.0, %v1518
        %v1520 = vpop.f32.mrf.mxu0
        %1521 = vmatprep.mubr.f32.mxu0 0.0
        %1522 = vmatmul.mubr.f32.gmra.mxu0 %v1309
        %v1523 = vpop.f32.mrf.mxu0
        %v1524 = vadd.f32 0.0, %v1523
        %v1525 = vpop.f32.mrf.mxu0
        %1526 = vmatprep.mubr.f32.mxu0 0.0
        %1527 = vmatmul.mubr.f32.gmra.mxu0 %v1312
        %v1528 = vpop.f32.mrf.mxu0
        %v1529 = vadd.f32 0.0, %v1528
        %v1530 = vpop.f32.mrf.mxu0
        %1531 = vmatprep.mubr.f32.mxu0 0.0
        %1532 = vmatmul.mubr.f32.gmra.mxu0 %v1315
        %v1533 = vpop.f32.mrf.mxu0
        %v1534 = vadd.f32 0.0, %v1533
        %v1535 = vpop.f32.mrf.mxu0
        %1536 = vmatprep.mubr.f32.mxu0 0.0
        %1537 = vmatmul.mubr.f32.gmra.mxu0 %v1318
        %v1538 = vpop.f32.mrf.mxu0
        %v1539 = vadd.f32 0.0, %v1538
        %v1540 = vpop.f32.mrf.mxu0
        %1541 = vmatprep.mubr.f32.mxu0 0.0
        %1542 = vmatmul.mubr.f32.gmra.mxu0 %v1321
        %v1543 = vpop.f32.mrf.mxu0
        %v1544 = vadd.f32 0.0, %v1543
        %v1545 = vpop.f32.mrf.mxu0
        %1546 = vmatprep.mubr.f32.mxu0 0.0
        %1547 = vmatmul.mubr.f32.gmra.mxu0 %v1324
        %v1548 = vpop.f32.mrf.mxu0
        %v1549 = vadd.f32 0.0, %v1548
        %v1550 = vpop.f32.mrf.mxu0
        %1551 = vmatprep.mubr.f32.mxu0 0.0
        %1552 = vmatmul.mubr.f32.gmra.mxu0 %v1327
        %v1553 = vpop.f32.mrf.mxu0
        %v1554 = vadd.f32 0.0, %v1553
        %v1555 = vpop.f32.mrf.mxu0
        %1556 = vdwg.mxu0
        %v1557 = vadd.f32 %v1041, %v1399
        %v1558 = vadd.f32 %v1046, %v1404
        %v1559 = vadd.f32 %v1051, %v1409
        %v1560 = vadd.f32 %v1056, %v1414
        %v1561 = vadd.f32 %v1061, %v1419
        %v1562 = vadd.f32 %v1066, %v1424
        %v1563 = vadd.f32 %v1071, %v1429
        %v1564 = vadd.f32 %v1076, %v1434
        %v1565 = vadd.f32 %v1081, %v1439
        %v1566 = vadd.f32 %v1086, %v1444
        %v1567 = vadd.f32 %v1091, %v1449
        %v1568 = vadd.f32 %v1096, %v1454
        %v1569 = vadd.f32 %v1101, %v1459
        %v1570 = vadd.f32 %v1106, %v1464
        %v1571 = vadd.f32 %v1111, %v1469
        %v1572 = vadd.f32 %v1116, %v1474
        %v1573 = vadd.f32 %v1121, %v1479
        %v1574 = vadd.f32 %v1126, %v1484
        %v1575 = vadd.f32 %v1131, %v1489
        %v1576 = vadd.f32 %v1136, %v1494
        %v1577 = vadd.f32 %v1141, %v1499
        %v1578 = vadd.f32 %v1146, %v1504
        %v1579 = vadd.f32 %v1151, %v1509
        %v1580 = vadd.f32 %v1156, %v1514
        %v1581 = vadd.f32 %v1161, %v1519
        %v1582 = vadd.f32 %v1166, %v1524
        %v1583 = vadd.f32 %v1171, %v1529
        %v1584 = vadd.f32 %v1176, %v1534
        %v1585 = vadd.f32 %v1181, %v1539
        %v1586 = vadd.f32 %v1186, %v1544
        %v1587 = vadd.f32 %v1191, %v1549
        %v1588 = vadd.f32 %v1196, %v1554
        %v1589 = vld [vmem:[%s450] sm:$0xff]
        %v1590 = vld [vmem:[%s450 + $0x8] sm:$0xff]
        %v1591 = vld [vmem:[%s450 + $0x18] sm:$0xff]
        %v1592 = vld [vmem:[%s450 + $0x20] sm:$0xff]
        %v1593 = vld [vmem:[%s450 + $0x30] sm:$0xff]
        %v1594 = vld [vmem:[%s450 + $0x38] sm:$0xff]
        %v1595 = vld [vmem:[%s450 + $0x48] sm:$0xff]
        %v1596 = vld [vmem:[%s450 + $0x50] sm:$0xff]
        %v1597 = vld [vmem:[%s450 + $0x60] sm:$0xff]
        %v1598 = vld [vmem:[%s450 + $0x68] sm:$0xff]
        %v1599 = vld [vmem:[%s450 + $0x78] sm:$0xff]
        %v1600 = vld [vmem:[%s450 + $0x80] sm:$0xff]
        %v1601 = vld [vmem:[%s450 + $0x90] sm:$0xff]
        %v1602 = vld [vmem:[%s450 + $0x98] sm:$0xff]
        %v1603 = vld [vmem:[%s450 + $0xa8] sm:$0xff]
        %v1604 = vld [vmem:[%s450 + $0xb0] sm:$0xff]
        %v1605 = vld [vmem:[%s450 + $0xc0] sm:$0xff]
        %v1606 = vld [vmem:[%s450 + $0xc8] sm:$0xff]
        %v1607 = vld [vmem:[%s450 + $0xd8] sm:$0xff]
        %v1608 = vld [vmem:[%s450 + $0xe0] sm:$0xff]
        %v1609 = vld [vmem:[%s450 + $0xf0] sm:$0xff]
        %v1610 = vld [vmem:[%s450 + $0xf8] sm:$0xff]
        %v1611 = vld [vmem:[%s450 + $0x108] sm:$0xff]
        %v1612 = vld [vmem:[%s450 + $0x110] sm:$0xff]
        %v1613 = vld [vmem:[%s450 + $0x120] sm:$0xff]
        %v1614 = vld [vmem:[%s450 + $0x128] sm:$0xff]
        %v1615 = vld [vmem:[%s450 + $0x138] sm:$0xff]
        %v1616 = vld [vmem:[%s450 + $0x140] sm:$0xff]
        %v1617 = vld [vmem:[%s450 + $0x150] sm:$0xff]
        %v1618 = vld [vmem:[%s450 + $0x158] sm:$0xff]
        %v1619 = vld [vmem:[%s450 + $0x168] sm:$0xff]
        %v1620 = vld [vmem:[%s450 + $0x170] sm:$0xff]
        %s1621 = scalar_lea.vmem %s1, 12
        %v1622 = vld [vmem:[%s1621] sm:$0x7]
        %v1624 = vsel %vm394, %v1589, 0
        %v1627 = vsel %vm394, %v1590, 0
        %v1630 = vsel %vm394, %v1591, 0
        %v1633 = vsel %vm394, %v1592, 0
        %v1636 = vsel %vm394, %v1593, 0
        %v1639 = vsel %vm394, %v1594, 0
        %v1642 = vsel %vm394, %v1595, 0
        %v1645 = vsel %vm394, %v1596, 0
        %v1648 = vsel %vm394, %v1597, 0
        %v1651 = vsel %vm394, %v1598, 0
        %v1654 = vsel %vm394, %v1599, 0
        %v1657 = vsel %vm394, %v1600, 0
        %v1660 = vsel %vm394, %v1601, 0
        %v1663 = vsel %vm394, %v1602, 0
        %v1666 = vsel %vm394, %v1603, 0
        %v1669 = vsel %vm394, %v1604, 0
        %v1672 = vsel %vm394, %v1605, 0
        %v1675 = vsel %vm394, %v1606, 0
        %v1678 = vsel %vm394, %v1607, 0
        %v1681 = vsel %vm394, %v1608, 0
        %v1684 = vsel %vm394, %v1609, 0
        %v1687 = vsel %vm394, %v1610, 0
        %v1690 = vsel %vm394, %v1611, 0
        %v1693 = vsel %vm394, %v1612, 0
        %v1696 = vsel %vm394, %v1613, 0
        %v1699 = vsel %vm394, %v1614, 0
        %v1702 = vsel %vm394, %v1615, 0
        %v1705 = vsel %vm394, %v1616, 0
        %v1708 = vsel %vm394, %v1617, 0
        %v1711 = vsel %vm394, %v1618, 0
        %v1714 = vsel %vm394, %v1619, 0
        %v1717 = vsel %vm394, %v1620, 0
        %v1720 = vsel %vm646, %v1622, 0
        %1722 = vmatprep.subr.mxu0 0.0
        %1723 = vmatpush1.msra.mxu0 0.0
        %1724 = vmatprep.subr.mxu0 0.0
        %1725 = vmatpush1.msra.mxu0 0.0
        %1726 = vmatprep.subr.mxu0 0.0
        %1727 = vmatpush1.msra.mxu0 0.0
        %1728 = vmatprep.subr.mxu0 0.0
        %1729 = vmatpush1.msra.mxu0 0.0
        %1730 = vmatprep.subr.mxu0 0.0
        %1731 = vmatpush1.msra.mxu0 0.0
        %1732 = vmatprep.subr.mxu0 0.0
        %1733 = vmatpush1.msra.mxu0 0.0
        %1734 = vmatprep.subr.mxu0 0.0
        %1735 = vmatpush1.msra.mxu0 0.0
        %1736 = vmatprep.subr.mxu0 0.0
        %1737 = vmatpush1.msra.mxu0 0.0
        %1738 = vmatprep.subr.mxu0 0.0
        %1739 = vmatpush1.msra.mxu0 0.0
        %1740 = vmatprep.subr.mxu0 0.0
        %1741 = vmatpush1.msra.mxu0 0.0
        %1742 = vmatprep.subr.mxu0 0.0
        %1743 = vmatpush1.msra.mxu0 0.0
        %1744 = vmatprep.subr.mxu0 0.0
        %1745 = vmatpush1.msra.mxu0 0.0
        %1746 = vmatprep.subr.mxu0 0.0
        %1747 = vmatpush1.msra.mxu0 0.0
        %1748 = vmatprep.subr.mxu0 0.0
        %1749 = vmatpush1.msra.mxu0 0.0
        %1750 = vmatprep.subr.mxu0 0.0
        %1751 = vmatpush1.msra.mxu0 0.0
        %1752 = vmatprep.subr.mxu0 0.0
        %1753 = vmatpush1.msra.mxu0 %v1720
        %1754 = vmatprep.subr.mxu0 0.0
        %1755 = vmatpush2.msra.mxu0 0.0
        %1756 = vmatprep.subr.mxu0 0.0
        %1757 = vmatpush2.msra.mxu0 0.0
        %1758 = vmatprep.subr.mxu0 0.0
        %1759 = vmatpush2.msra.mxu0 0.0
        %1760 = vmatprep.subr.mxu0 0.0
        %1761 = vmatpush2.msra.mxu0 0.0
        %1762 = vmatprep.subr.mxu0 0.0
        %1763 = vmatpush2.msra.mxu0 0.0
        %1764 = vmatprep.subr.mxu0 0.0
        %1765 = vmatpush2.msra.mxu0 0.0
        %1766 = vmatprep.subr.mxu0 0.0
        %1767 = vmatpush2.msra.mxu0 0.0
        %1768 = vmatprep.subr.mxu0 0.0
        %1769 = vmatpush2.msra.mxu0 0.0
        %1770 = vmatprep.subr.mxu0 0.0
        %1771 = vmatpush2.msra.mxu0 0.0
        %1772 = vmatprep.subr.mxu0 0.0
        %1773 = vmatpush2.msra.mxu0 0.0
        %1774 = vmatprep.subr.mxu0 0.0
        %1775 = vmatpush2.msra.mxu0 0.0
        %1776 = vmatprep.subr.mxu0 0.0
        %1777 = vmatpush2.msra.mxu0 0.0
        %1778 = vmatprep.subr.mxu0 0.0
        %1779 = vmatpush2.msra.mxu0 0.0
        %1780 = vmatprep.subr.mxu0 0.0
        %1781 = vmatpush2.msra.mxu0 0.0
        %1782 = vmatprep.subr.mxu0 0.0
        %1783 = vmatpush2.msra.mxu0 0.0
        %1784 = vmatprep.subr.mxu0 0.0
        %1785 = vmatpush2.msra.mxu0 0.0
        %1786 = vmatprep.mubr.f32.mxu0 0.0
        %1787 = vmatmul.mubr.f32.gmra.mxu0 %v1624
        %v1788 = vpop.f32.mrf.mxu0
        %v1789 = vadd.f32 0.0, %v1788
        %v1790 = vpop.f32.mrf.mxu0
        %1791 = vmatprep.mubr.f32.mxu0 0.0
        %1792 = vmatmul.mubr.f32.gmra.mxu0 %v1627
        %v1793 = vpop.f32.mrf.mxu0
        %v1794 = vadd.f32 0.0, %v1793
        %v1795 = vpop.f32.mrf.mxu0
        %1796 = vmatprep.mubr.f32.mxu0 0.0
        %1797 = vmatmul.mubr.f32.gmra.mxu0 %v1630
        %v1798 = vpop.f32.mrf.mxu0
        %v1799 = vadd.f32 0.0, %v1798
        %v1800 = vpop.f32.mrf.mxu0
        %1801 = vmatprep.mubr.f32.mxu0 0.0
        %1802 = vmatmul.mubr.f32.gmra.mxu0 %v1633
        %v1803 = vpop.f32.mrf.mxu0
        %v1804 = vadd.f32 0.0, %v1803
        %v1805 = vpop.f32.mrf.mxu0
        %1806 = vmatprep.mubr.f32.mxu0 0.0
        %1807 = vmatmul.mubr.f32.gmra.mxu0 %v1636
        %v1808 = vpop.f32.mrf.mxu0
        %v1809 = vadd.f32 0.0, %v1808
        %v1810 = vpop.f32.mrf.mxu0
        %1811 = vmatprep.mubr.f32.mxu0 0.0
        %1812 = vmatmul.mubr.f32.gmra.mxu0 %v1639
        %v1813 = vpop.f32.mrf.mxu0
        %v1814 = vadd.f32 0.0, %v1813
        %v1815 = vpop.f32.mrf.mxu0
        %1816 = vmatprep.mubr.f32.mxu0 0.0
        %1817 = vmatmul.mubr.f32.gmra.mxu0 %v1642
        %v1818 = vpop.f32.mrf.mxu0
        %v1819 = vadd.f32 0.0, %v1818
        %v1820 = vpop.f32.mrf.mxu0
        %1821 = vmatprep.mubr.f32.mxu0 0.0
        %1822 = vmatmul.mubr.f32.gmra.mxu0 %v1645
        %v1823 = vpop.f32.mrf.mxu0
        %v1824 = vadd.f32 0.0, %v1823
        %v1825 = vpop.f32.mrf.mxu0
        %1826 = vmatprep.mubr.f32.mxu0 0.0
        %1827 = vmatmul.mubr.f32.gmra.mxu0 %v1648
        %v1828 = vpop.f32.mrf.mxu0
        %v1829 = vadd.f32 0.0, %v1828
        %v1830 = vpop.f32.mrf.mxu0
        %1831 = vmatprep.mubr.f32.mxu0 0.0
        %1832 = vmatmul.mubr.f32.gmra.mxu0 %v1651
        %v1833 = vpop.f32.mrf.mxu0
        %v1834 = vadd.f32 0.0, %v1833
        %v1835 = vpop.f32.mrf.mxu0
        %1836 = vmatprep.mubr.f32.mxu0 0.0
        %1837 = vmatmul.mubr.f32.gmra.mxu0 %v1654
        %v1838 = vpop.f32.mrf.mxu0
        %v1839 = vadd.f32 0.0, %v1838
        %v1840 = vpop.f32.mrf.mxu0
        %1841 = vmatprep.mubr.f32.mxu0 0.0
        %1842 = vmatmul.mubr.f32.gmra.mxu0 %v1657
        %v1843 = vpop.f32.mrf.mxu0
        %v1844 = vadd.f32 0.0, %v1843
        %v1845 = vpop.f32.mrf.mxu0
        %1846 = vmatprep.mubr.f32.mxu0 0.0
        %1847 = vmatmul.mubr.f32.gmra.mxu0 %v1660
        %v1848 = vpop.f32.mrf.mxu0
        %v1849 = vadd.f32 0.0, %v1848
        %v1850 = vpop.f32.mrf.mxu0
        %1851 = vmatprep.mubr.f32.mxu0 0.0
        %1852 = vmatmul.mubr.f32.gmra.mxu0 %v1663
        %v1853 = vpop.f32.mrf.mxu0
        %v1854 = vadd.f32 0.0, %v1853
        %v1855 = vpop.f32.mrf.mxu0
        %1856 = vmatprep.mubr.f32.mxu0 0.0
        %1857 = vmatmul.mubr.f32.gmra.mxu0 %v1666
        %v1858 = vpop.f32.mrf.mxu0
        %v1859 = vadd.f32 0.0, %v1858
        %v1860 = vpop.f32.mrf.mxu0
        %1861 = vmatprep.mubr.f32.mxu0 0.0
        %1862 = vmatmul.mubr.f32.gmra.mxu0 %v1669
        %v1863 = vpop.f32.mrf.mxu0
        %v1864 = vadd.f32 0.0, %v1863
        %v1865 = vpop.f32.mrf.mxu0
        %1866 = vmatprep.mubr.f32.mxu0 0.0
        %1867 = vmatmul.mubr.f32.gmra.mxu0 %v1672
        %v1868 = vpop.f32.mrf.mxu0
        %v1869 = vadd.f32 0.0, %v1868
        %v1870 = vpop.f32.mrf.mxu0
        %1871 = vmatprep.mubr.f32.mxu0 0.0
        %1872 = vmatmul.mubr.f32.gmra.mxu0 %v1675
        %v1873 = vpop.f32.mrf.mxu0
        %v1874 = vadd.f32 0.0, %v1873
        %v1875 = vpop.f32.mrf.mxu0
        %1876 = vmatprep.mubr.f32.mxu0 0.0
        %1877 = vmatmul.mubr.f32.gmra.mxu0 %v1678
        %v1878 = vpop.f32.mrf.mxu0
        %v1879 = vadd.f32 0.0, %v1878
        %v1880 = vpop.f32.mrf.mxu0
        %1881 = vmatprep.mubr.f32.mxu0 0.0
        %1882 = vmatmul.mubr.f32.gmra.mxu0 %v1681
        %v1883 = vpop.f32.mrf.mxu0
        %v1884 = vadd.f32 0.0, %v1883
        %v1885 = vpop.f32.mrf.mxu0
        %1886 = vmatprep.mubr.f32.mxu0 0.0
        %1887 = vmatmul.mubr.f32.gmra.mxu0 %v1684
        %v1888 = vpop.f32.mrf.mxu0
        %v1889 = vadd.f32 0.0, %v1888
        %v1890 = vpop.f32.mrf.mxu0
        %1891 = vmatprep.mubr.f32.mxu0 0.0
        %1892 = vmatmul.mubr.f32.gmra.mxu0 %v1687
        %v1893 = vpop.f32.mrf.mxu0
        %v1894 = vadd.f32 0.0, %v1893
        %v1895 = vpop.f32.mrf.mxu0
        %1896 = vmatprep.mubr.f32.mxu0 0.0
        %1897 = vmatmul.mubr.f32.gmra.mxu0 %v1690
        %v1898 = vpop.f32.mrf.mxu0
        %v1899 = vadd.f32 0.0, %v1898
        %v1900 = vpop.f32.mrf.mxu0
        %1901 = vmatprep.mubr.f32.mxu0 0.0
        %1902 = vmatmul.mubr.f32.gmra.mxu0 %v1693
        %v1903 = vpop.f32.mrf.mxu0
        %v1904 = vadd.f32 0.0, %v1903
        %v1905 = vpop.f32.mrf.mxu0
        %1906 = vmatprep.mubr.f32.mxu0 0.0
        %1907 = vmatmul.mubr.f32.gmra.mxu0 %v1696
        %v1908 = vpop.f32.mrf.mxu0
        %v1909 = vadd.f32 0.0, %v1908
        %v1910 = vpop.f32.mrf.mxu0
        %1911 = vmatprep.mubr.f32.mxu0 0.0
        %1912 = vmatmul.mubr.f32.gmra.mxu0 %v1699
        %v1913 = vpop.f32.mrf.mxu0
        %v1914 = vadd.f32 0.0, %v1913
        %v1915 = vpop.f32.mrf.mxu0
        %1916 = vmatprep.mubr.f32.mxu0 0.0
        %1917 = vmatmul.mubr.f32.gmra.mxu0 %v1702
        %v1918 = vpop.f32.mrf.mxu0
        %v1919 = vadd.f32 0.0, %v1918
        %v1920 = vpop.f32.mrf.mxu0
        %1921 = vmatprep.mubr.f32.mxu0 0.0
        %1922 = vmatmul.mubr.f32.gmra.mxu0 %v1705
        %v1923 = vpop.f32.mrf.mxu0
        %v1924 = vadd.f32 0.0, %v1923
        %v1925 = vpop.f32.mrf.mxu0
        %1926 = vmatprep.mubr.f32.mxu0 0.0
        %1927 = vmatmul.mubr.f32.gmra.mxu0 %v1708
        %v1928 = vpop.f32.mrf.mxu0
        %v1929 = vadd.f32 0.0, %v1928
        %v1930 = vpop.f32.mrf.mxu0
        %1931 = vmatprep.mubr.f32.mxu0 0.0
        %1932 = vmatmul.mubr.f32.gmra.mxu0 %v1711
        %v1933 = vpop.f32.mrf.mxu0
        %v1934 = vadd.f32 0.0, %v1933
        %v1935 = vpop.f32.mrf.mxu0
        %1936 = vmatprep.mubr.f32.mxu0 0.0
        %1937 = vmatmul.mubr.f32.gmra.mxu0 %v1714
        %v1938 = vpop.f32.mrf.mxu0
        %v1939 = vadd.f32 0.0, %v1938
        %v1940 = vpop.f32.mrf.mxu0
        %1941 = vmatprep.mubr.f32.mxu0 0.0
        %1942 = vmatmul.mubr.f32.gmra.mxu0 %v1717
        %v1943 = vpop.f32.mrf.mxu0
        %v1944 = vadd.f32 0.0, %v1943
        %v1945 = vpop.f32.mrf.mxu0
        %1946 = vdwg.mxu0
        %v1947 = vadd.f32 %v1557, %v1789
        %v1948 = vadd.f32 %v1558, %v1794
        %v1949 = vadd.f32 %v1559, %v1799
        %v1950 = vadd.f32 %v1560, %v1804
        %v1951 = vadd.f32 %v1561, %v1809
        %v1952 = vadd.f32 %v1562, %v1814
        %v1953 = vadd.f32 %v1563, %v1819
        %v1954 = vadd.f32 %v1564, %v1824
        %v1955 = vadd.f32 %v1565, %v1829
        %v1956 = vadd.f32 %v1566, %v1834
        %v1957 = vadd.f32 %v1567, %v1839
        %v1958 = vadd.f32 %v1568, %v1844
        %v1959 = vadd.f32 %v1569, %v1849
        %v1960 = vadd.f32 %v1570, %v1854
        %v1961 = vadd.f32 %v1571, %v1859
        %v1962 = vadd.f32 %v1572, %v1864
        %v1963 = vadd.f32 %v1573, %v1869
        %v1964 = vadd.f32 %v1574, %v1874
        %v1965 = vadd.f32 %v1575, %v1879
        %v1966 = vadd.f32 %v1576, %v1884
        %v1967 = vadd.f32 %v1577, %v1889
        %v1968 = vadd.f32 %v1578, %v1894
        %v1969 = vadd.f32 %v1579, %v1899
        %v1970 = vadd.f32 %v1580, %v1904
        %v1971 = vadd.f32 %v1581, %v1909
        %v1972 = vadd.f32 %v1582, %v1914
        %v1973 = vadd.f32 %v1583, %v1919
        %v1974 = vadd.f32 %v1584, %v1924
        %v1975 = vadd.f32 %v1585, %v1929
        %v1976 = vadd.f32 %v1586, %v1934
        %v1977 = vadd.f32 %v1587, %v1939
        %v1978 = vadd.f32 %v1588, %v1944
        %v1979 = vld [vmem:[%s450 + $0x1] sm:$0xff]
        %v1980 = vld [vmem:[%s450 + $0x9] sm:$0xff]
        %v1981 = vld [vmem:[%s450 + $0x19] sm:$0xff]
        %v1982 = vld [vmem:[%s450 + $0x21] sm:$0xff]
        %v1983 = vld [vmem:[%s450 + $0x31] sm:$0xff]
        %v1984 = vld [vmem:[%s450 + $0x39] sm:$0xff]
        %v1985 = vld [vmem:[%s450 + $0x49] sm:$0xff]
        %v1986 = vld [vmem:[%s450 + $0x51] sm:$0xff]
        %v1987 = vld [vmem:[%s450 + $0x61] sm:$0xff]
        %v1988 = vld [vmem:[%s450 + $0x69] sm:$0xff]
        %v1989 = vld [vmem:[%s450 + $0x79] sm:$0xff]
        %v1990 = vld [vmem:[%s450 + $0x81] sm:$0xff]
        %v1991 = vld [vmem:[%s450 + $0x91] sm:$0xff]
        %v1992 = vld [vmem:[%s450 + $0x99] sm:$0xff]
        %v1993 = vld [vmem:[%s450 + $0xa9] sm:$0xff]
        %v1994 = vld [vmem:[%s450 + $0xb1] sm:$0xff]
        %v1995 = vld [vmem:[%s450 + $0xc1] sm:$0xff]
        %v1996 = vld [vmem:[%s450 + $0xc9] sm:$0xff]
        %v1997 = vld [vmem:[%s450 + $0xd9] sm:$0xff]
        %v1998 = vld [vmem:[%s450 + $0xe1] sm:$0xff]
        %v1999 = vld [vmem:[%s450 + $0xf1] sm:$0xff]
        %v2000 = vld [vmem:[%s450 + $0xf9] sm:$0xff]
        %v2001 = vld [vmem:[%s450 + $0x109] sm:$0xff]
        %v2002 = vld [vmem:[%s450 + $0x111] sm:$0xff]
        %v2003 = vld [vmem:[%s450 + $0x121] sm:$0xff]
        %v2004 = vld [vmem:[%s450 + $0x129] sm:$0xff]
        %v2005 = vld [vmem:[%s450 + $0x139] sm:$0xff]
        %v2006 = vld [vmem:[%s450 + $0x141] sm:$0xff]
        %v2007 = vld [vmem:[%s450 + $0x151] sm:$0xff]
        %v2008 = vld [vmem:[%s450 + $0x159] sm:$0xff]
        %v2009 = vld [vmem:[%s450 + $0x169] sm:$0xff]
        %v2010 = vld [vmem:[%s450 + $0x171] sm:$0xff]
        %s2011 = scalar_lea.vmem %s1, 16
        %v2012 = vld [vmem:[%s2011] sm:$0x7]
        %v2014 = vsel %vm394, %v1979, 0
        %v2017 = vsel %vm394, %v1980, 0
        %v2020 = vsel %vm394, %v1981, 0
        %v2023 = vsel %vm394, %v1982, 0
        %v2026 = vsel %vm394, %v1983, 0
        %v2029 = vsel %vm394, %v1984, 0
        %v2032 = vsel %vm394, %v1985, 0
        %v2035 = vsel %vm394, %v1986, 0
        %v2038 = vsel %vm394, %v1987, 0
        %v2041 = vsel %vm394, %v1988, 0
        %v2044 = vsel %vm394, %v1989, 0
        %v2047 = vsel %vm394, %v1990, 0
        %v2050 = vsel %vm394, %v1991, 0
        %v2053 = vsel %vm394, %v1992, 0
        %v2056 = vsel %vm394, %v1993, 0
        %v2059 = vsel %vm394, %v1994, 0
        %v2062 = vsel %vm394, %v1995, 0
        %v2065 = vsel %vm394, %v1996, 0
        %v2068 = vsel %vm394, %v1997, 0
        %v2071 = vsel %vm394, %v1998, 0
        %v2074 = vsel %vm394, %v1999, 0
        %v2077 = vsel %vm394, %v2000, 0
        %v2080 = vsel %vm394, %v2001, 0
        %v2083 = vsel %vm394, %v2002, 0
        %v2086 = vsel %vm394, %v2003, 0
        %v2089 = vsel %vm394, %v2004, 0
        %v2092 = vsel %vm394, %v2005, 0
        %v2095 = vsel %vm394, %v2006, 0
        %v2098 = vsel %vm394, %v2007, 0
        %v2101 = vsel %vm394, %v2008, 0
        %v2104 = vsel %vm394, %v2009, 0
        %v2107 = vsel %vm394, %v2010, 0
        %v2110 = vsel %vm646, %v2012, 0
        %2112 = vmatprep.subr.mxu0 0.0
        %2113 = vmatpush1.msra.mxu0 0.0
        %2114 = vmatprep.subr.mxu0 0.0
        %2115 = vmatpush1.msra.mxu0 0.0
        %2116 = vmatprep.subr.mxu0 0.0
        %2117 = vmatpush1.msra.mxu0 0.0
        %2118 = vmatprep.subr.mxu0 0.0
        %2119 = vmatpush1.msra.mxu0 0.0
        %2120 = vmatprep.subr.mxu0 0.0
        %2121 = vmatpush1.msra.mxu0 0.0
        %2122 = vmatprep.subr.mxu0 0.0
        %2123 = vmatpush1.msra.mxu0 0.0
        %2124 = vmatprep.subr.mxu0 0.0
        %2125 = vmatpush1.msra.mxu0 0.0
        %2126 = vmatprep.subr.mxu0 0.0
        %2127 = vmatpush1.msra.mxu0 0.0
        %2128 = vmatprep.subr.mxu0 0.0
        %2129 = vmatpush1.msra.mxu0 0.0
        %2130 = vmatprep.subr.mxu0 0.0
        %2131 = vmatpush1.msra.mxu0 0.0
        %2132 = vmatprep.subr.mxu0 0.0
        %2133 = vmatpush1.msra.mxu0 0.0
        %2134 = vmatprep.subr.mxu0 0.0
        %2135 = vmatpush1.msra.mxu0 0.0
        %2136 = vmatprep.subr.mxu0 0.0
        %2137 = vmatpush1.msra.mxu0 0.0
        %2138 = vmatprep.subr.mxu0 0.0
        %2139 = vmatpush1.msra.mxu0 0.0
        %2140 = vmatprep.subr.mxu0 0.0
        %2141 = vmatpush1.msra.mxu0 0.0
        %2142 = vmatprep.subr.mxu0 0.0
        %2143 = vmatpush1.msra.mxu0 %v2110
        %2144 = vmatprep.subr.mxu0 0.0
        %2145 = vmatpush2.msra.mxu0 0.0
        %2146 = vmatprep.subr.mxu0 0.0
        %2147 = vmatpush2.msra.mxu0 0.0
        %2148 = vmatprep.subr.mxu0 0.0
        %2149 = vmatpush2.msra.mxu0 0.0
        %2150 = vmatprep.subr.mxu0 0.0
        %2151 = vmatpush2.msra.mxu0 0.0
        %2152 = vmatprep.subr.mxu0 0.0
        %2153 = vmatpush2.msra.mxu0 0.0
        %2154 = vmatprep.subr.mxu0 0.0
        %2155 = vmatpush2.msra.mxu0 0.0
        %2156 = vmatprep.subr.mxu0 0.0
        %2157 = vmatpush2.msra.mxu0 0.0
        %2158 = vmatprep.subr.mxu0 0.0
        %2159 = vmatpush2.msra.mxu0 0.0
        %2160 = vmatprep.subr.mxu0 0.0
        %2161 = vmatpush2.msra.mxu0 0.0
        %2162 = vmatprep.subr.mxu0 0.0
        %2163 = vmatpush2.msra.mxu0 0.0
        %2164 = vmatprep.subr.mxu0 0.0
        %2165 = vmatpush2.msra.mxu0 0.0
        %2166 = vmatprep.subr.mxu0 0.0
        %2167 = vmatpush2.msra.mxu0 0.0
        %2168 = vmatprep.subr.mxu0 0.0
        %2169 = vmatpush2.msra.mxu0 0.0
        %2170 = vmatprep.subr.mxu0 0.0
        %2171 = vmatpush2.msra.mxu0 0.0
        %2172 = vmatprep.subr.mxu0 0.0
        %2173 = vmatpush2.msra.mxu0 0.0
        %2174 = vmatprep.subr.mxu0 0.0
        %2175 = vmatpush2.msra.mxu0 0.0
        %2176 = vmatprep.mubr.f32.mxu0 0.0
        %2177 = vmatmul.mubr.f32.gmra.mxu0 %v2014
        %v2178 = vpop.f32.mrf.mxu0
        %v2179 = vadd.f32 0.0, %v2178
        %v2180 = vpop.f32.mrf.mxu0
        %2181 = vmatprep.mubr.f32.mxu0 0.0
        %2182 = vmatmul.mubr.f32.gmra.mxu0 %v2017
        %v2183 = vpop.f32.mrf.mxu0
        %v2184 = vadd.f32 0.0, %v2183
        %v2185 = vpop.f32.mrf.mxu0
        %2186 = vmatprep.mubr.f32.mxu0 0.0
        %2187 = vmatmul.mubr.f32.gmra.mxu0 %v2020
        %v2188 = vpop.f32.mrf.mxu0
        %v2189 = vadd.f32 0.0, %v2188
        %v2190 = vpop.f32.mrf.mxu0
        %2191 = vmatprep.mubr.f32.mxu0 0.0
        %2192 = vmatmul.mubr.f32.gmra.mxu0 %v2023
        %v2193 = vpop.f32.mrf.mxu0
        %v2194 = vadd.f32 0.0, %v2193
        %v2195 = vpop.f32.mrf.mxu0
        %2196 = vmatprep.mubr.f32.mxu0 0.0
        %2197 = vmatmul.mubr.f32.gmra.mxu0 %v2026
        %v2198 = vpop.f32.mrf.mxu0
        %v2199 = vadd.f32 0.0, %v2198
        %v2200 = vpop.f32.mrf.mxu0
        %2201 = vmatprep.mubr.f32.mxu0 0.0
        %2202 = vmatmul.mubr.f32.gmra.mxu0 %v2029
        %v2203 = vpop.f32.mrf.mxu0
        %v2204 = vadd.f32 0.0, %v2203
        %v2205 = vpop.f32.mrf.mxu0
        %2206 = vmatprep.mubr.f32.mxu0 0.0
        %2207 = vmatmul.mubr.f32.gmra.mxu0 %v2032
        %v2208 = vpop.f32.mrf.mxu0
        %v2209 = vadd.f32 0.0, %v2208
        %v2210 = vpop.f32.mrf.mxu0
        %2211 = vmatprep.mubr.f32.mxu0 0.0
        %2212 = vmatmul.mubr.f32.gmra.mxu0 %v2035
        %v2213 = vpop.f32.mrf.mxu0
        %v2214 = vadd.f32 0.0, %v2213
        %v2215 = vpop.f32.mrf.mxu0
        %2216 = vmatprep.mubr.f32.mxu0 0.0
        %2217 = vmatmul.mubr.f32.gmra.mxu0 %v2038
        %v2218 = vpop.f32.mrf.mxu0
        %v2219 = vadd.f32 0.0, %v2218
        %v2220 = vpop.f32.mrf.mxu0
        %2221 = vmatprep.mubr.f32.mxu0 0.0
        %2222 = vmatmul.mubr.f32.gmra.mxu0 %v2041
        %v2223 = vpop.f32.mrf.mxu0
        %v2224 = vadd.f32 0.0, %v2223
        %v2225 = vpop.f32.mrf.mxu0
        %2226 = vmatprep.mubr.f32.mxu0 0.0
        %2227 = vmatmul.mubr.f32.gmra.mxu0 %v2044
        %v2228 = vpop.f32.mrf.mxu0
        %v2229 = vadd.f32 0.0, %v2228
        %v2230 = vpop.f32.mrf.mxu0
        %2231 = vmatprep.mubr.f32.mxu0 0.0
        %2232 = vmatmul.mubr.f32.gmra.mxu0 %v2047
        %v2233 = vpop.f32.mrf.mxu0
        %v2234 = vadd.f32 0.0, %v2233
        %v2235 = vpop.f32.mrf.mxu0
        %2236 = vmatprep.mubr.f32.mxu0 0.0
        %2237 = vmatmul.mubr.f32.gmra.mxu0 %v2050
        %v2238 = vpop.f32.mrf.mxu0
        %v2239 = vadd.f32 0.0, %v2238
        %v2240 = vpop.f32.mrf.mxu0
        %2241 = vmatprep.mubr.f32.mxu0 0.0
        %2242 = vmatmul.mubr.f32.gmra.mxu0 %v2053
        %v2243 = vpop.f32.mrf.mxu0
        %v2244 = vadd.f32 0.0, %v2243
        %v2245 = vpop.f32.mrf.mxu0
        %2246 = vmatprep.mubr.f32.mxu0 0.0
        %2247 = vmatmul.mubr.f32.gmra.mxu0 %v2056
        %v2248 = vpop.f32.mrf.mxu0
        %v2249 = vadd.f32 0.0, %v2248
        %v2250 = vpop.f32.mrf.mxu0
        %2251 = vmatprep.mubr.f32.mxu0 0.0
        %2252 = vmatmul.mubr.f32.gmra.mxu0 %v2059
        %v2253 = vpop.f32.mrf.mxu0
        %v2254 = vadd.f32 0.0, %v2253
        %v2255 = vpop.f32.mrf.mxu0
        %2256 = vmatprep.mubr.f32.mxu0 0.0
        %2257 = vmatmul.mubr.f32.gmra.mxu0 %v2062
        %v2258 = vpop.f32.mrf.mxu0
        %v2259 = vadd.f32 0.0, %v2258
        %v2260 = vpop.f32.mrf.mxu0
        %2261 = vmatprep.mubr.f32.mxu0 0.0
        %2262 = vmatmul.mubr.f32.gmra.mxu0 %v2065
        %v2263 = vpop.f32.mrf.mxu0
        %v2264 = vadd.f32 0.0, %v2263
        %v2265 = vpop.f32.mrf.mxu0
        %2266 = vmatprep.mubr.f32.mxu0 0.0
        %2267 = vmatmul.mubr.f32.gmra.mxu0 %v2068
        %v2268 = vpop.f32.mrf.mxu0
        %v2269 = vadd.f32 0.0, %v2268
        %v2270 = vpop.f32.mrf.mxu0
        %2271 = vmatprep.mubr.f32.mxu0 0.0
        %2272 = vmatmul.mubr.f32.gmra.mxu0 %v2071
        %v2273 = vpop.f32.mrf.mxu0
        %v2274 = vadd.f32 0.0, %v2273
        %v2275 = vpop.f32.mrf.mxu0
        %2276 = vmatprep.mubr.f32.mxu0 0.0
        %2277 = vmatmul.mubr.f32.gmra.mxu0 %v2074
        %v2278 = vpop.f32.mrf.mxu0
        %v2279 = vadd.f32 0.0, %v2278
        %v2280 = vpop.f32.mrf.mxu0
        %2281 = vmatprep.mubr.f32.mxu0 0.0
        %2282 = vmatmul.mubr.f32.gmra.mxu0 %v2077
        %v2283 = vpop.f32.mrf.mxu0
        %v2284 = vadd.f32 0.0, %v2283
        %v2285 = vpop.f32.mrf.mxu0
        %2286 = vmatprep.mubr.f32.mxu0 0.0
        %2287 = vmatmul.mubr.f32.gmra.mxu0 %v2080
        %v2288 = vpop.f32.mrf.mxu0
        %v2289 = vadd.f32 0.0, %v2288
        %v2290 = vpop.f32.mrf.mxu0
        %2291 = vmatprep.mubr.f32.mxu0 0.0
        %2292 = vmatmul.mubr.f32.gmra.mxu0 %v2083
        %v2293 = vpop.f32.mrf.mxu0
        %v2294 = vadd.f32 0.0, %v2293
        %v2295 = vpop.f32.mrf.mxu0
        %2296 = vmatprep.mubr.f32.mxu0 0.0
        %2297 = vmatmul.mubr.f32.gmra.mxu0 %v2086
        %v2298 = vpop.f32.mrf.mxu0
        %v2299 = vadd.f32 0.0, %v2298
        %v2300 = vpop.f32.mrf.mxu0
        %2301 = vmatprep.mubr.f32.mxu0 0.0
        %2302 = vmatmul.mubr.f32.gmra.mxu0 %v2089
        %v2303 = vpop.f32.mrf.mxu0
        %v2304 = vadd.f32 0.0, %v2303
        %v2305 = vpop.f32.mrf.mxu0
        %2306 = vmatprep.mubr.f32.mxu0 0.0
        %2307 = vmatmul.mubr.f32.gmra.mxu0 %v2092
        %v2308 = vpop.f32.mrf.mxu0
        %v2309 = vadd.f32 0.0, %v2308
        %v2310 = vpop.f32.mrf.mxu0
        %2311 = vmatprep.mubr.f32.mxu0 0.0
        %2312 = vmatmul.mubr.f32.gmra.mxu0 %v2095
        %v2313 = vpop.f32.mrf.mxu0
        %v2314 = vadd.f32 0.0, %v2313
        %v2315 = vpop.f32.mrf.mxu0
        %2316 = vmatprep.mubr.f32.mxu0 0.0
        %2317 = vmatmul.mubr.f32.gmra.mxu0 %v2098
        %v2318 = vpop.f32.mrf.mxu0
        %v2319 = vadd.f32 0.0, %v2318
        %v2320 = vpop.f32.mrf.mxu0
        %2321 = vmatprep.mubr.f32.mxu0 0.0
        %2322 = vmatmul.mubr.f32.gmra.mxu0 %v2101
        %v2323 = vpop.f32.mrf.mxu0
        %v2324 = vadd.f32 0.0, %v2323
        %v2325 = vpop.f32.mrf.mxu0
        %2326 = vmatprep.mubr.f32.mxu0 0.0
        %2327 = vmatmul.mubr.f32.gmra.mxu0 %v2104
        %v2328 = vpop.f32.mrf.mxu0
        %v2329 = vadd.f32 0.0, %v2328
        %v2330 = vpop.f32.mrf.mxu0
        %2331 = vmatprep.mubr.f32.mxu0 0.0
        %2332 = vmatmul.mubr.f32.gmra.mxu0 %v2107
        %v2333 = vpop.f32.mrf.mxu0
        %v2334 = vadd.f32 0.0, %v2333
        %v2335 = vpop.f32.mrf.mxu0
        %2336 = vdwg.mxu0
        %v2337 = vadd.f32 %v1947, %v2179
        %v2338 = vadd.f32 %v1948, %v2184
        %v2339 = vadd.f32 %v1949, %v2189
        %v2340 = vadd.f32 %v1950, %v2194
        %v2341 = vadd.f32 %v1951, %v2199
        %v2342 = vadd.f32 %v1952, %v2204
        %v2343 = vadd.f32 %v1953, %v2209
        %v2344 = vadd.f32 %v1954, %v2214
        %v2345 = vadd.f32 %v1955, %v2219
        %v2346 = vadd.f32 %v1956, %v2224
        %v2347 = vadd.f32 %v1957, %v2229
        %v2348 = vadd.f32 %v1958, %v2234
        %v2349 = vadd.f32 %v1959, %v2239
        %v2350 = vadd.f32 %v1960, %v2244
        %v2351 = vadd.f32 %v1961, %v2249
        %v2352 = vadd.f32 %v1962, %v2254
        %v2353 = vadd.f32 %v1963, %v2259
        %v2354 = vadd.f32 %v1964, %v2264
        %v2355 = vadd.f32 %v1965, %v2269
        %v2356 = vadd.f32 %v1966, %v2274
        %v2357 = vadd.f32 %v1967, %v2279
        %v2358 = vadd.f32 %v1968, %v2284
        %v2359 = vadd.f32 %v1969, %v2289
        %v2360 = vadd.f32 %v1970, %v2294
        %v2361 = vadd.f32 %v1971, %v2299
        %v2362 = vadd.f32 %v1972, %v2304
        %v2363 = vadd.f32 %v1973, %v2309
        %v2364 = vadd.f32 %v1974, %v2314
        %v2365 = vadd.f32 %v1975, %v2319
        %v2366 = vadd.f32 %v1976, %v2324
        %v2367 = vadd.f32 %v1977, %v2329
        %v2368 = vadd.f32 %v1978, %v2334
        %v2369 = vld [vmem:[%s450 + $0x2] sm:$0xff]
        %v2370 = vld [vmem:[%s450 + $0xa] sm:$0xff]
        %v2371 = vld [vmem:[%s450 + $0x1a] sm:$0xff]
        %v2372 = vld [vmem:[%s450 + $0x22] sm:$0xff]
        %v2373 = vld [vmem:[%s450 + $0x32] sm:$0xff]
        %v2374 = vld [vmem:[%s450 + $0x3a] sm:$0xff]
        %v2375 = vld [vmem:[%s450 + $0x4a] sm:$0xff]
        %v2376 = vld [vmem:[%s450 + $0x52] sm:$0xff]
        %v2377 = vld [vmem:[%s450 + $0x62] sm:$0xff]
        %v2378 = vld [vmem:[%s450 + $0x6a] sm:$0xff]
        %v2379 = vld [vmem:[%s450 + $0x7a] sm:$0xff]
        %v2380 = vld [vmem:[%s450 + $0x82] sm:$0xff]
        %v2381 = vld [vmem:[%s450 + $0x92] sm:$0xff]
        %v2382 = vld [vmem:[%s450 + $0x9a] sm:$0xff]
        %v2383 = vld [vmem:[%s450 + $0xaa] sm:$0xff]
        %v2384 = vld [vmem:[%s450 + $0xb2] sm:$0xff]
        %v2385 = vld [vmem:[%s450 + $0xc2] sm:$0xff]
        %v2386 = vld [vmem:[%s450 + $0xca] sm:$0xff]
        %v2387 = vld [vmem:[%s450 + $0xda] sm:$0xff]
        %v2388 = vld [vmem:[%s450 + $0xe2] sm:$0xff]
        %v2389 = vld [vmem:[%s450 + $0xf2] sm:$0xff]
        %v2390 = vld [vmem:[%s450 + $0xfa] sm:$0xff]
        %v2391 = vld [vmem:[%s450 + $0x10a] sm:$0xff]
        %v2392 = vld [vmem:[%s450 + $0x112] sm:$0xff]
        %v2393 = vld [vmem:[%s450 + $0x122] sm:$0xff]
        %v2394 = vld [vmem:[%s450 + $0x12a] sm:$0xff]
        %v2395 = vld [vmem:[%s450 + $0x13a] sm:$0xff]
        %v2396 = vld [vmem:[%s450 + $0x142] sm:$0xff]
        %v2397 = vld [vmem:[%s450 + $0x152] sm:$0xff]
        %v2398 = vld [vmem:[%s450 + $0x15a] sm:$0xff]
        %v2399 = vld [vmem:[%s450 + $0x16a] sm:$0xff]
        %v2400 = vld [vmem:[%s450 + $0x172] sm:$0xff]
        %s2401 = scalar_lea.vmem %s1, 20
        %v2402 = vld [vmem:[%s2401] sm:$0x7]
        %v2404 = vsel %vm394, %v2369, 0
        %v2407 = vsel %vm394, %v2370, 0
        %v2410 = vsel %vm394, %v2371, 0
        %v2413 = vsel %vm394, %v2372, 0
        %v2416 = vsel %vm394, %v2373, 0
        %v2419 = vsel %vm394, %v2374, 0
        %v2422 = vsel %vm394, %v2375, 0
        %v2425 = vsel %vm394, %v2376, 0
        %v2428 = vsel %vm394, %v2377, 0
        %v2431 = vsel %vm394, %v2378, 0
        %v2434 = vsel %vm394, %v2379, 0
        %v2437 = vsel %vm394, %v2380, 0
        %v2440 = vsel %vm394, %v2381, 0
        %v2443 = vsel %vm394, %v2382, 0
        %v2446 = vsel %vm394, %v2383, 0
        %v2449 = vsel %vm394, %v2384, 0
        %v2452 = vsel %vm394, %v2385, 0
        %v2455 = vsel %vm394, %v2386, 0
        %v2458 = vsel %vm394, %v2387, 0
        %v2461 = vsel %vm394, %v2388, 0
        %v2464 = vsel %vm394, %v2389, 0
        %v2467 = vsel %vm394, %v2390, 0
        %v2470 = vsel %vm394, %v2391, 0
        %v2473 = vsel %vm394, %v2392, 0
        %v2476 = vsel %vm394, %v2393, 0
        %v2479 = vsel %vm394, %v2394, 0
        %v2482 = vsel %vm394, %v2395, 0
        %v2485 = vsel %vm394, %v2396, 0
        %v2488 = vsel %vm394, %v2397, 0
        %v2491 = vsel %vm394, %v2398, 0
        %v2494 = vsel %vm394, %v2399, 0
        %v2497 = vsel %vm394, %v2400, 0
        %v2500 = vsel %vm646, %v2402, 0
        %2502 = vmatprep.subr.mxu0 0.0
        %2503 = vmatpush1.msra.mxu0 0.0
        %2504 = vmatprep.subr.mxu0 0.0
        %2505 = vmatpush1.msra.mxu0 0.0
        %2506 = vmatprep.subr.mxu0 0.0
        %2507 = vmatpush1.msra.mxu0 0.0
        %2508 = vmatprep.subr.mxu0 0.0
        %2509 = vmatpush1.msra.mxu0 0.0
        %2510 = vmatprep.subr.mxu0 0.0
        %2511 = vmatpush1.msra.mxu0 0.0
        %2512 = vmatprep.subr.mxu0 0.0
        %2513 = vmatpush1.msra.mxu0 0.0
        %2514 = vmatprep.subr.mxu0 0.0
        %2515 = vmatpush1.msra.mxu0 0.0
        %2516 = vmatprep.subr.mxu0 0.0
        %2517 = vmatpush1.msra.mxu0 0.0
        %2518 = vmatprep.subr.mxu0 0.0
        %2519 = vmatpush1.msra.mxu0 0.0
        %2520 = vmatprep.subr.mxu0 0.0
        %2521 = vmatpush1.msra.mxu0 0.0
        %2522 = vmatprep.subr.mxu0 0.0
        %2523 = vmatpush1.msra.mxu0 0.0
        %2524 = vmatprep.subr.mxu0 0.0
        %2525 = vmatpush1.msra.mxu0 0.0
        %2526 = vmatprep.subr.mxu0 0.0
        %2527 = vmatpush1.msra.mxu0 0.0
        %2528 = vmatprep.subr.mxu0 0.0
        %2529 = vmatpush1.msra.mxu0 0.0
        %2530 = vmatprep.subr.mxu0 0.0
        %2531 = vmatpush1.msra.mxu0 0.0
        %2532 = vmatprep.subr.mxu0 0.0
        %2533 = vmatpush1.msra.mxu0 %v2500
        %2534 = vmatprep.subr.mxu0 0.0
        %2535 = vmatpush2.msra.mxu0 0.0
        %2536 = vmatprep.subr.mxu0 0.0
        %2537 = vmatpush2.msra.mxu0 0.0
        %2538 = vmatprep.subr.mxu0 0.0
        %2539 = vmatpush2.msra.mxu0 0.0
        %2540 = vmatprep.subr.mxu0 0.0
        %2541 = vmatpush2.msra.mxu0 0.0
        %2542 = vmatprep.subr.mxu0 0.0
        %2543 = vmatpush2.msra.mxu0 0.0
        %2544 = vmatprep.subr.mxu0 0.0
        %2545 = vmatpush2.msra.mxu0 0.0
        %2546 = vmatprep.subr.mxu0 0.0
        %2547 = vmatpush2.msra.mxu0 0.0
        %2548 = vmatprep.subr.mxu0 0.0
        %2549 = vmatpush2.msra.mxu0 0.0
        %2550 = vmatprep.subr.mxu0 0.0
        %2551 = vmatpush2.msra.mxu0 0.0
        %2552 = vmatprep.subr.mxu0 0.0
        %2553 = vmatpush2.msra.mxu0 0.0
        %2554 = vmatprep.subr.mxu0 0.0
        %2555 = vmatpush2.msra.mxu0 0.0
        %2556 = vmatprep.subr.mxu0 0.0
        %2557 = vmatpush2.msra.mxu0 0.0
        %2558 = vmatprep.subr.mxu0 0.0
        %2559 = vmatpush2.msra.mxu0 0.0
        %2560 = vmatprep.subr.mxu0 0.0
        %2561 = vmatpush2.msra.mxu0 0.0
        %2562 = vmatprep.subr.mxu0 0.0
        %2563 = vmatpush2.msra.mxu0 0.0
        %2564 = vmatprep.subr.mxu0 0.0
        %2565 = vmatpush2.msra.mxu0 0.0
        %2566 = vmatprep.mubr.f32.mxu0 0.0
        %2567 = vmatmul.mubr.f32.gmra.mxu0 %v2404
        %v2568 = vpop.f32.mrf.mxu0
        %v2569 = vadd.f32 0.0, %v2568
        %v2570 = vpop.f32.mrf.mxu0
        %2571 = vmatprep.mubr.f32.mxu0 0.0
        %2572 = vmatmul.mubr.f32.gmra.mxu0 %v2407
        %v2573 = vpop.f32.mrf.mxu0
        %v2574 = vadd.f32 0.0, %v2573
        %v2575 = vpop.f32.mrf.mxu0
        %2576 = vmatprep.mubr.f32.mxu0 0.0
        %2577 = vmatmul.mubr.f32.gmra.mxu0 %v2410
        %v2578 = vpop.f32.mrf.mxu0
        %v2579 = vadd.f32 0.0, %v2578
        %v2580 = vpop.f32.mrf.mxu0
        %2581 = vmatprep.mubr.f32.mxu0 0.0
        %2582 = vmatmul.mubr.f32.gmra.mxu0 %v2413
        %v2583 = vpop.f32.mrf.mxu0
        %v2584 = vadd.f32 0.0, %v2583
        %v2585 = vpop.f32.mrf.mxu0
        %2586 = vmatprep.mubr.f32.mxu0 0.0
        %2587 = vmatmul.mubr.f32.gmra.mxu0 %v2416
        %v2588 = vpop.f32.mrf.mxu0
        %v2589 = vadd.f32 0.0, %v2588
        %v2590 = vpop.f32.mrf.mxu0
        %2591 = vmatprep.mubr.f32.mxu0 0.0
        %2592 = vmatmul.mubr.f32.gmra.mxu0 %v2419
        %v2593 = vpop.f32.mrf.mxu0
        %v2594 = vadd.f32 0.0, %v2593
        %v2595 = vpop.f32.mrf.mxu0
        %2596 = vmatprep.mubr.f32.mxu0 0.0
        %2597 = vmatmul.mubr.f32.gmra.mxu0 %v2422
        %v2598 = vpop.f32.mrf.mxu0
        %v2599 = vadd.f32 0.0, %v2598
        %v2600 = vpop.f32.mrf.mxu0
        %2601 = vmatprep.mubr.f32.mxu0 0.0
        %2602 = vmatmul.mubr.f32.gmra.mxu0 %v2425
        %v2603 = vpop.f32.mrf.mxu0
        %v2604 = vadd.f32 0.0, %v2603
        %v2605 = vpop.f32.mrf.mxu0
        %2606 = vmatprep.mubr.f32.mxu0 0.0
        %2607 = vmatmul.mubr.f32.gmra.mxu0 %v2428
        %v2608 = vpop.f32.mrf.mxu0
        %v2609 = vadd.f32 0.0, %v2608
        %v2610 = vpop.f32.mrf.mxu0
        %2611 = vmatprep.mubr.f32.mxu0 0.0
        %2612 = vmatmul.mubr.f32.gmra.mxu0 %v2431
        %v2613 = vpop.f32.mrf.mxu0
        %v2614 = vadd.f32 0.0, %v2613
        %v2615 = vpop.f32.mrf.mxu0
        %2616 = vmatprep.mubr.f32.mxu0 0.0
        %2617 = vmatmul.mubr.f32.gmra.mxu0 %v2434
        %v2618 = vpop.f32.mrf.mxu0
        %v2619 = vadd.f32 0.0, %v2618
        %v2620 = vpop.f32.mrf.mxu0
        %2621 = vmatprep.mubr.f32.mxu0 0.0
        %2622 = vmatmul.mubr.f32.gmra.mxu0 %v2437
        %v2623 = vpop.f32.mrf.mxu0
        %v2624 = vadd.f32 0.0, %v2623
        %v2625 = vpop.f32.mrf.mxu0
        %2626 = vmatprep.mubr.f32.mxu0 0.0
        %2627 = vmatmul.mubr.f32.gmra.mxu0 %v2440
        %v2628 = vpop.f32.mrf.mxu0
        %v2629 = vadd.f32 0.0, %v2628
        %v2630 = vpop.f32.mrf.mxu0
        %2631 = vmatprep.mubr.f32.mxu0 0.0
        %2632 = vmatmul.mubr.f32.gmra.mxu0 %v2443
        %v2633 = vpop.f32.mrf.mxu0
        %v2634 = vadd.f32 0.0, %v2633
        %v2635 = vpop.f32.mrf.mxu0
        %2636 = vmatprep.mubr.f32.mxu0 0.0
        %2637 = vmatmul.mubr.f32.gmra.mxu0 %v2446
        %v2638 = vpop.f32.mrf.mxu0
        %v2639 = vadd.f32 0.0, %v2638
        %v2640 = vpop.f32.mrf.mxu0
        %2641 = vmatprep.mubr.f32.mxu0 0.0
        %2642 = vmatmul.mubr.f32.gmra.mxu0 %v2449
        %v2643 = vpop.f32.mrf.mxu0
        %v2644 = vadd.f32 0.0, %v2643
        %v2645 = vpop.f32.mrf.mxu0
        %2646 = vmatprep.mubr.f32.mxu0 0.0
        %2647 = vmatmul.mubr.f32.gmra.mxu0 %v2452
        %v2648 = vpop.f32.mrf.mxu0
        %v2649 = vadd.f32 0.0, %v2648
        %v2650 = vpop.f32.mrf.mxu0
        %2651 = vmatprep.mubr.f32.mxu0 0.0
        %2652 = vmatmul.mubr.f32.gmra.mxu0 %v2455
        %v2653 = vpop.f32.mrf.mxu0
        %v2654 = vadd.f32 0.0, %v2653
        %v2655 = vpop.f32.mrf.mxu0
        %2656 = vmatprep.mubr.f32.mxu0 0.0
        %2657 = vmatmul.mubr.f32.gmra.mxu0 %v2458
        %v2658 = vpop.f32.mrf.mxu0
        %v2659 = vadd.f32 0.0, %v2658
        %v2660 = vpop.f32.mrf.mxu0
        %2661 = vmatprep.mubr.f32.mxu0 0.0
        %2662 = vmatmul.mubr.f32.gmra.mxu0 %v2461
        %v2663 = vpop.f32.mrf.mxu0
        %v2664 = vadd.f32 0.0, %v2663
        %v2665 = vpop.f32.mrf.mxu0
        %2666 = vmatprep.mubr.f32.mxu0 0.0
        %2667 = vmatmul.mubr.f32.gmra.mxu0 %v2464
        %v2668 = vpop.f32.mrf.mxu0
        %v2669 = vadd.f32 0.0, %v2668
        %v2670 = vpop.f32.mrf.mxu0
        %2671 = vmatprep.mubr.f32.mxu0 0.0
        %2672 = vmatmul.mubr.f32.gmra.mxu0 %v2467
        %v2673 = vpop.f32.mrf.mxu0
        %v2674 = vadd.f32 0.0, %v2673
        %v2675 = vpop.f32.mrf.mxu0
        %2676 = vmatprep.mubr.f32.mxu0 0.0
        %2677 = vmatmul.mubr.f32.gmra.mxu0 %v2470
        %v2678 = vpop.f32.mrf.mxu0
        %v2679 = vadd.f32 0.0, %v2678
        %v2680 = vpop.f32.mrf.mxu0
        %2681 = vmatprep.mubr.f32.mxu0 0.0
        %2682 = vmatmul.mubr.f32.gmra.mxu0 %v2473
        %v2683 = vpop.f32.mrf.mxu0
        %v2684 = vadd.f32 0.0, %v2683
        %v2685 = vpop.f32.mrf.mxu0
        %2686 = vmatprep.mubr.f32.mxu0 0.0
        %2687 = vmatmul.mubr.f32.gmra.mxu0 %v2476
        %v2688 = vpop.f32.mrf.mxu0
        %v2689 = vadd.f32 0.0, %v2688
        %v2690 = vpop.f32.mrf.mxu0
        %2691 = vmatprep.mubr.f32.mxu0 0.0
        %2692 = vmatmul.mubr.f32.gmra.mxu0 %v2479
        %v2693 = vpop.f32.mrf.mxu0
        %v2694 = vadd.f32 0.0, %v2693
        %v2695 = vpop.f32.mrf.mxu0
        %2696 = vmatprep.mubr.f32.mxu0 0.0
        %2697 = vmatmul.mubr.f32.gmra.mxu0 %v2482
        %v2698 = vpop.f32.mrf.mxu0
        %v2699 = vadd.f32 0.0, %v2698
        %v2700 = vpop.f32.mrf.mxu0
        %2701 = vmatprep.mubr.f32.mxu0 0.0
        %2702 = vmatmul.mubr.f32.gmra.mxu0 %v2485
        %v2703 = vpop.f32.mrf.mxu0
        %v2704 = vadd.f32 0.0, %v2703
        %v2705 = vpop.f32.mrf.mxu0
        %2706 = vmatprep.mubr.f32.mxu0 0.0
        %2707 = vmatmul.mubr.f32.gmra.mxu0 %v2488
        %v2708 = vpop.f32.mrf.mxu0
        %v2709 = vadd.f32 0.0, %v2708
        %v2710 = vpop.f32.mrf.mxu0
        %2711 = vmatprep.mubr.f32.mxu0 0.0
        %2712 = vmatmul.mubr.f32.gmra.mxu0 %v2491
        %v2713 = vpop.f32.mrf.mxu0
        %v2714 = vadd.f32 0.0, %v2713
        %v2715 = vpop.f32.mrf.mxu0
        %2716 = vmatprep.mubr.f32.mxu0 0.0
        %2717 = vmatmul.mubr.f32.gmra.mxu0 %v2494
        %v2718 = vpop.f32.mrf.mxu0
        %v2719 = vadd.f32 0.0, %v2718
        %v2720 = vpop.f32.mrf.mxu0
        %2721 = vmatprep.mubr.f32.mxu0 0.0
        %2722 = vmatmul.mubr.f32.gmra.mxu0 %v2497
        %v2723 = vpop.f32.mrf.mxu0
        %v2724 = vadd.f32 0.0, %v2723
        %v2725 = vpop.f32.mrf.mxu0
        %2726 = vdwg.mxu0
        %v2727 = vadd.f32 %v2337, %v2569
        %v2728 = vadd.f32 %v2338, %v2574
        %v2729 = vadd.f32 %v2339, %v2579
        %v2730 = vadd.f32 %v2340, %v2584
        %v2731 = vadd.f32 %v2341, %v2589
        %v2732 = vadd.f32 %v2342, %v2594
        %v2733 = vadd.f32 %v2343, %v2599
        %v2734 = vadd.f32 %v2344, %v2604
        %v2735 = vadd.f32 %v2345, %v2609
        %v2736 = vadd.f32 %v2346, %v2614
        %v2737 = vadd.f32 %v2347, %v2619
        %v2738 = vadd.f32 %v2348, %v2624
        %v2739 = vadd.f32 %v2349, %v2629
        %v2740 = vadd.f32 %v2350, %v2634
        %v2741 = vadd.f32 %v2351, %v2639
        %v2742 = vadd.f32 %v2352, %v2644
        %v2743 = vadd.f32 %v2353, %v2649
        %v2744 = vadd.f32 %v2354, %v2654
        %v2745 = vadd.f32 %v2355, %v2659
        %v2746 = vadd.f32 %v2356, %v2664
        %v2747 = vadd.f32 %v2357, %v2669
        %v2748 = vadd.f32 %v2358, %v2674
        %v2749 = vadd.f32 %v2359, %v2679
        %v2750 = vadd.f32 %v2360, %v2684
        %v2751 = vadd.f32 %v2361, %v2689
        %v2752 = vadd.f32 %v2362, %v2694
        %v2753 = vadd.f32 %v2363, %v2699
        %v2754 = vadd.f32 %v2364, %v2704
        %v2755 = vadd.f32 %v2365, %v2709
        %v2756 = vadd.f32 %v2366, %v2714
        %v2757 = vadd.f32 %v2367, %v2719
        %v2758 = vadd.f32 %v2368, %v2724
        %s2759 = scalar_lea.vmem [#allocation2], 48
        %v2760 = vld [vmem:[%s2759] sm:$0xff]
        %v2761 = vld [vmem:[%s2759 + $0x8] sm:$0xff]
        %v2762 = vld [vmem:[%s2759 + $0x18] sm:$0xff]
        %v2763 = vld [vmem:[%s2759 + $0x20] sm:$0xff]
        %v2764 = vld [vmem:[%s2759 + $0x30] sm:$0xff]
        %v2765 = vld [vmem:[%s2759 + $0x38] sm:$0xff]
        %v2766 = vld [vmem:[%s2759 + $0x48] sm:$0xff]
        %v2767 = vld [vmem:[%s2759 + $0x50] sm:$0xff]
        %v2768 = vld [vmem:[%s2759 + $0x60] sm:$0xff]
        %v2769 = vld [vmem:[%s2759 + $0x68] sm:$0xff]
        %v2770 = vld [vmem:[%s2759 + $0x78] sm:$0xff]
        %v2771 = vld [vmem:[%s2759 + $0x80] sm:$0xff]
        %v2772 = vld [vmem:[%s2759 + $0x90] sm:$0xff]
        %v2773 = vld [vmem:[%s2759 + $0x98] sm:$0xff]
        %v2774 = vld [vmem:[%s2759 + $0xa8] sm:$0xff]
        %v2775 = vld [vmem:[%s2759 + $0xb0] sm:$0xff]
        %v2776 = vld [vmem:[%s2759 + $0xc0] sm:$0xff]
        %v2777 = vld [vmem:[%s2759 + $0xc8] sm:$0xff]
        %v2778 = vld [vmem:[%s2759 + $0xd8] sm:$0xff]
        %v2779 = vld [vmem:[%s2759 + $0xe0] sm:$0xff]
        %v2780 = vld [vmem:[%s2759 + $0xf0] sm:$0xff]
        %v2781 = vld [vmem:[%s2759 + $0xf8] sm:$0xff]
        %v2782 = vld [vmem:[%s2759 + $0x108] sm:$0xff]
        %v2783 = vld [vmem:[%s2759 + $0x110] sm:$0xff]
        %v2784 = vld [vmem:[%s2759 + $0x120] sm:$0xff]
        %v2785 = vld [vmem:[%s2759 + $0x128] sm:$0xff]
        %v2786 = vld [vmem:[%s2759 + $0x138] sm:$0xff]
        %v2787 = vld [vmem:[%s2759 + $0x140] sm:$0xff]
        %v2788 = vld [vmem:[%s2759 + $0x150] sm:$0xff]
        %v2789 = vld [vmem:[%s2759 + $0x158] sm:$0xff]
        %v2790 = vld [vmem:[%s2759 + $0x168] sm:$0xff]
        %v2791 = vld [vmem:[%s2759 + $0x170] sm:$0xff]
        %s2792 = scalar_lea.vmem %s1, 24
        %v2793 = vld [vmem:[%s2792] sm:$0x7]
        %v2795 = vsel %vm394, %v2760, 0
        %v2798 = vsel %vm394, %v2761, 0
        %v2801 = vsel %vm394, %v2762, 0
        %v2804 = vsel %vm394, %v2763, 0
        %v2807 = vsel %vm394, %v2764, 0
        %v2810 = vsel %vm394, %v2765, 0
        %v2813 = vsel %vm394, %v2766, 0
        %v2816 = vsel %vm394, %v2767, 0
        %v2819 = vsel %vm394, %v2768, 0
        %v2822 = vsel %vm394, %v2769, 0
        %v2825 = vsel %vm394, %v2770, 0
        %v2828 = vsel %vm394, %v2771, 0
        %v2831 = vsel %vm394, %v2772, 0
        %v2834 = vsel %vm394, %v2773, 0
        %v2837 = vsel %vm394, %v2774, 0
        %v2840 = vsel %vm394, %v2775, 0
        %v2843 = vsel %vm394, %v2776, 0
        %v2846 = vsel %vm394, %v2777, 0
        %v2849 = vsel %vm394, %v2778, 0
        %v2852 = vsel %vm394, %v2779, 0
        %v2855 = vsel %vm394, %v2780, 0
        %v2858 = vsel %vm394, %v2781, 0
        %v2861 = vsel %vm394, %v2782, 0
        %v2864 = vsel %vm394, %v2783, 0
        %v2867 = vsel %vm394, %v2784, 0
        %v2870 = vsel %vm394, %v2785, 0
        %v2873 = vsel %vm394, %v2786, 0
        %v2876 = vsel %vm394, %v2787, 0
        %v2879 = vsel %vm394, %v2788, 0
        %v2882 = vsel %vm394, %v2789, 0
        %v2885 = vsel %vm394, %v2790, 0
        %v2888 = vsel %vm394, %v2791, 0
        %v2891 = vsel %vm646, %v2793, 0
        %2893 = vmatprep.subr.mxu0 0.0
        %2894 = vmatpush1.msra.mxu0 0.0
        %2895 = vmatprep.subr.mxu0 0.0
        %2896 = vmatpush1.msra.mxu0 0.0
        %2897 = vmatprep.subr.mxu0 0.0
        %2898 = vmatpush1.msra.mxu0 0.0
        %2899 = vmatprep.subr.mxu0 0.0
        %2900 = vmatpush1.msra.mxu0 0.0
        %2901 = vmatprep.subr.mxu0 0.0
        %2902 = vmatpush1.msra.mxu0 0.0
        %2903 = vmatprep.subr.mxu0 0.0
        %2904 = vmatpush1.msra.mxu0 0.0
        %2905 = vmatprep.subr.mxu0 0.0
        %2906 = vmatpush1.msra.mxu0 0.0
        %2907 = vmatprep.subr.mxu0 0.0
        %2908 = vmatpush1.msra.mxu0 0.0
        %2909 = vmatprep.subr.mxu0 0.0
        %2910 = vmatpush1.msra.mxu0 0.0
        %2911 = vmatprep.subr.mxu0 0.0
        %2912 = vmatpush1.msra.mxu0 0.0
        %2913 = vmatprep.subr.mxu0 0.0
        %2914 = vmatpush1.msra.mxu0 0.0
        %2915 = vmatprep.subr.mxu0 0.0
        %2916 = vmatpush1.msra.mxu0 0.0
        %2917 = vmatprep.subr.mxu0 0.0
        %2918 = vmatpush1.msra.mxu0 0.0
        %2919 = vmatprep.subr.mxu0 0.0
        %2920 = vmatpush1.msra.mxu0 0.0
        %2921 = vmatprep.subr.mxu0 0.0
        %2922 = vmatpush1.msra.mxu0 0.0
        %2923 = vmatprep.subr.mxu0 0.0
        %2924 = vmatpush1.msra.mxu0 %v2891
        %2925 = vmatprep.subr.mxu0 0.0
        %2926 = vmatpush2.msra.mxu0 0.0
        %2927 = vmatprep.subr.mxu0 0.0
        %2928 = vmatpush2.msra.mxu0 0.0
        %2929 = vmatprep.subr.mxu0 0.0
        %2930 = vmatpush2.msra.mxu0 0.0
        %2931 = vmatprep.subr.mxu0 0.0
        %2932 = vmatpush2.msra.mxu0 0.0
        %2933 = vmatprep.subr.mxu0 0.0
        %2934 = vmatpush2.msra.mxu0 0.0
        %2935 = vmatprep.subr.mxu0 0.0
        %2936 = vmatpush2.msra.mxu0 0.0
        %2937 = vmatprep.subr.mxu0 0.0
        %2938 = vmatpush2.msra.mxu0 0.0
        %2939 = vmatprep.subr.mxu0 0.0
        %2940 = vmatpush2.msra.mxu0 0.0
        %2941 = vmatprep.subr.mxu0 0.0
        %2942 = vmatpush2.msra.mxu0 0.0
        %2943 = vmatprep.subr.mxu0 0.0
        %2944 = vmatpush2.msra.mxu0 0.0
        %2945 = vmatprep.subr.mxu0 0.0
        %2946 = vmatpush2.msra.mxu0 0.0
        %2947 = vmatprep.subr.mxu0 0.0
        %2948 = vmatpush2.msra.mxu0 0.0
        %2949 = vmatprep.subr.mxu0 0.0
        %2950 = vmatpush2.msra.mxu0 0.0
        %2951 = vmatprep.subr.mxu0 0.0
        %2952 = vmatpush2.msra.mxu0 0.0
        %2953 = vmatprep.subr.mxu0 0.0
        %2954 = vmatpush2.msra.mxu0 0.0
        %2955 = vmatprep.subr.mxu0 0.0
        %2956 = vmatpush2.msra.mxu0 0.0
        %2957 = vmatprep.mubr.f32.mxu0 0.0
        %2958 = vmatmul.mubr.f32.gmra.mxu0 %v2795
        %v2959 = vpop.f32.mrf.mxu0
        %v2960 = vadd.f32 0.0, %v2959
        %v2961 = vpop.f32.mrf.mxu0
        %2962 = vmatprep.mubr.f32.mxu0 0.0
        %2963 = vmatmul.mubr.f32.gmra.mxu0 %v2798
        %v2964 = vpop.f32.mrf.mxu0
        %v2965 = vadd.f32 0.0, %v2964
        %v2966 = vpop.f32.mrf.mxu0
        %2967 = vmatprep.mubr.f32.mxu0 0.0
        %2968 = vmatmul.mubr.f32.gmra.mxu0 %v2801
        %v2969 = vpop.f32.mrf.mxu0
        %v2970 = vadd.f32 0.0, %v2969
        %v2971 = vpop.f32.mrf.mxu0
        %2972 = vmatprep.mubr.f32.mxu0 0.0
        %2973 = vmatmul.mubr.f32.gmra.mxu0 %v2804
        %v2974 = vpop.f32.mrf.mxu0
        %v2975 = vadd.f32 0.0, %v2974
        %v2976 = vpop.f32.mrf.mxu0
        %2977 = vmatprep.mubr.f32.mxu0 0.0
        %2978 = vmatmul.mubr.f32.gmra.mxu0 %v2807
        %v2979 = vpop.f32.mrf.mxu0
        %v2980 = vadd.f32 0.0, %v2979
        %v2981 = vpop.f32.mrf.mxu0
        %2982 = vmatprep.mubr.f32.mxu0 0.0
        %2983 = vmatmul.mubr.f32.gmra.mxu0 %v2810
        %v2984 = vpop.f32.mrf.mxu0
        %v2985 = vadd.f32 0.0, %v2984
        %v2986 = vpop.f32.mrf.mxu0
        %2987 = vmatprep.mubr.f32.mxu0 0.0
        %2988 = vmatmul.mubr.f32.gmra.mxu0 %v2813
        %v2989 = vpop.f32.mrf.mxu0
        %v2990 = vadd.f32 0.0, %v2989
        %v2991 = vpop.f32.mrf.mxu0
        %2992 = vmatprep.mubr.f32.mxu0 0.0
        %2993 = vmatmul.mubr.f32.gmra.mxu0 %v2816
        %v2994 = vpop.f32.mrf.mxu0
        %v2995 = vadd.f32 0.0, %v2994
        %v2996 = vpop.f32.mrf.mxu0
        %2997 = vmatprep.mubr.f32.mxu0 0.0
        %2998 = vmatmul.mubr.f32.gmra.mxu0 %v2819
        %v2999 = vpop.f32.mrf.mxu0
        %v3000 = vadd.f32 0.0, %v2999
        %v3001 = vpop.f32.mrf.mxu0
        %3002 = vmatprep.mubr.f32.mxu0 0.0
        %3003 = vmatmul.mubr.f32.gmra.mxu0 %v2822
        %v3004 = vpop.f32.mrf.mxu0
        %v3005 = vadd.f32 0.0, %v3004
        %v3006 = vpop.f32.mrf.mxu0
        %3007 = vmatprep.mubr.f32.mxu0 0.0
        %3008 = vmatmul.mubr.f32.gmra.mxu0 %v2825
        %v3009 = vpop.f32.mrf.mxu0
        %v3010 = vadd.f32 0.0, %v3009
        %v3011 = vpop.f32.mrf.mxu0
        %3012 = vmatprep.mubr.f32.mxu0 0.0
        %3013 = vmatmul.mubr.f32.gmra.mxu0 %v2828
        %v3014 = vpop.f32.mrf.mxu0
        %v3015 = vadd.f32 0.0, %v3014
        %v3016 = vpop.f32.mrf.mxu0
        %3017 = vmatprep.mubr.f32.mxu0 0.0
        %3018 = vmatmul.mubr.f32.gmra.mxu0 %v2831
        %v3019 = vpop.f32.mrf.mxu0
        %v3020 = vadd.f32 0.0, %v3019
        %v3021 = vpop.f32.mrf.mxu0
        %3022 = vmatprep.mubr.f32.mxu0 0.0
        %3023 = vmatmul.mubr.f32.gmra.mxu0 %v2834
        %v3024 = vpop.f32.mrf.mxu0
        %v3025 = vadd.f32 0.0, %v3024
        %v3026 = vpop.f32.mrf.mxu0
        %3027 = vmatprep.mubr.f32.mxu0 0.0
        %3028 = vmatmul.mubr.f32.gmra.mxu0 %v2837
        %v3029 = vpop.f32.mrf.mxu0
        %v3030 = vadd.f32 0.0, %v3029
        %v3031 = vpop.f32.mrf.mxu0
        %3032 = vmatprep.mubr.f32.mxu0 0.0
        %3033 = vmatmul.mubr.f32.gmra.mxu0 %v2840
        %v3034 = vpop.f32.mrf.mxu0
        %v3035 = vadd.f32 0.0, %v3034
        %v3036 = vpop.f32.mrf.mxu0
        %3037 = vmatprep.mubr.f32.mxu0 0.0
        %3038 = vmatmul.mubr.f32.gmra.mxu0 %v2843
        %v3039 = vpop.f32.mrf.mxu0
        %v3040 = vadd.f32 0.0, %v3039
        %v3041 = vpop.f32.mrf.mxu0
        %3042 = vmatprep.mubr.f32.mxu0 0.0
        %3043 = vmatmul.mubr.f32.gmra.mxu0 %v2846
        %v3044 = vpop.f32.mrf.mxu0
        %v3045 = vadd.f32 0.0, %v3044
        %v3046 = vpop.f32.mrf.mxu0
        %3047 = vmatprep.mubr.f32.mxu0 0.0
        %3048 = vmatmul.mubr.f32.gmra.mxu0 %v2849
        %v3049 = vpop.f32.mrf.mxu0
        %v3050 = vadd.f32 0.0, %v3049
        %v3051 = vpop.f32.mrf.mxu0
        %3052 = vmatprep.mubr.f32.mxu0 0.0
        %3053 = vmatmul.mubr.f32.gmra.mxu0 %v2852
        %v3054 = vpop.f32.mrf.mxu0
        %v3055 = vadd.f32 0.0, %v3054
        %v3056 = vpop.f32.mrf.mxu0
        %3057 = vmatprep.mubr.f32.mxu0 0.0
        %3058 = vmatmul.mubr.f32.gmra.mxu0 %v2855
        %v3059 = vpop.f32.mrf.mxu0
        %v3060 = vadd.f32 0.0, %v3059
        %v3061 = vpop.f32.mrf.mxu0
        %3062 = vmatprep.mubr.f32.mxu0 0.0
        %3063 = vmatmul.mubr.f32.gmra.mxu0 %v2858
        %v3064 = vpop.f32.mrf.mxu0
        %v3065 = vadd.f32 0.0, %v3064
        %v3066 = vpop.f32.mrf.mxu0
        %3067 = vmatprep.mubr.f32.mxu0 0.0
        %3068 = vmatmul.mubr.f32.gmra.mxu0 %v2861
        %v3069 = vpop.f32.mrf.mxu0
        %v3070 = vadd.f32 0.0, %v3069
        %v3071 = vpop.f32.mrf.mxu0
        %3072 = vmatprep.mubr.f32.mxu0 0.0
        %3073 = vmatmul.mubr.f32.gmra.mxu0 %v2864
        %v3074 = vpop.f32.mrf.mxu0
        %v3075 = vadd.f32 0.0, %v3074
        %v3076 = vpop.f32.mrf.mxu0
        %3077 = vmatprep.mubr.f32.mxu0 0.0
        %3078 = vmatmul.mubr.f32.gmra.mxu0 %v2867
        %v3079 = vpop.f32.mrf.mxu0
        %v3080 = vadd.f32 0.0, %v3079
        %v3081 = vpop.f32.mrf.mxu0
        %3082 = vmatprep.mubr.f32.mxu0 0.0
        %3083 = vmatmul.mubr.f32.gmra.mxu0 %v2870
        %v3084 = vpop.f32.mrf.mxu0
        %v3085 = vadd.f32 0.0, %v3084
        %v3086 = vpop.f32.mrf.mxu0
        %3087 = vmatprep.mubr.f32.mxu0 0.0
        %3088 = vmatmul.mubr.f32.gmra.mxu0 %v2873
        %v3089 = vpop.f32.mrf.mxu0
        %v3090 = vadd.f32 0.0, %v3089
        %v3091 = vpop.f32.mrf.mxu0
        %3092 = vmatprep.mubr.f32.mxu0 0.0
        %3093 = vmatmul.mubr.f32.gmra.mxu0 %v2876
        %v3094 = vpop.f32.mrf.mxu0
        %v3095 = vadd.f32 0.0, %v3094
        %v3096 = vpop.f32.mrf.mxu0
        %3097 = vmatprep.mubr.f32.mxu0 0.0
        %3098 = vmatmul.mubr.f32.gmra.mxu0 %v2879
        %v3099 = vpop.f32.mrf.mxu0
        %v3100 = vadd.f32 0.0, %v3099
        %v3101 = vpop.f32.mrf.mxu0
        %3102 = vmatprep.mubr.f32.mxu0 0.0
        %3103 = vmatmul.mubr.f32.gmra.mxu0 %v2882
        %v3104 = vpop.f32.mrf.mxu0
        %v3105 = vadd.f32 0.0, %v3104
        %v3106 = vpop.f32.mrf.mxu0
        %3107 = vmatprep.mubr.f32.mxu0 0.0
        %3108 = vmatmul.mubr.f32.gmra.mxu0 %v2885
        %v3109 = vpop.f32.mrf.mxu0
        %v3110 = vadd.f32 0.0, %v3109
        %v3111 = vpop.f32.mrf.mxu0
        %3112 = vmatprep.mubr.f32.mxu0 0.0
        %3113 = vmatmul.mubr.f32.gmra.mxu0 %v2888
        %v3114 = vpop.f32.mrf.mxu0
        %v3115 = vadd.f32 0.0, %v3114
        %v3116 = vpop.f32.mrf.mxu0
        %3117 = vdwg.mxu0
        %v3118 = vadd.f32 %v2727, %v2960
        %v3119 = vadd.f32 %v2728, %v2965
        %v3120 = vadd.f32 %v2729, %v2970
        %v3121 = vadd.f32 %v2730, %v2975
        %v3122 = vadd.f32 %v2731, %v2980
        %v3123 = vadd.f32 %v2732, %v2985
        %v3124 = vadd.f32 %v2733, %v2990
        %v3125 = vadd.f32 %v2734, %v2995
        %v3126 = vadd.f32 %v2735, %v3000
        %v3127 = vadd.f32 %v2736, %v3005
        %v3128 = vadd.f32 %v2737, %v3010
        %v3129 = vadd.f32 %v2738, %v3015
        %v3130 = vadd.f32 %v2739, %v3020
        %v3131 = vadd.f32 %v2740, %v3025
        %v3132 = vadd.f32 %v2741, %v3030
        %v3133 = vadd.f32 %v2742, %v3035
        %v3134 = vadd.f32 %v2743, %v3040
        %v3135 = vadd.f32 %v2744, %v3045
        %v3136 = vadd.f32 %v2745, %v3050
        %v3137 = vadd.f32 %v2746, %v3055
        %v3138 = vadd.f32 %v2747, %v3060
        %v3139 = vadd.f32 %v2748, %v3065
        %v3140 = vadd.f32 %v2749, %v3070
        %v3141 = vadd.f32 %v2750, %v3075
        %v3142 = vadd.f32 %v2751, %v3080
        %v3143 = vadd.f32 %v2752, %v3085
        %v3144 = vadd.f32 %v2753, %v3090
        %v3145 = vadd.f32 %v2754, %v3095
        %v3146 = vadd.f32 %v2755, %v3100
        %v3147 = vadd.f32 %v2756, %v3105
        %v3148 = vadd.f32 %v2757, %v3110
        %v3149 = vadd.f32 %v2758, %v3115
        %v3150 = vld [vmem:[%s2759 + $0x1] sm:$0xff]
        %v3151 = vld [vmem:[%s2759 + $0x9] sm:$0xff]
        %v3152 = vld [vmem:[%s2759 + $0x19] sm:$0xff]
        %v3153 = vld [vmem:[%s2759 + $0x21] sm:$0xff]
        %v3154 = vld [vmem:[%s2759 + $0x31] sm:$0xff]
        %v3155 = vld [vmem:[%s2759 + $0x39] sm:$0xff]
        %v3156 = vld [vmem:[%s2759 + $0x49] sm:$0xff]
        %v3157 = vld [vmem:[%s2759 + $0x51] sm:$0xff]
        %v3158 = vld [vmem:[%s2759 + $0x61] sm:$0xff]
        %v3159 = vld [vmem:[%s2759 + $0x69] sm:$0xff]
        %v3160 = vld [vmem:[%s2759 + $0x79] sm:$0xff]
        %v3161 = vld [vmem:[%s2759 + $0x81] sm:$0xff]
        %v3162 = vld [vmem:[%s2759 + $0x91] sm:$0xff]
        %v3163 = vld [vmem:[%s2759 + $0x99] sm:$0xff]
        %v3164 = vld [vmem:[%s2759 + $0xa9] sm:$0xff]
        %v3165 = vld [vmem:[%s2759 + $0xb1] sm:$0xff]
        %v3166 = vld [vmem:[%s2759 + $0xc1] sm:$0xff]
        %v3167 = vld [vmem:[%s2759 + $0xc9] sm:$0xff]
        %v3168 = vld [vmem:[%s2759 + $0xd9] sm:$0xff]
        %v3169 = vld [vmem:[%s2759 + $0xe1] sm:$0xff]
        %v3170 = vld [vmem:[%s2759 + $0xf1] sm:$0xff]
        %v3171 = vld [vmem:[%s2759 + $0xf9] sm:$0xff]
        %v3172 = vld [vmem:[%s2759 + $0x109] sm:$0xff]
        %v3173 = vld [vmem:[%s2759 + $0x111] sm:$0xff]
        %v3174 = vld [vmem:[%s2759 + $0x121] sm:$0xff]
        %v3175 = vld [vmem:[%s2759 + $0x129] sm:$0xff]
        %v3176 = vld [vmem:[%s2759 + $0x139] sm:$0xff]
        %v3177 = vld [vmem:[%s2759 + $0x141] sm:$0xff]
        %v3178 = vld [vmem:[%s2759 + $0x151] sm:$0xff]
        %v3179 = vld [vmem:[%s2759 + $0x159] sm:$0xff]
        %v3180 = vld [vmem:[%s2759 + $0x169] sm:$0xff]
        %v3181 = vld [vmem:[%s2759 + $0x171] sm:$0xff]
        %s3182 = scalar_lea.vmem %s1, 28
        %v3183 = vld [vmem:[%s3182] sm:$0x7]
        %v3185 = vsel %vm394, %v3150, 0
        %v3188 = vsel %vm394, %v3151, 0
        %v3191 = vsel %vm394, %v3152, 0
        %v3194 = vsel %vm394, %v3153, 0
        %v3197 = vsel %vm394, %v3154, 0
        %v3200 = vsel %vm394, %v3155, 0
        %v3203 = vsel %vm394, %v3156, 0
        %v3206 = vsel %vm394, %v3157, 0
        %v3209 = vsel %vm394, %v3158, 0
        %v3212 = vsel %vm394, %v3159, 0
        %v3215 = vsel %vm394, %v3160, 0
        %v3218 = vsel %vm394, %v3161, 0
        %v3221 = vsel %vm394, %v3162, 0
        %v3224 = vsel %vm394, %v3163, 0
        %v3227 = vsel %vm394, %v3164, 0
        %v3230 = vsel %vm394, %v3165, 0
        %v3233 = vsel %vm394, %v3166, 0
        %v3236 = vsel %vm394, %v3167, 0
        %v3239 = vsel %vm394, %v3168, 0
        %v3242 = vsel %vm394, %v3169, 0
        %v3245 = vsel %vm394, %v3170, 0
        %v3248 = vsel %vm394, %v3171, 0
        %v3251 = vsel %vm394, %v3172, 0
        %v3254 = vsel %vm394, %v3173, 0
        %v3257 = vsel %vm394, %v3174, 0
        %v3260 = vsel %vm394, %v3175, 0
        %v3263 = vsel %vm394, %v3176, 0
        %v3266 = vsel %vm394, %v3177, 0
        %v3269 = vsel %vm394, %v3178, 0
        %v3272 = vsel %vm394, %v3179, 0
        %v3275 = vsel %vm394, %v3180, 0
        %v3278 = vsel %vm394, %v3181, 0
        %v3281 = vsel %vm646, %v3183, 0
        %3283 = vmatprep.subr.mxu0 0.0
        %3284 = vmatpush1.msra.mxu0 0.0
        %3285 = vmatprep.subr.mxu0 0.0
        %3286 = vmatpush1.msra.mxu0 0.0
        %3287 = vmatprep.subr.mxu0 0.0
        %3288 = vmatpush1.msra.mxu0 0.0
        %3289 = vmatprep.subr.mxu0 0.0
        %3290 = vmatpush1.msra.mxu0 0.0
        %3291 = vmatprep.subr.mxu0 0.0
        %3292 = vmatpush1.msra.mxu0 0.0
        %3293 = vmatprep.subr.mxu0 0.0
        %3294 = vmatpush1.msra.mxu0 0.0
        %3295 = vmatprep.subr.mxu0 0.0
        %3296 = vmatpush1.msra.mxu0 0.0
        %3297 = vmatprep.subr.mxu0 0.0
        %3298 = vmatpush1.msra.mxu0 0.0
        %3299 = vmatprep.subr.mxu0 0.0
        %3300 = vmatpush1.msra.mxu0 0.0
        %3301 = vmatprep.subr.mxu0 0.0
        %3302 = vmatpush1.msra.mxu0 0.0
        %3303 = vmatprep.subr.mxu0 0.0
        %3304 = vmatpush1.msra.mxu0 0.0
        %3305 = vmatprep.subr.mxu0 0.0
        %3306 = vmatpush1.msra.mxu0 0.0
        %3307 = vmatprep.subr.mxu0 0.0
        %3308 = vmatpush1.msra.mxu0 0.0
        %3309 = vmatprep.subr.mxu0 0.0
        %3310 = vmatpush1.msra.mxu0 0.0
        %3311 = vmatprep.subr.mxu0 0.0
        %3312 = vmatpush1.msra.mxu0 0.0
        %3313 = vmatprep.subr.mxu0 0.0
        %3314 = vmatpush1.msra.mxu0 %v3281
        %3315 = vmatprep.subr.mxu0 0.0
        %3316 = vmatpush2.msra.mxu0 0.0
        %3317 = vmatprep.subr.mxu0 0.0
        %3318 = vmatpush2.msra.mxu0 0.0
        %3319 = vmatprep.subr.mxu0 0.0
        %3320 = vmatpush2.msra.mxu0 0.0
        %3321 = vmatprep.subr.mxu0 0.0
        %3322 = vmatpush2.msra.mxu0 0.0
        %3323 = vmatprep.subr.mxu0 0.0
        %3324 = vmatpush2.msra.mxu0 0.0
        %3325 = vmatprep.subr.mxu0 0.0
        %3326 = vmatpush2.msra.mxu0 0.0
        %3327 = vmatprep.subr.mxu0 0.0
        %3328 = vmatpush2.msra.mxu0 0.0
        %3329 = vmatprep.subr.mxu0 0.0
        %3330 = vmatpush2.msra.mxu0 0.0
        %3331 = vmatprep.subr.mxu0 0.0
        %3332 = vmatpush2.msra.mxu0 0.0
        %3333 = vmatprep.subr.mxu0 0.0
        %3334 = vmatpush2.msra.mxu0 0.0
        %3335 = vmatprep.subr.mxu0 0.0
        %3336 = vmatpush2.msra.mxu0 0.0
        %3337 = vmatprep.subr.mxu0 0.0
        %3338 = vmatpush2.msra.mxu0 0.0
        %3339 = vmatprep.subr.mxu0 0.0
        %3340 = vmatpush2.msra.mxu0 0.0
        %3341 = vmatprep.subr.mxu0 0.0
        %3342 = vmatpush2.msra.mxu0 0.0
        %3343 = vmatprep.subr.mxu0 0.0
        %3344 = vmatpush2.msra.mxu0 0.0
        %3345 = vmatprep.subr.mxu0 0.0
        %3346 = vmatpush2.msra.mxu0 0.0
        %3347 = vmatprep.mubr.f32.mxu0 0.0
        %3348 = vmatmul.mubr.f32.gmra.mxu0 %v3185
        %v3349 = vpop.f32.mrf.mxu0
        %v3350 = vadd.f32 0.0, %v3349
        %v3351 = vpop.f32.mrf.mxu0
        %3352 = vmatprep.mubr.f32.mxu0 0.0
        %3353 = vmatmul.mubr.f32.gmra.mxu0 %v3188
        %v3354 = vpop.f32.mrf.mxu0
        %v3355 = vadd.f32 0.0, %v3354
        %v3356 = vpop.f32.mrf.mxu0
        %3357 = vmatprep.mubr.f32.mxu0 0.0
        %3358 = vmatmul.mubr.f32.gmra.mxu0 %v3191
        %v3359 = vpop.f32.mrf.mxu0
        %v3360 = vadd.f32 0.0, %v3359
        %v3361 = vpop.f32.mrf.mxu0
        %3362 = vmatprep.mubr.f32.mxu0 0.0
        %3363 = vmatmul.mubr.f32.gmra.mxu0 %v3194
        %v3364 = vpop.f32.mrf.mxu0
        %v3365 = vadd.f32 0.0, %v3364
        %v3366 = vpop.f32.mrf.mxu0
        %3367 = vmatprep.mubr.f32.mxu0 0.0
        %3368 = vmatmul.mubr.f32.gmra.mxu0 %v3197
        %v3369 = vpop.f32.mrf.mxu0
        %v3370 = vadd.f32 0.0, %v3369
        %v3371 = vpop.f32.mrf.mxu0
        %3372 = vmatprep.mubr.f32.mxu0 0.0
        %3373 = vmatmul.mubr.f32.gmra.mxu0 %v3200
        %v3374 = vpop.f32.mrf.mxu0
        %v3375 = vadd.f32 0.0, %v3374
        %v3376 = vpop.f32.mrf.mxu0
        %3377 = vmatprep.mubr.f32.mxu0 0.0
        %3378 = vmatmul.mubr.f32.gmra.mxu0 %v3203
        %v3379 = vpop.f32.mrf.mxu0
        %v3380 = vadd.f32 0.0, %v3379
        %v3381 = vpop.f32.mrf.mxu0
        %3382 = vmatprep.mubr.f32.mxu0 0.0
        %3383 = vmatmul.mubr.f32.gmra.mxu0 %v3206
        %v3384 = vpop.f32.mrf.mxu0
        %v3385 = vadd.f32 0.0, %v3384
        %v3386 = vpop.f32.mrf.mxu0
        %3387 = vmatprep.mubr.f32.mxu0 0.0
        %3388 = vmatmul.mubr.f32.gmra.mxu0 %v3209
        %v3389 = vpop.f32.mrf.mxu0
        %v3390 = vadd.f32 0.0, %v3389
        %v3391 = vpop.f32.mrf.mxu0
        %3392 = vmatprep.mubr.f32.mxu0 0.0
        %3393 = vmatmul.mubr.f32.gmra.mxu0 %v3212
        %v3394 = vpop.f32.mrf.mxu0
        %v3395 = vadd.f32 0.0, %v3394
        %v3396 = vpop.f32.mrf.mxu0
        %3397 = vmatprep.mubr.f32.mxu0 0.0
        %3398 = vmatmul.mubr.f32.gmra.mxu0 %v3215
        %v3399 = vpop.f32.mrf.mxu0
        %v3400 = vadd.f32 0.0, %v3399
        %v3401 = vpop.f32.mrf.mxu0
        %3402 = vmatprep.mubr.f32.mxu0 0.0
        %3403 = vmatmul.mubr.f32.gmra.mxu0 %v3218
        %v3404 = vpop.f32.mrf.mxu0
        %v3405 = vadd.f32 0.0, %v3404
        %v3406 = vpop.f32.mrf.mxu0
        %3407 = vmatprep.mubr.f32.mxu0 0.0
        %3408 = vmatmul.mubr.f32.gmra.mxu0 %v3221
        %v3409 = vpop.f32.mrf.mxu0
        %v3410 = vadd.f32 0.0, %v3409
        %v3411 = vpop.f32.mrf.mxu0
        %3412 = vmatprep.mubr.f32.mxu0 0.0
        %3413 = vmatmul.mubr.f32.gmra.mxu0 %v3224
        %v3414 = vpop.f32.mrf.mxu0
        %v3415 = vadd.f32 0.0, %v3414
        %v3416 = vpop.f32.mrf.mxu0
        %3417 = vmatprep.mubr.f32.mxu0 0.0
        %3418 = vmatmul.mubr.f32.gmra.mxu0 %v3227
        %v3419 = vpop.f32.mrf.mxu0
        %v3420 = vadd.f32 0.0, %v3419
        %v3421 = vpop.f32.mrf.mxu0
        %3422 = vmatprep.mubr.f32.mxu0 0.0
        %3423 = vmatmul.mubr.f32.gmra.mxu0 %v3230
        %v3424 = vpop.f32.mrf.mxu0
        %v3425 = vadd.f32 0.0, %v3424
        %v3426 = vpop.f32.mrf.mxu0
        %3427 = vmatprep.mubr.f32.mxu0 0.0
        %3428 = vmatmul.mubr.f32.gmra.mxu0 %v3233
        %v3429 = vpop.f32.mrf.mxu0
        %v3430 = vadd.f32 0.0, %v3429
        %v3431 = vpop.f32.mrf.mxu0
        %3432 = vmatprep.mubr.f32.mxu0 0.0
        %3433 = vmatmul.mubr.f32.gmra.mxu0 %v3236
        %v3434 = vpop.f32.mrf.mxu0
        %v3435 = vadd.f32 0.0, %v3434
        %v3436 = vpop.f32.mrf.mxu0
        %3437 = vmatprep.mubr.f32.mxu0 0.0
        %3438 = vmatmul.mubr.f32.gmra.mxu0 %v3239
        %v3439 = vpop.f32.mrf.mxu0
        %v3440 = vadd.f32 0.0, %v3439
        %v3441 = vpop.f32.mrf.mxu0
        %3442 = vmatprep.mubr.f32.mxu0 0.0
        %3443 = vmatmul.mubr.f32.gmra.mxu0 %v3242
        %v3444 = vpop.f32.mrf.mxu0
        %v3445 = vadd.f32 0.0, %v3444
        %v3446 = vpop.f32.mrf.mxu0
        %3447 = vmatprep.mubr.f32.mxu0 0.0
        %3448 = vmatmul.mubr.f32.gmra.mxu0 %v3245
        %v3449 = vpop.f32.mrf.mxu0
        %v3450 = vadd.f32 0.0, %v3449
        %v3451 = vpop.f32.mrf.mxu0
        %3452 = vmatprep.mubr.f32.mxu0 0.0
        %3453 = vmatmul.mubr.f32.gmra.mxu0 %v3248
        %v3454 = vpop.f32.mrf.mxu0
        %v3455 = vadd.f32 0.0, %v3454
        %v3456 = vpop.f32.mrf.mxu0
        %3457 = vmatprep.mubr.f32.mxu0 0.0
        %3458 = vmatmul.mubr.f32.gmra.mxu0 %v3251
        %v3459 = vpop.f32.mrf.mxu0
        %v3460 = vadd.f32 0.0, %v3459
        %v3461 = vpop.f32.mrf.mxu0
        %3462 = vmatprep.mubr.f32.mxu0 0.0
        %3463 = vmatmul.mubr.f32.gmra.mxu0 %v3254
        %v3464 = vpop.f32.mrf.mxu0
        %v3465 = vadd.f32 0.0, %v3464
        %v3466 = vpop.f32.mrf.mxu0
        %3467 = vmatprep.mubr.f32.mxu0 0.0
        %3468 = vmatmul.mubr.f32.gmra.mxu0 %v3257
        %v3469 = vpop.f32.mrf.mxu0
        %v3470 = vadd.f32 0.0, %v3469
        %v3471 = vpop.f32.mrf.mxu0
        %3472 = vmatprep.mubr.f32.mxu0 0.0
        %3473 = vmatmul.mubr.f32.gmra.mxu0 %v3260
        %v3474 = vpop.f32.mrf.mxu0
        %v3475 = vadd.f32 0.0, %v3474
        %v3476 = vpop.f32.mrf.mxu0
        %3477 = vmatprep.mubr.f32.mxu0 0.0
        %3478 = vmatmul.mubr.f32.gmra.mxu0 %v3263
        %v3479 = vpop.f32.mrf.mxu0
        %v3480 = vadd.f32 0.0, %v3479
        %v3481 = vpop.f32.mrf.mxu0
        %3482 = vmatprep.mubr.f32.mxu0 0.0
        %3483 = vmatmul.mubr.f32.gmra.mxu0 %v3266
        %v3484 = vpop.f32.mrf.mxu0
        %v3485 = vadd.f32 0.0, %v3484
        %v3486 = vpop.f32.mrf.mxu0
        %3487 = vmatprep.mubr.f32.mxu0 0.0
        %3488 = vmatmul.mubr.f32.gmra.mxu0 %v3269
        %v3489 = vpop.f32.mrf.mxu0
        %v3490 = vadd.f32 0.0, %v3489
        %v3491 = vpop.f32.mrf.mxu0
        %3492 = vmatprep.mubr.f32.mxu0 0.0
        %3493 = vmatmul.mubr.f32.gmra.mxu0 %v3272
        %v3494 = vpop.f32.mrf.mxu0
        %v3495 = vadd.f32 0.0, %v3494
        %v3496 = vpop.f32.mrf.mxu0
        %3497 = vmatprep.mubr.f32.mxu0 0.0
        %3498 = vmatmul.mubr.f32.gmra.mxu0 %v3275
        %v3499 = vpop.f32.mrf.mxu0
        %v3500 = vadd.f32 0.0, %v3499
        %v3501 = vpop.f32.mrf.mxu0
        %3502 = vmatprep.mubr.f32.mxu0 0.0
        %3503 = vmatmul.mubr.f32.gmra.mxu0 %v3278
        %v3504 = vpop.f32.mrf.mxu0
        %v3505 = vadd.f32 0.0, %v3504
        %v3506 = vpop.f32.mrf.mxu0
        %3507 = vdwg.mxu0
        %v3508 = vadd.f32 %v3118, %v3350
        %v3509 = vadd.f32 %v3119, %v3355
        %v3510 = vadd.f32 %v3120, %v3360
        %v3511 = vadd.f32 %v3121, %v3365
        %v3512 = vadd.f32 %v3122, %v3370
        %v3513 = vadd.f32 %v3123, %v3375
        %v3514 = vadd.f32 %v3124, %v3380
        %v3515 = vadd.f32 %v3125, %v3385
        %v3516 = vadd.f32 %v3126, %v3390
        %v3517 = vadd.f32 %v3127, %v3395
        %v3518 = vadd.f32 %v3128, %v3400
        %v3519 = vadd.f32 %v3129, %v3405
        %v3520 = vadd.f32 %v3130, %v3410
        %v3521 = vadd.f32 %v3131, %v3415
        %v3522 = vadd.f32 %v3132, %v3420
        %v3523 = vadd.f32 %v3133, %v3425
        %v3524 = vadd.f32 %v3134, %v3430
        %v3525 = vadd.f32 %v3135, %v3435
        %v3526 = vadd.f32 %v3136, %v3440
        %v3527 = vadd.f32 %v3137, %v3445
        %v3528 = vadd.f32 %v3138, %v3450
        %v3529 = vadd.f32 %v3139, %v3455
        %v3530 = vadd.f32 %v3140, %v3460
        %v3531 = vadd.f32 %v3141, %v3465
        %v3532 = vadd.f32 %v3142, %v3470
        %v3533 = vadd.f32 %v3143, %v3475
        %v3534 = vadd.f32 %v3144, %v3480
        %v3535 = vadd.f32 %v3145, %v3485
        %v3536 = vadd.f32 %v3146, %v3490
        %v3537 = vadd.f32 %v3147, %v3495
        %v3538 = vadd.f32 %v3148, %v3500
        %v3539 = vadd.f32 %v3149, %v3505
        %v3540 = vld [vmem:[%s2759 + $0x2] sm:$0xff]
        %v3541 = vld [vmem:[%s2759 + $0xa] sm:$0xff]
        %v3542 = vld [vmem:[%s2759 + $0x1a] sm:$0xff]
        %v3543 = vld [vmem:[%s2759 + $0x22] sm:$0xff]
        %v3544 = vld [vmem:[%s2759 + $0x32] sm:$0xff]
        %v3545 = vld [vmem:[%s2759 + $0x3a] sm:$0xff]
        %v3546 = vld [vmem:[%s2759 + $0x4a] sm:$0xff]
        %v3547 = vld [vmem:[%s2759 + $0x52] sm:$0xff]
        %v3548 = vld [vmem:[%s2759 + $0x62] sm:$0xff]
        %v3549 = vld [vmem:[%s2759 + $0x6a] sm:$0xff]
        %v3550 = vld [vmem:[%s2759 + $0x7a] sm:$0xff]
        %v3551 = vld [vmem:[%s2759 + $0x82] sm:$0xff]
        %v3552 = vld [vmem:[%s2759 + $0x92] sm:$0xff]
        %v3553 = vld [vmem:[%s2759 + $0x9a] sm:$0xff]
        %v3554 = vld [vmem:[%s2759 + $0xaa] sm:$0xff]
        %v3555 = vld [vmem:[%s2759 + $0xb2] sm:$0xff]
        %v3556 = vld [vmem:[%s2759 + $0xc2] sm:$0xff]
        %v3557 = vld [vmem:[%s2759 + $0xca] sm:$0xff]
        %v3558 = vld [vmem:[%s2759 + $0xda] sm:$0xff]
        %v3559 = vld [vmem:[%s2759 + $0xe2] sm:$0xff]
        %v3560 = vld [vmem:[%s2759 + $0xf2] sm:$0xff]
        %v3561 = vld [vmem:[%s2759 + $0xfa] sm:$0xff]
        %v3562 = vld [vmem:[%s2759 + $0x10a] sm:$0xff]
        %v3563 = vld [vmem:[%s2759 + $0x112] sm:$0xff]
        %v3564 = vld [vmem:[%s2759 + $0x122] sm:$0xff]
        %v3565 = vld [vmem:[%s2759 + $0x12a] sm:$0xff]
        %v3566 = vld [vmem:[%s2759 + $0x13a] sm:$0xff]
        %v3567 = vld [vmem:[%s2759 + $0x142] sm:$0xff]
        %v3568 = vld [vmem:[%s2759 + $0x152] sm:$0xff]
        %v3569 = vld [vmem:[%s2759 + $0x15a] sm:$0xff]
        %v3570 = vld [vmem:[%s2759 + $0x16a] sm:$0xff]
        %v3571 = vld [vmem:[%s2759 + $0x172] sm:$0xff]
        %s3572 = scalar_lea.vmem %s1, 32
        %v3573 = vld [vmem:[%s3572] sm:$0x7]
        %v3575 = vsel %vm394, %v3540, 0
        %v3578 = vsel %vm394, %v3541, 0
        %v3581 = vsel %vm394, %v3542, 0
        %v3584 = vsel %vm394, %v3543, 0
        %v3587 = vsel %vm394, %v3544, 0
        %v3590 = vsel %vm394, %v3545, 0
        %v3593 = vsel %vm394, %v3546, 0
        %v3596 = vsel %vm394, %v3547, 0
        %v3599 = vsel %vm394, %v3548, 0
        %v3602 = vsel %vm394, %v3549, 0
        %v3605 = vsel %vm394, %v3550, 0
        %v3608 = vsel %vm394, %v3551, 0
        %v3611 = vsel %vm394, %v3552, 0
        %v3614 = vsel %vm394, %v3553, 0
        %v3617 = vsel %vm394, %v3554, 0
        %v3620 = vsel %vm394, %v3555, 0
        %v3623 = vsel %vm394, %v3556, 0
        %v3626 = vsel %vm394, %v3557, 0
        %v3629 = vsel %vm394, %v3558, 0
        %v3632 = vsel %vm394, %v3559, 0
        %v3635 = vsel %vm394, %v3560, 0
        %v3638 = vsel %vm394, %v3561, 0
        %v3641 = vsel %vm394, %v3562, 0
        %v3644 = vsel %vm394, %v3563, 0
        %v3647 = vsel %vm394, %v3564, 0
        %v3650 = vsel %vm394, %v3565, 0
        %v3653 = vsel %vm394, %v3566, 0
        %v3656 = vsel %vm394, %v3567, 0
        %v3659 = vsel %vm394, %v3568, 0
        %v3662 = vsel %vm394, %v3569, 0
        %v3665 = vsel %vm394, %v3570, 0
        %v3668 = vsel %vm394, %v3571, 0
        %v3671 = vsel %vm646, %v3573, 0
        %3673 = vmatprep.subr.mxu0 0.0
        %3674 = vmatpush1.msra.mxu0 0.0
        %3675 = vmatprep.subr.mxu0 0.0
        %3676 = vmatpush1.msra.mxu0 0.0
        %3677 = vmatprep.subr.mxu0 0.0
        %3678 = vmatpush1.msra.mxu0 0.0
        %3679 = vmatprep.subr.mxu0 0.0
        %3680 = vmatpush1.msra.mxu0 0.0
        %3681 = vmatprep.subr.mxu0 0.0
        %3682 = vmatpush1.msra.mxu0 0.0
        %3683 = vmatprep.subr.mxu0 0.0
        %3684 = vmatpush1.msra.mxu0 0.0
        %3685 = vmatprep.subr.mxu0 0.0
        %3686 = vmatpush1.msra.mxu0 0.0
        %3687 = vmatprep.subr.mxu0 0.0
        %3688 = vmatpush1.msra.mxu0 0.0
        %3689 = vmatprep.subr.mxu0 0.0
        %3690 = vmatpush1.msra.mxu0 0.0
        %3691 = vmatprep.subr.mxu0 0.0
        %3692 = vmatpush1.msra.mxu0 0.0
        %3693 = vmatprep.subr.mxu0 0.0
        %3694 = vmatpush1.msra.mxu0 0.0
        %3695 = vmatprep.subr.mxu0 0.0
        %3696 = vmatpush1.msra.mxu0 0.0
        %3697 = vmatprep.subr.mxu0 0.0
        %3698 = vmatpush1.msra.mxu0 0.0
        %3699 = vmatprep.subr.mxu0 0.0
        %3700 = vmatpush1.msra.mxu0 0.0
        %3701 = vmatprep.subr.mxu0 0.0
        %3702 = vmatpush1.msra.mxu0 0.0
        %3703 = vmatprep.subr.mxu0 0.0
        %3704 = vmatpush1.msra.mxu0 %v3671
        %3705 = vmatprep.subr.mxu0 0.0
        %3706 = vmatpush2.msra.mxu0 0.0
        %3707 = vmatprep.subr.mxu0 0.0
        %3708 = vmatpush2.msra.mxu0 0.0
        %3709 = vmatprep.subr.mxu0 0.0
        %3710 = vmatpush2.msra.mxu0 0.0
        %3711 = vmatprep.subr.mxu0 0.0
        %3712 = vmatpush2.msra.mxu0 0.0
        %3713 = vmatprep.subr.mxu0 0.0
        %3714 = vmatpush2.msra.mxu0 0.0
        %3715 = vmatprep.subr.mxu0 0.0
        %3716 = vmatpush2.msra.mxu0 0.0
        %3717 = vmatprep.subr.mxu0 0.0
        %3718 = vmatpush2.msra.mxu0 0.0
        %3719 = vmatprep.subr.mxu0 0.0
        %3720 = vmatpush2.msra.mxu0 0.0
        %3721 = vmatprep.subr.mxu0 0.0
        %3722 = vmatpush2.msra.mxu0 0.0
        %3723 = vmatprep.subr.mxu0 0.0
        %3724 = vmatpush2.msra.mxu0 0.0
        %3725 = vmatprep.subr.mxu0 0.0
        %3726 = vmatpush2.msra.mxu0 0.0
        %3727 = vmatprep.subr.mxu0 0.0
        %3728 = vmatpush2.msra.mxu0 0.0
        %3729 = vmatprep.subr.mxu0 0.0
        %3730 = vmatpush2.msra.mxu0 0.0
        %3731 = vmatprep.subr.mxu0 0.0
        %3732 = vmatpush2.msra.mxu0 0.0
        %3733 = vmatprep.subr.mxu0 0.0
        %3734 = vmatpush2.msra.mxu0 0.0
        %3735 = vmatprep.subr.mxu0 0.0
        %3736 = vmatpush2.msra.mxu0 0.0
        %3737 = vmatprep.mubr.f32.mxu0 0.0
        %3738 = vmatmul.mubr.f32.gmra.mxu0 %v3575
        %v3739 = vpop.f32.mrf.mxu0
        %v3740 = vadd.f32 0.0, %v3739
        %v3741 = vpop.f32.mrf.mxu0
        %3742 = vmatprep.mubr.f32.mxu0 0.0
        %3743 = vmatmul.mubr.f32.gmra.mxu0 %v3578
        %v3744 = vpop.f32.mrf.mxu0
        %v3745 = vadd.f32 0.0, %v3744
        %v3746 = vpop.f32.mrf.mxu0
        %3747 = vmatprep.mubr.f32.mxu0 0.0
        %3748 = vmatmul.mubr.f32.gmra.mxu0 %v3581
        %v3749 = vpop.f32.mrf.mxu0
        %v3750 = vadd.f32 0.0, %v3749
        %v3751 = vpop.f32.mrf.mxu0
        %3752 = vmatprep.mubr.f32.mxu0 0.0
        %3753 = vmatmul.mubr.f32.gmra.mxu0 %v3584
        %v3754 = vpop.f32.mrf.mxu0
        %v3755 = vadd.f32 0.0, %v3754
        %v3756 = vpop.f32.mrf.mxu0
        %3757 = vmatprep.mubr.f32.mxu0 0.0
        %3758 = vmatmul.mubr.f32.gmra.mxu0 %v3587
        %v3759 = vpop.f32.mrf.mxu0
        %v3760 = vadd.f32 0.0, %v3759
        %v3761 = vpop.f32.mrf.mxu0
        %3762 = vmatprep.mubr.f32.mxu0 0.0
        %3763 = vmatmul.mubr.f32.gmra.mxu0 %v3590
        %v3764 = vpop.f32.mrf.mxu0
        %v3765 = vadd.f32 0.0, %v3764
        %v3766 = vpop.f32.mrf.mxu0
        %3767 = vmatprep.mubr.f32.mxu0 0.0
        %3768 = vmatmul.mubr.f32.gmra.mxu0 %v3593
        %v3769 = vpop.f32.mrf.mxu0
        %v3770 = vadd.f32 0.0, %v3769
        %v3771 = vpop.f32.mrf.mxu0
        %3772 = vmatprep.mubr.f32.mxu0 0.0
        %3773 = vmatmul.mubr.f32.gmra.mxu0 %v3596
        %v3774 = vpop.f32.mrf.mxu0
        %v3775 = vadd.f32 0.0, %v3774
        %v3776 = vpop.f32.mrf.mxu0
        %3777 = vmatprep.mubr.f32.mxu0 0.0
        %3778 = vmatmul.mubr.f32.gmra.mxu0 %v3599
        %v3779 = vpop.f32.mrf.mxu0
        %v3780 = vadd.f32 0.0, %v3779
        %v3781 = vpop.f32.mrf.mxu0
        %3782 = vmatprep.mubr.f32.mxu0 0.0
        %3783 = vmatmul.mubr.f32.gmra.mxu0 %v3602
        %v3784 = vpop.f32.mrf.mxu0
        %v3785 = vadd.f32 0.0, %v3784
        %v3786 = vpop.f32.mrf.mxu0
        %3787 = vmatprep.mubr.f32.mxu0 0.0
        %3788 = vmatmul.mubr.f32.gmra.mxu0 %v3605
        %v3789 = vpop.f32.mrf.mxu0
        %v3790 = vadd.f32 0.0, %v3789
        %v3791 = vpop.f32.mrf.mxu0
        %3792 = vmatprep.mubr.f32.mxu0 0.0
        %3793 = vmatmul.mubr.f32.gmra.mxu0 %v3608
        %v3794 = vpop.f32.mrf.mxu0
        %v3795 = vadd.f32 0.0, %v3794
        %v3796 = vpop.f32.mrf.mxu0
        %3797 = vmatprep.mubr.f32.mxu0 0.0
        %3798 = vmatmul.mubr.f32.gmra.mxu0 %v3611
        %v3799 = vpop.f32.mrf.mxu0
        %v3800 = vadd.f32 0.0, %v3799
        %v3801 = vpop.f32.mrf.mxu0
        %3802 = vmatprep.mubr.f32.mxu0 0.0
        %3803 = vmatmul.mubr.f32.gmra.mxu0 %v3614
        %v3804 = vpop.f32.mrf.mxu0
        %v3805 = vadd.f32 0.0, %v3804
        %v3806 = vpop.f32.mrf.mxu0
        %3807 = vmatprep.mubr.f32.mxu0 0.0
        %3808 = vmatmul.mubr.f32.gmra.mxu0 %v3617
        %v3809 = vpop.f32.mrf.mxu0
        %v3810 = vadd.f32 0.0, %v3809
        %v3811 = vpop.f32.mrf.mxu0
        %3812 = vmatprep.mubr.f32.mxu0 0.0
        %3813 = vmatmul.mubr.f32.gmra.mxu0 %v3620
        %v3814 = vpop.f32.mrf.mxu0
        %v3815 = vadd.f32 0.0, %v3814
        %v3816 = vpop.f32.mrf.mxu0
        %3817 = vmatprep.mubr.f32.mxu0 0.0
        %3818 = vmatmul.mubr.f32.gmra.mxu0 %v3623
        %v3819 = vpop.f32.mrf.mxu0
        %v3820 = vadd.f32 0.0, %v3819
        %v3821 = vpop.f32.mrf.mxu0
        %3822 = vmatprep.mubr.f32.mxu0 0.0
        %3823 = vmatmul.mubr.f32.gmra.mxu0 %v3626
        %v3824 = vpop.f32.mrf.mxu0
        %v3825 = vadd.f32 0.0, %v3824
        %v3826 = vpop.f32.mrf.mxu0
        %3827 = vmatprep.mubr.f32.mxu0 0.0
        %3828 = vmatmul.mubr.f32.gmra.mxu0 %v3629
        %v3829 = vpop.f32.mrf.mxu0
        %v3830 = vadd.f32 0.0, %v3829
        %v3831 = vpop.f32.mrf.mxu0
        %3832 = vmatprep.mubr.f32.mxu0 0.0
        %3833 = vmatmul.mubr.f32.gmra.mxu0 %v3632
        %v3834 = vpop.f32.mrf.mxu0
        %v3835 = vadd.f32 0.0, %v3834
        %v3836 = vpop.f32.mrf.mxu0
        %3837 = vmatprep.mubr.f32.mxu0 0.0
        %3838 = vmatmul.mubr.f32.gmra.mxu0 %v3635
        %v3839 = vpop.f32.mrf.mxu0
        %v3840 = vadd.f32 0.0, %v3839
        %v3841 = vpop.f32.mrf.mxu0
        %3842 = vmatprep.mubr.f32.mxu0 0.0
        %3843 = vmatmul.mubr.f32.gmra.mxu0 %v3638
        %v3844 = vpop.f32.mrf.mxu0
        %v3845 = vadd.f32 0.0, %v3844
        %v3846 = vpop.f32.mrf.mxu0
        %3847 = vmatprep.mubr.f32.mxu0 0.0
        %3848 = vmatmul.mubr.f32.gmra.mxu0 %v3641
        %v3849 = vpop.f32.mrf.mxu0
        %v3850 = vadd.f32 0.0, %v3849
        %v3851 = vpop.f32.mrf.mxu0
        %3852 = vmatprep.mubr.f32.mxu0 0.0
        %3853 = vmatmul.mubr.f32.gmra.mxu0 %v3644
        %v3854 = vpop.f32.mrf.mxu0
        %v3855 = vadd.f32 0.0, %v3854
        %v3856 = vpop.f32.mrf.mxu0
        %3857 = vmatprep.mubr.f32.mxu0 0.0
        %3858 = vmatmul.mubr.f32.gmra.mxu0 %v3647
        %v3859 = vpop.f32.mrf.mxu0
        %v3860 = vadd.f32 0.0, %v3859
        %v3861 = vpop.f32.mrf.mxu0
        %3862 = vmatprep.mubr.f32.mxu0 0.0
        %3863 = vmatmul.mubr.f32.gmra.mxu0 %v3650
        %v3864 = vpop.f32.mrf.mxu0
        %v3865 = vadd.f32 0.0, %v3864
        %v3866 = vpop.f32.mrf.mxu0
        %3867 = vmatprep.mubr.f32.mxu0 0.0
        %3868 = vmatmul.mubr.f32.gmra.mxu0 %v3653
        %v3869 = vpop.f32.mrf.mxu0
        %v3870 = vadd.f32 0.0, %v3869
        %v3871 = vpop.f32.mrf.mxu0
        %3872 = vmatprep.mubr.f32.mxu0 0.0
        %3873 = vmatmul.mubr.f32.gmra.mxu0 %v3656
        %v3874 = vpop.f32.mrf.mxu0
        %v3875 = vadd.f32 0.0, %v3874
        %v3876 = vpop.f32.mrf.mxu0
        %3877 = vmatprep.mubr.f32.mxu0 0.0
        %3878 = vmatmul.mubr.f32.gmra.mxu0 %v3659
        %v3879 = vpop.f32.mrf.mxu0
        %v3880 = vadd.f32 0.0, %v3879
        %v3881 = vpop.f32.mrf.mxu0
        %3882 = vmatprep.mubr.f32.mxu0 0.0
        %3883 = vmatmul.mubr.f32.gmra.mxu0 %v3662
        %v3884 = vpop.f32.mrf.mxu0
        %v3885 = vadd.f32 0.0, %v3884
        %v3886 = vpop.f32.mrf.mxu0
        %3887 = vmatprep.mubr.f32.mxu0 0.0
        %3888 = vmatmul.mubr.f32.gmra.mxu0 %v3665
        %v3889 = vpop.f32.mrf.mxu0
        %v3890 = vadd.f32 0.0, %v3889
        %v3891 = vpop.f32.mrf.mxu0
        %3892 = vmatprep.mubr.f32.mxu0 0.0
        %3893 = vmatmul.mubr.f32.gmra.mxu0 %v3668
        %v3894 = vpop.f32.mrf.mxu0
        %v3895 = vadd.f32 0.0, %v3894
        %v3896 = vpop.f32.mrf.mxu0
        %3897 = vdwg.mxu0
        %v3898 = vadd.f32 %v3508, %v3740
        %v3899 = vadd.f32 %v3509, %v3745
        %v3900 = vadd.f32 %v3510, %v3750
        %v3901 = vadd.f32 %v3511, %v3755
        %v3902 = vadd.f32 %v3512, %v3760
        %v3903 = vadd.f32 %v3513, %v3765
        %v3904 = vadd.f32 %v3514, %v3770
        %v3905 = vadd.f32 %v3515, %v3775
        %v3906 = vadd.f32 %v3516, %v3780
        %v3907 = vadd.f32 %v3517, %v3785
        %v3908 = vadd.f32 %v3518, %v3790
        %v3909 = vadd.f32 %v3519, %v3795
        %v3910 = vadd.f32 %v3520, %v3800
        %v3911 = vadd.f32 %v3521, %v3805
        %v3912 = vadd.f32 %v3522, %v3810
        %v3913 = vadd.f32 %v3523, %v3815
        %v3914 = vadd.f32 %v3524, %v3820
        %v3915 = vadd.f32 %v3525, %v3825
        %v3916 = vadd.f32 %v3526, %v3830
        %v3917 = vadd.f32 %v3527, %v3835
        %v3918 = vadd.f32 %v3528, %v3840
        %v3919 = vadd.f32 %v3529, %v3845
        %v3920 = vadd.f32 %v3530, %v3850
        %v3921 = vadd.f32 %v3531, %v3855
        %v3922 = vadd.f32 %v3532, %v3860
        %v3923 = vadd.f32 %v3533, %v3865
        %v3924 = vadd.f32 %v3534, %v3870
        %v3925 = vadd.f32 %v3535, %v3875
        %v3926 = vadd.f32 %v3536, %v3880
        %v3927 = vadd.f32 %v3537, %v3885
        %v3928 = vadd.f32 %v3538, %v3890
        %v3929 = vadd.f32 %v3539, %v3895
        %v3930 = vld [vmem:[%s2] sm:$0x1]
        %v3932 = vlaneseq
        %v3933 = vshrl.u32 %v3932, 7
        %v3934 = vsub.s32 0, %v3933
        %v3935 = vrot.slane %v3930, %v3934
        %v3937 = vadd.f32 %v3898, %v3935
        %v3938 = vadd.f32 %v3899, %v3935
        %v3939 = vadd.f32 %v3900, %v3935
        %v3940 = vadd.f32 %v3901, %v3935
        %v3941 = vadd.f32 %v3902, %v3935
        %v3942 = vadd.f32 %v3903, %v3935
        %v3943 = vadd.f32 %v3904, %v3935
        %v3944 = vadd.f32 %v3905, %v3935
        %v3945 = vadd.f32 %v3906, %v3935
        %v3946 = vadd.f32 %v3907, %v3935
        %v3947 = vadd.f32 %v3908, %v3935
        %v3948 = vadd.f32 %v3909, %v3935
        %v3949 = vadd.f32 %v3910, %v3935
        %v3950 = vadd.f32 %v3911, %v3935
        %v3951 = vadd.f32 %v3912, %v3935
        %v3952 = vadd.f32 %v3913, %v3935
        %v3953 = vadd.f32 %v3914, %v3935
        %v3954 = vadd.f32 %v3915, %v3935
        %v3955 = vadd.f32 %v3916, %v3935
        %v3956 = vadd.f32 %v3917, %v3935
        %v3957 = vadd.f32 %v3918, %v3935
        %v3958 = vadd.f32 %v3919, %v3935
        %v3959 = vadd.f32 %v3920, %v3935
        %v3960 = vadd.f32 %v3921, %v3935
        %v3961 = vadd.f32 %v3922, %v3935
        %v3962 = vadd.f32 %v3923, %v3935
        %v3963 = vadd.f32 %v3924, %v3935
        %v3964 = vadd.f32 %v3925, %v3935
        %v3965 = vadd.f32 %v3926, %v3935
        %v3966 = vadd.f32 %v3927, %v3935
        %v3967 = vadd.f32 %v3928, %v3935
        %v3968 = vadd.f32 %v3929, %v3935
        %v3969 = vmax.f32 %v3937, 0.0
        %v3970 = vmax.f32 %v3938, 0.0
        %v3971 = vmax.f32 %v3939, 0.0
        %v3972 = vmax.f32 %v3940, 0.0
        %v3973 = vmax.f32 %v3941, 0.0
        %v3974 = vmax.f32 %v3942, 0.0
        %v3975 = vmax.f32 %v3943, 0.0
        %v3976 = vmax.f32 %v3944, 0.0
        %v3977 = vmax.f32 %v3945, 0.0
        %v3978 = vmax.f32 %v3946, 0.0
        %v3979 = vmax.f32 %v3947, 0.0
        %v3980 = vmax.f32 %v3948, 0.0
        %v3981 = vmax.f32 %v3949, 0.0
        %v3982 = vmax.f32 %v3950, 0.0
        %v3983 = vmax.f32 %v3951, 0.0
        %v3984 = vmax.f32 %v3952, 0.0
        %v3985 = vmax.f32 %v3953, 0.0
        %v3986 = vmax.f32 %v3954, 0.0
        %v3987 = vmax.f32 %v3955, 0.0
        %v3988 = vmax.f32 %v3956, 0.0
        %v3989 = vmax.f32 %v3957, 0.0
        %v3990 = vmax.f32 %v3958, 0.0
        %v3991 = vmax.f32 %v3959, 0.0
        %v3992 = vmax.f32 %v3960, 0.0
        %v3993 = vmax.f32 %v3961, 0.0
        %v3994 = vmax.f32 %v3962, 0.0
        %v3995 = vmax.f32 %v3963, 0.0
        %v3996 = vmax.f32 %v3964, 0.0
        %v3997 = vmax.f32 %v3965, 0.0
        %v3998 = vmax.f32 %v3966, 0.0
        %v3999 = vmax.f32 %v3967, 0.0
        %v4000 = vmax.f32 %v3968, 0.0
        %4001 = vst [vmem:[#allocation3] sm:$0xff] 0.0
        %4002 = vst [vmem:[#allocation3 + $0x8] sm:$0xff] 0.0
        %4003 = vst [vmem:[#allocation3 + $0x10] sm:$0x3] 0.0
        %4004 = vst [vmem:[#allocation3 + $0x18] sm:$0xff] 0.0
        %4005 = vst [vmem:[#allocation3 + $0x20] sm:$0xff] 0.0
        %4006 = vst [vmem:[#allocation3 + $0x28] sm:$0x3] 0.0
        %4007 = vst [vmem:[#allocation3 + $0x30] sm:$0xff] 0.0
        %4008 = vst [vmem:[#allocation3 + $0x38] sm:$0xff] 0.0
        %4009 = vst [vmem:[#allocation3 + $0x40] sm:$0x3] 0.0
        %4010 = vst [vmem:[#allocation3 + $0x48] sm:$0xff] 0.0
        %4011 = vst [vmem:[#allocation3 + $0x50] sm:$0xff] 0.0
        %4012 = vst [vmem:[#allocation3 + $0x58] sm:$0x3] 0.0
        %4013 = vst [vmem:[#allocation3 + $0x60] sm:$0xff] 0.0
        %4014 = vst [vmem:[#allocation3 + $0x68] sm:$0xff] 0.0
        %4015 = vst [vmem:[#allocation3 + $0x70] sm:$0x3] 0.0
        %4016 = vst [vmem:[#allocation3 + $0x78] sm:$0xff] 0.0
        %4017 = vst [vmem:[#allocation3 + $0x80] sm:$0xff] 0.0
        %4018 = vst [vmem:[#allocation3 + $0x88] sm:$0x3] 0.0
        %4019 = vst [vmem:[#allocation3 + $0x90] sm:$0xff] 0.0
        %4020 = vst [vmem:[#allocation3 + $0x98] sm:$0xff] 0.0
        %4021 = vst [vmem:[#allocation3 + $0xa0] sm:$0x3] 0.0
        %4022 = vst [vmem:[#allocation3 + $0xa8] sm:$0xff] 0.0
        %4023 = vst [vmem:[#allocation3 + $0xb0] sm:$0xff] 0.0
        %4024 = vst [vmem:[#allocation3 + $0xb8] sm:$0x3] 0.0
        %4025 = vst [vmem:[#allocation3 + $0xc0] sm:$0xff] 0.0
        %4026 = vst [vmem:[#allocation3 + $0xc8] sm:$0xff] 0.0
        %4027 = vst [vmem:[#allocation3 + $0xd0] sm:$0x3] 0.0
        %4028 = vst [vmem:[#allocation3 + $0xd8] sm:$0xff] 0.0
        %4029 = vst [vmem:[#allocation3 + $0xe0] sm:$0xff] 0.0
        %4030 = vst [vmem:[#allocation3 + $0xe8] sm:$0x3] 0.0
        %4031 = vst [vmem:[#allocation3 + $0xf0] sm:$0xff] 0.0
        %4032 = vst [vmem:[#allocation3 + $0xf8] sm:$0xff] 0.0
        %4033 = vst [vmem:[#allocation3 + $0x100] sm:$0x3] 0.0
        %4034 = vst [vmem:[#allocation3 + $0x108] sm:$0xff] 0.0
        %4035 = vst [vmem:[#allocation3 + $0x110] sm:$0xff] 0.0
        %4036 = vst [vmem:[#allocation3 + $0x118] sm:$0x3] 0.0
        %4037 = vst [vmem:[#allocation3 + $0x120] sm:$0xff] 0.0
        %4038 = vst [vmem:[#allocation3 + $0x128] sm:$0xff] 0.0
        %4039 = vst [vmem:[#allocation3 + $0x130] sm:$0x3] 0.0
        %4040 = vst [vmem:[#allocation3 + $0x138] sm:$0xff] 0.0
        %4041 = vst [vmem:[#allocation3 + $0x140] sm:$0xff] 0.0
        %4042 = vst [vmem:[#allocation3 + $0x148] sm:$0x3] 0.0
        %4043 = vst [vmem:[#allocation3 + $0x150] sm:$0xff] 0.0
        %4044 = vst [vmem:[#allocation3 + $0x158] sm:$0xff] 0.0
        %4045 = vst [vmem:[#allocation3 + $0x160] sm:$0x3] 0.0
        %4046 = vst [vmem:[#allocation3 + $0x168] sm:$0xff] 0.0
        %4047 = vst [vmem:[#allocation3 + $0x170] sm:$0xff] 0.0
        %4048 = vst [vmem:[#allocation3 + $0x178] sm:$0x3] 0.0
        %4049 = vst [vmem:[#allocation3 + $0x180] sm:$0xff] 0.0
        %4050 = vst [vmem:[#allocation3 + $0x188] sm:$0xff] 0.0
        %4051 = vst [vmem:[#allocation3 + $0x190] sm:$0x3] 0.0
        %4052 = vst [vmem:[#allocation3 + $0x198] sm:$0xff] 0.0
        %4053 = vst [vmem:[#allocation3 + $0x1a0] sm:$0xff] 0.0
        %4054 = vst [vmem:[#allocation3 + $0x1a8] sm:$0x3] 0.0
        %s4055 = scalar_lea.vmem [#allocation3], 24
        %4056 = vst [vmem:[%s4055 + $0x1] sm:$0xff] %v3969
        %4057 = vst [vmem:[%s4055 + $0x9] sm:$0xff] %v3970
        %4058 = vst [vmem:[%s4055 + $0x19] sm:$0xff] %v3971
        %4059 = vst [vmem:[%s4055 + $0x21] sm:$0xff] %v3972
        %4060 = vst [vmem:[%s4055 + $0x31] sm:$0xff] %v3973
        %4061 = vst [vmem:[%s4055 + $0x39] sm:$0xff] %v3974
        %4062 = vst [vmem:[%s4055 + $0x49] sm:$0xff] %v3975
        %4063 = vst [vmem:[%s4055 + $0x51] sm:$0xff] %v3976
        %4064 = vst [vmem:[%s4055 + $0x61] sm:$0xff] %v3977
        %4065 = vst [vmem:[%s4055 + $0x69] sm:$0xff] %v3978
        %4066 = vst [vmem:[%s4055 + $0x79] sm:$0xff] %v3979
        %4067 = vst [vmem:[%s4055 + $0x81] sm:$0xff] %v3980
        %4068 = vst [vmem:[%s4055 + $0x91] sm:$0xff] %v3981
        %4069 = vst [vmem:[%s4055 + $0x99] sm:$0xff] %v3982
        %4070 = vst [vmem:[%s4055 + $0xa9] sm:$0xff] %v3983
        %4071 = vst [vmem:[%s4055 + $0xb1] sm:$0xff] %v3984
        %4072 = vst [vmem:[%s4055 + $0xc1] sm:$0xff] %v3985
        %4073 = vst [vmem:[%s4055 + $0xc9] sm:$0xff] %v3986
        %4074 = vst [vmem:[%s4055 + $0xd9] sm:$0xff] %v3987
        %4075 = vst [vmem:[%s4055 + $0xe1] sm:$0xff] %v3988
        %4076 = vst [vmem:[%s4055 + $0xf1] sm:$0xff] %v3989
        %4077 = vst [vmem:[%s4055 + $0xf9] sm:$0xff] %v3990
        %4078 = vst [vmem:[%s4055 + $0x109] sm:$0xff] %v3991
        %4079 = vst [vmem:[%s4055 + $0x111] sm:$0xff] %v3992
        %4080 = vst [vmem:[%s4055 + $0x121] sm:$0xff] %v3993
        %4081 = vst [vmem:[%s4055 + $0x129] sm:$0xff] %v3994
        %4082 = vst [vmem:[%s4055 + $0x139] sm:$0xff] %v3995
        %4083 = vst [vmem:[%s4055 + $0x141] sm:$0xff] %v3996
        %4084 = vst [vmem:[%s4055 + $0x151] sm:$0xff] %v3997
        %4085 = vst [vmem:[%s4055 + $0x159] sm:$0xff] %v3998
        %4086 = vst [vmem:[%s4055 + $0x169] sm:$0xff] %v3999
        %4087 = vst [vmem:[%s4055 + $0x171] sm:$0xff] %v4000
        %v4088 = vld [vmem:[#allocation3] sm:$0xff]
        %v4089 = vld [vmem:[#allocation3 + $0x8] sm:$0xff]
        %v4090 = vld [vmem:[#allocation3 + $0x18] sm:$0xff]
        %v4091 = vld [vmem:[#allocation3 + $0x20] sm:$0xff]
        %v4092 = vld [vmem:[#allocation3 + $0x30] sm:$0xff]
        %v4093 = vld [vmem:[#allocation3 + $0x38] sm:$0xff]
        %v4094 = vld [vmem:[#allocation3 + $0x48] sm:$0xff]
        %v4095 = vld [vmem:[#allocation3 + $0x50] sm:$0xff]
        %v4096 = vld [vmem:[#allocation3 + $0x60] sm:$0xff]
        %v4097 = vld [vmem:[#allocation3 + $0x68] sm:$0xff]
        %v4098 = vld [vmem:[#allocation3 + $0x78] sm:$0xff]
        %v4099 = vld [vmem:[#allocation3 + $0x80] sm:$0xff]
        %v4100 = vld [vmem:[#allocation3 + $0x90] sm:$0xff]
        %v4101 = vld [vmem:[#allocation3 + $0x98] sm:$0xff]
        %v4102 = vld [vmem:[#allocation3 + $0xa8] sm:$0xff]
        %v4103 = vld [vmem:[#allocation3 + $0xb0] sm:$0xff]
        %v4104 = vld [vmem:[#allocation3 + $0xc0] sm:$0xff]
        %v4105 = vld [vmem:[#allocation3 + $0xc8] sm:$0xff]
        %v4106 = vld [vmem:[#allocation3 + $0xd8] sm:$0xff]
        %v4107 = vld [vmem:[#allocation3 + $0xe0] sm:$0xff]
        %v4108 = vld [vmem:[#allocation3 + $0xf0] sm:$0xff]
        %v4109 = vld [vmem:[#allocation3 + $0xf8] sm:$0xff]
        %v4110 = vld [vmem:[#allocation3 + $0x108] sm:$0xff]
        %v4111 = vld [vmem:[#allocation3 + $0x110] sm:$0xff]
        %v4112 = vld [vmem:[#allocation3 + $0x120] sm:$0xff]
        %v4113 = vld [vmem:[#allocation3 + $0x128] sm:$0xff]
        %v4114 = vld [vmem:[#allocation3 + $0x138] sm:$0xff]
        %v4115 = vld [vmem:[#allocation3 + $0x140] sm:$0xff]
        %v4116 = vld [vmem:[#allocation3 + $0x150] sm:$0xff]
        %v4117 = vld [vmem:[#allocation3 + $0x158] sm:$0xff]
        %v4118 = vld [vmem:[#allocation3 + $0x168] sm:$0xff]
        %v4119 = vld [vmem:[#allocation3 + $0x170] sm:$0xff]
        %v4120 = vld [vmem:[#allocation3 + $0x1] sm:$0xff]
        %v4121 = vld [vmem:[#allocation3 + $0x9] sm:$0xff]
        %v4122 = vld [vmem:[#allocation3 + $0x19] sm:$0xff]
        %v4123 = vld [vmem:[#allocation3 + $0x21] sm:$0xff]
        %v4124 = vld [vmem:[#allocation3 + $0x31] sm:$0xff]
        %v4125 = vld [vmem:[#allocation3 + $0x39] sm:$0xff]
        %v4126 = vld [vmem:[#allocation3 + $0x49] sm:$0xff]
        %v4127 = vld [vmem:[#allocation3 + $0x51] sm:$0xff]
        %v4128 = vld [vmem:[#allocation3 + $0x61] sm:$0xff]
        %v4129 = vld [vmem:[#allocation3 + $0x69] sm:$0xff]
        %v4130 = vld [vmem:[#allocation3 + $0x79] sm:$0xff]
        %v4131 = vld [vmem:[#allocation3 + $0x81] sm:$0xff]
        %v4132 = vld [vmem:[#allocation3 + $0x91] sm:$0xff]
        %v4133 = vld [vmem:[#allocation3 + $0x99] sm:$0xff]
        %v4134 = vld [vmem:[#allocation3 + $0xa9] sm:$0xff]
        %v4135 = vld [vmem:[#allocation3 + $0xb1] sm:$0xff]
        %v4136 = vld [vmem:[#allocation3 + $0xc1] sm:$0xff]
        %v4137 = vld [vmem:[#allocation3 + $0xc9] sm:$0xff]
        %v4138 = vld [vmem:[#allocation3 + $0xd9] sm:$0xff]
        %v4139 = vld [vmem:[#allocation3 + $0xe1] sm:$0xff]
        %v4140 = vld [vmem:[#allocation3 + $0xf1] sm:$0xff]
        %v4141 = vld [vmem:[#allocation3 + $0xf9] sm:$0xff]
        %v4142 = vld [vmem:[#allocation3 + $0x109] sm:$0xff]
        %v4143 = vld [vmem:[#allocation3 + $0x111] sm:$0xff]
        %v4144 = vld [vmem:[#allocation3 + $0x121] sm:$0xff]
        %v4145 = vld [vmem:[#allocation3 + $0x129] sm:$0xff]
        %v4146 = vld [vmem:[#allocation3 + $0x139] sm:$0xff]
        %v4147 = vld [vmem:[#allocation3 + $0x141] sm:$0xff]
        %v4148 = vld [vmem:[#allocation3 + $0x151] sm:$0xff]
        %v4149 = vld [vmem:[#allocation3 + $0x159] sm:$0xff]
        %v4150 = vld [vmem:[#allocation3 + $0x169] sm:$0xff]
        %v4151 = vld [vmem:[#allocation3 + $0x171] sm:$0xff]
        %v4152 = vld [vmem:[#allocation3 + $0x2] sm:$0xff]
        %v4153 = vld [vmem:[#allocation3 + $0xa] sm:$0xff]
        %v4154 = vld [vmem:[#allocation3 + $0x1a] sm:$0xff]
        %v4155 = vld [vmem:[#allocation3 + $0x22] sm:$0xff]
        %v4156 = vld [vmem:[#allocation3 + $0x32] sm:$0xff]
        %v4157 = vld [vmem:[#allocation3 + $0x3a] sm:$0xff]
        %v4158 = vld [vmem:[#allocation3 + $0x4a] sm:$0xff]
        %v4159 = vld [vmem:[#allocation3 + $0x52] sm:$0xff]
        %v4160 = vld [vmem:[#allocation3 + $0x62] sm:$0xff]
        %v4161 = vld [vmem:[#allocation3 + $0x6a] sm:$0xff]
        %v4162 = vld [vmem:[#allocation3 + $0x7a] sm:$0xff]
        %v4163 = vld [vmem:[#allocation3 + $0x82] sm:$0xff]
        %v4164 = vld [vmem:[#allocation3 + $0x92] sm:$0xff]
        %v4165 = vld [vmem:[#allocation3 + $0x9a] sm:$0xff]
        %v4166 = vld [vmem:[#allocation3 + $0xaa] sm:$0xff]
        %v4167 = vld [vmem:[#allocation3 + $0xb2] sm:$0xff]
        %v4168 = vld [vmem:[#allocation3 + $0xc2] sm:$0xff]
        %v4169 = vld [vmem:[#allocation3 + $0xca] sm:$0xff]
        %v4170 = vld [vmem:[#allocation3 + $0xda] sm:$0xff]
        %v4171 = vld [vmem:[#allocation3 + $0xe2] sm:$0xff]
        %v4172 = vld [vmem:[#allocation3 + $0xf2] sm:$0xff]
        %v4173 = vld [vmem:[#allocation3 + $0xfa] sm:$0xff]
        %v4174 = vld [vmem:[#allocation3 + $0x10a] sm:$0xff]
        %v4175 = vld [vmem:[#allocation3 + $0x112] sm:$0xff]
        %v4176 = vld [vmem:[#allocation3 + $0x122] sm:$0xff]
        %v4177 = vld [vmem:[#allocation3 + $0x12a] sm:$0xff]
        %v4178 = vld [vmem:[#allocation3 + $0x13a] sm:$0xff]
        %v4179 = vld [vmem:[#allocation3 + $0x142] sm:$0xff]
        %v4180 = vld [vmem:[#allocation3 + $0x152] sm:$0xff]
        %v4181 = vld [vmem:[#allocation3 + $0x15a] sm:$0xff]
        %v4182 = vld [vmem:[#allocation3 + $0x16a] sm:$0xff]
        %v4183 = vld [vmem:[#allocation3 + $0x172] sm:$0xff]
        %v4184 = vpack.c.bf16 %v4089, %v4088
        %v4185 = vpack.c.bf16 %v4121, %v4120
        %v4186 = vpack.c.bf16 %v4153, %v4152
        %v4187 = vpack.c.bf16 %v4091, %v4090
        %v4188 = vpack.c.bf16 %v4123, %v4122
        %v4189 = vpack.c.bf16 %v4155, %v4154
        %v4190 = vpack.c.bf16 %v4093, %v4092
        %v4191 = vpack.c.bf16 %v4125, %v4124
        %v4192 = vpack.c.bf16 %v4157, %v4156
        %v4193 = vpack.c.bf16 %v4095, %v4094
        %v4194 = vpack.c.bf16 %v4127, %v4126
        %v4195 = vpack.c.bf16 %v4159, %v4158
        %v4196 = vpack.c.bf16 %v4097, %v4096
        %v4197 = vpack.c.bf16 %v4129, %v4128
        %v4198 = vpack.c.bf16 %v4161, %v4160
        %v4199 = vpack.c.bf16 %v4099, %v4098
        %v4200 = vpack.c.bf16 %v4131, %v4130
        %v4201 = vpack.c.bf16 %v4163, %v4162
        %v4202 = vpack.c.bf16 %v4101, %v4100
        %v4203 = vpack.c.bf16 %v4133, %v4132
        %v4204 = vpack.c.bf16 %v4165, %v4164
        %v4205 = vpack.c.bf16 %v4103, %v4102
        %v4206 = vpack.c.bf16 %v4135, %v4134
        %v4207 = vpack.c.bf16 %v4167, %v4166
        %v4208 = vpack.c.bf16 %v4105, %v4104
        %v4209 = vpack.c.bf16 %v4137, %v4136
        %v4210 = vpack.c.bf16 %v4169, %v4168
        %v4211 = vpack.c.bf16 %v4107, %v4106
        %v4212 = vpack.c.bf16 %v4139, %v4138
        %v4213 = vpack.c.bf16 %v4171, %v4170
        %v4214 = vpack.c.bf16 %v4109, %v4108
        %v4215 = vpack.c.bf16 %v4141, %v4140
        %v4216 = vpack.c.bf16 %v4173, %v4172
        %v4217 = vpack.c.bf16 %v4111, %v4110
        %v4218 = vpack.c.bf16 %v4143, %v4142
        %v4219 = vpack.c.bf16 %v4175, %v4174
        %v4220 = vpack.c.bf16 %v4113, %v4112
        %v4221 = vpack.c.bf16 %v4145, %v4144
        %v4222 = vpack.c.bf16 %v4177, %v4176
        %v4223 = vpack.c.bf16 %v4115, %v4114
        %v4224 = vpack.c.bf16 %v4147, %v4146
        %v4225 = vpack.c.bf16 %v4179, %v4178
        %v4226 = vpack.c.bf16 %v4117, %v4116
        %v4227 = vpack.c.bf16 %v4149, %v4148
        %v4228 = vpack.c.bf16 %v4181, %v4180
        %v4229 = vpack.c.bf16 %v4119, %v4118
        %v4230 = vpack.c.bf16 %v4151, %v4150
        %v4231 = vpack.c.bf16 %v4183, %v4182
        %v4232 = vld [vmem:[%s3] sm:$0xf]
        %v4233 = vld [vmem:[%s3 + $0x4] sm:$0xf]
        %v4234 = vld [vmem:[%s3 + $0x8] sm:$0xf]
        %v4235 = vld [vmem:[%s3 + $0xc] sm:$0xf]
        %v4236 = vld [vmem:[%s3 + $0x10] sm:$0xf]
        %v4237 = vld [vmem:[%s3 + $0x14] sm:$0xf]
        %v4238 = vld [vmem:[%s3 + $0x18] sm:$0xf]
        %v4239 = vld [vmem:[%s3 + $0x1c] sm:$0xf]
        %v4240 = vld [vmem:[%s3 + $0x20] sm:$0xf]
        %v4241 = vld [vmem:[%s3 + $0x24] sm:$0xf]
        %v4242 = vld [vmem:[%s3 + $0x28] sm:$0xf]
        %v4243 = vld [vmem:[%s3 + $0x2c] sm:$0xf]
        %v4244 = vld [vmem:[%s3 + $0x30] sm:$0xf]
        %v4245 = vld [vmem:[%s3 + $0x34] sm:$0xf]
        %v4246 = vld [vmem:[%s3 + $0x38] sm:$0xf]
        %v4247 = vld [vmem:[%s3 + $0x3c] sm:$0xf]
        %v4248 = vld [vmem:[%s3 + $0x40] sm:$0xf]
        %v4249 = vld [vmem:[%s3 + $0x44] sm:$0xf]
        %v4250 = vld [vmem:[%s3 + $0x48] sm:$0xf]
        %v4251 = vld [vmem:[%s3 + $0x4c] sm:$0xf]
        %v4252 = vld [vmem:[%s3 + $0x50] sm:$0xf]
        %v4253 = vld [vmem:[%s3 + $0x54] sm:$0xf]
        %v4254 = vld [vmem:[%s3 + $0x58] sm:$0xf]
        %v4255 = vld [vmem:[%s3 + $0x5c] sm:$0xf]
        %v4256 = vld [vmem:[%s3 + $0x60] sm:$0xf]
        %v4257 = vld [vmem:[%s3 + $0x64] sm:$0xf]
        %v4258 = vld [vmem:[%s3 + $0x68] sm:$0xf]
        %v4259 = vld [vmem:[%s3 + $0x6c] sm:$0xf]
        %v4260 = vld [vmem:[%s3 + $0x70] sm:$0xf]
        %v4261 = vld [vmem:[%s3 + $0x74] sm:$0xf]
        %v4262 = vld [vmem:[%s3 + $0x78] sm:$0xf]
        %v4263 = vld [vmem:[%s3 + $0x7c] sm:$0xf]
        %v4264 = vld [vmem:[%s3 + $0x80] sm:$0xf]
        %v4265 = vld [vmem:[%s3 + $0x84] sm:$0xf]
        %v4266 = vld [vmem:[%s3 + $0x88] sm:$0xf]
        %v4267 = vld [vmem:[%s3 + $0x8c] sm:$0xf]
        %v4268 = vld [vmem:[%s3 + $0x90] sm:$0xf]
        %v4269 = vld [vmem:[%s3 + $0x94] sm:$0xf]
        %v4270 = vld [vmem:[%s3 + $0x98] sm:$0xf]
        %v4271 = vld [vmem:[%s3 + $0x9c] sm:$0xf]
        %v4272 = vld [vmem:[%s3 + $0xa0] sm:$0xf]
        %v4273 = vld [vmem:[%s3 + $0xa4] sm:$0xf]
        %v4274 = vld [vmem:[%s3 + $0xa8] sm:$0xf]
        %v4275 = vld [vmem:[%s3 + $0xac] sm:$0xf]
        %v4276 = vld [vmem:[%s3 + $0xb0] sm:$0xf]
        %v4277 = vld [vmem:[%s3 + $0xb4] sm:$0xf]
        %v4278 = vld [vmem:[%s3 + $0xb8] sm:$0xf]
        %v4279 = vld [vmem:[%s3 + $0xbc] sm:$0xf]
        %v4280 = vld [vmem:[%s4055] sm:$0xff]
        %v4281 = vld [vmem:[%s4055 + $0x8] sm:$0xff]
        %v4282 = vld [vmem:[%s4055 + $0x18] sm:$0xff]
        %v4283 = vld [vmem:[%s4055 + $0x20] sm:$0xff]
        %v4284 = vld [vmem:[%s4055 + $0x30] sm:$0xff]
        %v4285 = vld [vmem:[%s4055 + $0x38] sm:$0xff]
        %v4286 = vld [vmem:[%s4055 + $0x48] sm:$0xff]
        %v4287 = vld [vmem:[%s4055 + $0x50] sm:$0xff]
        %v4288 = vld [vmem:[%s4055 + $0x60] sm:$0xff]
        %v4289 = vld [vmem:[%s4055 + $0x68] sm:$0xff]
        %v4290 = vld [vmem:[%s4055 + $0x78] sm:$0xff]
        %v4291 = vld [vmem:[%s4055 + $0x80] sm:$0xff]
        %v4292 = vld [vmem:[%s4055 + $0x90] sm:$0xff]
        %v4293 = vld [vmem:[%s4055 + $0x98] sm:$0xff]
        %v4294 = vld [vmem:[%s4055 + $0xa8] sm:$0xff]
        %v4295 = vld [vmem:[%s4055 + $0xb0] sm:$0xff]
        %v4296 = vld [vmem:[%s4055 + $0xc0] sm:$0xff]
        %v4297 = vld [vmem:[%s4055 + $0xc8] sm:$0xff]
        %v4298 = vld [vmem:[%s4055 + $0xd8] sm:$0xff]
        %v4299 = vld [vmem:[%s4055 + $0xe0] sm:$0xff]
        %v4300 = vld [vmem:[%s4055 + $0xf0] sm:$0xff]
        %v4301 = vld [vmem:[%s4055 + $0xf8] sm:$0xff]
        %v4302 = vld [vmem:[%s4055 + $0x108] sm:$0xff]
        %v4303 = vld [vmem:[%s4055 + $0x110] sm:$0xff]
        %v4304 = vld [vmem:[%s4055 + $0x120] sm:$0xff]
        %v4305 = vld [vmem:[%s4055 + $0x128] sm:$0xff]
        %v4306 = vld [vmem:[%s4055 + $0x138] sm:$0xff]
        %v4307 = vld [vmem:[%s4055 + $0x140] sm:$0xff]
        %v4308 = vld [vmem:[%s4055 + $0x150] sm:$0xff]
        %v4309 = vld [vmem:[%s4055 + $0x158] sm:$0xff]
        %v4310 = vld [vmem:[%s4055 + $0x168] sm:$0xff]
        %v4311 = vld [vmem:[%s4055 + $0x170] sm:$0xff]
        %v4312 = vld [vmem:[%s4055 + $0x1] sm:$0xff]
        %v4313 = vld [vmem:[%s4055 + $0x9] sm:$0xff]
        %v4314 = vld [vmem:[%s4055 + $0x19] sm:$0xff]
        %v4315 = vld [vmem:[%s4055 + $0x21] sm:$0xff]
        %v4316 = vld [vmem:[%s4055 + $0x31] sm:$0xff]
        %v4317 = vld [vmem:[%s4055 + $0x39] sm:$0xff]
        %v4318 = vld [vmem:[%s4055 + $0x49] sm:$0xff]
        %v4319 = vld [vmem:[%s4055 + $0x51] sm:$0xff]
        %v4320 = vld [vmem:[%s4055 + $0x61] sm:$0xff]
        %v4321 = vld [vmem:[%s4055 + $0x69] sm:$0xff]
        %v4322 = vld [vmem:[%s4055 + $0x79] sm:$0xff]
        %v4323 = vld [vmem:[%s4055 + $0x81] sm:$0xff]
        %v4324 = vld [vmem:[%s4055 + $0x91] sm:$0xff]
        %v4325 = vld [vmem:[%s4055 + $0x99] sm:$0xff]
        %v4326 = vld [vmem:[%s4055 + $0xa9] sm:$0xff]
        %v4327 = vld [vmem:[%s4055 + $0xb1] sm:$0xff]
        %v4328 = vld [vmem:[%s4055 + $0xc1] sm:$0xff]
        %v4329 = vld [vmem:[%s4055 + $0xc9] sm:$0xff]
        %v4330 = vld [vmem:[%s4055 + $0xd9] sm:$0xff]
        %v4331 = vld [vmem:[%s4055 + $0xe1] sm:$0xff]
        %v4332 = vld [vmem:[%s4055 + $0xf1] sm:$0xff]
        %v4333 = vld [vmem:[%s4055 + $0xf9] sm:$0xff]
        %v4334 = vld [vmem:[%s4055 + $0x109] sm:$0xff]
        %v4335 = vld [vmem:[%s4055 + $0x111] sm:$0xff]
        %v4336 = vld [vmem:[%s4055 + $0x121] sm:$0xff]
        %v4337 = vld [vmem:[%s4055 + $0x129] sm:$0xff]
        %v4338 = vld [vmem:[%s4055 + $0x139] sm:$0xff]
        %v4339 = vld [vmem:[%s4055 + $0x141] sm:$0xff]
        %v4340 = vld [vmem:[%s4055 + $0x151] sm:$0xff]
        %v4341 = vld [vmem:[%s4055 + $0x159] sm:$0xff]
        %v4342 = vld [vmem:[%s4055 + $0x169] sm:$0xff]
        %v4343 = vld [vmem:[%s4055 + $0x171] sm:$0xff]
        %v4344 = vld [vmem:[%s4055 + $0x2] sm:$0xff]
        %v4345 = vld [vmem:[%s4055 + $0xa] sm:$0xff]
        %v4346 = vld [vmem:[%s4055 + $0x1a] sm:$0xff]
        %v4347 = vld [vmem:[%s4055 + $0x22] sm:$0xff]
        %v4348 = vld [vmem:[%s4055 + $0x32] sm:$0xff]
        %v4349 = vld [vmem:[%s4055 + $0x3a] sm:$0xff]
        %v4350 = vld [vmem:[%s4055 + $0x4a] sm:$0xff]
        %v4351 = vld [vmem:[%s4055 + $0x52] sm:$0xff]
        %v4352 = vld [vmem:[%s4055 + $0x62] sm:$0xff]
        %v4353 = vld [vmem:[%s4055 + $0x6a] sm:$0xff]
        %v4354 = vld [vmem:[%s4055 + $0x7a] sm:$0xff]
        %v4355 = vld [vmem:[%s4055 + $0x82] sm:$0xff]
        %v4356 = vld [vmem:[%s4055 + $0x92] sm:$0xff]
        %v4357 = vld [vmem:[%s4055 + $0x9a] sm:$0xff]
        %v4358 = vld [vmem:[%s4055 + $0xaa] sm:$0xff]
        %v4359 = vld [vmem:[%s4055 + $0xb2] sm:$0xff]
        %v4360 = vld [vmem:[%s4055 + $0xc2] sm:$0xff]
        %v4361 = vld [vmem:[%s4055 + $0xca] sm:$0xff]
        %v4362 = vld [vmem:[%s4055 + $0xda] sm:$0xff]
        %v4363 = vld [vmem:[%s4055 + $0xe2] sm:$0xff]
        %v4364 = vld [vmem:[%s4055 + $0xf2] sm:$0xff]
        %v4365 = vld [vmem:[%s4055 + $0xfa] sm:$0xff]
        %v4366 = vld [vmem:[%s4055 + $0x10a] sm:$0xff]
        %v4367 = vld [vmem:[%s4055 + $0x112] sm:$0xff]
        %v4368 = vld [vmem:[%s4055 + $0x122] sm:$0xff]
        %v4369 = vld [vmem:[%s4055 + $0x12a] sm:$0xff]
        %v4370 = vld [vmem:[%s4055 + $0x13a] sm:$0xff]
        %v4371 = vld [vmem:[%s4055 + $0x142] sm:$0xff]
        %v4372 = vld [vmem:[%s4055 + $0x152] sm:$0xff]
        %v4373 = vld [vmem:[%s4055 + $0x15a] sm:$0xff]
        %v4374 = vld [vmem:[%s4055 + $0x16a] sm:$0xff]
        %v4375 = vld [vmem:[%s4055 + $0x172] sm:$0xff]
        %v4376 = vpack.c.bf16 %v4281, %v4280
        %v4377 = vpack.c.bf16 %v4313, %v4312
        %v4378 = vpack.c.bf16 %v4345, %v4344
        %v4379 = vpack.c.bf16 %v4283, %v4282
        %v4380 = vpack.c.bf16 %v4315, %v4314
        %v4381 = vpack.c.bf16 %v4347, %v4346
        %v4382 = vpack.c.bf16 %v4285, %v4284
        %v4383 = vpack.c.bf16 %v4317, %v4316
        %v4384 = vpack.c.bf16 %v4349, %v4348
        %v4385 = vpack.c.bf16 %v4287, %v4286
        %v4386 = vpack.c.bf16 %v4319, %v4318
        %v4387 = vpack.c.bf16 %v4351, %v4350
        %v4388 = vpack.c.bf16 %v4289, %v4288
        %v4389 = vpack.c.bf16 %v4321, %v4320
        %v4390 = vpack.c.bf16 %v4353, %v4352
        %v4391 = vpack.c.bf16 %v4291, %v4290
        %v4392 = vpack.c.bf16 %v4323, %v4322
        %v4393 = vpack.c.bf16 %v4355, %v4354
        %v4394 = vpack.c.bf16 %v4293, %v4292
        %v4395 = vpack.c.bf16 %v4325, %v4324
        %v4396 = vpack.c.bf16 %v4357, %v4356
        %v4397 = vpack.c.bf16 %v4295, %v4294
        %v4398 = vpack.c.bf16 %v4327, %v4326
        %v4399 = vpack.c.bf16 %v4359, %v4358
        %v4400 = vpack.c.bf16 %v4297, %v4296
        %v4401 = vpack.c.bf16 %v4329, %v4328
        %v4402 = vpack.c.bf16 %v4361, %v4360
        %v4403 = vpack.c.bf16 %v4299, %v4298
        %v4404 = vpack.c.bf16 %v4331, %v4330
        %v4405 = vpack.c.bf16 %v4363, %v4362
        %v4406 = vpack.c.bf16 %v4301, %v4300
        %v4407 = vpack.c.bf16 %v4333, %v4332
        %v4408 = vpack.c.bf16 %v4365, %v4364
        %v4409 = vpack.c.bf16 %v4303, %v4302
        %v4410 = vpack.c.bf16 %v4335, %v4334
        %v4411 = vpack.c.bf16 %v4367, %v4366
        %v4412 = vpack.c.bf16 %v4305, %v4304
        %v4413 = vpack.c.bf16 %v4337, %v4336
        %v4414 = vpack.c.bf16 %v4369, %v4368
        %v4415 = vpack.c.bf16 %v4307, %v4306
        %v4416 = vpack.c.bf16 %v4339, %v4338
        %v4417 = vpack.c.bf16 %v4371, %v4370
        %v4418 = vpack.c.bf16 %v4309, %v4308
        %v4419 = vpack.c.bf16 %v4341, %v4340
        %v4420 = vpack.c.bf16 %v4373, %v4372
        %v4421 = vpack.c.bf16 %v4311, %v4310
        %v4422 = vpack.c.bf16 %v4343, %v4342
        %v4423 = vpack.c.bf16 %v4375, %v4374
        %s4424 = scalar_lea.vmem %s3, 192
        %v4425 = vld [vmem:[%s4424] sm:$0xf]
        %v4426 = vld [vmem:[%s4424 + $0x4] sm:$0xf]
        %v4427 = vld [vmem:[%s4424 + $0x8] sm:$0xf]
        %v4428 = vld [vmem:[%s4424 + $0xc] sm:$0xf]
        %v4429 = vld [vmem:[%s4424 + $0x10] sm:$0xf]
        %v4430 = vld [vmem:[%s4424 + $0x14] sm:$0xf]
        %v4431 = vld [vmem:[%s4424 + $0x18] sm:$0xf]
        %v4432 = vld [vmem:[%s4424 + $0x1c] sm:$0xf]
        %v4433 = vld [vmem:[%s4424 + $0x20] sm:$0xf]
        %v4434 = vld [vmem:[%s4424 + $0x24] sm:$0xf]
        %v4435 = vld [vmem:[%s4424 + $0x28] sm:$0xf]
        %v4436 = vld [vmem:[%s4424 + $0x2c] sm:$0xf]
        %v4437 = vld [vmem:[%s4424 + $0x30] sm:$0xf]
        %v4438 = vld [vmem:[%s4424 + $0x34] sm:$0xf]
        %v4439 = vld [vmem:[%s4424 + $0x38] sm:$0xf]
        %v4440 = vld [vmem:[%s4424 + $0x3c] sm:$0xf]
        %v4441 = vld [vmem:[%s4424 + $0x40] sm:$0xf]
        %v4442 = vld [vmem:[%s4424 + $0x44] sm:$0xf]
        %v4443 = vld [vmem:[%s4424 + $0x48] sm:$0xf]
        %v4444 = vld [vmem:[%s4424 + $0x4c] sm:$0xf]
        %v4445 = vld [vmem:[%s4424 + $0x50] sm:$0xf]
        %v4446 = vld [vmem:[%s4424 + $0x54] sm:$0xf]
        %v4447 = vld [vmem:[%s4424 + $0x58] sm:$0xf]
        %v4448 = vld [vmem:[%s4424 + $0x5c] sm:$0xf]
        %v4449 = vld [vmem:[%s4424 + $0x60] sm:$0xf]
        %v4450 = vld [vmem:[%s4424 + $0x64] sm:$0xf]
        %v4451 = vld [vmem:[%s4424 + $0x68] sm:$0xf]
        %v4452 = vld [vmem:[%s4424 + $0x6c] sm:$0xf]
        %v4453 = vld [vmem:[%s4424 + $0x70] sm:$0xf]
        %v4454 = vld [vmem:[%s4424 + $0x74] sm:$0xf]
        %v4455 = vld [vmem:[%s4424 + $0x78] sm:$0xf]
        %v4456 = vld [vmem:[%s4424 + $0x7c] sm:$0xf]
        %v4457 = vld [vmem:[%s4424 + $0x80] sm:$0xf]
        %v4458 = vld [vmem:[%s4424 + $0x84] sm:$0xf]
        %v4459 = vld [vmem:[%s4424 + $0x88] sm:$0xf]
        %v4460 = vld [vmem:[%s4424 + $0x8c] sm:$0xf]
        %v4461 = vld [vmem:[%s4424 + $0x90] sm:$0xf]
        %v4462 = vld [vmem:[%s4424 + $0x94] sm:$0xf]
        %v4463 = vld [vmem:[%s4424 + $0x98] sm:$0xf]
        %v4464 = vld [vmem:[%s4424 + $0x9c] sm:$0xf]
        %v4465 = vld [vmem:[%s4424 + $0xa0] sm:$0xf]
        %v4466 = vld [vmem:[%s4424 + $0xa4] sm:$0xf]
        %v4467 = vld [vmem:[%s4424 + $0xa8] sm:$0xf]
        %v4468 = vld [vmem:[%s4424 + $0xac] sm:$0xf]
        %v4469 = vld [vmem:[%s4424 + $0xb0] sm:$0xf]
        %v4470 = vld [vmem:[%s4424 + $0xb4] sm:$0xf]
        %v4471 = vld [vmem:[%s4424 + $0xb8] sm:$0xf]
        %v4472 = vld [vmem:[%s4424 + $0xbc] sm:$0xf]
        %v4521 = vunpack.c.l.b16 %v4425
        %v4522 = vunpack.c.l.b16 %v4426
        %v4523 = vunpack.c.l.b16 %v4427
        %v4524 = vunpack.c.l.b16 %v4428
        %v4525 = vunpack.c.l.b16 %v4429
        %v4526 = vunpack.c.l.b16 %v4430
        %v4527 = vunpack.c.l.b16 %v4431
        %v4528 = vunpack.c.l.b16 %v4432
        %v4529 = vunpack.c.l.b16 %v4433
        %v4530 = vunpack.c.l.b16 %v4434
        %v4531 = vunpack.c.l.b16 %v4435
        %v4532 = vunpack.c.l.b16 %v4436
        %v4533 = vunpack.c.l.b16 %v4437
        %v4534 = vunpack.c.l.b16 %v4438
        %v4535 = vunpack.c.l.b16 %v4439
        %v4536 = vunpack.c.l.b16 %v4440
        %v4537 = vunpack.c.l.b16 %v4441
        %v4538 = vunpack.c.l.b16 %v4442
        %v4539 = vunpack.c.l.b16 %v4443
        %v4540 = vunpack.c.l.b16 %v4444
        %v4541 = vunpack.c.l.b16 %v4445
        %v4542 = vunpack.c.l.b16 %v4446
        %v4543 = vunpack.c.l.b16 %v4447
        %v4544 = vunpack.c.l.b16 %v4448
        %v4545 = vunpack.c.l.b16 %v4449
        %v4546 = vunpack.c.l.b16 %v4450
        %v4547 = vunpack.c.l.b16 %v4451
        %v4548 = vunpack.c.l.b16 %v4452
        %v4549 = vunpack.c.l.b16 %v4453
        %v4550 = vunpack.c.l.b16 %v4454
        %v4551 = vunpack.c.l.b16 %v4455
        %v4552 = vunpack.c.l.b16 %v4456
        %v4553 = vunpack.c.l.b16 %v4457
        %v4554 = vunpack.c.l.b16 %v4458
        %v4555 = vunpack.c.l.b16 %v4459
        %v4556 = vunpack.c.l.b16 %v4460
        %v4557 = vunpack.c.l.b16 %v4461
        %v4558 = vunpack.c.l.b16 %v4462
        %v4559 = vunpack.c.l.b16 %v4463
        %v4560 = vunpack.c.l.b16 %v4464
        %v4561 = vunpack.c.l.b16 %v4465
        %v4562 = vunpack.c.l.b16 %v4466
        %v4563 = vunpack.c.l.b16 %v4467
        %v4564 = vunpack.c.l.b16 %v4468
        %v4565 = vunpack.c.l.b16 %v4469
        %v4566 = vunpack.c.l.b16 %v4470
        %v4567 = vunpack.c.l.b16 %v4471
        %v4568 = vunpack.c.l.b16 %v4472
        %v4569 = vpack.c.b16 %v4522, %v4521
        %v4570 = vpack.c.b16 %v4524, %v4523
        %v4571 = vpack.c.b16 %v4526, %v4525
        %v4572 = vpack.c.b16 %v4528, %v4527
        %v4573 = vpack.c.b16 %v4530, %v4529
        %v4574 = vpack.c.b16 %v4532, %v4531
        %v4575 = vpack.c.b16 %v4534, %v4533
        %v4576 = vpack.c.b16 %v4536, %v4535
        %v4577 = vpack.c.b16 %v4538, %v4537
        %v4578 = vpack.c.b16 %v4540, %v4539
        %v4579 = vpack.c.b16 %v4542, %v4541
        %v4580 = vpack.c.b16 %v4544, %v4543
        %v4581 = vpack.c.b16 %v4546, %v4545
        %v4582 = vpack.c.b16 %v4548, %v4547
        %v4583 = vpack.c.b16 %v4550, %v4549
        %v4584 = vpack.c.b16 %v4552, %v4551
        %v4585 = vpack.c.b16 %v4554, %v4553
        %v4586 = vpack.c.b16 %v4556, %v4555
        %v4587 = vpack.c.b16 %v4558, %v4557
        %v4588 = vpack.c.b16 %v4560, %v4559
        %v4589 = vpack.c.b16 %v4562, %v4561
        %v4590 = vpack.c.b16 %v4564, %v4563
        %v4591 = vpack.c.b16 %v4566, %v4565
        %v4592 = vpack.c.b16 %v4568, %v4567
        %4617 = vmatprep.subr.bf16.mxu0 0
        %4618 = vmatpush1.bf16.msra.mxu0 %v4576
        %4619 = vmatprep.subr.bf16.mxu0 0
        %4620 = vmatpush1.bf16.msra.mxu0 %v4575
        %4621 = vmatprep.subr.bf16.mxu0 0
        %4622 = vmatpush1.bf16.msra.mxu0 %v4574
        %4623 = vmatprep.subr.bf16.mxu0 0
        %4624 = vmatpush1.bf16.msra.mxu0 %v4573
        %4625 = vmatprep.subr.bf16.mxu0 0
        %4626 = vmatpush1.bf16.msra.mxu0 %v4572
        %4627 = vmatprep.subr.bf16.mxu0 0
        %4628 = vmatpush1.bf16.msra.mxu0 %v4571
        %4629 = vmatprep.subr.bf16.mxu0 0
        %4630 = vmatpush1.bf16.msra.mxu0 %v4570
        %4631 = vmatprep.subr.bf16.mxu0 0
        %4632 = vmatpush1.bf16.msra.mxu0 %v4569
        %4633 = vmatprep.subr.bf16.mxu0 0
        %4634 = vmatpush2.bf16.msra.mxu0 %v4584
        %4635 = vmatprep.subr.bf16.mxu0 0
        %4636 = vmatpush2.bf16.msra.mxu0 %v4583
        %4637 = vmatprep.subr.bf16.mxu0 0
        %4638 = vmatpush2.bf16.msra.mxu0 %v4582
        %4639 = vmatprep.subr.bf16.mxu0 0
        %4640 = vmatpush2.bf16.msra.mxu0 %v4581
        %4641 = vmatprep.subr.bf16.mxu0 0
        %4642 = vmatpush2.bf16.msra.mxu0 %v4580
        %4643 = vmatprep.subr.bf16.mxu0 0
        %4644 = vmatpush2.bf16.msra.mxu0 %v4579
        %4645 = vmatprep.subr.bf16.mxu0 0
        %4646 = vmatpush2.bf16.msra.mxu0 %v4578
        %4647 = vmatprep.subr.bf16.mxu0 0
        %4648 = vmatpush2.bf16.msra.mxu0 %v4577
        %4649 = vmatprep.mubr.bf16.mxu0 %v4377
        %4650 = vmatmul.mubr.bf16.gmra.mxu0 %v4376
        %v4651 = vpop.f32.mrf.mxu0
        %v4652 = vadd.f32 0.0, %v4651
        %v4653 = vpop.f32.mrf.mxu0
        %v4654 = vpop.f32.mrf.mxu0
        %v4655 = vadd.f32 0.0, %v4654
        %v4656 = vpop.f32.mrf.mxu0
        %4657 = vmatprep.mubr.bf16.mxu0 %v4380
        %4658 = vmatmul.mubr.bf16.gmra.mxu0 %v4379
        %v4659 = vpop.f32.mrf.mxu0
        %v4660 = vadd.f32 0.0, %v4659
        %v4661 = vpop.f32.mrf.mxu0
        %v4662 = vpop.f32.mrf.mxu0
        %v4663 = vadd.f32 0.0, %v4662
        %v4664 = vpop.f32.mrf.mxu0
        %4665 = vmatprep.mubr.bf16.mxu0 %v4383
        %4666 = vmatmul.mubr.bf16.gmra.mxu0 %v4382
        %v4667 = vpop.f32.mrf.mxu0
        %v4668 = vadd.f32 0.0, %v4667
        %v4669 = vpop.f32.mrf.mxu0
        %v4670 = vpop.f32.mrf.mxu0
        %v4671 = vadd.f32 0.0, %v4670
        %v4672 = vpop.f32.mrf.mxu0
        %4673 = vmatprep.mubr.bf16.mxu0 %v4386
        %4674 = vmatmul.mubr.bf16.gmra.mxu0 %v4385
        %v4675 = vpop.f32.mrf.mxu0
        %v4676 = vadd.f32 0.0, %v4675
        %v4677 = vpop.f32.mrf.mxu0
        %v4678 = vpop.f32.mrf.mxu0
        %v4679 = vadd.f32 0.0, %v4678
        %v4680 = vpop.f32.mrf.mxu0
        %4681 = vmatprep.mubr.bf16.mxu0 %v4389
        %4682 = vmatmul.mubr.bf16.gmra.mxu0 %v4388
        %v4683 = vpop.f32.mrf.mxu0
        %v4684 = vadd.f32 0.0, %v4683
        %v4685 = vpop.f32.mrf.mxu0
        %v4686 = vpop.f32.mrf.mxu0
        %v4687 = vadd.f32 0.0, %v4686
        %v4688 = vpop.f32.mrf.mxu0
        %4689 = vmatprep.mubr.bf16.mxu0 %v4392
        %4690 = vmatmul.mubr.bf16.gmra.mxu0 %v4391
        %v4691 = vpop.f32.mrf.mxu0
        %v4692 = vadd.f32 0.0, %v4691
        %v4693 = vpop.f32.mrf.mxu0
        %v4694 = vpop.f32.mrf.mxu0
        %v4695 = vadd.f32 0.0, %v4694
        %v4696 = vpop.f32.mrf.mxu0
        %4697 = vmatprep.mubr.bf16.mxu0 %v4395
        %4698 = vmatmul.mubr.bf16.gmra.mxu0 %v4394
        %v4699 = vpop.f32.mrf.mxu0
        %v4700 = vadd.f32 0.0, %v4699
        %v4701 = vpop.f32.mrf.mxu0
        %v4702 = vpop.f32.mrf.mxu0
        %v4703 = vadd.f32 0.0, %v4702
        %v4704 = vpop.f32.mrf.mxu0
        %4705 = vmatprep.mubr.bf16.mxu0 %v4398
        %4706 = vmatmul.mubr.bf16.gmra.mxu0 %v4397
        %v4707 = vpop.f32.mrf.mxu0
        %v4708 = vadd.f32 0.0, %v4707
        %v4709 = vpop.f32.mrf.mxu0
        %v4710 = vpop.f32.mrf.mxu0
        %v4711 = vadd.f32 0.0, %v4710
        %v4712 = vpop.f32.mrf.mxu0
        %4713 = vmatprep.mubr.bf16.mxu0 %v4401
        %4714 = vmatmul.mubr.bf16.gmra.mxu0 %v4400
        %v4715 = vpop.f32.mrf.mxu0
        %v4716 = vadd.f32 0.0, %v4715
        %v4717 = vpop.f32.mrf.mxu0
        %v4718 = vpop.f32.mrf.mxu0
        %v4719 = vadd.f32 0.0, %v4718
        %v4720 = vpop.f32.mrf.mxu0
        %4721 = vmatprep.mubr.bf16.mxu0 %v4404
        %4722 = vmatmul.mubr.bf16.gmra.mxu0 %v4403
        %v4723 = vpop.f32.mrf.mxu0
        %v4724 = vadd.f32 0.0, %v4723
        %v4725 = vpop.f32.mrf.mxu0
        %v4726 = vpop.f32.mrf.mxu0
        %v4727 = vadd.f32 0.0, %v4726
        %v4728 = vpop.f32.mrf.mxu0
        %4729 = vmatprep.mubr.bf16.mxu0 %v4407
        %4730 = vmatmul.mubr.bf16.gmra.mxu0 %v4406
        %v4731 = vpop.f32.mrf.mxu0
        %v4732 = vadd.f32 0.0, %v4731
        %v4733 = vpop.f32.mrf.mxu0
        %v4734 = vpop.f32.mrf.mxu0
        %v4735 = vadd.f32 0.0, %v4734
        %v4736 = vpop.f32.mrf.mxu0
        %4737 = vmatprep.mubr.bf16.mxu0 %v4410
        %4738 = vmatmul.mubr.bf16.gmra.mxu0 %v4409
        %v4739 = vpop.f32.mrf.mxu0
        %v4740 = vadd.f32 0.0, %v4739
        %v4741 = vpop.f32.mrf.mxu0
        %v4742 = vpop.f32.mrf.mxu0
        %v4743 = vadd.f32 0.0, %v4742
        %v4744 = vpop.f32.mrf.mxu0
        %4745 = vmatprep.mubr.bf16.mxu0 %v4413
        %4746 = vmatmul.mubr.bf16.gmra.mxu0 %v4412
        %v4747 = vpop.f32.mrf.mxu0
        %v4748 = vadd.f32 0.0, %v4747
        %v4749 = vpop.f32.mrf.mxu0
        %v4750 = vpop.f32.mrf.mxu0
        %v4751 = vadd.f32 0.0, %v4750
        %v4752 = vpop.f32.mrf.mxu0
        %4753 = vmatprep.mubr.bf16.mxu0 %v4416
        %4754 = vmatmul.mubr.bf16.gmra.mxu0 %v4415
        %v4755 = vpop.f32.mrf.mxu0
        %v4756 = vadd.f32 0.0, %v4755
        %v4757 = vpop.f32.mrf.mxu0
        %v4758 = vpop.f32.mrf.mxu0
        %v4759 = vadd.f32 0.0, %v4758
        %v4760 = vpop.f32.mrf.mxu0
        %4761 = vmatprep.mubr.bf16.mxu0 %v4419
        %4762 = vmatmul.mubr.bf16.gmra.mxu0 %v4418
        %v4763 = vpop.f32.mrf.mxu0
        %v4764 = vadd.f32 0.0, %v4763
        %v4765 = vpop.f32.mrf.mxu0
        %v4766 = vpop.f32.mrf.mxu0
        %v4767 = vadd.f32 0.0, %v4766
        %v4768 = vpop.f32.mrf.mxu0
        %4769 = vmatprep.mubr.bf16.mxu0 %v4422
        %4770 = vmatmul.mubr.bf16.gmra.mxu0 %v4421
        %v4771 = vpop.f32.mrf.mxu0
        %v4772 = vadd.f32 0.0, %v4771
        %v4773 = vpop.f32.mrf.mxu0
        %v4774 = vpop.f32.mrf.mxu0
        %v4775 = vadd.f32 0.0, %v4774
        %v4776 = vpop.f32.mrf.mxu0
        %4777 = vdwg.mxu0
        %4778 = vmatprep.subr.bf16.mxu0 0
        %4779 = vmatpush1.bf16.msra.mxu0 %v4592
        %4780 = vmatprep.subr.bf16.mxu0 0
        %4781 = vmatpush1.bf16.msra.mxu0 %v4591
        %4782 = vmatprep.subr.bf16.mxu0 0
        %4783 = vmatpush1.bf16.msra.mxu0 %v4590
        %4784 = vmatprep.subr.bf16.mxu0 0
        %4785 = vmatpush1.bf16.msra.mxu0 %v4589
        %4786 = vmatprep.subr.bf16.mxu0 0
        %4787 = vmatpush1.bf16.msra.mxu0 %v4588
        %4788 = vmatprep.subr.bf16.mxu0 0
        %4789 = vmatpush1.bf16.msra.mxu0 %v4587
        %4790 = vmatprep.subr.bf16.mxu0 0
        %4791 = vmatpush1.bf16.msra.mxu0 %v4586
        %4792 = vmatprep.subr.bf16.mxu0 0
        %4793 = vmatpush1.bf16.msra.mxu0 %v4585
        %4794 = vmatprep.subr.bf16.mxu0 0
        %4795 = vmatpush2.bf16.msra.mxu0 0
        %4796 = vmatprep.subr.bf16.mxu0 0
        %4797 = vmatpush2.bf16.msra.mxu0 0
        %4798 = vmatprep.subr.bf16.mxu0 0
        %4799 = vmatpush2.bf16.msra.mxu0 0
        %4800 = vmatprep.subr.bf16.mxu0 0
        %4801 = vmatpush2.bf16.msra.mxu0 0
        %4802 = vmatprep.subr.bf16.mxu0 0
        %4803 = vmatpush2.bf16.msra.mxu0 0
        %4804 = vmatprep.subr.bf16.mxu0 0
        %4805 = vmatpush2.bf16.msra.mxu0 0
        %4806 = vmatprep.subr.bf16.mxu0 0
        %4807 = vmatpush2.bf16.msra.mxu0 0
        %4808 = vmatprep.subr.bf16.mxu0 0
        %4809 = vmatpush2.bf16.msra.mxu0 0
        %4810 = vmatprep.mubr.bf16.mxu0 0
        %4811 = vmatmul.mubr.bf16.gmra.mxu0 %v4378
        %v4812 = vpop.f32.mrf.mxu0
        %v4813 = vadd.f32 %v4652, %v4812
        %v4814 = vpop.f32.mrf.mxu0
        %v4815 = vpop.f32.mrf.mxu0
        %v4816 = vadd.f32 %v4655, %v4815
        %v4817 = vpop.f32.mrf.mxu0
        %4818 = vmatprep.mubr.bf16.mxu0 0
        %4819 = vmatmul.mubr.bf16.gmra.mxu0 %v4381
        %v4820 = vpop.f32.mrf.mxu0
        %v4821 = vadd.f32 %v4660, %v4820
        %v4822 = vpop.f32.mrf.mxu0
        %v4823 = vpop.f32.mrf.mxu0
        %v4824 = vadd.f32 %v4663, %v4823
        %v4825 = vpop.f32.mrf.mxu0
        %4826 = vmatprep.mubr.bf16.mxu0 0
        %4827 = vmatmul.mubr.bf16.gmra.mxu0 %v4384
        %v4828 = vpop.f32.mrf.mxu0
        %v4829 = vadd.f32 %v4668, %v4828
        %v4830 = vpop.f32.mrf.mxu0
        %v4831 = vpop.f32.mrf.mxu0
        %v4832 = vadd.f32 %v4671, %v4831
        %v4833 = vpop.f32.mrf.mxu0
        %4834 = vmatprep.mubr.bf16.mxu0 0
        %4835 = vmatmul.mubr.bf16.gmra.mxu0 %v4387
        %v4836 = vpop.f32.mrf.mxu0
        %v4837 = vadd.f32 %v4676, %v4836
        %v4838 = vpop.f32.mrf.mxu0
        %v4839 = vpop.f32.mrf.mxu0
        %v4840 = vadd.f32 %v4679, %v4839
        %v4841 = vpop.f32.mrf.mxu0
        %4842 = vmatprep.mubr.bf16.mxu0 0
        %4843 = vmatmul.mubr.bf16.gmra.mxu0 %v4390
        %v4844 = vpop.f32.mrf.mxu0
        %v4845 = vadd.f32 %v4684, %v4844
        %v4846 = vpop.f32.mrf.mxu0
        %v4847 = vpop.f32.mrf.mxu0
        %v4848 = vadd.f32 %v4687, %v4847
        %v4849 = vpop.f32.mrf.mxu0
        %4850 = vmatprep.mubr.bf16.mxu0 0
        %4851 = vmatmul.mubr.bf16.gmra.mxu0 %v4393
        %v4852 = vpop.f32.mrf.mxu0
        %v4853 = vadd.f32 %v4692, %v4852
        %v4854 = vpop.f32.mrf.mxu0
        %v4855 = vpop.f32.mrf.mxu0
        %v4856 = vadd.f32 %v4695, %v4855
        %v4857 = vpop.f32.mrf.mxu0
        %4858 = vmatprep.mubr.bf16.mxu0 0
        %4859 = vmatmul.mubr.bf16.gmra.mxu0 %v4396
        %v4860 = vpop.f32.mrf.mxu0
        %v4861 = vadd.f32 %v4700, %v4860
        %v4862 = vpop.f32.mrf.mxu0
        %v4863 = vpop.f32.mrf.mxu0
        %v4864 = vadd.f32 %v4703, %v4863
        %v4865 = vpop.f32.mrf.mxu0
        %4866 = vmatprep.mubr.bf16.mxu0 0
        %4867 = vmatmul.mubr.bf16.gmra.mxu0 %v4399
        %v4868 = vpop.f32.mrf.mxu0
        %v4869 = vadd.f32 %v4708, %v4868
        %v4870 = vpop.f32.mrf.mxu0
        %v4871 = vpop.f32.mrf.mxu0
        %v4872 = vadd.f32 %v4711, %v4871
        %v4873 = vpop.f32.mrf.mxu0
        %4874 = vmatprep.mubr.bf16.mxu0 0
        %4875 = vmatmul.mubr.bf16.gmra.mxu0 %v4402
        %v4876 = vpop.f32.mrf.mxu0
        %v4877 = vadd.f32 %v4716, %v4876
        %v4878 = vpop.f32.mrf.mxu0
        %v4879 = vpop.f32.mrf.mxu0
        %v4880 = vadd.f32 %v4719, %v4879
        %v4881 = vpop.f32.mrf.mxu0
        %4882 = vmatprep.mubr.bf16.mxu0 0
        %4883 = vmatmul.mubr.bf16.gmra.mxu0 %v4405
        %v4884 = vpop.f32.mrf.mxu0
        %v4885 = vadd.f32 %v4724, %v4884
        %v4886 = vpop.f32.mrf.mxu0
        %v4887 = vpop.f32.mrf.mxu0
        %v4888 = vadd.f32 %v4727, %v4887
        %v4889 = vpop.f32.mrf.mxu0
        %4890 = vmatprep.mubr.bf16.mxu0 0
        %4891 = vmatmul.mubr.bf16.gmra.mxu0 %v4408
        %v4892 = vpop.f32.mrf.mxu0
        %v4893 = vadd.f32 %v4732, %v4892
        %v4894 = vpop.f32.mrf.mxu0
        %v4895 = vpop.f32.mrf.mxu0
        %v4896 = vadd.f32 %v4735, %v4895
        %v4897 = vpop.f32.mrf.mxu0
        %4898 = vmatprep.mubr.bf16.mxu0 0
        %4899 = vmatmul.mubr.bf16.gmra.mxu0 %v4411
        %v4900 = vpop.f32.mrf.mxu0
        %v4901 = vadd.f32 %v4740, %v4900
        %v4902 = vpop.f32.mrf.mxu0
        %v4903 = vpop.f32.mrf.mxu0
        %v4904 = vadd.f32 %v4743, %v4903
        %v4905 = vpop.f32.mrf.mxu0
        %4906 = vmatprep.mubr.bf16.mxu0 0
        %4907 = vmatmul.mubr.bf16.gmra.mxu0 %v4414
        %v4908 = vpop.f32.mrf.mxu0
        %v4909 = vadd.f32 %v4748, %v4908
        %v4910 = vpop.f32.mrf.mxu0
        %v4911 = vpop.f32.mrf.mxu0
        %v4912 = vadd.f32 %v4751, %v4911
        %v4913 = vpop.f32.mrf.mxu0
        %4914 = vmatprep.mubr.bf16.mxu0 0
        %4915 = vmatmul.mubr.bf16.gmra.mxu0 %v4417
        %v4916 = vpop.f32.mrf.mxu0
        %v4917 = vadd.f32 %v4756, %v4916
        %v4918 = vpop.f32.mrf.mxu0
        %v4919 = vpop.f32.mrf.mxu0
        %v4920 = vadd.f32 %v4759, %v4919
        %v4921 = vpop.f32.mrf.mxu0
        %4922 = vmatprep.mubr.bf16.mxu0 0
        %4923 = vmatmul.mubr.bf16.gmra.mxu0 %v4420
        %v4924 = vpop.f32.mrf.mxu0
        %v4925 = vadd.f32 %v4764, %v4924
        %v4926 = vpop.f32.mrf.mxu0
        %v4927 = vpop.f32.mrf.mxu0
        %v4928 = vadd.f32 %v4767, %v4927
        %v4929 = vpop.f32.mrf.mxu0
        %4930 = vmatprep.mubr.bf16.mxu0 0
        %4931 = vmatmul.mubr.bf16.gmra.mxu0 %v4423
        %v4932 = vpop.f32.mrf.mxu0
        %v4933 = vadd.f32 %v4772, %v4932
        %v4934 = vpop.f32.mrf.mxu0
        %v4935 = vpop.f32.mrf.mxu0
        %v4936 = vadd.f32 %v4775, %v4935
        %v4937 = vpop.f32.mrf.mxu0
        %4938 = vdwg.mxu0
        %v4987 = vunpack.c.l.b16 %v4232
        %v4988 = vunpack.c.l.b16 %v4233
        %v4989 = vunpack.c.l.b16 %v4234
        %v4990 = vunpack.c.l.b16 %v4235
        %v4991 = vunpack.c.l.b16 %v4236
        %v4992 = vunpack.c.l.b16 %v4237
        %v4993 = vunpack.c.l.b16 %v4238
        %v4994 = vunpack.c.l.b16 %v4239
        %v4995 = vunpack.c.l.b16 %v4240
        %v4996 = vunpack.c.l.b16 %v4241
        %v4997 = vunpack.c.l.b16 %v4242
        %v4998 = vunpack.c.l.b16 %v4243
        %v4999 = vunpack.c.l.b16 %v4244
        %v5000 = vunpack.c.l.b16 %v4245
        %v5001 = vunpack.c.l.b16 %v4246
        %v5002 = vunpack.c.l.b16 %v4247
        %v5003 = vunpack.c.l.b16 %v4248
        %v5004 = vunpack.c.l.b16 %v4249
        %v5005 = vunpack.c.l.b16 %v4250
        %v5006 = vunpack.c.l.b16 %v4251
        %v5007 = vunpack.c.l.b16 %v4252
        %v5008 = vunpack.c.l.b16 %v4253
        %v5009 = vunpack.c.l.b16 %v4254
        %v5010 = vunpack.c.l.b16 %v4255
        %v5011 = vunpack.c.l.b16 %v4256
        %v5012 = vunpack.c.l.b16 %v4257
        %v5013 = vunpack.c.l.b16 %v4258
        %v5014 = vunpack.c.l.b16 %v4259
        %v5015 = vunpack.c.l.b16 %v4260
        %v5016 = vunpack.c.l.b16 %v4261
        %v5017 = vunpack.c.l.b16 %v4262
        %v5018 = vunpack.c.l.b16 %v4263
        %v5019 = vunpack.c.l.b16 %v4264
        %v5020 = vunpack.c.l.b16 %v4265
        %v5021 = vunpack.c.l.b16 %v4266
        %v5022 = vunpack.c.l.b16 %v4267
        %v5023 = vunpack.c.l.b16 %v4268
        %v5024 = vunpack.c.l.b16 %v4269
        %v5025 = vunpack.c.l.b16 %v4270
        %v5026 = vunpack.c.l.b16 %v4271
        %v5027 = vunpack.c.l.b16 %v4272
        %v5028 = vunpack.c.l.b16 %v4273
        %v5029 = vunpack.c.l.b16 %v4274
        %v5030 = vunpack.c.l.b16 %v4275
        %v5031 = vunpack.c.l.b16 %v4276
        %v5032 = vunpack.c.l.b16 %v4277
        %v5033 = vunpack.c.l.b16 %v4278
        %v5034 = vunpack.c.l.b16 %v4279
        %v5035 = vpack.c.b16 %v4988, %v4987
        %v5036 = vpack.c.b16 %v4990, %v4989
        %v5037 = vpack.c.b16 %v4992, %v4991
        %v5038 = vpack.c.b16 %v4994, %v4993
        %v5039 = vpack.c.b16 %v4996, %v4995
        %v5040 = vpack.c.b16 %v4998, %v4997
        %v5041 = vpack.c.b16 %v5000, %v4999
        %v5042 = vpack.c.b16 %v5002, %v5001
        %v5043 = vpack.c.b16 %v5004, %v5003
        %v5044 = vpack.c.b16 %v5006, %v5005
        %v5045 = vpack.c.b16 %v5008, %v5007
        %v5046 = vpack.c.b16 %v5010, %v5009
        %v5047 = vpack.c.b16 %v5012, %v5011
        %v5048 = vpack.c.b16 %v5014, %v5013
        %v5049 = vpack.c.b16 %v5016, %v5015
        %v5050 = vpack.c.b16 %v5018, %v5017
        %v5051 = vpack.c.b16 %v5020, %v5019
        %v5052 = vpack.c.b16 %v5022, %v5021
        %v5053 = vpack.c.b16 %v5024, %v5023
        %v5054 = vpack.c.b16 %v5026, %v5025
        %v5055 = vpack.c.b16 %v5028, %v5027
        %v5056 = vpack.c.b16 %v5030, %v5029
        %v5057 = vpack.c.b16 %v5032, %v5031
        %v5058 = vpack.c.b16 %v5034, %v5033
        %5083 = vmatprep.subr.bf16.mxu0 0
        %5084 = vmatpush1.bf16.msra.mxu0 %v5042
        %5085 = vmatprep.subr.bf16.mxu0 0
        %5086 = vmatpush1.bf16.msra.mxu0 %v5041
        %5087 = vmatprep.subr.bf16.mxu0 0
        %5088 = vmatpush1.bf16.msra.mxu0 %v5040
        %5089 = vmatprep.subr.bf16.mxu0 0
        %5090 = vmatpush1.bf16.msra.mxu0 %v5039
        %5091 = vmatprep.subr.bf16.mxu0 0
        %5092 = vmatpush1.bf16.msra.mxu0 %v5038
        %5093 = vmatprep.subr.bf16.mxu0 0
        %5094 = vmatpush1.bf16.msra.mxu0 %v5037
        %5095 = vmatprep.subr.bf16.mxu0 0
        %5096 = vmatpush1.bf16.msra.mxu0 %v5036
        %5097 = vmatprep.subr.bf16.mxu0 0
        %5098 = vmatpush1.bf16.msra.mxu0 %v5035
        %5099 = vmatprep.subr.bf16.mxu0 0
        %5100 = vmatpush2.bf16.msra.mxu0 %v5050
        %5101 = vmatprep.subr.bf16.mxu0 0
        %5102 = vmatpush2.bf16.msra.mxu0 %v5049
        %5103 = vmatprep.subr.bf16.mxu0 0
        %5104 = vmatpush2.bf16.msra.mxu0 %v5048
        %5105 = vmatprep.subr.bf16.mxu0 0
        %5106 = vmatpush2.bf16.msra.mxu0 %v5047
        %5107 = vmatprep.subr.bf16.mxu0 0
        %5108 = vmatpush2.bf16.msra.mxu0 %v5046
        %5109 = vmatprep.subr.bf16.mxu0 0
        %5110 = vmatpush2.bf16.msra.mxu0 %v5045
        %5111 = vmatprep.subr.bf16.mxu0 0
        %5112 = vmatpush2.bf16.msra.mxu0 %v5044
        %5113 = vmatprep.subr.bf16.mxu0 0
        %5114 = vmatpush2.bf16.msra.mxu0 %v5043
        %5115 = vmatprep.mubr.bf16.mxu0 %v4185
        %5116 = vmatmul.mubr.bf16.gmra.mxu0 %v4184
        %v5117 = vpop.f32.mrf.mxu0
        %v5118 = vadd.f32 %v4813, %v5117
        %v5119 = vpop.f32.mrf.mxu0
        %v5120 = vpop.f32.mrf.mxu0
        %v5121 = vadd.f32 %v4816, %v5120
        %v5122 = vpop.f32.mrf.mxu0
        %5123 = vmatprep.mubr.bf16.mxu0 %v4188
        %5124 = vmatmul.mubr.bf16.gmra.mxu0 %v4187
        %v5125 = vpop.f32.mrf.mxu0
        %v5126 = vadd.f32 %v4821, %v5125
        %v5127 = vpop.f32.mrf.mxu0
        %v5128 = vpop.f32.mrf.mxu0
        %v5129 = vadd.f32 %v4824, %v5128
        %v5130 = vpop.f32.mrf.mxu0
        %5131 = vmatprep.mubr.bf16.mxu0 %v4191
        %5132 = vmatmul.mubr.bf16.gmra.mxu0 %v4190
        %v5133 = vpop.f32.mrf.mxu0
        %v5134 = vadd.f32 %v4829, %v5133
        %v5135 = vpop.f32.mrf.mxu0
        %v5136 = vpop.f32.mrf.mxu0
        %v5137 = vadd.f32 %v4832, %v5136
        %v5138 = vpop.f32.mrf.mxu0
        %5139 = vmatprep.mubr.bf16.mxu0 %v4194
        %5140 = vmatmul.mubr.bf16.gmra.mxu0 %v4193
        %v5141 = vpop.f32.mrf.mxu0
        %v5142 = vadd.f32 %v4837, %v5141
        %v5143 = vpop.f32.mrf.mxu0
        %v5144 = vpop.f32.mrf.mxu0
        %v5145 = vadd.f32 %v4840, %v5144
        %v5146 = vpop.f32.mrf.mxu0
        %5147 = vmatprep.mubr.bf16.mxu0 %v4197
        %5148 = vmatmul.mubr.bf16.gmra.mxu0 %v4196
        %v5149 = vpop.f32.mrf.mxu0
        %v5150 = vadd.f32 %v4845, %v5149
        %v5151 = vpop.f32.mrf.mxu0
        %v5152 = vpop.f32.mrf.mxu0
        %v5153 = vadd.f32 %v4848, %v5152
        %v5154 = vpop.f32.mrf.mxu0
        %5155 = vmatprep.mubr.bf16.mxu0 %v4200
        %5156 = vmatmul.mubr.bf16.gmra.mxu0 %v4199
        %v5157 = vpop.f32.mrf.mxu0
        %v5158 = vadd.f32 %v4853, %v5157
        %v5159 = vpop.f32.mrf.mxu0
        %v5160 = vpop.f32.mrf.mxu0
        %v5161 = vadd.f32 %v4856, %v5160
        %v5162 = vpop.f32.mrf.mxu0
        %5163 = vmatprep.mubr.bf16.mxu0 %v4203
        %5164 = vmatmul.mubr.bf16.gmra.mxu0 %v4202
        %v5165 = vpop.f32.mrf.mxu0
        %v5166 = vadd.f32 %v4861, %v5165
        %v5167 = vpop.f32.mrf.mxu0
        %v5168 = vpop.f32.mrf.mxu0
        %v5169 = vadd.f32 %v4864, %v5168
        %v5170 = vpop.f32.mrf.mxu0
        %5171 = vmatprep.mubr.bf16.mxu0 %v4206
        %5172 = vmatmul.mubr.bf16.gmra.mxu0 %v4205
        %v5173 = vpop.f32.mrf.mxu0
        %v5174 = vadd.f32 %v4869, %v5173
        %v5175 = vpop.f32.mrf.mxu0
        %v5176 = vpop.f32.mrf.mxu0
        %v5177 = vadd.f32 %v4872, %v5176
        %v5178 = vpop.f32.mrf.mxu0
        %5179 = vmatprep.mubr.bf16.mxu0 %v4209
        %5180 = vmatmul.mubr.bf16.gmra.mxu0 %v4208
        %v5181 = vpop.f32.mrf.mxu0
        %v5182 = vadd.f32 %v4877, %v5181
        %v5183 = vpop.f32.mrf.mxu0
        %v5184 = vpop.f32.mrf.mxu0
        %v5185 = vadd.f32 %v4880, %v5184
        %v5186 = vpop.f32.mrf.mxu0
        %5187 = vmatprep.mubr.bf16.mxu0 %v4212
        %5188 = vmatmul.mubr.bf16.gmra.mxu0 %v4211
        %v5189 = vpop.f32.mrf.mxu0
        %v5190 = vadd.f32 %v4885, %v5189
        %v5191 = vpop.f32.mrf.mxu0
        %v5192 = vpop.f32.mrf.mxu0
        %v5193 = vadd.f32 %v4888, %v5192
        %v5194 = vpop.f32.mrf.mxu0
        %5195 = vmatprep.mubr.bf16.mxu0 %v4215
        %5196 = vmatmul.mubr.bf16.gmra.mxu0 %v4214
        %v5197 = vpop.f32.mrf.mxu0
        %v5198 = vadd.f32 %v4893, %v5197
        %v5199 = vpop.f32.mrf.mxu0
        %v5200 = vpop.f32.mrf.mxu0
        %v5201 = vadd.f32 %v4896, %v5200
        %v5202 = vpop.f32.mrf.mxu0
        %5203 = vmatprep.mubr.bf16.mxu0 %v4218
        %5204 = vmatmul.mubr.bf16.gmra.mxu0 %v4217
        %v5205 = vpop.f32.mrf.mxu0
        %v5206 = vadd.f32 %v4901, %v5205
        %v5207 = vpop.f32.mrf.mxu0
        %v5208 = vpop.f32.mrf.mxu0
        %v5209 = vadd.f32 %v4904, %v5208
        %v5210 = vpop.f32.mrf.mxu0
        %5211 = vmatprep.mubr.bf16.mxu0 %v4221
        %5212 = vmatmul.mubr.bf16.gmra.mxu0 %v4220
        %v5213 = vpop.f32.mrf.mxu0
        %v5214 = vadd.f32 %v4909, %v5213
        %v5215 = vpop.f32.mrf.mxu0
        %v5216 = vpop.f32.mrf.mxu0
        %v5217 = vadd.f32 %v4912, %v5216
        %v5218 = vpop.f32.mrf.mxu0
        %5219 = vmatprep.mubr.bf16.mxu0 %v4224
        %5220 = vmatmul.mubr.bf16.gmra.mxu0 %v4223
        %v5221 = vpop.f32.mrf.mxu0
        %v5222 = vadd.f32 %v4917, %v5221
        %v5223 = vpop.f32.mrf.mxu0
        %v5224 = vpop.f32.mrf.mxu0
        %v5225 = vadd.f32 %v4920, %v5224
        %v5226 = vpop.f32.mrf.mxu0
        %5227 = vmatprep.mubr.bf16.mxu0 %v4227
        %5228 = vmatmul.mubr.bf16.gmra.mxu0 %v4226
        %v5229 = vpop.f32.mrf.mxu0
        %v5230 = vadd.f32 %v4925, %v5229
        %v5231 = vpop.f32.mrf.mxu0
        %v5232 = vpop.f32.mrf.mxu0
        %v5233 = vadd.f32 %v4928, %v5232
        %v5234 = vpop.f32.mrf.mxu0
        %5235 = vmatprep.mubr.bf16.mxu0 %v4230
        %5236 = vmatmul.mubr.bf16.gmra.mxu0 %v4229
        %v5237 = vpop.f32.mrf.mxu0
        %v5238 = vadd.f32 %v4933, %v5237
        %v5239 = vpop.f32.mrf.mxu0
        %v5240 = vpop.f32.mrf.mxu0
        %v5241 = vadd.f32 %v4936, %v5240
        %v5242 = vpop.f32.mrf.mxu0
        %5243 = vdwg.mxu0
        %5244 = vmatprep.subr.bf16.mxu0 0
        %5245 = vmatpush1.bf16.msra.mxu0 %v5058
        %5246 = vmatprep.subr.bf16.mxu0 0
        %5247 = vmatpush1.bf16.msra.mxu0 %v5057
        %5248 = vmatprep.subr.bf16.mxu0 0
        %5249 = vmatpush1.bf16.msra.mxu0 %v5056
        %5250 = vmatprep.subr.bf16.mxu0 0
        %5251 = vmatpush1.bf16.msra.mxu0 %v5055
        %5252 = vmatprep.subr.bf16.mxu0 0
        %5253 = vmatpush1.bf16.msra.mxu0 %v5054
        %5254 = vmatprep.subr.bf16.mxu0 0
        %5255 = vmatpush1.bf16.msra.mxu0 %v5053
        %5256 = vmatprep.subr.bf16.mxu0 0
        %5257 = vmatpush1.bf16.msra.mxu0 %v5052
        %5258 = vmatprep.subr.bf16.mxu0 0
        %5259 = vmatpush1.bf16.msra.mxu0 %v5051
        %5260 = vmatprep.subr.bf16.mxu0 0
        %5261 = vmatpush2.bf16.msra.mxu0 0
        %5262 = vmatprep.subr.bf16.mxu0 0
        %5263 = vmatpush2.bf16.msra.mxu0 0
        %5264 = vmatprep.subr.bf16.mxu0 0
        %5265 = vmatpush2.bf16.msra.mxu0 0
        %5266 = vmatprep.subr.bf16.mxu0 0
        %5267 = vmatpush2.bf16.msra.mxu0 0
        %5268 = vmatprep.subr.bf16.mxu0 0
        %5269 = vmatpush2.bf16.msra.mxu0 0
        %5270 = vmatprep.subr.bf16.mxu0 0
        %5271 = vmatpush2.bf16.msra.mxu0 0
        %5272 = vmatprep.subr.bf16.mxu0 0
        %5273 = vmatpush2.bf16.msra.mxu0 0
        %5274 = vmatprep.subr.bf16.mxu0 0
        %5275 = vmatpush2.bf16.msra.mxu0 0
        %5276 = vmatprep.mubr.bf16.mxu0 0
        %5277 = vmatmul.mubr.bf16.gmra.mxu0 %v4186
        %v5278 = vpop.f32.mrf.mxu0
        %v5279 = vadd.f32 %v5118, %v5278
        %v5280 = vpop.f32.mrf.mxu0
        %v5281 = vpop.f32.mrf.mxu0
        %v5282 = vadd.f32 %v5121, %v5281
        %v5283 = vpop.f32.mrf.mxu0
        %5284 = vmatprep.mubr.bf16.mxu0 0
        %5285 = vmatmul.mubr.bf16.gmra.mxu0 %v4189
        %v5286 = vpop.f32.mrf.mxu0
        %v5287 = vadd.f32 %v5126, %v5286
        %v5288 = vpop.f32.mrf.mxu0
        %v5289 = vpop.f32.mrf.mxu0
        %v5290 = vadd.f32 %v5129, %v5289
        %v5291 = vpop.f32.mrf.mxu0
        %5292 = vmatprep.mubr.bf16.mxu0 0
        %5293 = vmatmul.mubr.bf16.gmra.mxu0 %v4192
        %v5294 = vpop.f32.mrf.mxu0
        %v5295 = vadd.f32 %v5134, %v5294
        %v5296 = vpop.f32.mrf.mxu0
        %v5297 = vpop.f32.mrf.mxu0
        %v5298 = vadd.f32 %v5137, %v5297
        %v5299 = vpop.f32.mrf.mxu0
        %5300 = vmatprep.mubr.bf16.mxu0 0
        %5301 = vmatmul.mubr.bf16.gmra.mxu0 %v4195
        %v5302 = vpop.f32.mrf.mxu0
        %v5303 = vadd.f32 %v5142, %v5302
        %v5304 = vpop.f32.mrf.mxu0
        %v5305 = vpop.f32.mrf.mxu0
        %v5306 = vadd.f32 %v5145, %v5305
        %v5307 = vpop.f32.mrf.mxu0
        %5308 = vmatprep.mubr.bf16.mxu0 0
        %5309 = vmatmul.mubr.bf16.gmra.mxu0 %v4198
        %v5310 = vpop.f32.mrf.mxu0
        %v5311 = vadd.f32 %v5150, %v5310
        %v5312 = vpop.f32.mrf.mxu0
        %v5313 = vpop.f32.mrf.mxu0
        %v5314 = vadd.f32 %v5153, %v5313
        %v5315 = vpop.f32.mrf.mxu0
        %5316 = vmatprep.mubr.bf16.mxu0 0
        %5317 = vmatmul.mubr.bf16.gmra.mxu0 %v4201
        %v5318 = vpop.f32.mrf.mxu0
        %v5319 = vadd.f32 %v5158, %v5318
        %v5320 = vpop.f32.mrf.mxu0
        %v5321 = vpop.f32.mrf.mxu0
        %v5322 = vadd.f32 %v5161, %v5321
        %v5323 = vpop.f32.mrf.mxu0
        %5324 = vmatprep.mubr.bf16.mxu0 0
        %5325 = vmatmul.mubr.bf16.gmra.mxu0 %v4204
        %v5326 = vpop.f32.mrf.mxu0
        %v5327 = vadd.f32 %v5166, %v5326
        %v5328 = vpop.f32.mrf.mxu0
        %v5329 = vpop.f32.mrf.mxu0
        %v5330 = vadd.f32 %v5169, %v5329
        %v5331 = vpop.f32.mrf.mxu0
        %5332 = vmatprep.mubr.bf16.mxu0 0
        %5333 = vmatmul.mubr.bf16.gmra.mxu0 %v4207
        %v5334 = vpop.f32.mrf.mxu0
        %v5335 = vadd.f32 %v5174, %v5334
        %v5336 = vpop.f32.mrf.mxu0
        %v5337 = vpop.f32.mrf.mxu0
        %v5338 = vadd.f32 %v5177, %v5337
        %v5339 = vpop.f32.mrf.mxu0
        %5340 = vmatprep.mubr.bf16.mxu0 0
        %5341 = vmatmul.mubr.bf16.gmra.mxu0 %v4210
        %v5342 = vpop.f32.mrf.mxu0
        %v5343 = vadd.f32 %v5182, %v5342
        %v5344 = vpop.f32.mrf.mxu0
        %v5345 = vpop.f32.mrf.mxu0
        %v5346 = vadd.f32 %v5185, %v5345
        %v5347 = vpop.f32.mrf.mxu0
        %5348 = vmatprep.mubr.bf16.mxu0 0
        %5349 = vmatmul.mubr.bf16.gmra.mxu0 %v4213
        %v5350 = vpop.f32.mrf.mxu0
        %v5351 = vadd.f32 %v5190, %v5350
        %v5352 = vpop.f32.mrf.mxu0
        %v5353 = vpop.f32.mrf.mxu0
        %v5354 = vadd.f32 %v5193, %v5353
        %v5355 = vpop.f32.mrf.mxu0
        %5356 = vmatprep.mubr.bf16.mxu0 0
        %5357 = vmatmul.mubr.bf16.gmra.mxu0 %v4216
        %v5358 = vpop.f32.mrf.mxu0
        %v5359 = vadd.f32 %v5198, %v5358
        %v5360 = vpop.f32.mrf.mxu0
        %v5361 = vpop.f32.mrf.mxu0
        %v5362 = vadd.f32 %v5201, %v5361
        %v5363 = vpop.f32.mrf.mxu0
        %5364 = vmatprep.mubr.bf16.mxu0 0
        %5365 = vmatmul.mubr.bf16.gmra.mxu0 %v4219
        %v5366 = vpop.f32.mrf.mxu0
        %v5367 = vadd.f32 %v5206, %v5366
        %v5368 = vpop.f32.mrf.mxu0
        %v5369 = vpop.f32.mrf.mxu0
        %v5370 = vadd.f32 %v5209, %v5369
        %v5371 = vpop.f32.mrf.mxu0
        %5372 = vmatprep.mubr.bf16.mxu0 0
        %5373 = vmatmul.mubr.bf16.gmra.mxu0 %v4222
        %v5374 = vpop.f32.mrf.mxu0
        %v5375 = vadd.f32 %v5214, %v5374
        %v5376 = vpop.f32.mrf.mxu0
        %v5377 = vpop.f32.mrf.mxu0
        %v5378 = vadd.f32 %v5217, %v5377
        %v5379 = vpop.f32.mrf.mxu0
        %5380 = vmatprep.mubr.bf16.mxu0 0
        %5381 = vmatmul.mubr.bf16.gmra.mxu0 %v4225
        %v5382 = vpop.f32.mrf.mxu0
        %v5383 = vadd.f32 %v5222, %v5382
        %v5384 = vpop.f32.mrf.mxu0
        %v5385 = vpop.f32.mrf.mxu0
        %v5386 = vadd.f32 %v5225, %v5385
        %v5387 = vpop.f32.mrf.mxu0
        %5388 = vmatprep.mubr.bf16.mxu0 0
        %5389 = vmatmul.mubr.bf16.gmra.mxu0 %v4228
        %v5390 = vpop.f32.mrf.mxu0
        %v5391 = vadd.f32 %v5230, %v5390
        %v5392 = vpop.f32.mrf.mxu0
        %v5393 = vpop.f32.mrf.mxu0
        %v5394 = vadd.f32 %v5233, %v5393
        %v5395 = vpop.f32.mrf.mxu0
        %5396 = vmatprep.mubr.bf16.mxu0 0
        %5397 = vmatmul.mubr.bf16.gmra.mxu0 %v4231
        %v5398 = vpop.f32.mrf.mxu0
        %v5399 = vadd.f32 %v5238, %v5398
        %v5400 = vpop.f32.mrf.mxu0
        %v5401 = vpop.f32.mrf.mxu0
        %v5402 = vadd.f32 %v5241, %v5401
        %v5403 = vpop.f32.mrf.mxu0
        %5404 = vdwg.mxu0
        %s5405 = scalar_lea.vmem [#allocation3], 48
        %v5406 = vld [vmem:[%s5405] sm:$0xff]
        %v5407 = vld [vmem:[%s5405 + $0x8] sm:$0xff]
        %v5408 = vld [vmem:[%s5405 + $0x18] sm:$0xff]
        %v5409 = vld [vmem:[%s5405 + $0x20] sm:$0xff]
        %v5410 = vld [vmem:[%s5405 + $0x30] sm:$0xff]
        %v5411 = vld [vmem:[%s5405 + $0x38] sm:$0xff]
        %v5412 = vld [vmem:[%s5405 + $0x48] sm:$0xff]
        %v5413 = vld [vmem:[%s5405 + $0x50] sm:$0xff]
        %v5414 = vld [vmem:[%s5405 + $0x60] sm:$0xff]
        %v5415 = vld [vmem:[%s5405 + $0x68] sm:$0xff]
        %v5416 = vld [vmem:[%s5405 + $0x78] sm:$0xff]
        %v5417 = vld [vmem:[%s5405 + $0x80] sm:$0xff]
        %v5418 = vld [vmem:[%s5405 + $0x90] sm:$0xff]
        %v5419 = vld [vmem:[%s5405 + $0x98] sm:$0xff]
        %v5420 = vld [vmem:[%s5405 + $0xa8] sm:$0xff]
        %v5421 = vld [vmem:[%s5405 + $0xb0] sm:$0xff]
        %v5422 = vld [vmem:[%s5405 + $0xc0] sm:$0xff]
        %v5423 = vld [vmem:[%s5405 + $0xc8] sm:$0xff]
        %v5424 = vld [vmem:[%s5405 + $0xd8] sm:$0xff]
        %v5425 = vld [vmem:[%s5405 + $0xe0] sm:$0xff]
        %v5426 = vld [vmem:[%s5405 + $0xf0] sm:$0xff]
        %v5427 = vld [vmem:[%s5405 + $0xf8] sm:$0xff]
        %v5428 = vld [vmem:[%s5405 + $0x108] sm:$0xff]
        %v5429 = vld [vmem:[%s5405 + $0x110] sm:$0xff]
        %v5430 = vld [vmem:[%s5405 + $0x120] sm:$0xff]
        %v5431 = vld [vmem:[%s5405 + $0x128] sm:$0xff]
        %v5432 = vld [vmem:[%s5405 + $0x138] sm:$0xff]
        %v5433 = vld [vmem:[%s5405 + $0x140] sm:$0xff]
        %v5434 = vld [vmem:[%s5405 + $0x150] sm:$0xff]
        %v5435 = vld [vmem:[%s5405 + $0x158] sm:$0xff]
        %v5436 = vld [vmem:[%s5405 + $0x168] sm:$0xff]
        %v5437 = vld [vmem:[%s5405 + $0x170] sm:$0xff]
        %v5438 = vld [vmem:[%s5405 + $0x1] sm:$0xff]
        %v5439 = vld [vmem:[%s5405 + $0x9] sm:$0xff]
        %v5440 = vld [vmem:[%s5405 + $0x19] sm:$0xff]
        %v5441 = vld [vmem:[%s5405 + $0x21] sm:$0xff]
        %v5442 = vld [vmem:[%s5405 + $0x31] sm:$0xff]
        %v5443 = vld [vmem:[%s5405 + $0x39] sm:$0xff]
        %v5444 = vld [vmem:[%s5405 + $0x49] sm:$0xff]
        %v5445 = vld [vmem:[%s5405 + $0x51] sm:$0xff]
        %v5446 = vld [vmem:[%s5405 + $0x61] sm:$0xff]
        %v5447 = vld [vmem:[%s5405 + $0x69] sm:$0xff]
        %v5448 = vld [vmem:[%s5405 + $0x79] sm:$0xff]
        %v5449 = vld [vmem:[%s5405 + $0x81] sm:$0xff]
        %v5450 = vld [vmem:[%s5405 + $0x91] sm:$0xff]
        %v5451 = vld [vmem:[%s5405 + $0x99] sm:$0xff]
        %v5452 = vld [vmem:[%s5405 + $0xa9] sm:$0xff]
        %v5453 = vld [vmem:[%s5405 + $0xb1] sm:$0xff]
        %v5454 = vld [vmem:[%s5405 + $0xc1] sm:$0xff]
        %v5455 = vld [vmem:[%s5405 + $0xc9] sm:$0xff]
        %v5456 = vld [vmem:[%s5405 + $0xd9] sm:$0xff]
        %v5457 = vld [vmem:[%s5405 + $0xe1] sm:$0xff]
        %v5458 = vld [vmem:[%s5405 + $0xf1] sm:$0xff]
        %v5459 = vld [vmem:[%s5405 + $0xf9] sm:$0xff]
        %v5460 = vld [vmem:[%s5405 + $0x109] sm:$0xff]
        %v5461 = vld [vmem:[%s5405 + $0x111] sm:$0xff]
        %v5462 = vld [vmem:[%s5405 + $0x121] sm:$0xff]
        %v5463 = vld [vmem:[%s5405 + $0x129] sm:$0xff]
        %v5464 = vld [vmem:[%s5405 + $0x139] sm:$0xff]
        %v5465 = vld [vmem:[%s5405 + $0x141] sm:$0xff]
        %v5466 = vld [vmem:[%s5405 + $0x151] sm:$0xff]
        %v5467 = vld [vmem:[%s5405 + $0x159] sm:$0xff]
        %v5468 = vld [vmem:[%s5405 + $0x169] sm:$0xff]
        %v5469 = vld [vmem:[%s5405 + $0x171] sm:$0xff]
        %v5470 = vld [vmem:[%s5405 + $0x2] sm:$0xff]
        %v5471 = vld [vmem:[%s5405 + $0xa] sm:$0xff]
        %v5472 = vld [vmem:[%s5405 + $0x1a] sm:$0xff]
        %v5473 = vld [vmem:[%s5405 + $0x22] sm:$0xff]
        %v5474 = vld [vmem:[%s5405 + $0x32] sm:$0xff]
        %v5475 = vld [vmem:[%s5405 + $0x3a] sm:$0xff]
        %v5476 = vld [vmem:[%s5405 + $0x4a] sm:$0xff]
        %v5477 = vld [vmem:[%s5405 + $0x52] sm:$0xff]
        %v5478 = vld [vmem:[%s5405 + $0x62] sm:$0xff]
        %v5479 = vld [vmem:[%s5405 + $0x6a] sm:$0xff]
        %v5480 = vld [vmem:[%s5405 + $0x7a] sm:$0xff]
        %v5481 = vld [vmem:[%s5405 + $0x82] sm:$0xff]
        %v5482 = vld [vmem:[%s5405 + $0x92] sm:$0xff]
        %v5483 = vld [vmem:[%s5405 + $0x9a] sm:$0xff]
        %v5484 = vld [vmem:[%s5405 + $0xaa] sm:$0xff]
        %v5485 = vld [vmem:[%s5405 + $0xb2] sm:$0xff]
        %v5486 = vld [vmem:[%s5405 + $0xc2] sm:$0xff]
        %v5487 = vld [vmem:[%s5405 + $0xca] sm:$0xff]
        %v5488 = vld [vmem:[%s5405 + $0xda] sm:$0xff]
        %v5489 = vld [vmem:[%s5405 + $0xe2] sm:$0xff]
        %v5490 = vld [vmem:[%s5405 + $0xf2] sm:$0xff]
        %v5491 = vld [vmem:[%s5405 + $0xfa] sm:$0xff]
        %v5492 = vld [vmem:[%s5405 + $0x10a] sm:$0xff]
        %v5493 = vld [vmem:[%s5405 + $0x112] sm:$0xff]
        %v5494 = vld [vmem:[%s5405 + $0x122] sm:$0xff]
        %v5495 = vld [vmem:[%s5405 + $0x12a] sm:$0xff]
        %v5496 = vld [vmem:[%s5405 + $0x13a] sm:$0xff]
        %v5497 = vld [vmem:[%s5405 + $0x142] sm:$0xff]
        %v5498 = vld [vmem:[%s5405 + $0x152] sm:$0xff]
        %v5499 = vld [vmem:[%s5405 + $0x15a] sm:$0xff]
        %v5500 = vld [vmem:[%s5405 + $0x16a] sm:$0xff]
        %v5501 = vld [vmem:[%s5405 + $0x172] sm:$0xff]
        %v5502 = vpack.c.bf16 %v5407, %v5406
        %v5503 = vpack.c.bf16 %v5439, %v5438
        %v5504 = vpack.c.bf16 %v5471, %v5470
        %v5505 = vpack.c.bf16 %v5409, %v5408
        %v5506 = vpack.c.bf16 %v5441, %v5440
        %v5507 = vpack.c.bf16 %v5473, %v5472
        %v5508 = vpack.c.bf16 %v5411, %v5410
        %v5509 = vpack.c.bf16 %v5443, %v5442
        %v5510 = vpack.c.bf16 %v5475, %v5474
        %v5511 = vpack.c.bf16 %v5413, %v5412
        %v5512 = vpack.c.bf16 %v5445, %v5444
        %v5513 = vpack.c.bf16 %v5477, %v5476
        %v5514 = vpack.c.bf16 %v5415, %v5414
        %v5515 = vpack.c.bf16 %v5447, %v5446
        %v5516 = vpack.c.bf16 %v5479, %v5478
        %v5517 = vpack.c.bf16 %v5417, %v5416
        %v5518 = vpack.c.bf16 %v5449, %v5448
        %v5519 = vpack.c.bf16 %v5481, %v5480
        %v5520 = vpack.c.bf16 %v5419, %v5418
        %v5521 = vpack.c.bf16 %v5451, %v5450
        %v5522 = vpack.c.bf16 %v5483, %v5482
        %v5523 = vpack.c.bf16 %v5421, %v5420
        %v5524 = vpack.c.bf16 %v5453, %v5452
        %v5525 = vpack.c.bf16 %v5485, %v5484
        %v5526 = vpack.c.bf16 %v5423, %v5422
        %v5527 = vpack.c.bf16 %v5455, %v5454
        %v5528 = vpack.c.bf16 %v5487, %v5486
        %v5529 = vpack.c.bf16 %v5425, %v5424
        %v5530 = vpack.c.bf16 %v5457, %v5456
        %v5531 = vpack.c.bf16 %v5489, %v5488
        %v5532 = vpack.c.bf16 %v5427, %v5426
        %v5533 = vpack.c.bf16 %v5459, %v5458
        %v5534 = vpack.c.bf16 %v5491, %v5490
        %v5535 = vpack.c.bf16 %v5429, %v5428
        %v5536 = vpack.c.bf16 %v5461, %v5460
        %v5537 = vpack.c.bf16 %v5493, %v5492
        %v5538 = vpack.c.bf16 %v5431, %v5430
        %v5539 = vpack.c.bf16 %v5463, %v5462
        %v5540 = vpack.c.bf16 %v5495, %v5494
        %v5541 = vpack.c.bf16 %v5433, %v5432
        %v5542 = vpack.c.bf16 %v5465, %v5464
        %v5543 = vpack.c.bf16 %v5497, %v5496
        %v5544 = vpack.c.bf16 %v5435, %v5434
        %v5545 = vpack.c.bf16 %v5467, %v5466
        %v5546 = vpack.c.bf16 %v5499, %v5498
        %v5547 = vpack.c.bf16 %v5437, %v5436
        %v5548 = vpack.c.bf16 %v5469, %v5468
        %v5549 = vpack.c.bf16 %v5501, %v5500
        %s5550 = scalar_lea.vmem %s3, 384
        %v5551 = vld [vmem:[%s5550] sm:$0xf]
        %v5552 = vld [vmem:[%s5550 + $0x4] sm:$0xf]
        %v5553 = vld [vmem:[%s5550 + $0x8] sm:$0xf]
        %v5554 = vld [vmem:[%s5550 + $0xc] sm:$0xf]
        %v5555 = vld [vmem:[%s5550 + $0x10] sm:$0xf]
        %v5556 = vld [vmem:[%s5550 + $0x14] sm:$0xf]
        %v5557 = vld [vmem:[%s5550 + $0x18] sm:$0xf]
        %v5558 = vld [vmem:[%s5550 + $0x1c] sm:$0xf]
        %v5559 = vld [vmem:[%s5550 + $0x20] sm:$0xf]
        %v5560 = vld [vmem:[%s5550 + $0x24] sm:$0xf]
        %v5561 = vld [vmem:[%s5550 + $0x28] sm:$0xf]
        %v5562 = vld [vmem:[%s5550 + $0x2c] sm:$0xf]
        %v5563 = vld [vmem:[%s5550 + $0x30] sm:$0xf]
        %v5564 = vld [vmem:[%s5550 + $0x34] sm:$0xf]
        %v5565 = vld [vmem:[%s5550 + $0x38] sm:$0xf]
        %v5566 = vld [vmem:[%s5550 + $0x3c] sm:$0xf]
        %v5567 = vld [vmem:[%s5550 + $0x40] sm:$0xf]
        %v5568 = vld [vmem:[%s5550 + $0x44] sm:$0xf]
        %v5569 = vld [vmem:[%s5550 + $0x48] sm:$0xf]
        %v5570 = vld [vmem:[%s5550 + $0x4c] sm:$0xf]
        %v5571 = vld [vmem:[%s5550 + $0x50] sm:$0xf]
        %v5572 = vld [vmem:[%s5550 + $0x54] sm:$0xf]
        %v5573 = vld [vmem:[%s5550 + $0x58] sm:$0xf]
        %v5574 = vld [vmem:[%s5550 + $0x5c] sm:$0xf]
        %v5575 = vld [vmem:[%s5550 + $0x60] sm:$0xf]
        %v5576 = vld [vmem:[%s5550 + $0x64] sm:$0xf]
        %v5577 = vld [vmem:[%s5550 + $0x68] sm:$0xf]
        %v5578 = vld [vmem:[%s5550 + $0x6c] sm:$0xf]
        %v5579 = vld [vmem:[%s5550 + $0x70] sm:$0xf]
        %v5580 = vld [vmem:[%s5550 + $0x74] sm:$0xf]
        %v5581 = vld [vmem:[%s5550 + $0x78] sm:$0xf]
        %v5582 = vld [vmem:[%s5550 + $0x7c] sm:$0xf]
        %v5583 = vld [vmem:[%s5550 + $0x80] sm:$0xf]
        %v5584 = vld [vmem:[%s5550 + $0x84] sm:$0xf]
        %v5585 = vld [vmem:[%s5550 + $0x88] sm:$0xf]
        %v5586 = vld [vmem:[%s5550 + $0x8c] sm:$0xf]
        %v5587 = vld [vmem:[%s5550 + $0x90] sm:$0xf]
        %v5588 = vld [vmem:[%s5550 + $0x94] sm:$0xf]
        %v5589 = vld [vmem:[%s5550 + $0x98] sm:$0xf]
        %v5590 = vld [vmem:[%s5550 + $0x9c] sm:$0xf]
        %v5591 = vld [vmem:[%s5550 + $0xa0] sm:$0xf]
        %v5592 = vld [vmem:[%s5550 + $0xa4] sm:$0xf]
        %v5593 = vld [vmem:[%s5550 + $0xa8] sm:$0xf]
        %v5594 = vld [vmem:[%s5550 + $0xac] sm:$0xf]
        %v5595 = vld [vmem:[%s5550 + $0xb0] sm:$0xf]
        %v5596 = vld [vmem:[%s5550 + $0xb4] sm:$0xf]
        %v5597 = vld [vmem:[%s5550 + $0xb8] sm:$0xf]
        %v5598 = vld [vmem:[%s5550 + $0xbc] sm:$0xf]
        %v5647 = vunpack.c.l.b16 %v5551
        %v5648 = vunpack.c.l.b16 %v5552
        %v5649 = vunpack.c.l.b16 %v5553
        %v5650 = vunpack.c.l.b16 %v5554
        %v5651 = vunpack.c.l.b16 %v5555
        %v5652 = vunpack.c.l.b16 %v5556
        %v5653 = vunpack.c.l.b16 %v5557
        %v5654 = vunpack.c.l.b16 %v5558
        %v5655 = vunpack.c.l.b16 %v5559
        %v5656 = vunpack.c.l.b16 %v5560
        %v5657 = vunpack.c.l.b16 %v5561
        %v5658 = vunpack.c.l.b16 %v5562
        %v5659 = vunpack.c.l.b16 %v5563
        %v5660 = vunpack.c.l.b16 %v5564
        %v5661 = vunpack.c.l.b16 %v5565
        %v5662 = vunpack.c.l.b16 %v5566
        %v5663 = vunpack.c.l.b16 %v5567
        %v5664 = vunpack.c.l.b16 %v5568
        %v5665 = vunpack.c.l.b16 %v5569
        %v5666 = vunpack.c.l.b16 %v5570
        %v5667 = vunpack.c.l.b16 %v5571
        %v5668 = vunpack.c.l.b16 %v5572
        %v5669 = vunpack.c.l.b16 %v5573
        %v5670 = vunpack.c.l.b16 %v5574
        %v5671 = vunpack.c.l.b16 %v5575
        %v5672 = vunpack.c.l.b16 %v5576
        %v5673 = vunpack.c.l.b16 %v5577
        %v5674 = vunpack.c.l.b16 %v5578
        %v5675 = vunpack.c.l.b16 %v5579
        %v5676 = vunpack.c.l.b16 %v5580
        %v5677 = vunpack.c.l.b16 %v5581
        %v5678 = vunpack.c.l.b16 %v5582
        %v5679 = vunpack.c.l.b16 %v5583
        %v5680 = vunpack.c.l.b16 %v5584
        %v5681 = vunpack.c.l.b16 %v5585
        %v5682 = vunpack.c.l.b16 %v5586
        %v5683 = vunpack.c.l.b16 %v5587
        %v5684 = vunpack.c.l.b16 %v5588
        %v5685 = vunpack.c.l.b16 %v5589
        %v5686 = vunpack.c.l.b16 %v5590
        %v5687 = vunpack.c.l.b16 %v5591
        %v5688 = vunpack.c.l.b16 %v5592
        %v5689 = vunpack.c.l.b16 %v5593
        %v5690 = vunpack.c.l.b16 %v5594
        %v5691 = vunpack.c.l.b16 %v5595
        %v5692 = vunpack.c.l.b16 %v5596
        %v5693 = vunpack.c.l.b16 %v5597
        %v5694 = vunpack.c.l.b16 %v5598
        %v5695 = vpack.c.b16 %v5648, %v5647
        %v5696 = vpack.c.b16 %v5650, %v5649
        %v5697 = vpack.c.b16 %v5652, %v5651
        %v5698 = vpack.c.b16 %v5654, %v5653
        %v5699 = vpack.c.b16 %v5656, %v5655
        %v5700 = vpack.c.b16 %v5658, %v5657
        %v5701 = vpack.c.b16 %v5660, %v5659
        %v5702 = vpack.c.b16 %v5662, %v5661
        %v5703 = vpack.c.b16 %v5664, %v5663
        %v5704 = vpack.c.b16 %v5666, %v5665
        %v5705 = vpack.c.b16 %v5668, %v5667
        %v5706 = vpack.c.b16 %v5670, %v5669
        %v5707 = vpack.c.b16 %v5672, %v5671
        %v5708 = vpack.c.b16 %v5674, %v5673
        %v5709 = vpack.c.b16 %v5676, %v5675
        %v5710 = vpack.c.b16 %v5678, %v5677
        %v5711 = vpack.c.b16 %v5680, %v5679
        %v5712 = vpack.c.b16 %v5682, %v5681
        %v5713 = vpack.c.b16 %v5684, %v5683
        %v5714 = vpack.c.b16 %v5686, %v5685
        %v5715 = vpack.c.b16 %v5688, %v5687
        %v5716 = vpack.c.b16 %v5690, %v5689
        %v5717 = vpack.c.b16 %v5692, %v5691
        %v5718 = vpack.c.b16 %v5694, %v5693
        %5743 = vmatprep.subr.bf16.mxu0 0
        %5744 = vmatpush1.bf16.msra.mxu0 %v5702
        %5745 = vmatprep.subr.bf16.mxu0 0
        %5746 = vmatpush1.bf16.msra.mxu0 %v5701
        %5747 = vmatprep.subr.bf16.mxu0 0
        %5748 = vmatpush1.bf16.msra.mxu0 %v5700
        %5749 = vmatprep.subr.bf16.mxu0 0
        %5750 = vmatpush1.bf16.msra.mxu0 %v5699
        %5751 = vmatprep.subr.bf16.mxu0 0
        %5752 = vmatpush1.bf16.msra.mxu0 %v5698
        %5753 = vmatprep.subr.bf16.mxu0 0
        %5754 = vmatpush1.bf16.msra.mxu0 %v5697
        %5755 = vmatprep.subr.bf16.mxu0 0
        %5756 = vmatpush1.bf16.msra.mxu0 %v5696
        %5757 = vmatprep.subr.bf16.mxu0 0
        %5758 = vmatpush1.bf16.msra.mxu0 %v5695
        %5759 = vmatprep.subr.bf16.mxu0 0
        %5760 = vmatpush2.bf16.msra.mxu0 %v5710
        %5761 = vmatprep.subr.bf16.mxu0 0
        %5762 = vmatpush2.bf16.msra.mxu0 %v5709
        %5763 = vmatprep.subr.bf16.mxu0 0
        %5764 = vmatpush2.bf16.msra.mxu0 %v5708
        %5765 = vmatprep.subr.bf16.mxu0 0
        %5766 = vmatpush2.bf16.msra.mxu0 %v5707
        %5767 = vmatprep.subr.bf16.mxu0 0
        %5768 = vmatpush2.bf16.msra.mxu0 %v5706
        %5769 = vmatprep.subr.bf16.mxu0 0
        %5770 = vmatpush2.bf16.msra.mxu0 %v5705
        %5771 = vmatprep.subr.bf16.mxu0 0
        %5772 = vmatpush2.bf16.msra.mxu0 %v5704
        %5773 = vmatprep.subr.bf16.mxu0 0
        %5774 = vmatpush2.bf16.msra.mxu0 %v5703
        %5775 = vmatprep.mubr.bf16.mxu0 %v5503
        %5776 = vmatmul.mubr.bf16.gmra.mxu0 %v5502
        %v5777 = vpop.f32.mrf.mxu0
        %v5778 = vadd.f32 0.0, %v5777
        %v5779 = vpop.f32.mrf.mxu0
        %v5780 = vpop.f32.mrf.mxu0
        %v5781 = vadd.f32 0.0, %v5780
        %v5782 = vpop.f32.mrf.mxu0
        %5783 = vmatprep.mubr.bf16.mxu0 %v5506
        %5784 = vmatmul.mubr.bf16.gmra.mxu0 %v5505
        %v5785 = vpop.f32.mrf.mxu0
        %v5786 = vadd.f32 0.0, %v5785
        %v5787 = vpop.f32.mrf.mxu0
        %v5788 = vpop.f32.mrf.mxu0
        %v5789 = vadd.f32 0.0, %v5788
        %v5790 = vpop.f32.mrf.mxu0
        %5791 = vmatprep.mubr.bf16.mxu0 %v5509
        %5792 = vmatmul.mubr.bf16.gmra.mxu0 %v5508
        %v5793 = vpop.f32.mrf.mxu0
        %v5794 = vadd.f32 0.0, %v5793
        %v5795 = vpop.f32.mrf.mxu0
        %v5796 = vpop.f32.mrf.mxu0
        %v5797 = vadd.f32 0.0, %v5796
        %v5798 = vpop.f32.mrf.mxu0
        %5799 = vmatprep.mubr.bf16.mxu0 %v5512
        %5800 = vmatmul.mubr.bf16.gmra.mxu0 %v5511
        %v5801 = vpop.f32.mrf.mxu0
        %v5802 = vadd.f32 0.0, %v5801
        %v5803 = vpop.f32.mrf.mxu0
        %v5804 = vpop.f32.mrf.mxu0
        %v5805 = vadd.f32 0.0, %v5804
        %v5806 = vpop.f32.mrf.mxu0
        %5807 = vmatprep.mubr.bf16.mxu0 %v5515
        %5808 = vmatmul.mubr.bf16.gmra.mxu0 %v5514
        %v5809 = vpop.f32.mrf.mxu0
        %v5810 = vadd.f32 0.0, %v5809
        %v5811 = vpop.f32.mrf.mxu0
        %v5812 = vpop.f32.mrf.mxu0
        %v5813 = vadd.f32 0.0, %v5812
        %v5814 = vpop.f32.mrf.mxu0
        %5815 = vmatprep.mubr.bf16.mxu0 %v5518
        %5816 = vmatmul.mubr.bf16.gmra.mxu0 %v5517
        %v5817 = vpop.f32.mrf.mxu0
        %v5818 = vadd.f32 0.0, %v5817
        %v5819 = vpop.f32.mrf.mxu0
        %v5820 = vpop.f32.mrf.mxu0
        %v5821 = vadd.f32 0.0, %v5820
        %v5822 = vpop.f32.mrf.mxu0
        %5823 = vmatprep.mubr.bf16.mxu0 %v5521
        %5824 = vmatmul.mubr.bf16.gmra.mxu0 %v5520
        %v5825 = vpop.f32.mrf.mxu0
        %v5826 = vadd.f32 0.0, %v5825
        %v5827 = vpop.f32.mrf.mxu0
        %v5828 = vpop.f32.mrf.mxu0
        %v5829 = vadd.f32 0.0, %v5828
        %v5830 = vpop.f32.mrf.mxu0
        %5831 = vmatprep.mubr.bf16.mxu0 %v5524
        %5832 = vmatmul.mubr.bf16.gmra.mxu0 %v5523
        %v5833 = vpop.f32.mrf.mxu0
        %v5834 = vadd.f32 0.0, %v5833
        %v5835 = vpop.f32.mrf.mxu0
        %v5836 = vpop.f32.mrf.mxu0
        %v5837 = vadd.f32 0.0, %v5836
        %v5838 = vpop.f32.mrf.mxu0
        %5839 = vmatprep.mubr.bf16.mxu0 %v5527
        %5840 = vmatmul.mubr.bf16.gmra.mxu0 %v5526
        %v5841 = vpop.f32.mrf.mxu0
        %v5842 = vadd.f32 0.0, %v5841
        %v5843 = vpop.f32.mrf.mxu0
        %v5844 = vpop.f32.mrf.mxu0
        %v5845 = vadd.f32 0.0, %v5844
        %v5846 = vpop.f32.mrf.mxu0
        %5847 = vmatprep.mubr.bf16.mxu0 %v5530
        %5848 = vmatmul.mubr.bf16.gmra.mxu0 %v5529
        %v5849 = vpop.f32.mrf.mxu0
        %v5850 = vadd.f32 0.0, %v5849
        %v5851 = vpop.f32.mrf.mxu0
        %v5852 = vpop.f32.mrf.mxu0
        %v5853 = vadd.f32 0.0, %v5852
        %v5854 = vpop.f32.mrf.mxu0
        %5855 = vmatprep.mubr.bf16.mxu0 %v5533
        %5856 = vmatmul.mubr.bf16.gmra.mxu0 %v5532
        %v5857 = vpop.f32.mrf.mxu0
        %v5858 = vadd.f32 0.0, %v5857
        %v5859 = vpop.f32.mrf.mxu0
        %v5860 = vpop.f32.mrf.mxu0
        %v5861 = vadd.f32 0.0, %v5860
        %v5862 = vpop.f32.mrf.mxu0
        %5863 = vmatprep.mubr.bf16.mxu0 %v5536
        %5864 = vmatmul.mubr.bf16.gmra.mxu0 %v5535
        %v5865 = vpop.f32.mrf.mxu0
        %v5866 = vadd.f32 0.0, %v5865
        %v5867 = vpop.f32.mrf.mxu0
        %v5868 = vpop.f32.mrf.mxu0
        %v5869 = vadd.f32 0.0, %v5868
        %v5870 = vpop.f32.mrf.mxu0
        %5871 = vmatprep.mubr.bf16.mxu0 %v5539
        %5872 = vmatmul.mubr.bf16.gmra.mxu0 %v5538
        %v5873 = vpop.f32.mrf.mxu0
        %v5874 = vadd.f32 0.0, %v5873
        %v5875 = vpop.f32.mrf.mxu0
        %v5876 = vpop.f32.mrf.mxu0
        %v5877 = vadd.f32 0.0, %v5876
        %v5878 = vpop.f32.mrf.mxu0
        %5879 = vmatprep.mubr.bf16.mxu0 %v5542
        %5880 = vmatmul.mubr.bf16.gmra.mxu0 %v5541
        %v5881 = vpop.f32.mrf.mxu0
        %v5882 = vadd.f32 0.0, %v5881
        %v5883 = vpop.f32.mrf.mxu0
        %v5884 = vpop.f32.mrf.mxu0
        %v5885 = vadd.f32 0.0, %v5884
        %v5886 = vpop.f32.mrf.mxu0
        %5887 = vmatprep.mubr.bf16.mxu0 %v5545
        %5888 = vmatmul.mubr.bf16.gmra.mxu0 %v5544
        %v5889 = vpop.f32.mrf.mxu0
        %v5890 = vadd.f32 0.0, %v5889
        %v5891 = vpop.f32.mrf.mxu0
        %v5892 = vpop.f32.mrf.mxu0
        %v5893 = vadd.f32 0.0, %v5892
        %v5894 = vpop.f32.mrf.mxu0
        %5895 = vmatprep.mubr.bf16.mxu0 %v5548
        %5896 = vmatmul.mubr.bf16.gmra.mxu0 %v5547
        %v5897 = vpop.f32.mrf.mxu0
        %v5898 = vadd.f32 0.0, %v5897
        %v5899 = vpop.f32.mrf.mxu0
        %v5900 = vpop.f32.mrf.mxu0
        %v5901 = vadd.f32 0.0, %v5900
        %v5902 = vpop.f32.mrf.mxu0
        %5903 = vdwg.mxu0
        %5904 = vmatprep.subr.bf16.mxu0 0
        %5905 = vmatpush1.bf16.msra.mxu0 %v5718
        %5906 = vmatprep.subr.bf16.mxu0 0
        %5907 = vmatpush1.bf16.msra.mxu0 %v5717
        %5908 = vmatprep.subr.bf16.mxu0 0
        %5909 = vmatpush1.bf16.msra.mxu0 %v5716
        %5910 = vmatprep.subr.bf16.mxu0 0
        %5911 = vmatpush1.bf16.msra.mxu0 %v5715
        %5912 = vmatprep.subr.bf16.mxu0 0
        %5913 = vmatpush1.bf16.msra.mxu0 %v5714
        %5914 = vmatprep.subr.bf16.mxu0 0
        %5915 = vmatpush1.bf16.msra.mxu0 %v5713
        %5916 = vmatprep.subr.bf16.mxu0 0
        %5917 = vmatpush1.bf16.msra.mxu0 %v5712
        %5918 = vmatprep.subr.bf16.mxu0 0
        %5919 = vmatpush1.bf16.msra.mxu0 %v5711
        %5920 = vmatprep.subr.bf16.mxu0 0
        %5921 = vmatpush2.bf16.msra.mxu0 0
        %5922 = vmatprep.subr.bf16.mxu0 0
        %5923 = vmatpush2.bf16.msra.mxu0 0
        %5924 = vmatprep.subr.bf16.mxu0 0
        %5925 = vmatpush2.bf16.msra.mxu0 0
        %5926 = vmatprep.subr.bf16.mxu0 0
        %5927 = vmatpush2.bf16.msra.mxu0 0
        %5928 = vmatprep.subr.bf16.mxu0 0
        %5929 = vmatpush2.bf16.msra.mxu0 0
        %5930 = vmatprep.subr.bf16.mxu0 0
        %5931 = vmatpush2.bf16.msra.mxu0 0
        %5932 = vmatprep.subr.bf16.mxu0 0
        %5933 = vmatpush2.bf16.msra.mxu0 0
        %5934 = vmatprep.subr.bf16.mxu0 0
        %5935 = vmatpush2.bf16.msra.mxu0 0
        %5936 = vmatprep.mubr.bf16.mxu0 0
        %5937 = vmatmul.mubr.bf16.gmra.mxu0 %v5504
        %v5938 = vpop.f32.mrf.mxu0
        %v5939 = vadd.f32 %v5778, %v5938
        %v5940 = vpop.f32.mrf.mxu0
        %v5941 = vpop.f32.mrf.mxu0
        %v5942 = vadd.f32 %v5781, %v5941
        %v5943 = vpop.f32.mrf.mxu0
        %5944 = vmatprep.mubr.bf16.mxu0 0
        %5945 = vmatmul.mubr.bf16.gmra.mxu0 %v5507
        %v5946 = vpop.f32.mrf.mxu0
        %v5947 = vadd.f32 %v5786, %v5946
        %v5948 = vpop.f32.mrf.mxu0
        %v5949 = vpop.f32.mrf.mxu0
        %v5950 = vadd.f32 %v5789, %v5949
        %v5951 = vpop.f32.mrf.mxu0
        %5952 = vmatprep.mubr.bf16.mxu0 0
        %5953 = vmatmul.mubr.bf16.gmra.mxu0 %v5510
        %v5954 = vpop.f32.mrf.mxu0
        %v5955 = vadd.f32 %v5794, %v5954
        %v5956 = vpop.f32.mrf.mxu0
        %v5957 = vpop.f32.mrf.mxu0
        %v5958 = vadd.f32 %v5797, %v5957
        %v5959 = vpop.f32.mrf.mxu0
        %5960 = vmatprep.mubr.bf16.mxu0 0
        %5961 = vmatmul.mubr.bf16.gmra.mxu0 %v5513
        %v5962 = vpop.f32.mrf.mxu0
        %v5963 = vadd.f32 %v5802, %v5962
        %v5964 = vpop.f32.mrf.mxu0
        %v5965 = vpop.f32.mrf.mxu0
        %v5966 = vadd.f32 %v5805, %v5965
        %v5967 = vpop.f32.mrf.mxu0
        %5968 = vmatprep.mubr.bf16.mxu0 0
        %5969 = vmatmul.mubr.bf16.gmra.mxu0 %v5516
        %v5970 = vpop.f32.mrf.mxu0
        %v5971 = vadd.f32 %v5810, %v5970
        %v5972 = vpop.f32.mrf.mxu0
        %v5973 = vpop.f32.mrf.mxu0
        %v5974 = vadd.f32 %v5813, %v5973
        %v5975 = vpop.f32.mrf.mxu0
        %5976 = vmatprep.mubr.bf16.mxu0 0
        %5977 = vmatmul.mubr.bf16.gmra.mxu0 %v5519
        %v5978 = vpop.f32.mrf.mxu0
        %v5979 = vadd.f32 %v5818, %v5978
        %v5980 = vpop.f32.mrf.mxu0
        %v5981 = vpop.f32.mrf.mxu0
        %v5982 = vadd.f32 %v5821, %v5981
        %v5983 = vpop.f32.mrf.mxu0
        %5984 = vmatprep.mubr.bf16.mxu0 0
        %5985 = vmatmul.mubr.bf16.gmra.mxu0 %v5522
        %v5986 = vpop.f32.mrf.mxu0
        %v5987 = vadd.f32 %v5826, %v5986
        %v5988 = vpop.f32.mrf.mxu0
        %v5989 = vpop.f32.mrf.mxu0
        %v5990 = vadd.f32 %v5829, %v5989
        %v5991 = vpop.f32.mrf.mxu0
        %5992 = vmatprep.mubr.bf16.mxu0 0
        %5993 = vmatmul.mubr.bf16.gmra.mxu0 %v5525
        %v5994 = vpop.f32.mrf.mxu0
        %v5995 = vadd.f32 %v5834, %v5994
        %v5996 = vpop.f32.mrf.mxu0
        %v5997 = vpop.f32.mrf.mxu0
        %v5998 = vadd.f32 %v5837, %v5997
        %v5999 = vpop.f32.mrf.mxu0
        %6000 = vmatprep.mubr.bf16.mxu0 0
        %6001 = vmatmul.mubr.bf16.gmra.mxu0 %v5528
        %v6002 = vpop.f32.mrf.mxu0
        %v6003 = vadd.f32 %v5842, %v6002
        %v6004 = vpop.f32.mrf.mxu0
        %v6005 = vpop.f32.mrf.mxu0
        %v6006 = vadd.f32 %v5845, %v6005
        %v6007 = vpop.f32.mrf.mxu0
        %6008 = vmatprep.mubr.bf16.mxu0 0
        %6009 = vmatmul.mubr.bf16.gmra.mxu0 %v5531
        %v6010 = vpop.f32.mrf.mxu0
        %v6011 = vadd.f32 %v5850, %v6010
        %v6012 = vpop.f32.mrf.mxu0
        %v6013 = vpop.f32.mrf.mxu0
        %v6014 = vadd.f32 %v5853, %v6013
        %v6015 = vpop.f32.mrf.mxu0
        %6016 = vmatprep.mubr.bf16.mxu0 0
        %6017 = vmatmul.mubr.bf16.gmra.mxu0 %v5534
        %v6018 = vpop.f32.mrf.mxu0
        %v6019 = vadd.f32 %v5858, %v6018
        %v6020 = vpop.f32.mrf.mxu0
        %v6021 = vpop.f32.mrf.mxu0
        %v6022 = vadd.f32 %v5861, %v6021
        %v6023 = vpop.f32.mrf.mxu0
        %6024 = vmatprep.mubr.bf16.mxu0 0
        %6025 = vmatmul.mubr.bf16.gmra.mxu0 %v5537
        %v6026 = vpop.f32.mrf.mxu0
        %v6027 = vadd.f32 %v5866, %v6026
        %v6028 = vpop.f32.mrf.mxu0
        %v6029 = vpop.f32.mrf.mxu0
        %v6030 = vadd.f32 %v5869, %v6029
        %v6031 = vpop.f32.mrf.mxu0
        %6032 = vmatprep.mubr.bf16.mxu0 0
        %6033 = vmatmul.mubr.bf16.gmra.mxu0 %v5540
        %v6034 = vpop.f32.mrf.mxu0
        %v6035 = vadd.f32 %v5874, %v6034
        %v6036 = vpop.f32.mrf.mxu0
        %v6037 = vpop.f32.mrf.mxu0
        %v6038 = vadd.f32 %v5877, %v6037
        %v6039 = vpop.f32.mrf.mxu0
        %6040 = vmatprep.mubr.bf16.mxu0 0
        %6041 = vmatmul.mubr.bf16.gmra.mxu0 %v5543
        %v6042 = vpop.f32.mrf.mxu0
        %v6043 = vadd.f32 %v5882, %v6042
        %v6044 = vpop.f32.mrf.mxu0
        %v6045 = vpop.f32.mrf.mxu0
        %v6046 = vadd.f32 %v5885, %v6045
        %v6047 = vpop.f32.mrf.mxu0
        %6048 = vmatprep.mubr.bf16.mxu0 0
        %6049 = vmatmul.mubr.bf16.gmra.mxu0 %v5546
        %v6050 = vpop.f32.mrf.mxu0
        %v6051 = vadd.f32 %v5890, %v6050
        %v6052 = vpop.f32.mrf.mxu0
        %v6053 = vpop.f32.mrf.mxu0
        %v6054 = vadd.f32 %v5893, %v6053
        %v6055 = vpop.f32.mrf.mxu0
        %6056 = vmatprep.mubr.bf16.mxu0 0
        %6057 = vmatmul.mubr.bf16.gmra.mxu0 %v5549
        %v6058 = vpop.f32.mrf.mxu0
        %v6059 = vadd.f32 %v5898, %v6058
        %v6060 = vpop.f32.mrf.mxu0
        %v6061 = vpop.f32.mrf.mxu0
        %v6062 = vadd.f32 %v5901, %v6061
        %v6063 = vpop.f32.mrf.mxu0
        %6064 = vdwg.mxu0
        %v6065 = vadd.f32 %v5279, %v5939
        %v6066 = vadd.f32 %v5282, %v5942
        %v6067 = vadd.f32 %v5287, %v5947
        %v6068 = vadd.f32 %v5290, %v5950
        %v6069 = vadd.f32 %v5295, %v5955
        %v6070 = vadd.f32 %v5298, %v5958
        %v6071 = vadd.f32 %v5303, %v5963
        %v6072 = vadd.f32 %v5306, %v5966
        %v6073 = vadd.f32 %v5311, %v5971
        %v6074 = vadd.f32 %v5314, %v5974
        %v6075 = vadd.f32 %v5319, %v5979
        %v6076 = vadd.f32 %v5322, %v5982
        %v6077 = vadd.f32 %v5327, %v5987
        %v6078 = vadd.f32 %v5330, %v5990
        %v6079 = vadd.f32 %v5335, %v5995
        %v6080 = vadd.f32 %v5338, %v5998
        %v6081 = vadd.f32 %v5343, %v6003
        %v6082 = vadd.f32 %v5346, %v6006
        %v6083 = vadd.f32 %v5351, %v6011
        %v6084 = vadd.f32 %v5354, %v6014
        %v6085 = vadd.f32 %v5359, %v6019
        %v6086 = vadd.f32 %v5362, %v6022
        %v6087 = vadd.f32 %v5367, %v6027
        %v6088 = vadd.f32 %v5370, %v6030
        %v6089 = vadd.f32 %v5375, %v6035
        %v6090 = vadd.f32 %v5378, %v6038
        %v6091 = vadd.f32 %v5383, %v6043
        %v6092 = vadd.f32 %v5386, %v6046
        %v6093 = vadd.f32 %v5391, %v6051
        %v6094 = vadd.f32 %v5394, %v6054
        %v6095 = vadd.f32 %v5399, %v6059
        %v6096 = vadd.f32 %v5402, %v6062
        %v6097 = vld [vmem:[%s4] sm:$0x1]
        %v6099 = vlaneseq
        %v6100 = vshrl.u32 %v6099, 7
        %v6101 = vsub.s32 0, %v6100
        %v6102 = vrot.slane %v6097, %v6101
        %v6104 = vadd.f32 %v6065, %v6102
        %v6105 = vadd.f32 %v6066, %v6102
        %v6106 = vadd.f32 %v6067, %v6102
        %v6107 = vadd.f32 %v6068, %v6102
        %v6108 = vadd.f32 %v6069, %v6102
        %v6109 = vadd.f32 %v6070, %v6102
        %v6110 = vadd.f32 %v6071, %v6102
        %v6111 = vadd.f32 %v6072, %v6102
        %v6112 = vadd.f32 %v6073, %v6102
        %v6113 = vadd.f32 %v6074, %v6102
        %v6114 = vadd.f32 %v6075, %v6102
        %v6115 = vadd.f32 %v6076, %v6102
        %v6116 = vadd.f32 %v6077, %v6102
        %v6117 = vadd.f32 %v6078, %v6102
        %v6118 = vadd.f32 %v6079, %v6102
        %v6119 = vadd.f32 %v6080, %v6102
        %v6120 = vadd.f32 %v6081, %v6102
        %v6121 = vadd.f32 %v6082, %v6102
        %v6122 = vadd.f32 %v6083, %v6102
        %v6123 = vadd.f32 %v6084, %v6102
        %v6124 = vadd.f32 %v6085, %v6102
        %v6125 = vadd.f32 %v6086, %v6102
        %v6126 = vadd.f32 %v6087, %v6102
        %v6127 = vadd.f32 %v6088, %v6102
        %v6128 = vadd.f32 %v6089, %v6102
        %v6129 = vadd.f32 %v6090, %v6102
        %v6130 = vadd.f32 %v6091, %v6102
        %v6131 = vadd.f32 %v6092, %v6102
        %v6132 = vadd.f32 %v6093, %v6102
        %v6133 = vadd.f32 %v6094, %v6102
        %v6134 = vadd.f32 %v6095, %v6102
        %v6135 = vadd.f32 %v6096, %v6102
        %v6136 = vmax.f32 %v6104, 0.0
        %v6137 = vmax.f32 %v6105, 0.0
        %v6138 = vmax.f32 %v6106, 0.0
        %v6139 = vmax.f32 %v6107, 0.0
        %v6140 = vmax.f32 %v6108, 0.0
        %v6141 = vmax.f32 %v6109, 0.0
        %v6142 = vmax.f32 %v6110, 0.0
        %v6143 = vmax.f32 %v6111, 0.0
        %v6144 = vmax.f32 %v6112, 0.0
        %v6145 = vmax.f32 %v6113, 0.0
        %v6146 = vmax.f32 %v6114, 0.0
        %v6147 = vmax.f32 %v6115, 0.0
        %v6148 = vmax.f32 %v6116, 0.0
        %v6149 = vmax.f32 %v6117, 0.0
        %v6150 = vmax.f32 %v6118, 0.0
        %v6151 = vmax.f32 %v6119, 0.0
        %v6152 = vmax.f32 %v6120, 0.0
        %v6153 = vmax.f32 %v6121, 0.0
        %v6154 = vmax.f32 %v6122, 0.0
        %v6155 = vmax.f32 %v6123, 0.0
        %v6156 = vmax.f32 %v6124, 0.0
        %v6157 = vmax.f32 %v6125, 0.0
        %v6158 = vmax.f32 %v6126, 0.0
        %v6159 = vmax.f32 %v6127, 0.0
        %v6160 = vmax.f32 %v6128, 0.0
        %v6161 = vmax.f32 %v6129, 0.0
        %v6162 = vmax.f32 %v6130, 0.0
        %v6163 = vmax.f32 %v6131, 0.0
        %v6164 = vmax.f32 %v6132, 0.0
        %v6165 = vmax.f32 %v6133, 0.0
        %v6166 = vmax.f32 %v6134, 0.0
        %v6167 = vmax.f32 %v6135, 0.0
        %v6168 = vmax.f32 %v6136, %v6138
        %v6169 = vmax.f32 %v6137, %v6139
        %v6170 = vmax.f32 %v6140, %v6142
        %v6171 = vmax.f32 %v6141, %v6143
        %v6172 = vmax.f32 %v6144, %v6146
        %v6173 = vmax.f32 %v6145, %v6147
        %v6174 = vmax.f32 %v6148, %v6150
        %v6175 = vmax.f32 %v6149, %v6151
        %v6176 = vmax.f32 %v6152, %v6154
        %v6177 = vmax.f32 %v6153, %v6155
        %v6178 = vmax.f32 %v6156, %v6158
        %v6179 = vmax.f32 %v6157, %v6159
        %v6180 = vmax.f32 %v6160, %v6162
        %v6181 = vmax.f32 %v6161, %v6163
        %v6182 = vmax.f32 %v6164, %v6166
        %v6183 = vmax.f32 %v6165, %v6167
        %v6200 = vcombine.high %v6168, %v6168
        %v6202 = vunpack.c.l.s4 1983009808
        %v6203 = vunpack.c.0.s8 %v6202
        %v6204 = vlaneseq
        %v6205 = vshrl.u32 %v6204, 7
        %v6206 = vsub.s32 %v6203, %v6205
        %v6207 = vrot.slane %v6168, %v6206
        %v6209 = vunpack.c.l.s4 1983009808
        %v6210 = vunpack.c.0.s8 %v6209
        %v6211 = vlaneseq
        %v6212 = vshrl.u32 %v6211, 7
        %v6213 = vsub.s32 %v6210, %v6212
        %v6214 = vrot.slane %v6200, %v6213
        %v6215 = vcombine.high %v6207, %v6207
        %v6216 = vcombine.high %v6214, %v6214
        %v6217 = vcombine.high %v6169, %v6169
        %v6219 = vunpack.c.l.s4 1983009808
        %v6220 = vunpack.c.0.s8 %v6219
        %v6221 = vlaneseq
        %v6222 = vshrl.u32 %v6221, 7
        %v6223 = vsub.s32 %v6220, %v6222
        %v6224 = vrot.slane %v6169, %v6223
        %v6226 = vunpack.c.l.s4 1983009808
        %v6227 = vunpack.c.0.s8 %v6226
        %v6228 = vlaneseq
        %v6229 = vshrl.u32 %v6228, 7
        %v6230 = vsub.s32 %v6227, %v6229
        %v6231 = vrot.slane %v6217, %v6230
        %v6232 = vcombine.high %v6224, %v6224
        %v6233 = vcombine.high %v6231, %v6231
        %v6234 = vcombine.high %v6170, %v6170
        %v6236 = vunpack.c.l.s4 1983009808
        %v6237 = vunpack.c.0.s8 %v6236
        %v6238 = vlaneseq
        %v6239 = vshrl.u32 %v6238, 7
        %v6240 = vsub.s32 %v6237, %v6239
        %v6241 = vrot.slane %v6170, %v6240
        %v6243 = vunpack.c.l.s4 1983009808
        %v6244 = vunpack.c.0.s8 %v6243
        %v6245 = vlaneseq
        %v6246 = vshrl.u32 %v6245, 7
        %v6247 = vsub.s32 %v6244, %v6246
        %v6248 = vrot.slane %v6234, %v6247
        %v6249 = vcombine.high %v6241, %v6241
        %v6250 = vcombine.high %v6248, %v6248
        %v6251 = vcombine.high %v6171, %v6171
        %v6253 = vunpack.c.l.s4 1983009808
        %v6254 = vunpack.c.0.s8 %v6253
        %v6255 = vlaneseq
        %v6256 = vshrl.u32 %v6255, 7
        %v6257 = vsub.s32 %v6254, %v6256
        %v6258 = vrot.slane %v6171, %v6257
        %v6260 = vunpack.c.l.s4 1983009808
        %v6261 = vunpack.c.0.s8 %v6260
        %v6262 = vlaneseq
        %v6263 = vshrl.u32 %v6262, 7
        %v6264 = vsub.s32 %v6261, %v6263
        %v6265 = vrot.slane %v6251, %v6264
        %v6266 = vcombine.high %v6258, %v6258
        %v6267 = vcombine.high %v6265, %v6265
        %v6268 = vcombine.high %v6172, %v6172
        %v6270 = vunpack.c.l.s4 1983009808
        %v6271 = vunpack.c.0.s8 %v6270
        %v6272 = vlaneseq
        %v6273 = vshrl.u32 %v6272, 7
        %v6274 = vsub.s32 %v6271, %v6273
        %v6275 = vrot.slane %v6172, %v6274
        %v6277 = vunpack.c.l.s4 1983009808
        %v6278 = vunpack.c.0.s8 %v6277
        %v6279 = vlaneseq
        %v6280 = vshrl.u32 %v6279, 7
        %v6281 = vsub.s32 %v6278, %v6280
        %v6282 = vrot.slane %v6268, %v6281
        %v6283 = vcombine.high %v6275, %v6275
        %v6284 = vcombine.high %v6282, %v6282
        %v6285 = vcombine.high %v6173, %v6173
        %v6287 = vunpack.c.l.s4 1983009808
        %v6288 = vunpack.c.0.s8 %v6287
        %v6289 = vlaneseq
        %v6290 = vshrl.u32 %v6289, 7
        %v6291 = vsub.s32 %v6288, %v6290
        %v6292 = vrot.slane %v6173, %v6291
        %v6294 = vunpack.c.l.s4 1983009808
        %v6295 = vunpack.c.0.s8 %v6294
        %v6296 = vlaneseq
        %v6297 = vshrl.u32 %v6296, 7
        %v6298 = vsub.s32 %v6295, %v6297
        %v6299 = vrot.slane %v6285, %v6298
        %v6300 = vcombine.high %v6292, %v6292
        %v6301 = vcombine.high %v6299, %v6299
        %v6302 = vcombine.high %v6174, %v6174
        %v6304 = vunpack.c.l.s4 1983009808
        %v6305 = vunpack.c.0.s8 %v6304
        %v6306 = vlaneseq
        %v6307 = vshrl.u32 %v6306, 7
        %v6308 = vsub.s32 %v6305, %v6307
        %v6309 = vrot.slane %v6174, %v6308
        %v6311 = vunpack.c.l.s4 1983009808
        %v6312 = vunpack.c.0.s8 %v6311
        %v6313 = vlaneseq
        %v6314 = vshrl.u32 %v6313, 7
        %v6315 = vsub.s32 %v6312, %v6314
        %v6316 = vrot.slane %v6302, %v6315
        %v6317 = vcombine.high %v6309, %v6309
        %v6318 = vcombine.high %v6316, %v6316
        %v6319 = vcombine.high %v6175, %v6175
        %v6321 = vunpack.c.l.s4 1983009808
        %v6322 = vunpack.c.0.s8 %v6321
        %v6323 = vlaneseq
        %v6324 = vshrl.u32 %v6323, 7
        %v6325 = vsub.s32 %v6322, %v6324
        %v6326 = vrot.slane %v6175, %v6325
        %v6328 = vunpack.c.l.s4 1983009808
        %v6329 = vunpack.c.0.s8 %v6328
        %v6330 = vlaneseq
        %v6331 = vshrl.u32 %v6330, 7
        %v6332 = vsub.s32 %v6329, %v6331
        %v6333 = vrot.slane %v6319, %v6332
        %v6334 = vcombine.high %v6326, %v6326
        %v6335 = vcombine.high %v6333, %v6333
        %v6336 = vcombine.high %v6176, %v6176
        %v6338 = vunpack.c.l.s4 1983009808
        %v6339 = vunpack.c.0.s8 %v6338
        %v6340 = vlaneseq
        %v6341 = vshrl.u32 %v6340, 7
        %v6342 = vsub.s32 %v6339, %v6341
        %v6343 = vrot.slane %v6176, %v6342
        %v6345 = vunpack.c.l.s4 1983009808
        %v6346 = vunpack.c.0.s8 %v6345
        %v6347 = vlaneseq
        %v6348 = vshrl.u32 %v6347, 7
        %v6349 = vsub.s32 %v6346, %v6348
        %v6350 = vrot.slane %v6336, %v6349
        %v6351 = vcombine.high %v6343, %v6343
        %v6352 = vcombine.high %v6350, %v6350
        %v6353 = vcombine.high %v6177, %v6177
        %v6355 = vunpack.c.l.s4 1983009808
        %v6356 = vunpack.c.0.s8 %v6355
        %v6357 = vlaneseq
        %v6358 = vshrl.u32 %v6357, 7
        %v6359 = vsub.s32 %v6356, %v6358
        %v6360 = vrot.slane %v6177, %v6359
        %v6362 = vunpack.c.l.s4 1983009808
        %v6363 = vunpack.c.0.s8 %v6362
        %v6364 = vlaneseq
        %v6365 = vshrl.u32 %v6364, 7
        %v6366 = vsub.s32 %v6363, %v6365
        %v6367 = vrot.slane %v6353, %v6366
        %v6368 = vcombine.high %v6360, %v6360
        %v6369 = vcombine.high %v6367, %v6367
        %v6370 = vcombine.high %v6178, %v6178
        %v6372 = vunpack.c.l.s4 1983009808
        %v6373 = vunpack.c.0.s8 %v6372
        %v6374 = vlaneseq
        %v6375 = vshrl.u32 %v6374, 7
        %v6376 = vsub.s32 %v6373, %v6375
        %v6377 = vrot.slane %v6178, %v6376
        %v6379 = vunpack.c.l.s4 1983009808
        %v6380 = vunpack.c.0.s8 %v6379
        %v6381 = vlaneseq
        %v6382 = vshrl.u32 %v6381, 7
        %v6383 = vsub.s32 %v6380, %v6382
        %v6384 = vrot.slane %v6370, %v6383
        %v6385 = vcombine.high %v6377, %v6377
        %v6386 = vcombine.high %v6384, %v6384
        %v6387 = vcombine.high %v6179, %v6179
        %v6389 = vunpack.c.l.s4 1983009808
        %v6390 = vunpack.c.0.s8 %v6389
        %v6391 = vlaneseq
        %v6392 = vshrl.u32 %v6391, 7
        %v6393 = vsub.s32 %v6390, %v6392
        %v6394 = vrot.slane %v6179, %v6393
        %v6396 = vunpack.c.l.s4 1983009808
        %v6397 = vunpack.c.0.s8 %v6396
        %v6398 = vlaneseq
        %v6399 = vshrl.u32 %v6398, 7
        %v6400 = vsub.s32 %v6397, %v6399
        %v6401 = vrot.slane %v6387, %v6400
        %v6402 = vcombine.high %v6394, %v6394
        %v6403 = vcombine.high %v6401, %v6401
        %v6404 = vcombine.high %v6180, %v6180
        %v6406 = vunpack.c.l.s4 1983009808
        %v6407 = vunpack.c.0.s8 %v6406
        %v6408 = vlaneseq
        %v6409 = vshrl.u32 %v6408, 7
        %v6410 = vsub.s32 %v6407, %v6409
        %v6411 = vrot.slane %v6180, %v6410
        %v6413 = vunpack.c.l.s4 1983009808
        %v6414 = vunpack.c.0.s8 %v6413
        %v6415 = vlaneseq
        %v6416 = vshrl.u32 %v6415, 7
        %v6417 = vsub.s32 %v6414, %v6416
        %v6418 = vrot.slane %v6404, %v6417
        %v6419 = vcombine.high %v6411, %v6411
        %v6420 = vcombine.high %v6418, %v6418
        %v6421 = vcombine.high %v6181, %v6181
        %v6423 = vunpack.c.l.s4 1983009808
        %v6424 = vunpack.c.0.s8 %v6423
        %v6425 = vlaneseq
        %v6426 = vshrl.u32 %v6425, 7
        %v6427 = vsub.s32 %v6424, %v6426
        %v6428 = vrot.slane %v6181, %v6427
        %v6430 = vunpack.c.l.s4 1983009808
        %v6431 = vunpack.c.0.s8 %v6430
        %v6432 = vlaneseq
        %v6433 = vshrl.u32 %v6432, 7
        %v6434 = vsub.s32 %v6431, %v6433
        %v6435 = vrot.slane %v6421, %v6434
        %v6436 = vcombine.high %v6428, %v6428
        %v6437 = vcombine.high %v6435, %v6435
        %v6438 = vcombine.high %v6182, %v6182
        %v6440 = vunpack.c.l.s4 1983009808
        %v6441 = vunpack.c.0.s8 %v6440
        %v6442 = vlaneseq
        %v6443 = vshrl.u32 %v6442, 7
        %v6444 = vsub.s32 %v6441, %v6443
        %v6445 = vrot.slane %v6182, %v6444
        %v6447 = vunpack.c.l.s4 1983009808
        %v6448 = vunpack.c.0.s8 %v6447
        %v6449 = vlaneseq
        %v6450 = vshrl.u32 %v6449, 7
        %v6451 = vsub.s32 %v6448, %v6450
        %v6452 = vrot.slane %v6438, %v6451
        %v6453 = vcombine.high %v6445, %v6445
        %v6454 = vcombine.high %v6452, %v6452
        %v6455 = vcombine.high %v6183, %v6183
        %v6457 = vunpack.c.l.s4 1983009808
        %v6458 = vunpack.c.0.s8 %v6457
        %v6459 = vlaneseq
        %v6460 = vshrl.u32 %v6459, 7
        %v6461 = vsub.s32 %v6458, %v6460
        %v6462 = vrot.slane %v6183, %v6461
        %v6464 = vunpack.c.l.s4 1983009808
        %v6465 = vunpack.c.0.s8 %v6464
        %v6466 = vlaneseq
        %v6467 = vshrl.u32 %v6466, 7
        %v6468 = vsub.s32 %v6465, %v6467
        %v6469 = vrot.slane %v6455, %v6468
        %v6470 = vcombine.high %v6462, %v6462
        %v6471 = vcombine.high %v6469, %v6469
        %v6536 = vrot.slane %v6207, 7
        %v6537 = vrot.slane %v6536, 2
        %v6538 = vrot.slane %v6215, 7
        %v6539 = vrot.slane %v6538, 2
        %v6540 = vrot.slane %v6214, 7
        %v6541 = vrot.slane %v6540, 2
        %v6542 = vrot.slane %v6216, 7
        %v6543 = vrot.slane %v6542, 2
        %v6544 = vrot.slane %v6224, 7
        %v6545 = vrot.slane %v6544, 2
        %v6546 = vrot.slane %v6232, 7
        %v6547 = vrot.slane %v6546, 2
        %v6548 = vrot.slane %v6231, 7
        %v6549 = vrot.slane %v6548, 2
        %v6550 = vrot.slane %v6233, 7
        %v6551 = vrot.slane %v6550, 2
        %v6552 = vrot.slane %v6241, 7
        %v6553 = vrot.slane %v6552, 2
        %v6554 = vrot.slane %v6249, 7
        %v6555 = vrot.slane %v6554, 2
        %v6556 = vrot.slane %v6248, 7
        %v6557 = vrot.slane %v6556, 2
        %v6558 = vrot.slane %v6250, 7
        %v6559 = vrot.slane %v6558, 2
        %v6560 = vrot.slane %v6258, 7
        %v6561 = vrot.slane %v6560, 2
        %v6562 = vrot.slane %v6266, 7
        %v6563 = vrot.slane %v6562, 2
        %v6564 = vrot.slane %v6265, 7
        %v6565 = vrot.slane %v6564, 2
        %v6566 = vrot.slane %v6267, 7
        %v6567 = vrot.slane %v6566, 2
        %v6568 = vrot.slane %v6275, 7
        %v6569 = vrot.slane %v6568, 2
        %v6570 = vrot.slane %v6283, 7
        %v6571 = vrot.slane %v6570, 2
        %v6572 = vrot.slane %v6282, 7
        %v6573 = vrot.slane %v6572, 2
        %v6574 = vrot.slane %v6284, 7
        %v6575 = vrot.slane %v6574, 2
        %v6576 = vrot.slane %v6292, 7
        %v6577 = vrot.slane %v6576, 2
        %v6578 = vrot.slane %v6300, 7
        %v6579 = vrot.slane %v6578, 2
        %v6580 = vrot.slane %v6299, 7
        %v6581 = vrot.slane %v6580, 2
        %v6582 = vrot.slane %v6301, 7
        %v6583 = vrot.slane %v6582, 2
        %v6584 = vrot.slane %v6309, 7
        %v6585 = vrot.slane %v6584, 2
        %v6586 = vrot.slane %v6317, 7
        %v6587 = vrot.slane %v6586, 2
        %v6588 = vrot.slane %v6316, 7
        %v6589 = vrot.slane %v6588, 2
        %v6590 = vrot.slane %v6318, 7
        %v6591 = vrot.slane %v6590, 2
        %v6592 = vrot.slane %v6326, 7
        %v6593 = vrot.slane %v6592, 2
        %v6594 = vrot.slane %v6334, 7
        %v6595 = vrot.slane %v6594, 2
        %v6596 = vrot.slane %v6333, 7
        %v6597 = vrot.slane %v6596, 2
        %v6598 = vrot.slane %v6335, 7
        %v6599 = vrot.slane %v6598, 2
        %v6600 = vrot.slane %v6343, 7
        %v6601 = vrot.slane %v6600, 2
        %v6602 = vrot.slane %v6351, 7
        %v6603 = vrot.slane %v6602, 2
        %v6604 = vrot.slane %v6350, 7
        %v6605 = vrot.slane %v6604, 2
        %v6606 = vrot.slane %v6352, 7
        %v6607 = vrot.slane %v6606, 2
        %v6608 = vrot.slane %v6360, 7
        %v6609 = vrot.slane %v6608, 2
        %v6610 = vrot.slane %v6368, 7
        %v6611 = vrot.slane %v6610, 2
        %v6612 = vrot.slane %v6367, 7
        %v6613 = vrot.slane %v6612, 2
        %v6614 = vrot.slane %v6369, 7
        %v6615 = vrot.slane %v6614, 2
        %v6616 = vrot.slane %v6377, 7
        %v6617 = vrot.slane %v6616, 2
        %v6618 = vrot.slane %v6385, 7
        %v6619 = vrot.slane %v6618, 2
        %v6620 = vrot.slane %v6384, 7
        %v6621 = vrot.slane %v6620, 2
        %v6622 = vrot.slane %v6386, 7
        %v6623 = vrot.slane %v6622, 2
        %v6624 = vrot.slane %v6394, 7
        %v6625 = vrot.slane %v6624, 2
        %v6626 = vrot.slane %v6402, 7
        %v6627 = vrot.slane %v6626, 2
        %v6628 = vrot.slane %v6401, 7
        %v6629 = vrot.slane %v6628, 2
        %v6630 = vrot.slane %v6403, 7
        %v6631 = vrot.slane %v6630, 2
        %v6632 = vrot.slane %v6411, 7
        %v6633 = vrot.slane %v6632, 2
        %v6634 = vrot.slane %v6419, 7
        %v6635 = vrot.slane %v6634, 2
        %v6636 = vrot.slane %v6418, 7
        %v6637 = vrot.slane %v6636, 2
        %v6638 = vrot.slane %v6420, 7
        %v6639 = vrot.slane %v6638, 2
        %v6640 = vrot.slane %v6428, 7
        %v6641 = vrot.slane %v6640, 2
        %v6642 = vrot.slane %v6436, 7
        %v6643 = vrot.slane %v6642, 2
        %v6644 = vrot.slane %v6435, 7
        %v6645 = vrot.slane %v6644, 2
        %v6646 = vrot.slane %v6437, 7
        %v6647 = vrot.slane %v6646, 2
        %v6648 = vrot.slane %v6445, 7
        %v6649 = vrot.slane %v6648, 2
        %v6650 = vrot.slane %v6453, 7
        %v6651 = vrot.slane %v6650, 2
        %v6652 = vrot.slane %v6452, 7
        %v6653 = vrot.slane %v6652, 2
        %v6654 = vrot.slane %v6454, 7
        %v6655 = vrot.slane %v6654, 2
        %v6656 = vrot.slane %v6462, 7
        %v6657 = vrot.slane %v6656, 2
        %v6658 = vrot.slane %v6470, 7
        %v6659 = vrot.slane %v6658, 2
        %v6660 = vrot.slane %v6469, 7
        %v6661 = vrot.slane %v6660, 2
        %v6662 = vrot.slane %v6471, 7
        %v6663 = vrot.slane %v6662, 2
        %v6728 = vmax.f32 %v6207, %v6537
        %v6729 = vmax.f32 %v6215, %v6539
        %v6730 = vmax.f32 %v6214, %v6541
        %v6731 = vmax.f32 %v6216, %v6543
        %v6732 = vmax.f32 %v6224, %v6545
        %v6733 = vmax.f32 %v6232, %v6547
        %v6734 = vmax.f32 %v6231, %v6549
        %v6735 = vmax.f32 %v6233, %v6551
        %v6736 = vmax.f32 %v6241, %v6553
        %v6737 = vmax.f32 %v6249, %v6555
        %v6738 = vmax.f32 %v6248, %v6557
        %v6739 = vmax.f32 %v6250, %v6559
        %v6740 = vmax.f32 %v6258, %v6561
        %v6741 = vmax.f32 %v6266, %v6563
        %v6742 = vmax.f32 %v6265, %v6565
        %v6743 = vmax.f32 %v6267, %v6567
        %v6744 = vmax.f32 %v6275, %v6569
        %v6745 = vmax.f32 %v6283, %v6571
        %v6746 = vmax.f32 %v6282, %v6573
        %v6747 = vmax.f32 %v6284, %v6575
        %v6748 = vmax.f32 %v6292, %v6577
        %v6749 = vmax.f32 %v6300, %v6579
        %v6750 = vmax.f32 %v6299, %v6581
        %v6751 = vmax.f32 %v6301, %v6583
        %v6752 = vmax.f32 %v6309, %v6585
        %v6753 = vmax.f32 %v6317, %v6587
        %v6754 = vmax.f32 %v6316, %v6589
        %v6755 = vmax.f32 %v6318, %v6591
        %v6756 = vmax.f32 %v6326, %v6593
        %v6757 = vmax.f32 %v6334, %v6595
        %v6758 = vmax.f32 %v6333, %v6597
        %v6759 = vmax.f32 %v6335, %v6599
        %v6760 = vmax.f32 %v6343, %v6601
        %v6761 = vmax.f32 %v6351, %v6603
        %v6762 = vmax.f32 %v6350, %v6605
        %v6763 = vmax.f32 %v6352, %v6607
        %v6764 = vmax.f32 %v6360, %v6609
        %v6765 = vmax.f32 %v6368, %v6611
        %v6766 = vmax.f32 %v6367, %v6613
        %v6767 = vmax.f32 %v6369, %v6615
        %v6768 = vmax.f32 %v6377, %v6617
        %v6769 = vmax.f32 %v6385, %v6619
        %v6770 = vmax.f32 %v6384, %v6621
        %v6771 = vmax.f32 %v6386, %v6623
        %v6772 = vmax.f32 %v6394, %v6625
        %v6773 = vmax.f32 %v6402, %v6627
        %v6774 = vmax.f32 %v6401, %v6629
        %v6775 = vmax.f32 %v6403, %v6631
        %v6776 = vmax.f32 %v6411, %v6633
        %v6777 = vmax.f32 %v6419, %v6635
        %v6778 = vmax.f32 %v6418, %v6637
        %v6779 = vmax.f32 %v6420, %v6639
        %v6780 = vmax.f32 %v6428, %v6641
        %v6781 = vmax.f32 %v6436, %v6643
        %v6782 = vmax.f32 %v6435, %v6645
        %v6783 = vmax.f32 %v6437, %v6647
        %v6784 = vmax.f32 %v6445, %v6649
        %v6785 = vmax.f32 %v6453, %v6651
        %v6786 = vmax.f32 %v6452, %v6653
        %v6787 = vmax.f32 %v6454, %v6655
        %v6788 = vmax.f32 %v6462, %v6657
        %v6789 = vmax.f32 %v6470, %v6659
        %v6790 = vmax.f32 %v6469, %v6661
        %v6791 = vmax.f32 %v6471, %v6663
        %6792 = vst [vmem:[#allocation4] sm:$0xff] 0.0
        %6793 = vst [vmem:[#allocation4 + $0x8] sm:$0x3] 0.0
        %6794 = vst [vmem:[#allocation4 + $0x10] sm:$0xff] 0.0
        %6795 = vst [vmem:[#allocation4 + $0x18] sm:$0x3] 0.0
        %6796 = vst [vmem:[#allocation4 + $0x20] sm:$0xff] 0.0
        %6797 = vst [vmem:[#allocation4 + $0x28] sm:$0x3] 0.0
        %6798 = vst [vmem:[#allocation4 + $0x30] sm:$0xff] 0.0
        %6799 = vst [vmem:[#allocation4 + $0x38] sm:$0x3] 0.0
        %6800 = vst [vmem:[#allocation4 + $0x40] sm:$0xff] 0.0
        %6801 = vst [vmem:[#allocation4 + $0x48] sm:$0x3] 0.0
        %6802 = vst [vmem:[#allocation4 + $0x50] sm:$0xff] 0.0
        %6803 = vst [vmem:[#allocation4 + $0x58] sm:$0x3] 0.0
        %6804 = vst [vmem:[#allocation4 + $0x60] sm:$0xff] 0.0
        %6805 = vst [vmem:[#allocation4 + $0x68] sm:$0x3] 0.0
        %6806 = vst [vmem:[#allocation4 + $0x70] sm:$0xff] 0.0
        %6807 = vst [vmem:[#allocation4 + $0x78] sm:$0x3] 0.0
        %6808 = vst [vmem:[#allocation4 + $0x80] sm:$0xff] 0.0
        %6809 = vst [vmem:[#allocation4 + $0x88] sm:$0x3] 0.0
        %6810 = vst [vmem:[#allocation4 + $0x90] sm:$0xff] 0.0
        %6811 = vst [vmem:[#allocation4 + $0x98] sm:$0x3] 0.0
        %v6876 = vlaneseq
        %v6877 = vshrl.u32 %v6876, 7
        %v6878 = vsub.s32 0, %v6877
        %v6879 = vrot.slane %v6728, %v6878
        %v6880 = vlaneseq
        %v6881 = vshrl.u32 %v6880, 7
        %v6882 = vsub.s32 0, %v6881
        %v6883 = vrot.slane %v6729, %v6882
        %v6884 = vlaneseq
        %v6885 = vshrl.u32 %v6884, 7
        %v6886 = vsub.s32 0, %v6885
        %v6887 = vrot.slane %v6730, %v6886
        %v6888 = vlaneseq
        %v6889 = vshrl.u32 %v6888, 7
        %v6890 = vsub.s32 0, %v6889
        %v6891 = vrot.slane %v6731, %v6890
        %v6892 = vlaneseq
        %v6893 = vshrl.u32 %v6892, 7
        %v6894 = vsub.s32 0, %v6893
        %v6895 = vrot.slane %v6732, %v6894
        %v6896 = vlaneseq
        %v6897 = vshrl.u32 %v6896, 7
        %v6898 = vsub.s32 0, %v6897
        %v6899 = vrot.slane %v6733, %v6898
        %v6900 = vlaneseq
        %v6901 = vshrl.u32 %v6900, 7
        %v6902 = vsub.s32 0, %v6901
        %v6903 = vrot.slane %v6734, %v6902
        %v6904 = vlaneseq
        %v6905 = vshrl.u32 %v6904, 7
        %v6906 = vsub.s32 0, %v6905
        %v6907 = vrot.slane %v6735, %v6906
        %v6908 = vlaneseq
        %v6909 = vshrl.u32 %v6908, 7
        %v6910 = vsub.s32 0, %v6909
        %v6911 = vrot.slane %v6736, %v6910
        %v6912 = vlaneseq
        %v6913 = vshrl.u32 %v6912, 7
        %v6914 = vsub.s32 0, %v6913
        %v6915 = vrot.slane %v6737, %v6914
        %v6916 = vlaneseq
        %v6917 = vshrl.u32 %v6916, 7
        %v6918 = vsub.s32 0, %v6917
        %v6919 = vrot.slane %v6738, %v6918
        %v6920 = vlaneseq
        %v6921 = vshrl.u32 %v6920, 7
        %v6922 = vsub.s32 0, %v6921
        %v6923 = vrot.slane %v6739, %v6922
        %v6924 = vlaneseq
        %v6925 = vshrl.u32 %v6924, 7
        %v6926 = vsub.s32 0, %v6925
        %v6927 = vrot.slane %v6740, %v6926
        %v6928 = vlaneseq
        %v6929 = vshrl.u32 %v6928, 7
        %v6930 = vsub.s32 0, %v6929
        %v6931 = vrot.slane %v6741, %v6930
        %v6932 = vlaneseq
        %v6933 = vshrl.u32 %v6932, 7
        %v6934 = vsub.s32 0, %v6933
        %v6935 = vrot.slane %v6742, %v6934
        %v6936 = vlaneseq
        %v6937 = vshrl.u32 %v6936, 7
        %v6938 = vsub.s32 0, %v6937
        %v6939 = vrot.slane %v6743, %v6938
        %v6940 = vlaneseq
        %v6941 = vshrl.u32 %v6940, 7
        %v6942 = vsub.s32 0, %v6941
        %v6943 = vrot.slane %v6744, %v6942
        %v6944 = vlaneseq
        %v6945 = vshrl.u32 %v6944, 7
        %v6946 = vsub.s32 0, %v6945
        %v6947 = vrot.slane %v6745, %v6946
        %v6948 = vlaneseq
        %v6949 = vshrl.u32 %v6948, 7
        %v6950 = vsub.s32 0, %v6949
        %v6951 = vrot.slane %v6746, %v6950
        %v6952 = vlaneseq
        %v6953 = vshrl.u32 %v6952, 7
        %v6954 = vsub.s32 0, %v6953
        %v6955 = vrot.slane %v6747, %v6954
        %v6956 = vlaneseq
        %v6957 = vshrl.u32 %v6956, 7
        %v6958 = vsub.s32 0, %v6957
        %v6959 = vrot.slane %v6748, %v6958
        %v6960 = vlaneseq
        %v6961 = vshrl.u32 %v6960, 7
        %v6962 = vsub.s32 0, %v6961
        %v6963 = vrot.slane %v6749, %v6962
        %v6964 = vlaneseq
        %v6965 = vshrl.u32 %v6964, 7
        %v6966 = vsub.s32 0, %v6965
        %v6967 = vrot.slane %v6750, %v6966
        %v6968 = vlaneseq
        %v6969 = vshrl.u32 %v6968, 7
        %v6970 = vsub.s32 0, %v6969
        %v6971 = vrot.slane %v6751, %v6970
        %v6972 = vlaneseq
        %v6973 = vshrl.u32 %v6972, 7
        %v6974 = vsub.s32 0, %v6973
        %v6975 = vrot.slane %v6752, %v6974
        %v6976 = vlaneseq
        %v6977 = vshrl.u32 %v6976, 7
        %v6978 = vsub.s32 0, %v6977
        %v6979 = vrot.slane %v6753, %v6978
        %v6980 = vlaneseq
        %v6981 = vshrl.u32 %v6980, 7
        %v6982 = vsub.s32 0, %v6981
        %v6983 = vrot.slane %v6754, %v6982
        %v6984 = vlaneseq
        %v6985 = vshrl.u32 %v6984, 7
        %v6986 = vsub.s32 0, %v6985
        %v6987 = vrot.slane %v6755, %v6986
        %v6988 = vlaneseq
        %v6989 = vshrl.u32 %v6988, 7
        %v6990 = vsub.s32 0, %v6989
        %v6991 = vrot.slane %v6756, %v6990
        %v6992 = vlaneseq
        %v6993 = vshrl.u32 %v6992, 7
        %v6994 = vsub.s32 0, %v6993
        %v6995 = vrot.slane %v6757, %v6994
        %v6996 = vlaneseq
        %v6997 = vshrl.u32 %v6996, 7
        %v6998 = vsub.s32 0, %v6997
        %v6999 = vrot.slane %v6758, %v6998
        %v7000 = vlaneseq
        %v7001 = vshrl.u32 %v7000, 7
        %v7002 = vsub.s32 0, %v7001
        %v7003 = vrot.slane %v6759, %v7002
        %v7004 = vlaneseq
        %v7005 = vshrl.u32 %v7004, 7
        %v7006 = vsub.s32 0, %v7005
        %v7007 = vrot.slane %v6760, %v7006
        %v7008 = vlaneseq
        %v7009 = vshrl.u32 %v7008, 7
        %v7010 = vsub.s32 0, %v7009
        %v7011 = vrot.slane %v6761, %v7010
        %v7012 = vlaneseq
        %v7013 = vshrl.u32 %v7012, 7
        %v7014 = vsub.s32 0, %v7013
        %v7015 = vrot.slane %v6762, %v7014
        %v7016 = vlaneseq
        %v7017 = vshrl.u32 %v7016, 7
        %v7018 = vsub.s32 0, %v7017
        %v7019 = vrot.slane %v6763, %v7018
        %v7020 = vlaneseq
        %v7021 = vshrl.u32 %v7020, 7
        %v7022 = vsub.s32 0, %v7021
        %v7023 = vrot.slane %v6764, %v7022
        %v7024 = vlaneseq
        %v7025 = vshrl.u32 %v7024, 7
        %v7026 = vsub.s32 0, %v7025
        %v7027 = vrot.slane %v6765, %v7026
        %v7028 = vlaneseq
        %v7029 = vshrl.u32 %v7028, 7
        %v7030 = vsub.s32 0, %v7029
        %v7031 = vrot.slane %v6766, %v7030
        %v7032 = vlaneseq
        %v7033 = vshrl.u32 %v7032, 7
        %v7034 = vsub.s32 0, %v7033
        %v7035 = vrot.slane %v6767, %v7034
        %v7036 = vlaneseq
        %v7037 = vshrl.u32 %v7036, 7
        %v7038 = vsub.s32 0, %v7037
        %v7039 = vrot.slane %v6768, %v7038
        %v7040 = vlaneseq
        %v7041 = vshrl.u32 %v7040, 7
        %v7042 = vsub.s32 0, %v7041
        %v7043 = vrot.slane %v6769, %v7042
        %v7044 = vlaneseq
        %v7045 = vshrl.u32 %v7044, 7
        %v7046 = vsub.s32 0, %v7045
        %v7047 = vrot.slane %v6770, %v7046
        %v7048 = vlaneseq
        %v7049 = vshrl.u32 %v7048, 7
        %v7050 = vsub.s32 0, %v7049
        %v7051 = vrot.slane %v6771, %v7050
        %v7052 = vlaneseq
        %v7053 = vshrl.u32 %v7052, 7
        %v7054 = vsub.s32 0, %v7053
        %v7055 = vrot.slane %v6772, %v7054
        %v7056 = vlaneseq
        %v7057 = vshrl.u32 %v7056, 7
        %v7058 = vsub.s32 0, %v7057
        %v7059 = vrot.slane %v6773, %v7058
        %v7060 = vlaneseq
        %v7061 = vshrl.u32 %v7060, 7
        %v7062 = vsub.s32 0, %v7061
        %v7063 = vrot.slane %v6774, %v7062
        %v7064 = vlaneseq
        %v7065 = vshrl.u32 %v7064, 7
        %v7066 = vsub.s32 0, %v7065
        %v7067 = vrot.slane %v6775, %v7066
        %v7068 = vlaneseq
        %v7069 = vshrl.u32 %v7068, 7
        %v7070 = vsub.s32 0, %v7069
        %v7071 = vrot.slane %v6776, %v7070
        %v7072 = vlaneseq
        %v7073 = vshrl.u32 %v7072, 7
        %v7074 = vsub.s32 0, %v7073
        %v7075 = vrot.slane %v6777, %v7074
        %v7076 = vlaneseq
        %v7077 = vshrl.u32 %v7076, 7
        %v7078 = vsub.s32 0, %v7077
        %v7079 = vrot.slane %v6778, %v7078
        %v7080 = vlaneseq
        %v7081 = vshrl.u32 %v7080, 7
        %v7082 = vsub.s32 0, %v7081
        %v7083 = vrot.slane %v6779, %v7082
        %v7084 = vlaneseq
        %v7085 = vshrl.u32 %v7084, 7
        %v7086 = vsub.s32 0, %v7085
        %v7087 = vrot.slane %v6780, %v7086
        %v7088 = vlaneseq
        %v7089 = vshrl.u32 %v7088, 7
        %v7090 = vsub.s32 0, %v7089
        %v7091 = vrot.slane %v6781, %v7090
        %v7092 = vlaneseq
        %v7093 = vshrl.u32 %v7092, 7
        %v7094 = vsub.s32 0, %v7093
        %v7095 = vrot.slane %v6782, %v7094
        %v7096 = vlaneseq
        %v7097 = vshrl.u32 %v7096, 7
        %v7098 = vsub.s32 0, %v7097
        %v7099 = vrot.slane %v6783, %v7098
        %v7100 = vlaneseq
        %v7101 = vshrl.u32 %v7100, 7
        %v7102 = vsub.s32 0, %v7101
        %v7103 = vrot.slane %v6784, %v7102
        %v7104 = vlaneseq
        %v7105 = vshrl.u32 %v7104, 7
        %v7106 = vsub.s32 0, %v7105
        %v7107 = vrot.slane %v6785, %v7106
        %v7108 = vlaneseq
        %v7109 = vshrl.u32 %v7108, 7
        %v7110 = vsub.s32 0, %v7109
        %v7111 = vrot.slane %v6786, %v7110
        %v7112 = vlaneseq
        %v7113 = vshrl.u32 %v7112, 7
        %v7114 = vsub.s32 0, %v7113
        %v7115 = vrot.slane %v6787, %v7114
        %v7116 = vlaneseq
        %v7117 = vshrl.u32 %v7116, 7
        %v7118 = vsub.s32 0, %v7117
        %v7119 = vrot.slane %v6788, %v7118
        %v7120 = vlaneseq
        %v7121 = vshrl.u32 %v7120, 7
        %v7122 = vsub.s32 0, %v7121
        %v7123 = vrot.slane %v6789, %v7122
        %v7124 = vlaneseq
        %v7125 = vshrl.u32 %v7124, 7
        %v7126 = vsub.s32 0, %v7125
        %v7127 = vrot.slane %v6790, %v7126
        %v7128 = vlaneseq
        %v7129 = vshrl.u32 %v7128, 7
        %v7130 = vsub.s32 0, %v7129
        %v7131 = vrot.slane %v6791, %v7130
        %vm7132 = vcmask 1041409
        %v7133 = vsel %vm7132, %v6883, %v6879
        %vm7134 = vcmask 1042434
        %v7135 = vsel %vm7134, %v6887, %v7133
        %vm7136 = vcmask 1043459
        %v7137 = vsel %vm7136, %v6891, %v7135
        %vm7138 = vcmask 1044484
        %v7139 = vsel %vm7138, %v6895, %v7137
        %vm7140 = vcmask 1045509
        %v7141 = vsel %vm7140, %v6899, %v7139
        %vm7142 = vcmask 1046534
        %v7143 = vsel %vm7142, %v6903, %v7141
        %vm7144 = vcmask 1047559
        %v7145 = vsel %vm7144, %v6907, %v7143
        %v7146 = vsel %vm7132, %v6915, %v6911
        %v7147 = vsel %vm7134, %v6919, %v7146
        %v7148 = vsel %vm7136, %v6923, %v7147
        %v7149 = vsel %vm7138, %v6927, %v7148
        %v7150 = vsel %vm7140, %v6931, %v7149
        %v7151 = vsel %vm7142, %v6935, %v7150
        %v7152 = vsel %vm7144, %v6939, %v7151
        %v7153 = vsel %vm7132, %v6947, %v6943
        %v7154 = vsel %vm7134, %v6951, %v7153
        %v7155 = vsel %vm7136, %v6955, %v7154
        %v7156 = vsel %vm7138, %v6959, %v7155
        %v7157 = vsel %vm7140, %v6963, %v7156
        %v7158 = vsel %vm7142, %v6967, %v7157
        %v7159 = vsel %vm7144, %v6971, %v7158
        %v7160 = vsel %vm7132, %v6979, %v6975
        %v7161 = vsel %vm7134, %v6983, %v7160
        %v7162 = vsel %vm7136, %v6987, %v7161
        %v7163 = vsel %vm7138, %v6991, %v7162
        %v7164 = vsel %vm7140, %v6995, %v7163
        %v7165 = vsel %vm7142, %v6999, %v7164
        %v7166 = vsel %vm7144, %v7003, %v7165
        %v7167 = vsel %vm7132, %v7011, %v7007
        %v7168 = vsel %vm7134, %v7015, %v7167
        %v7169 = vsel %vm7136, %v7019, %v7168
        %v7170 = vsel %vm7138, %v7023, %v7169
        %v7171 = vsel %vm7140, %v7027, %v7170
        %v7172 = vsel %vm7142, %v7031, %v7171
        %v7173 = vsel %vm7144, %v7035, %v7172
        %v7174 = vsel %vm7132, %v7043, %v7039
        %v7175 = vsel %vm7134, %v7047, %v7174
        %v7176 = vsel %vm7136, %v7051, %v7175
        %v7177 = vsel %vm7138, %v7055, %v7176
        %v7178 = vsel %vm7140, %v7059, %v7177
        %v7179 = vsel %vm7142, %v7063, %v7178
        %v7180 = vsel %vm7144, %v7067, %v7179
        %v7181 = vsel %vm7132, %v7075, %v7071
        %v7182 = vsel %vm7134, %v7079, %v7181
        %v7183 = vsel %vm7136, %v7083, %v7182
        %v7184 = vsel %vm7138, %v7087, %v7183
        %v7185 = vsel %vm7140, %v7091, %v7184
        %v7186 = vsel %vm7142, %v7095, %v7185
        %v7187 = vsel %vm7144, %v7099, %v7186
        %v7188 = vsel %vm7132, %v7107, %v7103
        %v7189 = vsel %vm7134, %v7111, %v7188
        %v7190 = vsel %vm7136, %v7115, %v7189
        %v7191 = vsel %vm7138, %v7119, %v7190
        %v7192 = vsel %vm7140, %v7123, %v7191
        %v7193 = vsel %vm7142, %v7127, %v7192
        %v7194 = vsel %vm7144, %v7131, %v7193
        %s7203 = scalar_lea.vmem [#allocation4], 16
        %7204 = vst [vmem:[%s7203 + $0x1] sm:$0xff] %v7145
        %7205 = vst [vmem:[%s7203 + $0x11] sm:$0xff] %v7152
        %7206 = vst [vmem:[%s7203 + $0x21] sm:$0xff] %v7159
        %7207 = vst [vmem:[%s7203 + $0x31] sm:$0xff] %v7166
        %7208 = vst [vmem:[%s7203 + $0x41] sm:$0xff] %v7173
        %7209 = vst [vmem:[%s7203 + $0x51] sm:$0xff] %v7180
        %7210 = vst [vmem:[%s7203 + $0x61] sm:$0xff] %v7187
        %7211 = vst [vmem:[%s7203 + $0x71] sm:$0xff] %v7194
        %v7212 = vld [vmem:[#allocation4] sm:$0xff]
        %v7213 = vld [vmem:[#allocation4 + $0x10] sm:$0xff]
        %v7214 = vld [vmem:[#allocation4 + $0x20] sm:$0xff]
        %v7215 = vld [vmem:[#allocation4 + $0x30] sm:$0xff]
        %v7216 = vld [vmem:[#allocation4 + $0x40] sm:$0xff]
        %v7217 = vld [vmem:[#allocation4 + $0x50] sm:$0xff]
        %v7218 = vld [vmem:[#allocation4 + $0x60] sm:$0xff]
        %v7219 = vld [vmem:[#allocation4 + $0x70] sm:$0xff]
        %v7220 = vld [vmem:[#allocation4 + $0x1] sm:$0xff]
        %v7221 = vld [vmem:[#allocation4 + $0x11] sm:$0xff]
        %v7222 = vld [vmem:[#allocation4 + $0x21] sm:$0xff]
        %v7223 = vld [vmem:[#allocation4 + $0x31] sm:$0xff]
        %v7224 = vld [vmem:[#allocation4 + $0x41] sm:$0xff]
        %v7225 = vld [vmem:[#allocation4 + $0x51] sm:$0xff]
        %v7226 = vld [vmem:[#allocation4 + $0x61] sm:$0xff]
        %v7227 = vld [vmem:[#allocation4 + $0x71] sm:$0xff]
        %v7228 = vld [vmem:[#allocation4 + $0x2] sm:$0xff]
        %v7229 = vld [vmem:[#allocation4 + $0x12] sm:$0xff]
        %v7230 = vld [vmem:[#allocation4 + $0x22] sm:$0xff]
        %v7231 = vld [vmem:[#allocation4 + $0x32] sm:$0xff]
        %v7232 = vld [vmem:[#allocation4 + $0x42] sm:$0xff]
        %v7233 = vld [vmem:[#allocation4 + $0x52] sm:$0xff]
        %v7234 = vld [vmem:[#allocation4 + $0x62] sm:$0xff]
        %v7235 = vld [vmem:[#allocation4 + $0x72] sm:$0xff]
        %v7236 = vpack.c.bf16 %v7213, %v7212
        %v7237 = vpack.c.bf16 %v7221, %v7220
        %v7238 = vpack.c.bf16 %v7229, %v7228
        %v7239 = vpack.c.bf16 %v7215, %v7214
        %v7240 = vpack.c.bf16 %v7223, %v7222
        %v7241 = vpack.c.bf16 %v7231, %v7230
        %v7242 = vpack.c.bf16 %v7217, %v7216
        %v7243 = vpack.c.bf16 %v7225, %v7224
        %v7244 = vpack.c.bf16 %v7233, %v7232
        %v7245 = vpack.c.bf16 %v7219, %v7218
        %v7246 = vpack.c.bf16 %v7227, %v7226
        %v7247 = vpack.c.bf16 %v7235, %v7234
        %v7248 = vld [vmem:[#allocation6] sm:$0xf]
        %v7249 = vld [vmem:[#allocation6 + $0x4] sm:$0xf]
        %v7250 = vld [vmem:[#allocation6 + $0x8] sm:$0xf]
        %v7251 = vld [vmem:[#allocation6 + $0xc] sm:$0xf]
        %v7252 = vld [vmem:[#allocation6 + $0x10] sm:$0xf]
        %v7253 = vld [vmem:[#allocation6 + $0x14] sm:$0xf]
        %v7254 = vld [vmem:[#allocation6 + $0x18] sm:$0xf]
        %v7255 = vld [vmem:[#allocation6 + $0x1c] sm:$0xf]
        %v7256 = vld [vmem:[#allocation6 + $0x20] sm:$0xf]
        %v7257 = vld [vmem:[#allocation6 + $0x24] sm:$0xf]
        %v7258 = vld [vmem:[#allocation6 + $0x28] sm:$0xf]
        %v7259 = vld [vmem:[#allocation6 + $0x2c] sm:$0xf]
        %v7260 = vld [vmem:[#allocation6 + $0x30] sm:$0xf]
        %v7261 = vld [vmem:[#allocation6 + $0x34] sm:$0xf]
        %v7262 = vld [vmem:[#allocation6 + $0x38] sm:$0xf]
        %v7263 = vld [vmem:[#allocation6 + $0x3c] sm:$0xf]
        %v7264 = vld [vmem:[#allocation6 + $0x40] sm:$0xf]
        %v7265 = vld [vmem:[#allocation6 + $0x44] sm:$0xf]
        %v7266 = vld [vmem:[#allocation6 + $0x48] sm:$0xf]
        %v7267 = vld [vmem:[#allocation6 + $0x4c] sm:$0xf]
        %v7268 = vld [vmem:[#allocation6 + $0x50] sm:$0xf]
        %v7269 = vld [vmem:[#allocation6 + $0x54] sm:$0xf]
        %v7270 = vld [vmem:[#allocation6 + $0x58] sm:$0xf]
        %v7271 = vld [vmem:[#allocation6 + $0x5c] sm:$0xf]
        %v7272 = vld [vmem:[#allocation6 + $0x60] sm:$0xf]
        %v7273 = vld [vmem:[#allocation6 + $0x64] sm:$0xf]
        %v7274 = vld [vmem:[#allocation6 + $0x68] sm:$0xf]
        %v7275 = vld [vmem:[#allocation6 + $0x6c] sm:$0xf]
        %v7276 = vld [vmem:[#allocation6 + $0x70] sm:$0xf]
        %v7277 = vld [vmem:[#allocation6 + $0x74] sm:$0xf]
        %v7278 = vld [vmem:[#allocation6 + $0x78] sm:$0xf]
        %v7279 = vld [vmem:[#allocation6 + $0x7c] sm:$0xf]
        %v7280 = vld [vmem:[#allocation6 + $0x80] sm:$0xf]
        %v7281 = vld [vmem:[#allocation6 + $0x84] sm:$0xf]
        %v7282 = vld [vmem:[#allocation6 + $0x88] sm:$0xf]
        %v7283 = vld [vmem:[#allocation6 + $0x8c] sm:$0xf]
        %v7284 = vld [vmem:[#allocation6 + $0x90] sm:$0xf]
        %v7285 = vld [vmem:[#allocation6 + $0x94] sm:$0xf]
        %v7286 = vld [vmem:[#allocation6 + $0x98] sm:$0xf]
        %v7287 = vld [vmem:[#allocation6 + $0x9c] sm:$0xf]
        %v7288 = vld [vmem:[#allocation6 + $0xa0] sm:$0xf]
        %v7289 = vld [vmem:[#allocation6 + $0xa4] sm:$0xf]
        %v7290 = vld [vmem:[#allocation6 + $0xa8] sm:$0xf]
        %v7291 = vld [vmem:[#allocation6 + $0xac] sm:$0xf]
        %v7292 = vld [vmem:[#allocation6 + $0xb0] sm:$0xf]
        %v7293 = vld [vmem:[#allocation6 + $0xb4] sm:$0xf]
        %v7294 = vld [vmem:[#allocation6 + $0xb8] sm:$0xf]
        %v7295 = vld [vmem:[#allocation6 + $0xbc] sm:$0xf]
        %v7296 = vld [vmem:[%s7203] sm:$0xff]
        %v7297 = vld [vmem:[%s7203 + $0x10] sm:$0xff]
        %v7298 = vld [vmem:[%s7203 + $0x20] sm:$0xff]
        %v7299 = vld [vmem:[%s7203 + $0x30] sm:$0xff]
        %v7300 = vld [vmem:[%s7203 + $0x40] sm:$0xff]
        %v7301 = vld [vmem:[%s7203 + $0x50] sm:$0xff]
        %v7302 = vld [vmem:[%s7203 + $0x60] sm:$0xff]
        %v7303 = vld [vmem:[%s7203 + $0x70] sm:$0xff]
        %v7304 = vld [vmem:[%s7203 + $0x1] sm:$0xff]
        %v7305 = vld [vmem:[%s7203 + $0x11] sm:$0xff]
        %v7306 = vld [vmem:[%s7203 + $0x21] sm:$0xff]
        %v7307 = vld [vmem:[%s7203 + $0x31] sm:$0xff]
        %v7308 = vld [vmem:[%s7203 + $0x41] sm:$0xff]
        %v7309 = vld [vmem:[%s7203 + $0x51] sm:$0xff]
        %v7310 = vld [vmem:[%s7203 + $0x61] sm:$0xff]
        %v7311 = vld [vmem:[%s7203 + $0x71] sm:$0xff]
        %v7312 = vld [vmem:[%s7203 + $0x2] sm:$0xff]
        %v7313 = vld [vmem:[%s7203 + $0x12] sm:$0xff]
        %v7314 = vld [vmem:[%s7203 + $0x22] sm:$0xff]
        %v7315 = vld [vmem:[%s7203 + $0x32] sm:$0xff]
        %v7316 = vld [vmem:[%s7203 + $0x42] sm:$0xff]
        %v7317 = vld [vmem:[%s7203 + $0x52] sm:$0xff]
        %v7318 = vld [vmem:[%s7203 + $0x62] sm:$0xff]
        %v7319 = vld [vmem:[%s7203 + $0x72] sm:$0xff]
        %v7320 = vpack.c.bf16 %v7297, %v7296
        %v7321 = vpack.c.bf16 %v7305, %v7304
        %v7322 = vpack.c.bf16 %v7313, %v7312
        %v7323 = vpack.c.bf16 %v7299, %v7298
        %v7324 = vpack.c.bf16 %v7307, %v7306
        %v7325 = vpack.c.bf16 %v7315, %v7314
        %v7326 = vpack.c.bf16 %v7301, %v7300
        %v7327 = vpack.c.bf16 %v7309, %v7308
        %v7328 = vpack.c.bf16 %v7317, %v7316
        %v7329 = vpack.c.bf16 %v7303, %v7302
        %v7330 = vpack.c.bf16 %v7311, %v7310
        %v7331 = vpack.c.bf16 %v7319, %v7318
        %s7332 = scalar_lea.vmem [#allocation6], 192
        %v7333 = vld [vmem:[%s7332] sm:$0xf]
        %v7334 = vld [vmem:[%s7332 + $0x4] sm:$0xf]
        %v7335 = vld [vmem:[%s7332 + $0x8] sm:$0xf]
        %v7336 = vld [vmem:[%s7332 + $0xc] sm:$0xf]
        %v7337 = vld [vmem:[%s7332 + $0x10] sm:$0xf]
        %v7338 = vld [vmem:[%s7332 + $0x14] sm:$0xf]
        %v7339 = vld [vmem:[%s7332 + $0x18] sm:$0xf]
        %v7340 = vld [vmem:[%s7332 + $0x1c] sm:$0xf]
        %v7341 = vld [vmem:[%s7332 + $0x20] sm:$0xf]
        %v7342 = vld [vmem:[%s7332 + $0x24] sm:$0xf]
        %v7343 = vld [vmem:[%s7332 + $0x28] sm:$0xf]
        %v7344 = vld [vmem:[%s7332 + $0x2c] sm:$0xf]
        %v7345 = vld [vmem:[%s7332 + $0x30] sm:$0xf]
        %v7346 = vld [vmem:[%s7332 + $0x34] sm:$0xf]
        %v7347 = vld [vmem:[%s7332 + $0x38] sm:$0xf]
        %v7348 = vld [vmem:[%s7332 + $0x3c] sm:$0xf]
        %v7349 = vld [vmem:[%s7332 + $0x40] sm:$0xf]
        %v7350 = vld [vmem:[%s7332 + $0x44] sm:$0xf]
        %v7351 = vld [vmem:[%s7332 + $0x48] sm:$0xf]
        %v7352 = vld [vmem:[%s7332 + $0x4c] sm:$0xf]
        %v7353 = vld [vmem:[%s7332 + $0x50] sm:$0xf]
        %v7354 = vld [vmem:[%s7332 + $0x54] sm:$0xf]
        %v7355 = vld [vmem:[%s7332 + $0x58] sm:$0xf]
        %v7356 = vld [vmem:[%s7332 + $0x5c] sm:$0xf]
        %v7357 = vld [vmem:[%s7332 + $0x60] sm:$0xf]
        %v7358 = vld [vmem:[%s7332 + $0x64] sm:$0xf]
        %v7359 = vld [vmem:[%s7332 + $0x68] sm:$0xf]
        %v7360 = vld [vmem:[%s7332 + $0x6c] sm:$0xf]
        %v7361 = vld [vmem:[%s7332 + $0x70] sm:$0xf]
        %v7362 = vld [vmem:[%s7332 + $0x74] sm:$0xf]
        %v7363 = vld [vmem:[%s7332 + $0x78] sm:$0xf]
        %v7364 = vld [vmem:[%s7332 + $0x7c] sm:$0xf]
        %v7365 = vld [vmem:[%s7332 + $0x80] sm:$0xf]
        %v7366 = vld [vmem:[%s7332 + $0x84] sm:$0xf]
        %v7367 = vld [vmem:[%s7332 + $0x88] sm:$0xf]
        %v7368 = vld [vmem:[%s7332 + $0x8c] sm:$0xf]
        %v7369 = vld [vmem:[%s7332 + $0x90] sm:$0xf]
        %v7370 = vld [vmem:[%s7332 + $0x94] sm:$0xf]
        %v7371 = vld [vmem:[%s7332 + $0x98] sm:$0xf]
        %v7372 = vld [vmem:[%s7332 + $0x9c] sm:$0xf]
        %v7373 = vld [vmem:[%s7332 + $0xa0] sm:$0xf]
        %v7374 = vld [vmem:[%s7332 + $0xa4] sm:$0xf]
        %v7375 = vld [vmem:[%s7332 + $0xa8] sm:$0xf]
        %v7376 = vld [vmem:[%s7332 + $0xac] sm:$0xf]
        %v7377 = vld [vmem:[%s7332 + $0xb0] sm:$0xf]
        %v7378 = vld [vmem:[%s7332 + $0xb4] sm:$0xf]
        %v7379 = vld [vmem:[%s7332 + $0xb8] sm:$0xf]
        %v7380 = vld [vmem:[%s7332 + $0xbc] sm:$0xf]
        %v7429 = vunpack.c.l.b16 %v7333
        %v7430 = vunpack.c.l.b16 %v7334
        %v7431 = vunpack.c.l.b16 %v7335
        %v7432 = vunpack.c.l.b16 %v7336
        %v7433 = vunpack.c.l.b16 %v7337
        %v7434 = vunpack.c.l.b16 %v7338
        %v7435 = vunpack.c.l.b16 %v7339
        %v7436 = vunpack.c.l.b16 %v7340
        %v7437 = vunpack.c.l.b16 %v7341
        %v7438 = vunpack.c.l.b16 %v7342
        %v7439 = vunpack.c.l.b16 %v7343
        %v7440 = vunpack.c.l.b16 %v7344
        %v7441 = vunpack.c.l.b16 %v7345
        %v7442 = vunpack.c.l.b16 %v7346
        %v7443 = vunpack.c.l.b16 %v7347
        %v7444 = vunpack.c.l.b16 %v7348
        %v7445 = vunpack.c.l.b16 %v7349
        %v7446 = vunpack.c.l.b16 %v7350
        %v7447 = vunpack.c.l.b16 %v7351
        %v7448 = vunpack.c.l.b16 %v7352
        %v7449 = vunpack.c.l.b16 %v7353
        %v7450 = vunpack.c.l.b16 %v7354
        %v7451 = vunpack.c.l.b16 %v7355
        %v7452 = vunpack.c.l.b16 %v7356
        %v7453 = vunpack.c.l.b16 %v7357
        %v7454 = vunpack.c.l.b16 %v7358
        %v7455 = vunpack.c.l.b16 %v7359
        %v7456 = vunpack.c.l.b16 %v7360
        %v7457 = vunpack.c.l.b16 %v7361
        %v7458 = vunpack.c.l.b16 %v7362
        %v7459 = vunpack.c.l.b16 %v7363
        %v7460 = vunpack.c.l.b16 %v7364
        %v7461 = vunpack.c.l.b16 %v7365
        %v7462 = vunpack.c.l.b16 %v7366
        %v7463 = vunpack.c.l.b16 %v7367
        %v7464 = vunpack.c.l.b16 %v7368
        %v7465 = vunpack.c.l.b16 %v7369
        %v7466 = vunpack.c.l.b16 %v7370
        %v7467 = vunpack.c.l.b16 %v7371
        %v7468 = vunpack.c.l.b16 %v7372
        %v7469 = vunpack.c.l.b16 %v7373
        %v7470 = vunpack.c.l.b16 %v7374
        %v7471 = vunpack.c.l.b16 %v7375
        %v7472 = vunpack.c.l.b16 %v7376
        %v7473 = vunpack.c.l.b16 %v7377
        %v7474 = vunpack.c.l.b16 %v7378
        %v7475 = vunpack.c.l.b16 %v7379
        %v7476 = vunpack.c.l.b16 %v7380
        %v7477 = vpack.c.b16 %v7430, %v7429
        %v7478 = vpack.c.b16 %v7432, %v7431
        %v7479 = vpack.c.b16 %v7434, %v7433
        %v7480 = vpack.c.b16 %v7436, %v7435
        %v7481 = vpack.c.b16 %v7438, %v7437
        %v7482 = vpack.c.b16 %v7440, %v7439
        %v7483 = vpack.c.b16 %v7442, %v7441
        %v7484 = vpack.c.b16 %v7444, %v7443
        %v7485 = vpack.c.b16 %v7446, %v7445
        %v7486 = vpack.c.b16 %v7448, %v7447
        %v7487 = vpack.c.b16 %v7450, %v7449
        %v7488 = vpack.c.b16 %v7452, %v7451
        %v7489 = vpack.c.b16 %v7454, %v7453
        %v7490 = vpack.c.b16 %v7456, %v7455
        %v7491 = vpack.c.b16 %v7458, %v7457
        %v7492 = vpack.c.b16 %v7460, %v7459
        %v7493 = vpack.c.b16 %v7462, %v7461
        %v7494 = vpack.c.b16 %v7464, %v7463
        %v7495 = vpack.c.b16 %v7466, %v7465
        %v7496 = vpack.c.b16 %v7468, %v7467
        %v7497 = vpack.c.b16 %v7470, %v7469
        %v7498 = vpack.c.b16 %v7472, %v7471
        %v7499 = vpack.c.b16 %v7474, %v7473
        %v7500 = vpack.c.b16 %v7476, %v7475
        %7525 = vmatprep.subr.bf16.mxu0 0
        %7526 = vmatpush1.bf16.msra.mxu0 %v7484
        %7527 = vmatprep.subr.bf16.mxu0 0
        %7528 = vmatpush1.bf16.msra.mxu0 %v7483
        %7529 = vmatprep.subr.bf16.mxu0 0
        %7530 = vmatpush1.bf16.msra.mxu0 %v7482
        %7531 = vmatprep.subr.bf16.mxu0 0
        %7532 = vmatpush1.bf16.msra.mxu0 %v7481
        %7533 = vmatprep.subr.bf16.mxu0 0
        %7534 = vmatpush1.bf16.msra.mxu0 %v7480
        %7535 = vmatprep.subr.bf16.mxu0 0
        %7536 = vmatpush1.bf16.msra.mxu0 %v7479
        %7537 = vmatprep.subr.bf16.mxu0 0
        %7538 = vmatpush1.bf16.msra.mxu0 %v7478
        %7539 = vmatprep.subr.bf16.mxu0 0
        %7540 = vmatpush1.bf16.msra.mxu0 %v7477
        %7541 = vmatprep.subr.bf16.mxu0 0
        %7542 = vmatpush2.bf16.msra.mxu0 %v7492
        %7543 = vmatprep.subr.bf16.mxu0 0
        %7544 = vmatpush2.bf16.msra.mxu0 %v7491
        %7545 = vmatprep.subr.bf16.mxu0 0
        %7546 = vmatpush2.bf16.msra.mxu0 %v7490
        %7547 = vmatprep.subr.bf16.mxu0 0
        %7548 = vmatpush2.bf16.msra.mxu0 %v7489
        %7549 = vmatprep.subr.bf16.mxu0 0
        %7550 = vmatpush2.bf16.msra.mxu0 %v7488
        %7551 = vmatprep.subr.bf16.mxu0 0
        %7552 = vmatpush2.bf16.msra.mxu0 %v7487
        %7553 = vmatprep.subr.bf16.mxu0 0
        %7554 = vmatpush2.bf16.msra.mxu0 %v7486
        %7555 = vmatprep.subr.bf16.mxu0 0
        %7556 = vmatpush2.bf16.msra.mxu0 %v7485
        %7557 = vmatprep.mubr.bf16.mxu0 %v7321
        %7558 = vmatmul.mubr.bf16.gmra.mxu0 %v7320
        %v7559 = vpop.f32.mrf.mxu0
        %v7560 = vadd.f32 0.0, %v7559
        %v7561 = vpop.f32.mrf.mxu0
        %v7562 = vpop.f32.mrf.mxu0
        %v7563 = vadd.f32 0.0, %v7562
        %v7564 = vpop.f32.mrf.mxu0
        %7565 = vmatprep.mubr.bf16.mxu0 %v7324
        %7566 = vmatmul.mubr.bf16.gmra.mxu0 %v7323
        %v7567 = vpop.f32.mrf.mxu0
        %v7568 = vadd.f32 0.0, %v7567
        %v7569 = vpop.f32.mrf.mxu0
        %v7570 = vpop.f32.mrf.mxu0
        %v7571 = vadd.f32 0.0, %v7570
        %v7572 = vpop.f32.mrf.mxu0
        %7573 = vmatprep.mubr.bf16.mxu0 %v7327
        %7574 = vmatmul.mubr.bf16.gmra.mxu0 %v7326
        %v7575 = vpop.f32.mrf.mxu0
        %v7576 = vadd.f32 0.0, %v7575
        %v7577 = vpop.f32.mrf.mxu0
        %v7578 = vpop.f32.mrf.mxu0
        %v7579 = vadd.f32 0.0, %v7578
        %v7580 = vpop.f32.mrf.mxu0
        %7581 = vmatprep.mubr.bf16.mxu0 %v7330
        %7582 = vmatmul.mubr.bf16.gmra.mxu0 %v7329
        %v7583 = vpop.f32.mrf.mxu0
        %v7584 = vadd.f32 0.0, %v7583
        %v7585 = vpop.f32.mrf.mxu0
        %v7586 = vpop.f32.mrf.mxu0
        %v7587 = vadd.f32 0.0, %v7586
        %v7588 = vpop.f32.mrf.mxu0
        %7589 = vdwg.mxu0
        %7590 = vmatprep.subr.bf16.mxu0 0
        %7591 = vmatpush1.bf16.msra.mxu0 %v7500
        %7592 = vmatprep.subr.bf16.mxu0 0
        %7593 = vmatpush1.bf16.msra.mxu0 %v7499
        %7594 = vmatprep.subr.bf16.mxu0 0
        %7595 = vmatpush1.bf16.msra.mxu0 %v7498
        %7596 = vmatprep.subr.bf16.mxu0 0
        %7597 = vmatpush1.bf16.msra.mxu0 %v7497
        %7598 = vmatprep.subr.bf16.mxu0 0
        %7599 = vmatpush1.bf16.msra.mxu0 %v7496
        %7600 = vmatprep.subr.bf16.mxu0 0
        %7601 = vmatpush1.bf16.msra.mxu0 %v7495
        %7602 = vmatprep.subr.bf16.mxu0 0
        %7603 = vmatpush1.bf16.msra.mxu0 %v7494
        %7604 = vmatprep.subr.bf16.mxu0 0
        %7605 = vmatpush1.bf16.msra.mxu0 %v7493
        %7606 = vmatprep.subr.bf16.mxu0 0
        %7607 = vmatpush2.bf16.msra.mxu0 0
        %7608 = vmatprep.subr.bf16.mxu0 0
        %7609 = vmatpush2.bf16.msra.mxu0 0
        %7610 = vmatprep.subr.bf16.mxu0 0
        %7611 = vmatpush2.bf16.msra.mxu0 0
        %7612 = vmatprep.subr.bf16.mxu0 0
        %7613 = vmatpush2.bf16.msra.mxu0 0
        %7614 = vmatprep.subr.bf16.mxu0 0
        %7615 = vmatpush2.bf16.msra.mxu0 0
        %7616 = vmatprep.subr.bf16.mxu0 0
        %7617 = vmatpush2.bf16.msra.mxu0 0
        %7618 = vmatprep.subr.bf16.mxu0 0
        %7619 = vmatpush2.bf16.msra.mxu0 0
        %7620 = vmatprep.subr.bf16.mxu0 0
        %7621 = vmatpush2.bf16.msra.mxu0 0
        %7622 = vmatprep.mubr.bf16.mxu0 0
        %7623 = vmatmul.mubr.bf16.gmra.mxu0 %v7322
        %v7624 = vpop.f32.mrf.mxu0
        %v7625 = vadd.f32 %v7560, %v7624
        %v7626 = vpop.f32.mrf.mxu0
        %v7627 = vpop.f32.mrf.mxu0
        %v7628 = vadd.f32 %v7563, %v7627
        %v7629 = vpop.f32.mrf.mxu0
        %7630 = vmatprep.mubr.bf16.mxu0 0
        %7631 = vmatmul.mubr.bf16.gmra.mxu0 %v7325
        %v7632 = vpop.f32.mrf.mxu0
        %v7633 = vadd.f32 %v7568, %v7632
        %v7634 = vpop.f32.mrf.mxu0
        %v7635 = vpop.f32.mrf.mxu0
        %v7636 = vadd.f32 %v7571, %v7635
        %v7637 = vpop.f32.mrf.mxu0
        %7638 = vmatprep.mubr.bf16.mxu0 0
        %7639 = vmatmul.mubr.bf16.gmra.mxu0 %v7328
        %v7640 = vpop.f32.mrf.mxu0
        %v7641 = vadd.f32 %v7576, %v7640
        %v7642 = vpop.f32.mrf.mxu0
        %v7643 = vpop.f32.mrf.mxu0
        %v7644 = vadd.f32 %v7579, %v7643
        %v7645 = vpop.f32.mrf.mxu0
        %7646 = vmatprep.mubr.bf16.mxu0 0
        %7647 = vmatmul.mubr.bf16.gmra.mxu0 %v7331
        %v7648 = vpop.f32.mrf.mxu0
        %v7649 = vadd.f32 %v7584, %v7648
        %v7650 = vpop.f32.mrf.mxu0
        %v7651 = vpop.f32.mrf.mxu0
        %v7652 = vadd.f32 %v7587, %v7651
        %v7653 = vpop.f32.mrf.mxu0
        %7654 = vdwg.mxu0
        %v7703 = vunpack.c.l.b16 %v7248
        %v7704 = vunpack.c.l.b16 %v7249
        %v7705 = vunpack.c.l.b16 %v7250
        %v7706 = vunpack.c.l.b16 %v7251
        %v7707 = vunpack.c.l.b16 %v7252
        %v7708 = vunpack.c.l.b16 %v7253
        %v7709 = vunpack.c.l.b16 %v7254
        %v7710 = vunpack.c.l.b16 %v7255
        %v7711 = vunpack.c.l.b16 %v7256
        %v7712 = vunpack.c.l.b16 %v7257
        %v7713 = vunpack.c.l.b16 %v7258
        %v7714 = vunpack.c.l.b16 %v7259
        %v7715 = vunpack.c.l.b16 %v7260
        %v7716 = vunpack.c.l.b16 %v7261
        %v7717 = vunpack.c.l.b16 %v7262
        %v7718 = vunpack.c.l.b16 %v7263
        %v7719 = vunpack.c.l.b16 %v7264
        %v7720 = vunpack.c.l.b16 %v7265
        %v7721 = vunpack.c.l.b16 %v7266
        %v7722 = vunpack.c.l.b16 %v7267
        %v7723 = vunpack.c.l.b16 %v7268
        %v7724 = vunpack.c.l.b16 %v7269
        %v7725 = vunpack.c.l.b16 %v7270
        %v7726 = vunpack.c.l.b16 %v7271
        %v7727 = vunpack.c.l.b16 %v7272
        %v7728 = vunpack.c.l.b16 %v7273
        %v7729 = vunpack.c.l.b16 %v7274
        %v7730 = vunpack.c.l.b16 %v7275
        %v7731 = vunpack.c.l.b16 %v7276
        %v7732 = vunpack.c.l.b16 %v7277
        %v7733 = vunpack.c.l.b16 %v7278
        %v7734 = vunpack.c.l.b16 %v7279
        %v7735 = vunpack.c.l.b16 %v7280
        %v7736 = vunpack.c.l.b16 %v7281
        %v7737 = vunpack.c.l.b16 %v7282
        %v7738 = vunpack.c.l.b16 %v7283
        %v7739 = vunpack.c.l.b16 %v7284
        %v7740 = vunpack.c.l.b16 %v7285
        %v7741 = vunpack.c.l.b16 %v7286
        %v7742 = vunpack.c.l.b16 %v7287
        %v7743 = vunpack.c.l.b16 %v7288
        %v7744 = vunpack.c.l.b16 %v7289
        %v7745 = vunpack.c.l.b16 %v7290
        %v7746 = vunpack.c.l.b16 %v7291
        %v7747 = vunpack.c.l.b16 %v7292
        %v7748 = vunpack.c.l.b16 %v7293
        %v7749 = vunpack.c.l.b16 %v7294
        %v7750 = vunpack.c.l.b16 %v7295
        %v7751 = vpack.c.b16 %v7704, %v7703
        %v7752 = vpack.c.b16 %v7706, %v7705
        %v7753 = vpack.c.b16 %v7708, %v7707
        %v7754 = vpack.c.b16 %v7710, %v7709
        %v7755 = vpack.c.b16 %v7712, %v7711
        %v7756 = vpack.c.b16 %v7714, %v7713
        %v7757 = vpack.c.b16 %v7716, %v7715
        %v7758 = vpack.c.b16 %v7718, %v7717
        %v7759 = vpack.c.b16 %v7720, %v7719
        %v7760 = vpack.c.b16 %v7722, %v7721
        %v7761 = vpack.c.b16 %v7724, %v7723
        %v7762 = vpack.c.b16 %v7726, %v7725
        %v7763 = vpack.c.b16 %v7728, %v7727
        %v7764 = vpack.c.b16 %v7730, %v7729
        %v7765 = vpack.c.b16 %v7732, %v7731
        %v7766 = vpack.c.b16 %v7734, %v7733
        %v7767 = vpack.c.b16 %v7736, %v7735
        %v7768 = vpack.c.b16 %v7738, %v7737
        %v7769 = vpack.c.b16 %v7740, %v7739
        %v7770 = vpack.c.b16 %v7742, %v7741
        %v7771 = vpack.c.b16 %v7744, %v7743
        %v7772 = vpack.c.b16 %v7746, %v7745
        %v7773 = vpack.c.b16 %v7748, %v7747
        %v7774 = vpack.c.b16 %v7750, %v7749
        %7799 = vmatprep.subr.bf16.mxu0 0
        %7800 = vmatpush1.bf16.msra.mxu0 %v7758
        %7801 = vmatprep.subr.bf16.mxu0 0
        %7802 = vmatpush1.bf16.msra.mxu0 %v7757
        %7803 = vmatprep.subr.bf16.mxu0 0
        %7804 = vmatpush1.bf16.msra.mxu0 %v7756
        %7805 = vmatprep.subr.bf16.mxu0 0
        %7806 = vmatpush1.bf16.msra.mxu0 %v7755
        %7807 = vmatprep.subr.bf16.mxu0 0
        %7808 = vmatpush1.bf16.msra.mxu0 %v7754
        %7809 = vmatprep.subr.bf16.mxu0 0
        %7810 = vmatpush1.bf16.msra.mxu0 %v7753
        %7811 = vmatprep.subr.bf16.mxu0 0
        %7812 = vmatpush1.bf16.msra.mxu0 %v7752
        %7813 = vmatprep.subr.bf16.mxu0 0
        %7814 = vmatpush1.bf16.msra.mxu0 %v7751
        %7815 = vmatprep.subr.bf16.mxu0 0
        %7816 = vmatpush2.bf16.msra.mxu0 %v7766
        %7817 = vmatprep.subr.bf16.mxu0 0
        %7818 = vmatpush2.bf16.msra.mxu0 %v7765
        %7819 = vmatprep.subr.bf16.mxu0 0
        %7820 = vmatpush2.bf16.msra.mxu0 %v7764
        %7821 = vmatprep.subr.bf16.mxu0 0
        %7822 = vmatpush2.bf16.msra.mxu0 %v7763
        %7823 = vmatprep.subr.bf16.mxu0 0
        %7824 = vmatpush2.bf16.msra.mxu0 %v7762
        %7825 = vmatprep.subr.bf16.mxu0 0
        %7826 = vmatpush2.bf16.msra.mxu0 %v7761
        %7827 = vmatprep.subr.bf16.mxu0 0
        %7828 = vmatpush2.bf16.msra.mxu0 %v7760
        %7829 = vmatprep.subr.bf16.mxu0 0
        %7830 = vmatpush2.bf16.msra.mxu0 %v7759
        %7831 = vmatprep.mubr.bf16.mxu0 %v7237
        %7832 = vmatmul.mubr.bf16.gmra.mxu0 %v7236
        %v7833 = vpop.f32.mrf.mxu0
        %v7834 = vadd.f32 %v7625, %v7833
        %v7835 = vpop.f32.mrf.mxu0
        %v7836 = vpop.f32.mrf.mxu0
        %v7837 = vadd.f32 %v7628, %v7836
        %v7838 = vpop.f32.mrf.mxu0
        %7839 = vmatprep.mubr.bf16.mxu0 %v7240
        %7840 = vmatmul.mubr.bf16.gmra.mxu0 %v7239
        %v7841 = vpop.f32.mrf.mxu0
        %v7842 = vadd.f32 %v7633, %v7841
        %v7843 = vpop.f32.mrf.mxu0
        %v7844 = vpop.f32.mrf.mxu0
        %v7845 = vadd.f32 %v7636, %v7844
        %v7846 = vpop.f32.mrf.mxu0
        %7847 = vmatprep.mubr.bf16.mxu0 %v7243
        %7848 = vmatmul.mubr.bf16.gmra.mxu0 %v7242
        %v7849 = vpop.f32.mrf.mxu0
        %v7850 = vadd.f32 %v7641, %v7849
        %v7851 = vpop.f32.mrf.mxu0
        %v7852 = vpop.f32.mrf.mxu0
        %v7853 = vadd.f32 %v7644, %v7852
        %v7854 = vpop.f32.mrf.mxu0
        %7855 = vmatprep.mubr.bf16.mxu0 %v7246
        %7856 = vmatmul.mubr.bf16.gmra.mxu0 %v7245
        %v7857 = vpop.f32.mrf.mxu0
        %v7858 = vadd.f32 %v7649, %v7857
        %v7859 = vpop.f32.mrf.mxu0
        %v7860 = vpop.f32.mrf.mxu0
        %v7861 = vadd.f32 %v7652, %v7860
        %v7862 = vpop.f32.mrf.mxu0
        %7863 = vdwg.mxu0
        %7864 = vmatprep.subr.bf16.mxu0 0
        %7865 = vmatpush1.bf16.msra.mxu0 %v7774
        %7866 = vmatprep.subr.bf16.mxu0 0
        %7867 = vmatpush1.bf16.msra.mxu0 %v7773
        %7868 = vmatprep.subr.bf16.mxu0 0
        %7869 = vmatpush1.bf16.msra.mxu0 %v7772
        %7870 = vmatprep.subr.bf16.mxu0 0
        %7871 = vmatpush1.bf16.msra.mxu0 %v7771
        %7872 = vmatprep.subr.bf16.mxu0 0
        %7873 = vmatpush1.bf16.msra.mxu0 %v7770
        %7874 = vmatprep.subr.bf16.mxu0 0
        %7875 = vmatpush1.bf16.msra.mxu0 %v7769
        %7876 = vmatprep.subr.bf16.mxu0 0
        %7877 = vmatpush1.bf16.msra.mxu0 %v7768
        %7878 = vmatprep.subr.bf16.mxu0 0
        %7879 = vmatpush1.bf16.msra.mxu0 %v7767
        %7880 = vmatprep.subr.bf16.mxu0 0
        %7881 = vmatpush2.bf16.msra.mxu0 0
        %7882 = vmatprep.subr.bf16.mxu0 0
        %7883 = vmatpush2.bf16.msra.mxu0 0
        %7884 = vmatprep.subr.bf16.mxu0 0
        %7885 = vmatpush2.bf16.msra.mxu0 0
        %7886 = vmatprep.subr.bf16.mxu0 0
        %7887 = vmatpush2.bf16.msra.mxu0 0
        %7888 = vmatprep.subr.bf16.mxu0 0
        %7889 = vmatpush2.bf16.msra.mxu0 0
        %7890 = vmatprep.subr.bf16.mxu0 0
        %7891 = vmatpush2.bf16.msra.mxu0 0
        %7892 = vmatprep.subr.bf16.mxu0 0
        %7893 = vmatpush2.bf16.msra.mxu0 0
        %7894 = vmatprep.subr.bf16.mxu0 0
        %7895 = vmatpush2.bf16.msra.mxu0 0
        %7896 = vmatprep.mubr.bf16.mxu0 0
        %7897 = vmatmul.mubr.bf16.gmra.mxu0 %v7238
        %v7898 = vpop.f32.mrf.mxu0
        %v7899 = vadd.f32 %v7834, %v7898
        %v7900 = vpop.f32.mrf.mxu0
        %v7901 = vpop.f32.mrf.mxu0
        %v7902 = vadd.f32 %v7837, %v7901
        %v7903 = vpop.f32.mrf.mxu0
        %7904 = vmatprep.mubr.bf16.mxu0 0
        %7905 = vmatmul.mubr.bf16.gmra.mxu0 %v7241
        %v7906 = vpop.f32.mrf.mxu0
        %v7907 = vadd.f32 %v7842, %v7906
        %v7908 = vpop.f32.mrf.mxu0
        %v7909 = vpop.f32.mrf.mxu0
        %v7910 = vadd.f32 %v7845, %v7909
        %v7911 = vpop.f32.mrf.mxu0
        %7912 = vmatprep.mubr.bf16.mxu0 0
        %7913 = vmatmul.mubr.bf16.gmra.mxu0 %v7244
        %v7914 = vpop.f32.mrf.mxu0
        %v7915 = vadd.f32 %v7850, %v7914
        %v7916 = vpop.f32.mrf.mxu0
        %v7917 = vpop.f32.mrf.mxu0
        %v7918 = vadd.f32 %v7853, %v7917
        %v7919 = vpop.f32.mrf.mxu0
        %7920 = vmatprep.mubr.bf16.mxu0 0
        %7921 = vmatmul.mubr.bf16.gmra.mxu0 %v7247
        %v7922 = vpop.f32.mrf.mxu0
        %v7923 = vadd.f32 %v7858, %v7922
        %v7924 = vpop.f32.mrf.mxu0
        %v7925 = vpop.f32.mrf.mxu0
        %v7926 = vadd.f32 %v7861, %v7925
        %v7927 = vpop.f32.mrf.mxu0
        %7928 = vdwg.mxu0
        %s7929 = scalar_lea.vmem [#allocation4], 32
        %v7930 = vld [vmem:[%s7929] sm:$0xff]
        %v7931 = vld [vmem:[%s7929 + $0x10] sm:$0xff]
        %v7932 = vld [vmem:[%s7929 + $0x20] sm:$0xff]
        %v7933 = vld [vmem:[%s7929 + $0x30] sm:$0xff]
        %v7934 = vld [vmem:[%s7929 + $0x40] sm:$0xff]
        %v7935 = vld [vmem:[%s7929 + $0x50] sm:$0xff]
        %v7936 = vld [vmem:[%s7929 + $0x60] sm:$0xff]
        %v7937 = vld [vmem:[%s7929 + $0x70] sm:$0xff]
        %v7938 = vld [vmem:[%s7929 + $0x1] sm:$0xff]
        %v7939 = vld [vmem:[%s7929 + $0x11] sm:$0xff]
        %v7940 = vld [vmem:[%s7929 + $0x21] sm:$0xff]
        %v7941 = vld [vmem:[%s7929 + $0x31] sm:$0xff]
        %v7942 = vld [vmem:[%s7929 + $0x41] sm:$0xff]
        %v7943 = vld [vmem:[%s7929 + $0x51] sm:$0xff]
        %v7944 = vld [vmem:[%s7929 + $0x61] sm:$0xff]
        %v7945 = vld [vmem:[%s7929 + $0x71] sm:$0xff]
        %v7946 = vld [vmem:[%s7929 + $0x2] sm:$0xff]
        %v7947 = vld [vmem:[%s7929 + $0x12] sm:$0xff]
        %v7948 = vld [vmem:[%s7929 + $0x22] sm:$0xff]
        %v7949 = vld [vmem:[%s7929 + $0x32] sm:$0xff]
        %v7950 = vld [vmem:[%s7929 + $0x42] sm:$0xff]
        %v7951 = vld [vmem:[%s7929 + $0x52] sm:$0xff]
        %v7952 = vld [vmem:[%s7929 + $0x62] sm:$0xff]
        %v7953 = vld [vmem:[%s7929 + $0x72] sm:$0xff]
        %v7954 = vpack.c.bf16 %v7931, %v7930
        %v7955 = vpack.c.bf16 %v7939, %v7938
        %v7956 = vpack.c.bf16 %v7947, %v7946
        %v7957 = vpack.c.bf16 %v7933, %v7932
        %v7958 = vpack.c.bf16 %v7941, %v7940
        %v7959 = vpack.c.bf16 %v7949, %v7948
        %v7960 = vpack.c.bf16 %v7935, %v7934
        %v7961 = vpack.c.bf16 %v7943, %v7942
        %v7962 = vpack.c.bf16 %v7951, %v7950
        %v7963 = vpack.c.bf16 %v7937, %v7936
        %v7964 = vpack.c.bf16 %v7945, %v7944
        %v7965 = vpack.c.bf16 %v7953, %v7952
        %s7966 = scalar_lea.vmem [#allocation6], 384
        %v7967 = vld [vmem:[%s7966] sm:$0xf]
        %v7968 = vld [vmem:[%s7966 + $0x4] sm:$0xf]
        %v7969 = vld [vmem:[%s7966 + $0x8] sm:$0xf]
        %v7970 = vld [vmem:[%s7966 + $0xc] sm:$0xf]
        %v7971 = vld [vmem:[%s7966 + $0x10] sm:$0xf]
        %v7972 = vld [vmem:[%s7966 + $0x14] sm:$0xf]
        %v7973 = vld [vmem:[%s7966 + $0x18] sm:$0xf]
        %v7974 = vld [vmem:[%s7966 + $0x1c] sm:$0xf]
        %v7975 = vld [vmem:[%s7966 + $0x20] sm:$0xf]
        %v7976 = vld [vmem:[%s7966 + $0x24] sm:$0xf]
        %v7977 = vld [vmem:[%s7966 + $0x28] sm:$0xf]
        %v7978 = vld [vmem:[%s7966 + $0x2c] sm:$0xf]
        %v7979 = vld [vmem:[%s7966 + $0x30] sm:$0xf]
        %v7980 = vld [vmem:[%s7966 + $0x34] sm:$0xf]
        %v7981 = vld [vmem:[%s7966 + $0x38] sm:$0xf]
        %v7982 = vld [vmem:[%s7966 + $0x3c] sm:$0xf]
        %v7983 = vld [vmem:[%s7966 + $0x40] sm:$0xf]
        %v7984 = vld [vmem:[%s7966 + $0x44] sm:$0xf]
        %v7985 = vld [vmem:[%s7966 + $0x48] sm:$0xf]
        %v7986 = vld [vmem:[%s7966 + $0x4c] sm:$0xf]
        %v7987 = vld [vmem:[%s7966 + $0x50] sm:$0xf]
        %v7988 = vld [vmem:[%s7966 + $0x54] sm:$0xf]
        %v7989 = vld [vmem:[%s7966 + $0x58] sm:$0xf]
        %v7990 = vld [vmem:[%s7966 + $0x5c] sm:$0xf]
        %v7991 = vld [vmem:[%s7966 + $0x60] sm:$0xf]
        %v7992 = vld [vmem:[%s7966 + $0x64] sm:$0xf]
        %v7993 = vld [vmem:[%s7966 + $0x68] sm:$0xf]
        %v7994 = vld [vmem:[%s7966 + $0x6c] sm:$0xf]
        %v7995 = vld [vmem:[%s7966 + $0x70] sm:$0xf]
        %v7996 = vld [vmem:[%s7966 + $0x74] sm:$0xf]
        %v7997 = vld [vmem:[%s7966 + $0x78] sm:$0xf]
        %v7998 = vld [vmem:[%s7966 + $0x7c] sm:$0xf]
        %v7999 = vld [vmem:[%s7966 + $0x80] sm:$0xf]
        %v8000 = vld [vmem:[%s7966 + $0x84] sm:$0xf]
        %v8001 = vld [vmem:[%s7966 + $0x88] sm:$0xf]
        %v8002 = vld [vmem:[%s7966 + $0x8c] sm:$0xf]
        %v8003 = vld [vmem:[%s7966 + $0x90] sm:$0xf]
        %v8004 = vld [vmem:[%s7966 + $0x94] sm:$0xf]
        %v8005 = vld [vmem:[%s7966 + $0x98] sm:$0xf]
        %v8006 = vld [vmem:[%s7966 + $0x9c] sm:$0xf]
        %v8007 = vld [vmem:[%s7966 + $0xa0] sm:$0xf]
        %v8008 = vld [vmem:[%s7966 + $0xa4] sm:$0xf]
        %v8009 = vld [vmem:[%s7966 + $0xa8] sm:$0xf]
        %v8010 = vld [vmem:[%s7966 + $0xac] sm:$0xf]
        %v8011 = vld [vmem:[%s7966 + $0xb0] sm:$0xf]
        %v8012 = vld [vmem:[%s7966 + $0xb4] sm:$0xf]
        %v8013 = vld [vmem:[%s7966 + $0xb8] sm:$0xf]
        %v8014 = vld [vmem:[%s7966 + $0xbc] sm:$0xf]
        %v8063 = vunpack.c.l.b16 %v7967
        %v8064 = vunpack.c.l.b16 %v7968
        %v8065 = vunpack.c.l.b16 %v7969
        %v8066 = vunpack.c.l.b16 %v7970
        %v8067 = vunpack.c.l.b16 %v7971
        %v8068 = vunpack.c.l.b16 %v7972
        %v8069 = vunpack.c.l.b16 %v7973
        %v8070 = vunpack.c.l.b16 %v7974
        %v8071 = vunpack.c.l.b16 %v7975
        %v8072 = vunpack.c.l.b16 %v7976
        %v8073 = vunpack.c.l.b16 %v7977
        %v8074 = vunpack.c.l.b16 %v7978
        %v8075 = vunpack.c.l.b16 %v7979
        %v8076 = vunpack.c.l.b16 %v7980
        %v8077 = vunpack.c.l.b16 %v7981
        %v8078 = vunpack.c.l.b16 %v7982
        %v8079 = vunpack.c.l.b16 %v7983
        %v8080 = vunpack.c.l.b16 %v7984
        %v8081 = vunpack.c.l.b16 %v7985
        %v8082 = vunpack.c.l.b16 %v7986
        %v8083 = vunpack.c.l.b16 %v7987
        %v8084 = vunpack.c.l.b16 %v7988
        %v8085 = vunpack.c.l.b16 %v7989
        %v8086 = vunpack.c.l.b16 %v7990
        %v8087 = vunpack.c.l.b16 %v7991
        %v8088 = vunpack.c.l.b16 %v7992
        %v8089 = vunpack.c.l.b16 %v7993
        %v8090 = vunpack.c.l.b16 %v7994
        %v8091 = vunpack.c.l.b16 %v7995
        %v8092 = vunpack.c.l.b16 %v7996
        %v8093 = vunpack.c.l.b16 %v7997
        %v8094 = vunpack.c.l.b16 %v7998
        %v8095 = vunpack.c.l.b16 %v7999
        %v8096 = vunpack.c.l.b16 %v8000
        %v8097 = vunpack.c.l.b16 %v8001
        %v8098 = vunpack.c.l.b16 %v8002
        %v8099 = vunpack.c.l.b16 %v8003
        %v8100 = vunpack.c.l.b16 %v8004
        %v8101 = vunpack.c.l.b16 %v8005
        %v8102 = vunpack.c.l.b16 %v8006
        %v8103 = vunpack.c.l.b16 %v8007
        %v8104 = vunpack.c.l.b16 %v8008
        %v8105 = vunpack.c.l.b16 %v8009
        %v8106 = vunpack.c.l.b16 %v8010
        %v8107 = vunpack.c.l.b16 %v8011
        %v8108 = vunpack.c.l.b16 %v8012
        %v8109 = vunpack.c.l.b16 %v8013
        %v8110 = vunpack.c.l.b16 %v8014
        %v8111 = vpack.c.b16 %v8064, %v8063
        %v8112 = vpack.c.b16 %v8066, %v8065
        %v8113 = vpack.c.b16 %v8068, %v8067
        %v8114 = vpack.c.b16 %v8070, %v8069
        %v8115 = vpack.c.b16 %v8072, %v8071
        %v8116 = vpack.c.b16 %v8074, %v8073
        %v8117 = vpack.c.b16 %v8076, %v8075
        %v8118 = vpack.c.b16 %v8078, %v8077
        %v8119 = vpack.c.b16 %v8080, %v8079
        %v8120 = vpack.c.b16 %v8082, %v8081
        %v8121 = vpack.c.b16 %v8084, %v8083
        %v8122 = vpack.c.b16 %v8086, %v8085
        %v8123 = vpack.c.b16 %v8088, %v8087
        %v8124 = vpack.c.b16 %v8090, %v8089
        %v8125 = vpack.c.b16 %v8092, %v8091
        %v8126 = vpack.c.b16 %v8094, %v8093
        %v8127 = vpack.c.b16 %v8096, %v8095
        %v8128 = vpack.c.b16 %v8098, %v8097
        %v8129 = vpack.c.b16 %v8100, %v8099
        %v8130 = vpack.c.b16 %v8102, %v8101
        %v8131 = vpack.c.b16 %v8104, %v8103
        %v8132 = vpack.c.b16 %v8106, %v8105
        %v8133 = vpack.c.b16 %v8108, %v8107
        %v8134 = vpack.c.b16 %v8110, %v8109
        %8159 = vmatprep.subr.bf16.mxu0 0
        %8160 = vmatpush1.bf16.msra.mxu0 %v8118
        %8161 = vmatprep.subr.bf16.mxu0 0
        %8162 = vmatpush1.bf16.msra.mxu0 %v8117
        %8163 = vmatprep.subr.bf16.mxu0 0
        %8164 = vmatpush1.bf16.msra.mxu0 %v8116
        %8165 = vmatprep.subr.bf16.mxu0 0
        %8166 = vmatpush1.bf16.msra.mxu0 %v8115
        %8167 = vmatprep.subr.bf16.mxu0 0
        %8168 = vmatpush1.bf16.msra.mxu0 %v8114
        %8169 = vmatprep.subr.bf16.mxu0 0
        %8170 = vmatpush1.bf16.msra.mxu0 %v8113
        %8171 = vmatprep.subr.bf16.mxu0 0
        %8172 = vmatpush1.bf16.msra.mxu0 %v8112
        %8173 = vmatprep.subr.bf16.mxu0 0
        %8174 = vmatpush1.bf16.msra.mxu0 %v8111
        %8175 = vmatprep.subr.bf16.mxu0 0
        %8176 = vmatpush2.bf16.msra.mxu0 %v8126
        %8177 = vmatprep.subr.bf16.mxu0 0
        %8178 = vmatpush2.bf16.msra.mxu0 %v8125
        %8179 = vmatprep.subr.bf16.mxu0 0
        %8180 = vmatpush2.bf16.msra.mxu0 %v8124
        %8181 = vmatprep.subr.bf16.mxu0 0
        %8182 = vmatpush2.bf16.msra.mxu0 %v8123
        %8183 = vmatprep.subr.bf16.mxu0 0
        %8184 = vmatpush2.bf16.msra.mxu0 %v8122
        %8185 = vmatprep.subr.bf16.mxu0 0
        %8186 = vmatpush2.bf16.msra.mxu0 %v8121
        %8187 = vmatprep.subr.bf16.mxu0 0
        %8188 = vmatpush2.bf16.msra.mxu0 %v8120
        %8189 = vmatprep.subr.bf16.mxu0 0
        %8190 = vmatpush2.bf16.msra.mxu0 %v8119
        %8191 = vmatprep.mubr.bf16.mxu0 %v7955
        %8192 = vmatmul.mubr.bf16.gmra.mxu0 %v7954
        %v8193 = vpop.f32.mrf.mxu0
        %v8194 = vadd.f32 0.0, %v8193
        %v8195 = vpop.f32.mrf.mxu0
        %v8196 = vpop.f32.mrf.mxu0
        %v8197 = vadd.f32 0.0, %v8196
        %v8198 = vpop.f32.mrf.mxu0
        %8199 = vmatprep.mubr.bf16.mxu0 %v7958
        %8200 = vmatmul.mubr.bf16.gmra.mxu0 %v7957
        %v8201 = vpop.f32.mrf.mxu0
        %v8202 = vadd.f32 0.0, %v8201
        %v8203 = vpop.f32.mrf.mxu0
        %v8204 = vpop.f32.mrf.mxu0
        %v8205 = vadd.f32 0.0, %v8204
        %v8206 = vpop.f32.mrf.mxu0
        %8207 = vmatprep.mubr.bf16.mxu0 %v7961
        %8208 = vmatmul.mubr.bf16.gmra.mxu0 %v7960
        %v8209 = vpop.f32.mrf.mxu0
        %v8210 = vadd.f32 0.0, %v8209
        %v8211 = vpop.f32.mrf.mxu0
        %v8212 = vpop.f32.mrf.mxu0
        %v8213 = vadd.f32 0.0, %v8212
        %v8214 = vpop.f32.mrf.mxu0
        %8215 = vmatprep.mubr.bf16.mxu0 %v7964
        %8216 = vmatmul.mubr.bf16.gmra.mxu0 %v7963
        %v8217 = vpop.f32.mrf.mxu0
        %v8218 = vadd.f32 0.0, %v8217
        %v8219 = vpop.f32.mrf.mxu0
        %v8220 = vpop.f32.mrf.mxu0
        %v8221 = vadd.f32 0.0, %v8220
        %v8222 = vpop.f32.mrf.mxu0
        %8223 = vdwg.mxu0
        %8224 = vmatprep.subr.bf16.mxu0 0
        %8225 = vmatpush1.bf16.msra.mxu0 %v8134
        %8226 = vmatprep.subr.bf16.mxu0 0
        %8227 = vmatpush1.bf16.msra.mxu0 %v8133
        %8228 = vmatprep.subr.bf16.mxu0 0
        %8229 = vmatpush1.bf16.msra.mxu0 %v8132
        %8230 = vmatprep.subr.bf16.mxu0 0
        %8231 = vmatpush1.bf16.msra.mxu0 %v8131
        %8232 = vmatprep.subr.bf16.mxu0 0
        %8233 = vmatpush1.bf16.msra.mxu0 %v8130
        %8234 = vmatprep.subr.bf16.mxu0 0
        %8235 = vmatpush1.bf16.msra.mxu0 %v8129
        %8236 = vmatprep.subr.bf16.mxu0 0
        %8237 = vmatpush1.bf16.msra.mxu0 %v8128
        %8238 = vmatprep.subr.bf16.mxu0 0
        %8239 = vmatpush1.bf16.msra.mxu0 %v8127
        %8240 = vmatprep.subr.bf16.mxu0 0
        %8241 = vmatpush2.bf16.msra.mxu0 0
        %8242 = vmatprep.subr.bf16.mxu0 0
        %8243 = vmatpush2.bf16.msra.mxu0 0
        %8244 = vmatprep.subr.bf16.mxu0 0
        %8245 = vmatpush2.bf16.msra.mxu0 0
        %8246 = vmatprep.subr.bf16.mxu0 0
        %8247 = vmatpush2.bf16.msra.mxu0 0
        %8248 = vmatprep.subr.bf16.mxu0 0
        %8249 = vmatpush2.bf16.msra.mxu0 0
        %8250 = vmatprep.subr.bf16.mxu0 0
        %8251 = vmatpush2.bf16.msra.mxu0 0
        %8252 = vmatprep.subr.bf16.mxu0 0
        %8253 = vmatpush2.bf16.msra.mxu0 0
        %8254 = vmatprep.subr.bf16.mxu0 0
        %8255 = vmatpush2.bf16.msra.mxu0 0
        %8256 = vmatprep.mubr.bf16.mxu0 0
        %8257 = vmatmul.mubr.bf16.gmra.mxu0 %v7956
        %v8258 = vpop.f32.mrf.mxu0
        %v8259 = vadd.f32 %v8194, %v8258
        %v8260 = vpop.f32.mrf.mxu0
        %v8261 = vpop.f32.mrf.mxu0
        %v8262 = vadd.f32 %v8197, %v8261
        %v8263 = vpop.f32.mrf.mxu0
        %8264 = vmatprep.mubr.bf16.mxu0 0
        %8265 = vmatmul.mubr.bf16.gmra.mxu0 %v7959
        %v8266 = vpop.f32.mrf.mxu0
        %v8267 = vadd.f32 %v8202, %v8266
        %v8268 = vpop.f32.mrf.mxu0
        %v8269 = vpop.f32.mrf.mxu0
        %v8270 = vadd.f32 %v8205, %v8269
        %v8271 = vpop.f32.mrf.mxu0
        %8272 = vmatprep.mubr.bf16.mxu0 0
        %8273 = vmatmul.mubr.bf16.gmra.mxu0 %v7962
        %v8274 = vpop.f32.mrf.mxu0
        %v8275 = vadd.f32 %v8210, %v8274
        %v8276 = vpop.f32.mrf.mxu0
        %v8277 = vpop.f32.mrf.mxu0
        %v8278 = vadd.f32 %v8213, %v8277
        %v8279 = vpop.f32.mrf.mxu0
        %8280 = vmatprep.mubr.bf16.mxu0 0
        %8281 = vmatmul.mubr.bf16.gmra.mxu0 %v7965
        %v8282 = vpop.f32.mrf.mxu0
        %v8283 = vadd.f32 %v8218, %v8282
        %v8284 = vpop.f32.mrf.mxu0
        %v8285 = vpop.f32.mrf.mxu0
        %v8286 = vadd.f32 %v8221, %v8285
        %v8287 = vpop.f32.mrf.mxu0
        %8288 = vdwg.mxu0
        %v8289 = vadd.f32 %v7899, %v8259
        %v8290 = vadd.f32 %v7902, %v8262
        %v8291 = vadd.f32 %v7907, %v8267
        %v8292 = vadd.f32 %v7910, %v8270
        %v8293 = vadd.f32 %v7915, %v8275
        %v8294 = vadd.f32 %v7918, %v8278
        %v8295 = vadd.f32 %v7923, %v8283
        %v8296 = vadd.f32 %v7926, %v8286
        %v8297 = vld [vmem:[%s6] sm:$0x1]
        %v8299 = vlaneseq
        %v8300 = vshrl.u32 %v8299, 7
        %v8301 = vsub.s32 0, %v8300
        %v8302 = vrot.slane %v8297, %v8301
        %v8304 = vadd.f32 %v8289, %v8302
        %v8305 = vadd.f32 %v8290, %v8302
        %v8306 = vadd.f32 %v8291, %v8302
        %v8307 = vadd.f32 %v8292, %v8302
        %v8308 = vadd.f32 %v8293, %v8302
        %v8309 = vadd.f32 %v8294, %v8302
        %v8310 = vadd.f32 %v8295, %v8302
        %v8311 = vadd.f32 %v8296, %v8302
        %v8312 = vmax.f32 %v8304, 0.0
        %v8313 = vmax.f32 %v8305, 0.0
        %v8314 = vmax.f32 %v8306, 0.0
        %v8315 = vmax.f32 %v8307, 0.0
        %v8316 = vmax.f32 %v8308, 0.0
        %v8317 = vmax.f32 %v8309, 0.0
        %v8318 = vmax.f32 %v8310, 0.0
        %v8319 = vmax.f32 %v8311, 0.0
        %8320 = vst [vmem:[#allocation5] sm:$0xff] 0.0
        %8321 = vst [vmem:[#allocation5 + $0x8] sm:$0x3] 0.0
        %8322 = vst [vmem:[#allocation5 + $0x10] sm:$0xff] 0.0
        %8323 = vst [vmem:[#allocation5 + $0x18] sm:$0x3] 0.0
        %8324 = vst [vmem:[#allocation5 + $0x20] sm:$0xff] 0.0
        %8325 = vst [vmem:[#allocation5 + $0x28] sm:$0x3] 0.0
        %8326 = vst [vmem:[#allocation5 + $0x30] sm:$0xff] 0.0
        %8327 = vst [vmem:[#allocation5 + $0x38] sm:$0x3] 0.0
        %8328 = vst [vmem:[#allocation5 + $0x40] sm:$0xff] 0.0
        %8329 = vst [vmem:[#allocation5 + $0x48] sm:$0x3] 0.0
        %8330 = vst [vmem:[#allocation5 + $0x50] sm:$0xff] 0.0
        %8331 = vst [vmem:[#allocation5 + $0x58] sm:$0x3] 0.0
        %8332 = vst [vmem:[#allocation5 + $0x60] sm:$0xff] 0.0
        %8333 = vst [vmem:[#allocation5 + $0x68] sm:$0x3] 0.0
        %8334 = vst [vmem:[#allocation5 + $0x70] sm:$0xff] 0.0
        %8335 = vst [vmem:[#allocation5 + $0x78] sm:$0x3] 0.0
        %8336 = vst [vmem:[#allocation5 + $0x80] sm:$0xff] 0.0
        %8337 = vst [vmem:[#allocation5 + $0x88] sm:$0x3] 0.0
        %8338 = vst [vmem:[#allocation5 + $0x90] sm:$0xff] 0.0
        %8339 = vst [vmem:[#allocation5 + $0x98] sm:$0x3] 0.0
        %s8340 = scalar_lea.vmem [#allocation5], 16
        %8341 = vst [vmem:[%s8340 + $0x1] sm:$0xff] %v8312
        %8342 = vst [vmem:[%s8340 + $0x11] sm:$0xff] %v8313
        %8343 = vst [vmem:[%s8340 + $0x21] sm:$0xff] %v8314
        %8344 = vst [vmem:[%s8340 + $0x31] sm:$0xff] %v8315
        %8345 = vst [vmem:[%s8340 + $0x41] sm:$0xff] %v8316
        %8346 = vst [vmem:[%s8340 + $0x51] sm:$0xff] %v8317
        %8347 = vst [vmem:[%s8340 + $0x61] sm:$0xff] %v8318
        %8348 = vst [vmem:[%s8340 + $0x71] sm:$0xff] %v8319
        %v8349 = vld [vmem:[#allocation5] sm:$0xff]
        %v8350 = vld [vmem:[#allocation5 + $0x10] sm:$0xff]
        %v8351 = vld [vmem:[#allocation5 + $0x20] sm:$0xff]
        %v8352 = vld [vmem:[#allocation5 + $0x30] sm:$0xff]
        %v8353 = vld [vmem:[#allocation5 + $0x40] sm:$0xff]
        %v8354 = vld [vmem:[#allocation5 + $0x50] sm:$0xff]
        %v8355 = vld [vmem:[#allocation5 + $0x60] sm:$0xff]
        %v8356 = vld [vmem:[#allocation5 + $0x70] sm:$0xff]
        %v8357 = vld [vmem:[#allocation5 + $0x1] sm:$0xff]
        %v8358 = vld [vmem:[#allocation5 + $0x11] sm:$0xff]
        %v8359 = vld [vmem:[#allocation5 + $0x21] sm:$0xff]
        %v8360 = vld [vmem:[#allocation5 + $0x31] sm:$0xff]
        %v8361 = vld [vmem:[#allocation5 + $0x41] sm:$0xff]
        %v8362 = vld [vmem:[#allocation5 + $0x51] sm:$0xff]
        %v8363 = vld [vmem:[#allocation5 + $0x61] sm:$0xff]
        %v8364 = vld [vmem:[#allocation5 + $0x71] sm:$0xff]
        %v8365 = vld [vmem:[#allocation5 + $0x2] sm:$0xff]
        %v8366 = vld [vmem:[#allocation5 + $0x12] sm:$0xff]
        %v8367 = vld [vmem:[#allocation5 + $0x22] sm:$0xff]
        %v8368 = vld [vmem:[#allocation5 + $0x32] sm:$0xff]
        %v8369 = vld [vmem:[#allocation5 + $0x42] sm:$0xff]
        %v8370 = vld [vmem:[#allocation5 + $0x52] sm:$0xff]
        %v8371 = vld [vmem:[#allocation5 + $0x62] sm:$0xff]
        %v8372 = vld [vmem:[#allocation5 + $0x72] sm:$0xff]
        %v8373 = vpack.c.bf16 %v8350, %v8349
        %v8374 = vpack.c.bf16 %v8358, %v8357
        %v8375 = vpack.c.bf16 %v8366, %v8365
        %v8376 = vpack.c.bf16 %v8352, %v8351
        %v8377 = vpack.c.bf16 %v8360, %v8359
        %v8378 = vpack.c.bf16 %v8368, %v8367
        %v8379 = vpack.c.bf16 %v8354, %v8353
        %v8380 = vpack.c.bf16 %v8362, %v8361
        %v8381 = vpack.c.bf16 %v8370, %v8369
        %v8382 = vpack.c.bf16 %v8356, %v8355
        %v8383 = vpack.c.bf16 %v8364, %v8363
        %v8384 = vpack.c.bf16 %v8372, %v8371
        %v8385 = vld [vmem:[#allocation9] sm:$0xf]
        %v8386 = vld [vmem:[#allocation9 + $0x4] sm:$0xf]
        %v8387 = vld [vmem:[#allocation9 + $0x8] sm:$0xf]
        %v8388 = vld [vmem:[#allocation9 + $0xc] sm:$0xf]
        %v8389 = vld [vmem:[#allocation9 + $0x10] sm:$0xf]
        %v8390 = vld [vmem:[#allocation9 + $0x14] sm:$0xf]
        %v8391 = vld [vmem:[#allocation9 + $0x18] sm:$0xf]
        %v8392 = vld [vmem:[#allocation9 + $0x1c] sm:$0xf]
        %v8393 = vld [vmem:[#allocation9 + $0x20] sm:$0xf]
        %v8394 = vld [vmem:[#allocation9 + $0x24] sm:$0xf]
        %v8395 = vld [vmem:[#allocation9 + $0x28] sm:$0xf]
        %v8396 = vld [vmem:[#allocation9 + $0x2c] sm:$0xf]
        %v8397 = vld [vmem:[#allocation9 + $0x30] sm:$0xf]
        %v8398 = vld [vmem:[#allocation9 + $0x34] sm:$0xf]
        %v8399 = vld [vmem:[#allocation9 + $0x38] sm:$0xf]
        %v8400 = vld [vmem:[#allocation9 + $0x3c] sm:$0xf]
        %v8401 = vld [vmem:[#allocation9 + $0x40] sm:$0xf]
        %v8402 = vld [vmem:[#allocation9 + $0x44] sm:$0xf]
        %v8403 = vld [vmem:[#allocation9 + $0x48] sm:$0xf]
        %v8404 = vld [vmem:[#allocation9 + $0x4c] sm:$0xf]
        %v8405 = vld [vmem:[#allocation9 + $0x50] sm:$0xf]
        %v8406 = vld [vmem:[#allocation9 + $0x54] sm:$0xf]
        %v8407 = vld [vmem:[#allocation9 + $0x58] sm:$0xf]
        %v8408 = vld [vmem:[#allocation9 + $0x5c] sm:$0xf]
        %v8409 = vld [vmem:[#allocation9 + $0x60] sm:$0xf]
        %v8410 = vld [vmem:[#allocation9 + $0x64] sm:$0xf]
        %v8411 = vld [vmem:[#allocation9 + $0x68] sm:$0xf]
        %v8412 = vld [vmem:[#allocation9 + $0x6c] sm:$0xf]
        %v8413 = vld [vmem:[#allocation9 + $0x70] sm:$0xf]
        %v8414 = vld [vmem:[#allocation9 + $0x74] sm:$0xf]
        %v8415 = vld [vmem:[#allocation9 + $0x78] sm:$0xf]
        %v8416 = vld [vmem:[#allocation9 + $0x7c] sm:$0xf]
        %v8417 = vld [vmem:[#allocation9 + $0x80] sm:$0xf]
        %v8418 = vld [vmem:[#allocation9 + $0x84] sm:$0xf]
        %v8419 = vld [vmem:[#allocation9 + $0x88] sm:$0xf]
        %v8420 = vld [vmem:[#allocation9 + $0x8c] sm:$0xf]
        %v8421 = vld [vmem:[#allocation9 + $0x90] sm:$0xf]
        %v8422 = vld [vmem:[#allocation9 + $0x94] sm:$0xf]
        %v8423 = vld [vmem:[#allocation9 + $0x98] sm:$0xf]
        %v8424 = vld [vmem:[#allocation9 + $0x9c] sm:$0xf]
        %v8425 = vld [vmem:[#allocation9 + $0xa0] sm:$0xf]
        %v8426 = vld [vmem:[#allocation9 + $0xa4] sm:$0xf]
        %v8427 = vld [vmem:[#allocation9 + $0xa8] sm:$0xf]
        %v8428 = vld [vmem:[#allocation9 + $0xac] sm:$0xf]
        %v8429 = vld [vmem:[#allocation9 + $0xb0] sm:$0xf]
        %v8430 = vld [vmem:[#allocation9 + $0xb4] sm:$0xf]
        %v8431 = vld [vmem:[#allocation9 + $0xb8] sm:$0xf]
        %v8432 = vld [vmem:[#allocation9 + $0xbc] sm:$0xf]
        %v8433 = vld [vmem:[%s8340] sm:$0xff]
        %v8434 = vld [vmem:[%s8340 + $0x10] sm:$0xff]
        %v8435 = vld [vmem:[%s8340 + $0x20] sm:$0xff]
        %v8436 = vld [vmem:[%s8340 + $0x30] sm:$0xff]
        %v8437 = vld [vmem:[%s8340 + $0x40] sm:$0xff]
        %v8438 = vld [vmem:[%s8340 + $0x50] sm:$0xff]
        %v8439 = vld [vmem:[%s8340 + $0x60] sm:$0xff]
        %v8440 = vld [vmem:[%s8340 + $0x70] sm:$0xff]
        %v8441 = vld [vmem:[%s8340 + $0x1] sm:$0xff]
        %v8442 = vld [vmem:[%s8340 + $0x11] sm:$0xff]
        %v8443 = vld [vmem:[%s8340 + $0x21] sm:$0xff]
        %v8444 = vld [vmem:[%s8340 + $0x31] sm:$0xff]
        %v8445 = vld [vmem:[%s8340 + $0x41] sm:$0xff]
        %v8446 = vld [vmem:[%s8340 + $0x51] sm:$0xff]
        %v8447 = vld [vmem:[%s8340 + $0x61] sm:$0xff]
        %v8448 = vld [vmem:[%s8340 + $0x71] sm:$0xff]
        %v8449 = vld [vmem:[%s8340 + $0x2] sm:$0xff]
        %v8450 = vld [vmem:[%s8340 + $0x12] sm:$0xff]
        %v8451 = vld [vmem:[%s8340 + $0x22] sm:$0xff]
        %v8452 = vld [vmem:[%s8340 + $0x32] sm:$0xff]
        %v8453 = vld [vmem:[%s8340 + $0x42] sm:$0xff]
        %v8454 = vld [vmem:[%s8340 + $0x52] sm:$0xff]
        %v8455 = vld [vmem:[%s8340 + $0x62] sm:$0xff]
        %v8456 = vld [vmem:[%s8340 + $0x72] sm:$0xff]
        %v8457 = vpack.c.bf16 %v8434, %v8433
        %v8458 = vpack.c.bf16 %v8442, %v8441
        %v8459 = vpack.c.bf16 %v8450, %v8449
        %v8460 = vpack.c.bf16 %v8436, %v8435
        %v8461 = vpack.c.bf16 %v8444, %v8443
        %v8462 = vpack.c.bf16 %v8452, %v8451
        %v8463 = vpack.c.bf16 %v8438, %v8437
        %v8464 = vpack.c.bf16 %v8446, %v8445
        %v8465 = vpack.c.bf16 %v8454, %v8453
        %v8466 = vpack.c.bf16 %v8440, %v8439
        %v8467 = vpack.c.bf16 %v8448, %v8447
        %v8468 = vpack.c.bf16 %v8456, %v8455
        %s8469 = scalar_lea.vmem [#allocation9], 192
        %v8470 = vld [vmem:[%s8469] sm:$0xf]
        %v8471 = vld [vmem:[%s8469 + $0x4] sm:$0xf]
        %v8472 = vld [vmem:[%s8469 + $0x8] sm:$0xf]
        %v8473 = vld [vmem:[%s8469 + $0xc] sm:$0xf]
        %v8474 = vld [vmem:[%s8469 + $0x10] sm:$0xf]
        %v8475 = vld [vmem:[%s8469 + $0x14] sm:$0xf]
        %v8476 = vld [vmem:[%s8469 + $0x18] sm:$0xf]
        %v8477 = vld [vmem:[%s8469 + $0x1c] sm:$0xf]
        %v8478 = vld [vmem:[%s8469 + $0x20] sm:$0xf]
        %v8479 = vld [vmem:[%s8469 + $0x24] sm:$0xf]
        %v8480 = vld [vmem:[%s8469 + $0x28] sm:$0xf]
        %v8481 = vld [vmem:[%s8469 + $0x2c] sm:$0xf]
        %v8482 = vld [vmem:[%s8469 + $0x30] sm:$0xf]
        %v8483 = vld [vmem:[%s8469 + $0x34] sm:$0xf]
        %v8484 = vld [vmem:[%s8469 + $0x38] sm:$0xf]
        %v8485 = vld [vmem:[%s8469 + $0x3c] sm:$0xf]
        %v8486 = vld [vmem:[%s8469 + $0x40] sm:$0xf]
        %v8487 = vld [vmem:[%s8469 + $0x44] sm:$0xf]
        %v8488 = vld [vmem:[%s8469 + $0x48] sm:$0xf]
        %v8489 = vld [vmem:[%s8469 + $0x4c] sm:$0xf]
        %v8490 = vld [vmem:[%s8469 + $0x50] sm:$0xf]
        %v8491 = vld [vmem:[%s8469 + $0x54] sm:$0xf]
        %v8492 = vld [vmem:[%s8469 + $0x58] sm:$0xf]
        %v8493 = vld [vmem:[%s8469 + $0x5c] sm:$0xf]
        %v8494 = vld [vmem:[%s8469 + $0x60] sm:$0xf]
        %v8495 = vld [vmem:[%s8469 + $0x64] sm:$0xf]
        %v8496 = vld [vmem:[%s8469 + $0x68] sm:$0xf]
        %v8497 = vld [vmem:[%s8469 + $0x6c] sm:$0xf]
        %v8498 = vld [vmem:[%s8469 + $0x70] sm:$0xf]
        %v8499 = vld [vmem:[%s8469 + $0x74] sm:$0xf]
        %v8500 = vld [vmem:[%s8469 + $0x78] sm:$0xf]
        %v8501 = vld [vmem:[%s8469 + $0x7c] sm:$0xf]
        %v8502 = vld [vmem:[%s8469 + $0x80] sm:$0xf]
        %v8503 = vld [vmem:[%s8469 + $0x84] sm:$0xf]
        %v8504 = vld [vmem:[%s8469 + $0x88] sm:$0xf]
        %v8505 = vld [vmem:[%s8469 + $0x8c] sm:$0xf]
        %v8506 = vld [vmem:[%s8469 + $0x90] sm:$0xf]
        %v8507 = vld [vmem:[%s8469 + $0x94] sm:$0xf]
        %v8508 = vld [vmem:[%s8469 + $0x98] sm:$0xf]
        %v8509 = vld [vmem:[%s8469 + $0x9c] sm:$0xf]
        %v8510 = vld [vmem:[%s8469 + $0xa0] sm:$0xf]
        %v8511 = vld [vmem:[%s8469 + $0xa4] sm:$0xf]
        %v8512 = vld [vmem:[%s8469 + $0xa8] sm:$0xf]
        %v8513 = vld [vmem:[%s8469 + $0xac] sm:$0xf]
        %v8514 = vld [vmem:[%s8469 + $0xb0] sm:$0xf]
        %v8515 = vld [vmem:[%s8469 + $0xb4] sm:$0xf]
        %v8516 = vld [vmem:[%s8469 + $0xb8] sm:$0xf]
        %v8517 = vld [vmem:[%s8469 + $0xbc] sm:$0xf]
        %v8566 = vunpack.c.l.b16 %v8470
        %v8567 = vunpack.c.l.b16 %v8471
        %v8568 = vunpack.c.l.b16 %v8472
        %v8569 = vunpack.c.l.b16 %v8473
        %v8570 = vunpack.c.l.b16 %v8474
        %v8571 = vunpack.c.l.b16 %v8475
        %v8572 = vunpack.c.l.b16 %v8476
        %v8573 = vunpack.c.l.b16 %v8477
        %v8574 = vunpack.c.l.b16 %v8478
        %v8575 = vunpack.c.l.b16 %v8479
        %v8576 = vunpack.c.l.b16 %v8480
        %v8577 = vunpack.c.l.b16 %v8481
        %v8578 = vunpack.c.l.b16 %v8482
        %v8579 = vunpack.c.l.b16 %v8483
        %v8580 = vunpack.c.l.b16 %v8484
        %v8581 = vunpack.c.l.b16 %v8485
        %v8582 = vunpack.c.l.b16 %v8486
        %v8583 = vunpack.c.l.b16 %v8487
        %v8584 = vunpack.c.l.b16 %v8488
        %v8585 = vunpack.c.l.b16 %v8489
        %v8586 = vunpack.c.l.b16 %v8490
        %v8587 = vunpack.c.l.b16 %v8491
        %v8588 = vunpack.c.l.b16 %v8492
        %v8589 = vunpack.c.l.b16 %v8493
        %v8590 = vunpack.c.l.b16 %v8494
        %v8591 = vunpack.c.l.b16 %v8495
        %v8592 = vunpack.c.l.b16 %v8496
        %v8593 = vunpack.c.l.b16 %v8497
        %v8594 = vunpack.c.l.b16 %v8498
        %v8595 = vunpack.c.l.b16 %v8499
        %v8596 = vunpack.c.l.b16 %v8500
        %v8597 = vunpack.c.l.b16 %v8501
        %v8598 = vunpack.c.l.b16 %v8502
        %v8599 = vunpack.c.l.b16 %v8503
        %v8600 = vunpack.c.l.b16 %v8504
        %v8601 = vunpack.c.l.b16 %v8505
        %v8602 = vunpack.c.l.b16 %v8506
        %v8603 = vunpack.c.l.b16 %v8507
        %v8604 = vunpack.c.l.b16 %v8508
        %v8605 = vunpack.c.l.b16 %v8509
        %v8606 = vunpack.c.l.b16 %v8510
        %v8607 = vunpack.c.l.b16 %v8511
        %v8608 = vunpack.c.l.b16 %v8512
        %v8609 = vunpack.c.l.b16 %v8513
        %v8610 = vunpack.c.l.b16 %v8514
        %v8611 = vunpack.c.l.b16 %v8515
        %v8612 = vunpack.c.l.b16 %v8516
        %v8613 = vunpack.c.l.b16 %v8517
        %v8614 = vpack.c.b16 %v8567, %v8566
        %v8615 = vpack.c.b16 %v8569, %v8568
        %v8616 = vpack.c.b16 %v8571, %v8570
        %v8617 = vpack.c.b16 %v8573, %v8572
        %v8618 = vpack.c.b16 %v8575, %v8574
        %v8619 = vpack.c.b16 %v8577, %v8576
        %v8620 = vpack.c.b16 %v8579, %v8578
        %v8621 = vpack.c.b16 %v8581, %v8580
        %v8622 = vpack.c.b16 %v8583, %v8582
        %v8623 = vpack.c.b16 %v8585, %v8584
        %v8624 = vpack.c.b16 %v8587, %v8586
        %v8625 = vpack.c.b16 %v8589, %v8588
        %v8626 = vpack.c.b16 %v8591, %v8590
        %v8627 = vpack.c.b16 %v8593, %v8592
        %v8628 = vpack.c.b16 %v8595, %v8594
        %v8629 = vpack.c.b16 %v8597, %v8596
        %v8630 = vpack.c.b16 %v8599, %v8598
        %v8631 = vpack.c.b16 %v8601, %v8600
        %v8632 = vpack.c.b16 %v8603, %v8602
        %v8633 = vpack.c.b16 %v8605, %v8604
        %v8634 = vpack.c.b16 %v8607, %v8606
        %v8635 = vpack.c.b16 %v8609, %v8608
        %v8636 = vpack.c.b16 %v8611, %v8610
        %v8637 = vpack.c.b16 %v8613, %v8612
        %8662 = vmatprep.subr.bf16.mxu0 0
        %8663 = vmatpush1.bf16.msra.mxu0 %v8621
        %8664 = vmatprep.subr.bf16.mxu0 0
        %8665 = vmatpush1.bf16.msra.mxu0 %v8620
        %8666 = vmatprep.subr.bf16.mxu0 0
        %8667 = vmatpush1.bf16.msra.mxu0 %v8619
        %8668 = vmatprep.subr.bf16.mxu0 0
        %8669 = vmatpush1.bf16.msra.mxu0 %v8618
        %8670 = vmatprep.subr.bf16.mxu0 0
        %8671 = vmatpush1.bf16.msra.mxu0 %v8617
        %8672 = vmatprep.subr.bf16.mxu0 0
        %8673 = vmatpush1.bf16.msra.mxu0 %v8616
        %8674 = vmatprep.subr.bf16.mxu0 0
        %8675 = vmatpush1.bf16.msra.mxu0 %v8615
        %8676 = vmatprep.subr.bf16.mxu0 0
        %8677 = vmatpush1.bf16.msra.mxu0 %v8614
        %8678 = vmatprep.subr.bf16.mxu0 0
        %8679 = vmatpush2.bf16.msra.mxu0 %v8629
        %8680 = vmatprep.subr.bf16.mxu0 0
        %8681 = vmatpush2.bf16.msra.mxu0 %v8628
        %8682 = vmatprep.subr.bf16.mxu0 0
        %8683 = vmatpush2.bf16.msra.mxu0 %v8627
        %8684 = vmatprep.subr.bf16.mxu0 0
        %8685 = vmatpush2.bf16.msra.mxu0 %v8626
        %8686 = vmatprep.subr.bf16.mxu0 0
        %8687 = vmatpush2.bf16.msra.mxu0 %v8625
        %8688 = vmatprep.subr.bf16.mxu0 0
        %8689 = vmatpush2.bf16.msra.mxu0 %v8624
        %8690 = vmatprep.subr.bf16.mxu0 0
        %8691 = vmatpush2.bf16.msra.mxu0 %v8623
        %8692 = vmatprep.subr.bf16.mxu0 0
        %8693 = vmatpush2.bf16.msra.mxu0 %v8622
        %8694 = vmatprep.mubr.bf16.mxu0 %v8458
        %8695 = vmatmul.mubr.bf16.gmra.mxu0 %v8457
        %v8696 = vpop.f32.mrf.mxu0
        %v8697 = vadd.f32 0.0, %v8696
        %v8698 = vpop.f32.mrf.mxu0
        %v8699 = vpop.f32.mrf.mxu0
        %v8700 = vadd.f32 0.0, %v8699
        %v8701 = vpop.f32.mrf.mxu0
        %8702 = vmatprep.mubr.bf16.mxu0 %v8461
        %8703 = vmatmul.mubr.bf16.gmra.mxu0 %v8460
        %v8704 = vpop.f32.mrf.mxu0
        %v8705 = vadd.f32 0.0, %v8704
        %v8706 = vpop.f32.mrf.mxu0
        %v8707 = vpop.f32.mrf.mxu0
        %v8708 = vadd.f32 0.0, %v8707
        %v8709 = vpop.f32.mrf.mxu0
        %8710 = vmatprep.mubr.bf16.mxu0 %v8464
        %8711 = vmatmul.mubr.bf16.gmra.mxu0 %v8463
        %v8712 = vpop.f32.mrf.mxu0
        %v8713 = vadd.f32 0.0, %v8712
        %v8714 = vpop.f32.mrf.mxu0
        %v8715 = vpop.f32.mrf.mxu0
        %v8716 = vadd.f32 0.0, %v8715
        %v8717 = vpop.f32.mrf.mxu0
        %8718 = vmatprep.mubr.bf16.mxu0 %v8467
        %8719 = vmatmul.mubr.bf16.gmra.mxu0 %v8466
        %v8720 = vpop.f32.mrf.mxu0
        %v8721 = vadd.f32 0.0, %v8720
        %v8722 = vpop.f32.mrf.mxu0
        %v8723 = vpop.f32.mrf.mxu0
        %v8724 = vadd.f32 0.0, %v8723
        %v8725 = vpop.f32.mrf.mxu0
        %8726 = vdwg.mxu0
        %8727 = vmatprep.subr.bf16.mxu0 0
        %8728 = vmatpush1.bf16.msra.mxu0 %v8637
        %8729 = vmatprep.subr.bf16.mxu0 0
        %8730 = vmatpush1.bf16.msra.mxu0 %v8636
        %8731 = vmatprep.subr.bf16.mxu0 0
        %8732 = vmatpush1.bf16.msra.mxu0 %v8635
        %8733 = vmatprep.subr.bf16.mxu0 0
        %8734 = vmatpush1.bf16.msra.mxu0 %v8634
        %8735 = vmatprep.subr.bf16.mxu0 0
        %8736 = vmatpush1.bf16.msra.mxu0 %v8633
        %8737 = vmatprep.subr.bf16.mxu0 0
        %8738 = vmatpush1.bf16.msra.mxu0 %v8632
        %8739 = vmatprep.subr.bf16.mxu0 0
        %8740 = vmatpush1.bf16.msra.mxu0 %v8631
        %8741 = vmatprep.subr.bf16.mxu0 0
        %8742 = vmatpush1.bf16.msra.mxu0 %v8630
        %8743 = vmatprep.subr.bf16.mxu0 0
        %8744 = vmatpush2.bf16.msra.mxu0 0
        %8745 = vmatprep.subr.bf16.mxu0 0
        %8746 = vmatpush2.bf16.msra.mxu0 0
        %8747 = vmatprep.subr.bf16.mxu0 0
        %8748 = vmatpush2.bf16.msra.mxu0 0
        %8749 = vmatprep.subr.bf16.mxu0 0
        %8750 = vmatpush2.bf16.msra.mxu0 0
        %8751 = vmatprep.subr.bf16.mxu0 0
        %8752 = vmatpush2.bf16.msra.mxu0 0
        %8753 = vmatprep.subr.bf16.mxu0 0
        %8754 = vmatpush2.bf16.msra.mxu0 0
        %8755 = vmatprep.subr.bf16.mxu0 0
        %8756 = vmatpush2.bf16.msra.mxu0 0
        %8757 = vmatprep.subr.bf16.mxu0 0
        %8758 = vmatpush2.bf16.msra.mxu0 0
        %8759 = vmatprep.mubr.bf16.mxu0 0
        %8760 = vmatmul.mubr.bf16.gmra.mxu0 %v8459
        %v8761 = vpop.f32.mrf.mxu0
        %v8762 = vadd.f32 %v8697, %v8761
        %v8763 = vpop.f32.mrf.mxu0
        %v8764 = vpop.f32.mrf.mxu0
        %v8765 = vadd.f32 %v8700, %v8764
        %v8766 = vpop.f32.mrf.mxu0
        %8767 = vmatprep.mubr.bf16.mxu0 0
        %8768 = vmatmul.mubr.bf16.gmra.mxu0 %v8462
        %v8769 = vpop.f32.mrf.mxu0
        %v8770 = vadd.f32 %v8705, %v8769
        %v8771 = vpop.f32.mrf.mxu0
        %v8772 = vpop.f32.mrf.mxu0
        %v8773 = vadd.f32 %v8708, %v8772
        %v8774 = vpop.f32.mrf.mxu0
        %8775 = vmatprep.mubr.bf16.mxu0 0
        %8776 = vmatmul.mubr.bf16.gmra.mxu0 %v8465
        %v8777 = vpop.f32.mrf.mxu0
        %v8778 = vadd.f32 %v8713, %v8777
        %v8779 = vpop.f32.mrf.mxu0
        %v8780 = vpop.f32.mrf.mxu0
        %v8781 = vadd.f32 %v8716, %v8780
        %v8782 = vpop.f32.mrf.mxu0
        %8783 = vmatprep.mubr.bf16.mxu0 0
        %8784 = vmatmul.mubr.bf16.gmra.mxu0 %v8468
        %v8785 = vpop.f32.mrf.mxu0
        %v8786 = vadd.f32 %v8721, %v8785
        %v8787 = vpop.f32.mrf.mxu0
        %v8788 = vpop.f32.mrf.mxu0
        %v8789 = vadd.f32 %v8724, %v8788
        %v8790 = vpop.f32.mrf.mxu0
        %8791 = vdwg.mxu0
        %v8840 = vunpack.c.l.b16 %v8385
        %v8841 = vunpack.c.l.b16 %v8386
        %v8842 = vunpack.c.l.b16 %v8387
        %v8843 = vunpack.c.l.b16 %v8388
        %v8844 = vunpack.c.l.b16 %v8389
        %v8845 = vunpack.c.l.b16 %v8390
        %v8846 = vunpack.c.l.b16 %v8391
        %v8847 = vunpack.c.l.b16 %v8392
        %v8848 = vunpack.c.l.b16 %v8393
        %v8849 = vunpack.c.l.b16 %v8394
        %v8850 = vunpack.c.l.b16 %v8395
        %v8851 = vunpack.c.l.b16 %v8396
        %v8852 = vunpack.c.l.b16 %v8397
        %v8853 = vunpack.c.l.b16 %v8398
        %v8854 = vunpack.c.l.b16 %v8399
        %v8855 = vunpack.c.l.b16 %v8400
        %v8856 = vunpack.c.l.b16 %v8401
        %v8857 = vunpack.c.l.b16 %v8402
        %v8858 = vunpack.c.l.b16 %v8403
        %v8859 = vunpack.c.l.b16 %v8404
        %v8860 = vunpack.c.l.b16 %v8405
        %v8861 = vunpack.c.l.b16 %v8406
        %v8862 = vunpack.c.l.b16 %v8407
        %v8863 = vunpack.c.l.b16 %v8408
        %v8864 = vunpack.c.l.b16 %v8409
        %v8865 = vunpack.c.l.b16 %v8410
        %v8866 = vunpack.c.l.b16 %v8411
        %v8867 = vunpack.c.l.b16 %v8412
        %v8868 = vunpack.c.l.b16 %v8413
        %v8869 = vunpack.c.l.b16 %v8414
        %v8870 = vunpack.c.l.b16 %v8415
        %v8871 = vunpack.c.l.b16 %v8416
        %v8872 = vunpack.c.l.b16 %v8417
        %v8873 = vunpack.c.l.b16 %v8418
        %v8874 = vunpack.c.l.b16 %v8419
        %v8875 = vunpack.c.l.b16 %v8420
        %v8876 = vunpack.c.l.b16 %v8421
        %v8877 = vunpack.c.l.b16 %v8422
        %v8878 = vunpack.c.l.b16 %v8423
        %v8879 = vunpack.c.l.b16 %v8424
        %v8880 = vunpack.c.l.b16 %v8425
        %v8881 = vunpack.c.l.b16 %v8426
        %v8882 = vunpack.c.l.b16 %v8427
        %v8883 = vunpack.c.l.b16 %v8428
        %v8884 = vunpack.c.l.b16 %v8429
        %v8885 = vunpack.c.l.b16 %v8430
        %v8886 = vunpack.c.l.b16 %v8431
        %v8887 = vunpack.c.l.b16 %v8432
        %v8888 = vpack.c.b16 %v8841, %v8840
        %v8889 = vpack.c.b16 %v8843, %v8842
        %v8890 = vpack.c.b16 %v8845, %v8844
        %v8891 = vpack.c.b16 %v8847, %v8846
        %v8892 = vpack.c.b16 %v8849, %v8848
        %v8893 = vpack.c.b16 %v8851, %v8850
        %v8894 = vpack.c.b16 %v8853, %v8852
        %v8895 = vpack.c.b16 %v8855, %v8854
        %v8896 = vpack.c.b16 %v8857, %v8856
        %v8897 = vpack.c.b16 %v8859, %v8858
        %v8898 = vpack.c.b16 %v8861, %v8860
        %v8899 = vpack.c.b16 %v8863, %v8862
        %v8900 = vpack.c.b16 %v8865, %v8864
        %v8901 = vpack.c.b16 %v8867, %v8866
        %v8902 = vpack.c.b16 %v8869, %v8868
        %v8903 = vpack.c.b16 %v8871, %v8870
        %v8904 = vpack.c.b16 %v8873, %v8872
        %v8905 = vpack.c.b16 %v8875, %v8874
        %v8906 = vpack.c.b16 %v8877, %v8876
        %v8907 = vpack.c.b16 %v8879, %v8878
        %v8908 = vpack.c.b16 %v8881, %v8880
        %v8909 = vpack.c.b16 %v8883, %v8882
        %v8910 = vpack.c.b16 %v8885, %v8884
        %v8911 = vpack.c.b16 %v8887, %v8886
        %8936 = vmatprep.subr.bf16.mxu0 0
        %8937 = vmatpush1.bf16.msra.mxu0 %v8895
        %8938 = vmatprep.subr.bf16.mxu0 0
        %8939 = vmatpush1.bf16.msra.mxu0 %v8894
        %8940 = vmatprep.subr.bf16.mxu0 0
        %8941 = vmatpush1.bf16.msra.mxu0 %v8893
        %8942 = vmatprep.subr.bf16.mxu0 0
        %8943 = vmatpush1.bf16.msra.mxu0 %v8892
        %8944 = vmatprep.subr.bf16.mxu0 0
        %8945 = vmatpush1.bf16.msra.mxu0 %v8891
        %8946 = vmatprep.subr.bf16.mxu0 0
        %8947 = vmatpush1.bf16.msra.mxu0 %v8890
        %8948 = vmatprep.subr.bf16.mxu0 0
        %8949 = vmatpush1.bf16.msra.mxu0 %v8889
        %8950 = vmatprep.subr.bf16.mxu0 0
        %8951 = vmatpush1.bf16.msra.mxu0 %v8888
        %8952 = vmatprep.subr.bf16.mxu0 0
        %8953 = vmatpush2.bf16.msra.mxu0 %v8903
        %8954 = vmatprep.subr.bf16.mxu0 0
        %8955 = vmatpush2.bf16.msra.mxu0 %v8902
        %8956 = vmatprep.subr.bf16.mxu0 0
        %8957 = vmatpush2.bf16.msra.mxu0 %v8901
        %8958 = vmatprep.subr.bf16.mxu0 0
        %8959 = vmatpush2.bf16.msra.mxu0 %v8900
        %8960 = vmatprep.subr.bf16.mxu0 0
        %8961 = vmatpush2.bf16.msra.mxu0 %v8899
        %8962 = vmatprep.subr.bf16.mxu0 0
        %8963 = vmatpush2.bf16.msra.mxu0 %v8898
        %8964 = vmatprep.subr.bf16.mxu0 0
        %8965 = vmatpush2.bf16.msra.mxu0 %v8897
        %8966 = vmatprep.subr.bf16.mxu0 0
        %8967 = vmatpush2.bf16.msra.mxu0 %v8896
        %8968 = vmatprep.mubr.bf16.mxu0 %v8374
        %8969 = vmatmul.mubr.bf16.gmra.mxu0 %v8373
        %v8970 = vpop.f32.mrf.mxu0
        %v8971 = vadd.f32 %v8762, %v8970
        %v8972 = vpop.f32.mrf.mxu0
        %v8973 = vpop.f32.mrf.mxu0
        %v8974 = vadd.f32 %v8765, %v8973
        %v8975 = vpop.f32.mrf.mxu0
        %8976 = vmatprep.mubr.bf16.mxu0 %v8377
        %8977 = vmatmul.mubr.bf16.gmra.mxu0 %v8376
        %v8978 = vpop.f32.mrf.mxu0
        %v8979 = vadd.f32 %v8770, %v8978
        %v8980 = vpop.f32.mrf.mxu0
        %v8981 = vpop.f32.mrf.mxu0
        %v8982 = vadd.f32 %v8773, %v8981
        %v8983 = vpop.f32.mrf.mxu0
        %8984 = vmatprep.mubr.bf16.mxu0 %v8380
        %8985 = vmatmul.mubr.bf16.gmra.mxu0 %v8379
        %v8986 = vpop.f32.mrf.mxu0
        %v8987 = vadd.f32 %v8778, %v8986
        %v8988 = vpop.f32.mrf.mxu0
        %v8989 = vpop.f32.mrf.mxu0
        %v8990 = vadd.f32 %v8781, %v8989
        %v8991 = vpop.f32.mrf.mxu0
        %8992 = vmatprep.mubr.bf16.mxu0 %v8383
        %8993 = vmatmul.mubr.bf16.gmra.mxu0 %v8382
        %v8994 = vpop.f32.mrf.mxu0
        %v8995 = vadd.f32 %v8786, %v8994
        %v8996 = vpop.f32.mrf.mxu0
        %v8997 = vpop.f32.mrf.mxu0
        %v8998 = vadd.f32 %v8789, %v8997
        %v8999 = vpop.f32.mrf.mxu0
        %9000 = vdwg.mxu0
        %9001 = vmatprep.subr.bf16.mxu0 0
        %9002 = vmatpush1.bf16.msra.mxu0 %v8911
        %9003 = vmatprep.subr.bf16.mxu0 0
        %9004 = vmatpush1.bf16.msra.mxu0 %v8910
        %9005 = vmatprep.subr.bf16.mxu0 0
        %9006 = vmatpush1.bf16.msra.mxu0 %v8909
        %9007 = vmatprep.subr.bf16.mxu0 0
        %9008 = vmatpush1.bf16.msra.mxu0 %v8908
        %9009 = vmatprep.subr.bf16.mxu0 0
        %9010 = vmatpush1.bf16.msra.mxu0 %v8907
        %9011 = vmatprep.subr.bf16.mxu0 0
        %9012 = vmatpush1.bf16.msra.mxu0 %v8906
        %9013 = vmatprep.subr.bf16.mxu0 0
        %9014 = vmatpush1.bf16.msra.mxu0 %v8905
        %9015 = vmatprep.subr.bf16.mxu0 0
        %9016 = vmatpush1.bf16.msra.mxu0 %v8904
        %9017 = vmatprep.subr.bf16.mxu0 0
        %9018 = vmatpush2.bf16.msra.mxu0 0
        %9019 = vmatprep.subr.bf16.mxu0 0
        %9020 = vmatpush2.bf16.msra.mxu0 0
        %9021 = vmatprep.subr.bf16.mxu0 0
        %9022 = vmatpush2.bf16.msra.mxu0 0
        %9023 = vmatprep.subr.bf16.mxu0 0
        %9024 = vmatpush2.bf16.msra.mxu0 0
        %9025 = vmatprep.subr.bf16.mxu0 0
        %9026 = vmatpush2.bf16.msra.mxu0 0
        %9027 = vmatprep.subr.bf16.mxu0 0
        %9028 = vmatpush2.bf16.msra.mxu0 0
        %9029 = vmatprep.subr.bf16.mxu0 0
        %9030 = vmatpush2.bf16.msra.mxu0 0
        %9031 = vmatprep.subr.bf16.mxu0 0
        %9032 = vmatpush2.bf16.msra.mxu0 0
        %9033 = vmatprep.mubr.bf16.mxu0 0
        %9034 = vmatmul.mubr.bf16.gmra.mxu0 %v8375
        %v9035 = vpop.f32.mrf.mxu0
        %v9036 = vadd.f32 %v8971, %v9035
        %v9037 = vpop.f32.mrf.mxu0
        %v9038 = vpop.f32.mrf.mxu0
        %v9039 = vadd.f32 %v8974, %v9038
        %v9040 = vpop.f32.mrf.mxu0
        %9041 = vmatprep.mubr.bf16.mxu0 0
        %9042 = vmatmul.mubr.bf16.gmra.mxu0 %v8378
        %v9043 = vpop.f32.mrf.mxu0
        %v9044 = vadd.f32 %v8979, %v9043
        %v9045 = vpop.f32.mrf.mxu0
        %v9046 = vpop.f32.mrf.mxu0
        %v9047 = vadd.f32 %v8982, %v9046
        %v9048 = vpop.f32.mrf.mxu0
        %9049 = vmatprep.mubr.bf16.mxu0 0
        %9050 = vmatmul.mubr.bf16.gmra.mxu0 %v8381
        %v9051 = vpop.f32.mrf.mxu0
        %v9052 = vadd.f32 %v8987, %v9051
        %v9053 = vpop.f32.mrf.mxu0
        %v9054 = vpop.f32.mrf.mxu0
        %v9055 = vadd.f32 %v8990, %v9054
        %v9056 = vpop.f32.mrf.mxu0
        %9057 = vmatprep.mubr.bf16.mxu0 0
        %9058 = vmatmul.mubr.bf16.gmra.mxu0 %v8384
        %v9059 = vpop.f32.mrf.mxu0
        %v9060 = vadd.f32 %v8995, %v9059
        %v9061 = vpop.f32.mrf.mxu0
        %v9062 = vpop.f32.mrf.mxu0
        %v9063 = vadd.f32 %v8998, %v9062
        %v9064 = vpop.f32.mrf.mxu0
        %9065 = vdwg.mxu0
        %s9066 = scalar_lea.vmem [#allocation5], 32
        %v9067 = vld [vmem:[%s9066] sm:$0xff]
        %v9068 = vld [vmem:[%s9066 + $0x10] sm:$0xff]
        %v9069 = vld [vmem:[%s9066 + $0x20] sm:$0xff]
        %v9070 = vld [vmem:[%s9066 + $0x30] sm:$0xff]
        %v9071 = vld [vmem:[%s9066 + $0x40] sm:$0xff]
        %v9072 = vld [vmem:[%s9066 + $0x50] sm:$0xff]
        %v9073 = vld [vmem:[%s9066 + $0x60] sm:$0xff]
        %v9074 = vld [vmem:[%s9066 + $0x70] sm:$0xff]
        %v9075 = vld [vmem:[%s9066 + $0x1] sm:$0xff]
        %v9076 = vld [vmem:[%s9066 + $0x11] sm:$0xff]
        %v9077 = vld [vmem:[%s9066 + $0x21] sm:$0xff]
        %v9078 = vld [vmem:[%s9066 + $0x31] sm:$0xff]
        %v9079 = vld [vmem:[%s9066 + $0x41] sm:$0xff]
        %v9080 = vld [vmem:[%s9066 + $0x51] sm:$0xff]
        %v9081 = vld [vmem:[%s9066 + $0x61] sm:$0xff]
        %v9082 = vld [vmem:[%s9066 + $0x71] sm:$0xff]
        %v9083 = vld [vmem:[%s9066 + $0x2] sm:$0xff]
        %v9084 = vld [vmem:[%s9066 + $0x12] sm:$0xff]
        %v9085 = vld [vmem:[%s9066 + $0x22] sm:$0xff]
        %v9086 = vld [vmem:[%s9066 + $0x32] sm:$0xff]
        %v9087 = vld [vmem:[%s9066 + $0x42] sm:$0xff]
        %v9088 = vld [vmem:[%s9066 + $0x52] sm:$0xff]
        %v9089 = vld [vmem:[%s9066 + $0x62] sm:$0xff]
        %v9090 = vld [vmem:[%s9066 + $0x72] sm:$0xff]
        %v9091 = vpack.c.bf16 %v9068, %v9067
        %v9092 = vpack.c.bf16 %v9076, %v9075
        %v9093 = vpack.c.bf16 %v9084, %v9083
        %v9094 = vpack.c.bf16 %v9070, %v9069
        %v9095 = vpack.c.bf16 %v9078, %v9077
        %v9096 = vpack.c.bf16 %v9086, %v9085
        %v9097 = vpack.c.bf16 %v9072, %v9071
        %v9098 = vpack.c.bf16 %v9080, %v9079
        %v9099 = vpack.c.bf16 %v9088, %v9087
        %v9100 = vpack.c.bf16 %v9074, %v9073
        %v9101 = vpack.c.bf16 %v9082, %v9081
        %v9102 = vpack.c.bf16 %v9090, %v9089
        %s9103 = scalar_lea.vmem [#allocation9], 384
        %v9104 = vld [vmem:[%s9103] sm:$0xf]
        %v9105 = vld [vmem:[%s9103 + $0x4] sm:$0xf]
        %v9106 = vld [vmem:[%s9103 + $0x8] sm:$0xf]
        %v9107 = vld [vmem:[%s9103 + $0xc] sm:$0xf]
        %v9108 = vld [vmem:[%s9103 + $0x10] sm:$0xf]
        %v9109 = vld [vmem:[%s9103 + $0x14] sm:$0xf]
        %v9110 = vld [vmem:[%s9103 + $0x18] sm:$0xf]
        %v9111 = vld [vmem:[%s9103 + $0x1c] sm:$0xf]
        %v9112 = vld [vmem:[%s9103 + $0x20] sm:$0xf]
        %v9113 = vld [vmem:[%s9103 + $0x24] sm:$0xf]
        %v9114 = vld [vmem:[%s9103 + $0x28] sm:$0xf]
        %v9115 = vld [vmem:[%s9103 + $0x2c] sm:$0xf]
        %v9116 = vld [vmem:[%s9103 + $0x30] sm:$0xf]
        %v9117 = vld [vmem:[%s9103 + $0x34] sm:$0xf]
        %v9118 = vld [vmem:[%s9103 + $0x38] sm:$0xf]
        %v9119 = vld [vmem:[%s9103 + $0x3c] sm:$0xf]
        %v9120 = vld [vmem:[%s9103 + $0x40] sm:$0xf]
        %v9121 = vld [vmem:[%s9103 + $0x44] sm:$0xf]
        %v9122 = vld [vmem:[%s9103 + $0x48] sm:$0xf]
        %v9123 = vld [vmem:[%s9103 + $0x4c] sm:$0xf]
        %v9124 = vld [vmem:[%s9103 + $0x50] sm:$0xf]
        %v9125 = vld [vmem:[%s9103 + $0x54] sm:$0xf]
        %v9126 = vld [vmem:[%s9103 + $0x58] sm:$0xf]
        %v9127 = vld [vmem:[%s9103 + $0x5c] sm:$0xf]
        %v9128 = vld [vmem:[%s9103 + $0x60] sm:$0xf]
        %v9129 = vld [vmem:[%s9103 + $0x64] sm:$0xf]
        %v9130 = vld [vmem:[%s9103 + $0x68] sm:$0xf]
        %v9131 = vld [vmem:[%s9103 + $0x6c] sm:$0xf]
        %v9132 = vld [vmem:[%s9103 + $0x70] sm:$0xf]
        %v9133 = vld [vmem:[%s9103 + $0x74] sm:$0xf]
        %v9134 = vld [vmem:[%s9103 + $0x78] sm:$0xf]
        %v9135 = vld [vmem:[%s9103 + $0x7c] sm:$0xf]
        %v9136 = vld [vmem:[%s9103 + $0x80] sm:$0xf]
        %v9137 = vld [vmem:[%s9103 + $0x84] sm:$0xf]
        %v9138 = vld [vmem:[%s9103 + $0x88] sm:$0xf]
        %v9139 = vld [vmem:[%s9103 + $0x8c] sm:$0xf]
        %v9140 = vld [vmem:[%s9103 + $0x90] sm:$0xf]
        %v9141 = vld [vmem:[%s9103 + $0x94] sm:$0xf]
        %v9142 = vld [vmem:[%s9103 + $0x98] sm:$0xf]
        %v9143 = vld [vmem:[%s9103 + $0x9c] sm:$0xf]
        %v9144 = vld [vmem:[%s9103 + $0xa0] sm:$0xf]
        %v9145 = vld [vmem:[%s9103 + $0xa4] sm:$0xf]
        %v9146 = vld [vmem:[%s9103 + $0xa8] sm:$0xf]
        %v9147 = vld [vmem:[%s9103 + $0xac] sm:$0xf]
        %v9148 = vld [vmem:[%s9103 + $0xb0] sm:$0xf]
        %v9149 = vld [vmem:[%s9103 + $0xb4] sm:$0xf]
        %v9150 = vld [vmem:[%s9103 + $0xb8] sm:$0xf]
        %v9151 = vld [vmem:[%s9103 + $0xbc] sm:$0xf]
        %v9200 = vunpack.c.l.b16 %v9104
        %v9201 = vunpack.c.l.b16 %v9105
        %v9202 = vunpack.c.l.b16 %v9106
        %v9203 = vunpack.c.l.b16 %v9107
        %v9204 = vunpack.c.l.b16 %v9108
        %v9205 = vunpack.c.l.b16 %v9109
        %v9206 = vunpack.c.l.b16 %v9110
        %v9207 = vunpack.c.l.b16 %v9111
        %v9208 = vunpack.c.l.b16 %v9112
        %v9209 = vunpack.c.l.b16 %v9113
        %v9210 = vunpack.c.l.b16 %v9114
        %v9211 = vunpack.c.l.b16 %v9115
        %v9212 = vunpack.c.l.b16 %v9116
        %v9213 = vunpack.c.l.b16 %v9117
        %v9214 = vunpack.c.l.b16 %v9118
        %v9215 = vunpack.c.l.b16 %v9119
        %v9216 = vunpack.c.l.b16 %v9120
        %v9217 = vunpack.c.l.b16 %v9121
        %v9218 = vunpack.c.l.b16 %v9122
        %v9219 = vunpack.c.l.b16 %v9123
        %v9220 = vunpack.c.l.b16 %v9124
        %v9221 = vunpack.c.l.b16 %v9125
        %v9222 = vunpack.c.l.b16 %v9126
        %v9223 = vunpack.c.l.b16 %v9127
        %v9224 = vunpack.c.l.b16 %v9128
        %v9225 = vunpack.c.l.b16 %v9129
        %v9226 = vunpack.c.l.b16 %v9130
        %v9227 = vunpack.c.l.b16 %v9131
        %v9228 = vunpack.c.l.b16 %v9132
        %v9229 = vunpack.c.l.b16 %v9133
        %v9230 = vunpack.c.l.b16 %v9134
        %v9231 = vunpack.c.l.b16 %v9135
        %v9232 = vunpack.c.l.b16 %v9136
        %v9233 = vunpack.c.l.b16 %v9137
        %v9234 = vunpack.c.l.b16 %v9138
        %v9235 = vunpack.c.l.b16 %v9139
        %v9236 = vunpack.c.l.b16 %v9140
        %v9237 = vunpack.c.l.b16 %v9141
        %v9238 = vunpack.c.l.b16 %v9142
        %v9239 = vunpack.c.l.b16 %v9143
        %v9240 = vunpack.c.l.b16 %v9144
        %v9241 = vunpack.c.l.b16 %v9145
        %v9242 = vunpack.c.l.b16 %v9146
        %v9243 = vunpack.c.l.b16 %v9147
        %v9244 = vunpack.c.l.b16 %v9148
        %v9245 = vunpack.c.l.b16 %v9149
        %v9246 = vunpack.c.l.b16 %v9150
        %v9247 = vunpack.c.l.b16 %v9151
        %v9248 = vpack.c.b16 %v9201, %v9200
        %v9249 = vpack.c.b16 %v9203, %v9202
        %v9250 = vpack.c.b16 %v9205, %v9204
        %v9251 = vpack.c.b16 %v9207, %v9206
        %v9252 = vpack.c.b16 %v9209, %v9208
        %v9253 = vpack.c.b16 %v9211, %v9210
        %v9254 = vpack.c.b16 %v9213, %v9212
        %v9255 = vpack.c.b16 %v9215, %v9214
        %v9256 = vpack.c.b16 %v9217, %v9216
        %v9257 = vpack.c.b16 %v9219, %v9218
        %v9258 = vpack.c.b16 %v9221, %v9220
        %v9259 = vpack.c.b16 %v9223, %v9222
        %v9260 = vpack.c.b16 %v9225, %v9224
        %v9261 = vpack.c.b16 %v9227, %v9226
        %v9262 = vpack.c.b16 %v9229, %v9228
        %v9263 = vpack.c.b16 %v9231, %v9230
        %v9264 = vpack.c.b16 %v9233, %v9232
        %v9265 = vpack.c.b16 %v9235, %v9234
        %v9266 = vpack.c.b16 %v9237, %v9236
        %v9267 = vpack.c.b16 %v9239, %v9238
        %v9268 = vpack.c.b16 %v9241, %v9240
        %v9269 = vpack.c.b16 %v9243, %v9242
        %v9270 = vpack.c.b16 %v9245, %v9244
        %v9271 = vpack.c.b16 %v9247, %v9246
        %9296 = vmatprep.subr.bf16.mxu0 0
        %9297 = vmatpush1.bf16.msra.mxu0 %v9255
        %9298 = vmatprep.subr.bf16.mxu0 0
        %9299 = vmatpush1.bf16.msra.mxu0 %v9254
        %9300 = vmatprep.subr.bf16.mxu0 0
        %9301 = vmatpush1.bf16.msra.mxu0 %v9253
        %9302 = vmatprep.subr.bf16.mxu0 0
        %9303 = vmatpush1.bf16.msra.mxu0 %v9252
        %9304 = vmatprep.subr.bf16.mxu0 0
        %9305 = vmatpush1.bf16.msra.mxu0 %v9251
        %9306 = vmatprep.subr.bf16.mxu0 0
        %9307 = vmatpush1.bf16.msra.mxu0 %v9250
        %9308 = vmatprep.subr.bf16.mxu0 0
        %9309 = vmatpush1.bf16.msra.mxu0 %v9249
        %9310 = vmatprep.subr.bf16.mxu0 0
        %9311 = vmatpush1.bf16.msra.mxu0 %v9248
        %9312 = vmatprep.subr.bf16.mxu0 0
        %9313 = vmatpush2.bf16.msra.mxu0 %v9263
        %9314 = vmatprep.subr.bf16.mxu0 0
        %9315 = vmatpush2.bf16.msra.mxu0 %v9262
        %9316 = vmatprep.subr.bf16.mxu0 0
        %9317 = vmatpush2.bf16.msra.mxu0 %v9261
        %9318 = vmatprep.subr.bf16.mxu0 0
        %9319 = vmatpush2.bf16.msra.mxu0 %v9260
        %9320 = vmatprep.subr.bf16.mxu0 0
        %9321 = vmatpush2.bf16.msra.mxu0 %v9259
        %9322 = vmatprep.subr.bf16.mxu0 0
        %9323 = vmatpush2.bf16.msra.mxu0 %v9258
        %9324 = vmatprep.subr.bf16.mxu0 0
        %9325 = vmatpush2.bf16.msra.mxu0 %v9257
        %9326 = vmatprep.subr.bf16.mxu0 0
        %9327 = vmatpush2.bf16.msra.mxu0 %v9256
        %9328 = vmatprep.mubr.bf16.mxu0 %v9092
        %9329 = vmatmul.mubr.bf16.gmra.mxu0 %v9091
        %v9330 = vpop.f32.mrf.mxu0
        %v9331 = vadd.f32 0.0, %v9330
        %v9332 = vpop.f32.mrf.mxu0
        %v9333 = vpop.f32.mrf.mxu0
        %v9334 = vadd.f32 0.0, %v9333
        %v9335 = vpop.f32.mrf.mxu0
        %9336 = vmatprep.mubr.bf16.mxu0 %v9095
        %9337 = vmatmul.mubr.bf16.gmra.mxu0 %v9094
        %v9338 = vpop.f32.mrf.mxu0
        %v9339 = vadd.f32 0.0, %v9338
        %v9340 = vpop.f32.mrf.mxu0
        %v9341 = vpop.f32.mrf.mxu0
        %v9342 = vadd.f32 0.0, %v9341
        %v9343 = vpop.f32.mrf.mxu0
        %9344 = vmatprep.mubr.bf16.mxu0 %v9098
        %9345 = vmatmul.mubr.bf16.gmra.mxu0 %v9097
        %v9346 = vpop.f32.mrf.mxu0
        %v9347 = vadd.f32 0.0, %v9346
        %v9348 = vpop.f32.mrf.mxu0
        %v9349 = vpop.f32.mrf.mxu0
        %v9350 = vadd.f32 0.0, %v9349
        %v9351 = vpop.f32.mrf.mxu0
        %9352 = vmatprep.mubr.bf16.mxu0 %v9101
        %9353 = vmatmul.mubr.bf16.gmra.mxu0 %v9100
        %v9354 = vpop.f32.mrf.mxu0
        %v9355 = vadd.f32 0.0, %v9354
        %v9356 = vpop.f32.mrf.mxu0
        %v9357 = vpop.f32.mrf.mxu0
        %v9358 = vadd.f32 0.0, %v9357
        %v9359 = vpop.f32.mrf.mxu0
        %9360 = vdwg.mxu0
        %9361 = vmatprep.subr.bf16.mxu0 0
        %9362 = vmatpush1.bf16.msra.mxu0 %v9271
        %9363 = vmatprep.subr.bf16.mxu0 0
        %9364 = vmatpush1.bf16.msra.mxu0 %v9270
        %9365 = vmatprep.subr.bf16.mxu0 0
        %9366 = vmatpush1.bf16.msra.mxu0 %v9269
        %9367 = vmatprep.subr.bf16.mxu0 0
        %9368 = vmatpush1.bf16.msra.mxu0 %v9268
        %9369 = vmatprep.subr.bf16.mxu0 0
        %9370 = vmatpush1.bf16.msra.mxu0 %v9267
        %9371 = vmatprep.subr.bf16.mxu0 0
        %9372 = vmatpush1.bf16.msra.mxu0 %v9266
        %9373 = vmatprep.subr.bf16.mxu0 0
        %9374 = vmatpush1.bf16.msra.mxu0 %v9265
        %9375 = vmatprep.subr.bf16.mxu0 0
        %9376 = vmatpush1.bf16.msra.mxu0 %v9264
        %9377 = vmatprep.subr.bf16.mxu0 0
        %9378 = vmatpush2.bf16.msra.mxu0 0
        %9379 = vmatprep.subr.bf16.mxu0 0
        %9380 = vmatpush2.bf16.msra.mxu0 0
        %9381 = vmatprep.subr.bf16.mxu0 0
        %9382 = vmatpush2.bf16.msra.mxu0 0
        %9383 = vmatprep.subr.bf16.mxu0 0
        %9384 = vmatpush2.bf16.msra.mxu0 0
        %9385 = vmatprep.subr.bf16.mxu0 0
        %9386 = vmatpush2.bf16.msra.mxu0 0
        %9387 = vmatprep.subr.bf16.mxu0 0
        %9388 = vmatpush2.bf16.msra.mxu0 0
        %9389 = vmatprep.subr.bf16.mxu0 0
        %9390 = vmatpush2.bf16.msra.mxu0 0
        %9391 = vmatprep.subr.bf16.mxu0 0
        %9392 = vmatpush2.bf16.msra.mxu0 0
        %9393 = vmatprep.mubr.bf16.mxu0 0
        %9394 = vmatmul.mubr.bf16.gmra.mxu0 %v9093
        %v9395 = vpop.f32.mrf.mxu0
        %v9396 = vadd.f32 %v9331, %v9395
        %v9397 = vpop.f32.mrf.mxu0
        %v9398 = vpop.f32.mrf.mxu0
        %v9399 = vadd.f32 %v9334, %v9398
        %v9400 = vpop.f32.mrf.mxu0
        %9401 = vmatprep.mubr.bf16.mxu0 0
        %9402 = vmatmul.mubr.bf16.gmra.mxu0 %v9096
        %v9403 = vpop.f32.mrf.mxu0
        %v9404 = vadd.f32 %v9339, %v9403
        %v9405 = vpop.f32.mrf.mxu0
        %v9406 = vpop.f32.mrf.mxu0
        %v9407 = vadd.f32 %v9342, %v9406
        %v9408 = vpop.f32.mrf.mxu0
        %9409 = vmatprep.mubr.bf16.mxu0 0
        %9410 = vmatmul.mubr.bf16.gmra.mxu0 %v9099
        %v9411 = vpop.f32.mrf.mxu0
        %v9412 = vadd.f32 %v9347, %v9411
        %v9413 = vpop.f32.mrf.mxu0
        %v9414 = vpop.f32.mrf.mxu0
        %v9415 = vadd.f32 %v9350, %v9414
        %v9416 = vpop.f32.mrf.mxu0
        %9417 = vmatprep.mubr.bf16.mxu0 0
        %9418 = vmatmul.mubr.bf16.gmra.mxu0 %v9102
        %v9419 = vpop.f32.mrf.mxu0
        %v9420 = vadd.f32 %v9355, %v9419
        %v9421 = vpop.f32.mrf.mxu0
        %v9422 = vpop.f32.mrf.mxu0
        %v9423 = vadd.f32 %v9358, %v9422
        %v9424 = vpop.f32.mrf.mxu0
        %9425 = vdwg.mxu0
        %v9426 = vadd.f32 %v9036, %v9396
        %v9427 = vadd.f32 %v9039, %v9399
        %v9428 = vadd.f32 %v9044, %v9404
        %v9429 = vadd.f32 %v9047, %v9407
        %v9430 = vadd.f32 %v9052, %v9412
        %v9431 = vadd.f32 %v9055, %v9415
        %v9432 = vadd.f32 %v9060, %v9420
        %v9433 = vadd.f32 %v9063, %v9423
        %v9434 = vld [vmem:[%s8] sm:$0x1]
        %v9436 = vlaneseq
        %v9437 = vshrl.u32 %v9436, 7
        %v9438 = vsub.s32 0, %v9437
        %v9439 = vrot.slane %v9434, %v9438
        %v9441 = vadd.f32 %v9426, %v9439
        %v9442 = vadd.f32 %v9427, %v9439
        %v9443 = vadd.f32 %v9428, %v9439
        %v9444 = vadd.f32 %v9429, %v9439
        %v9445 = vadd.f32 %v9430, %v9439
        %v9446 = vadd.f32 %v9431, %v9439
        %v9447 = vadd.f32 %v9432, %v9439
        %v9448 = vadd.f32 %v9433, %v9439
        %v9449 = vmax.f32 %v9441, 0.0
        %v9450 = vmax.f32 %v9442, 0.0
        %v9451 = vmax.f32 %v9443, 0.0
        %v9452 = vmax.f32 %v9444, 0.0
        %v9453 = vmax.f32 %v9445, 0.0
        %v9454 = vmax.f32 %v9446, 0.0
        %v9455 = vmax.f32 %v9447, 0.0
        %v9456 = vmax.f32 %v9448, 0.0
        %v9457 = vmax.f32 %v9449, %v9450
        %v9458 = vmax.f32 %v9451, %v9452
        %v9459 = vmax.f32 %v9453, %v9454
        %v9460 = vmax.f32 %v9455, %v9456
        %v9465 = vcombine.high %v9457, %v9457
        %v9467 = vunpack.c.l.s4 1983009808
        %v9468 = vunpack.c.0.s8 %v9467
        %v9469 = vlaneseq
        %v9470 = vshrl.u32 %v9469, 7
        %v9471 = vsub.s32 %v9468, %v9470
        %v9472 = vrot.slane %v9457, %v9471
        %v9474 = vunpack.c.l.s4 1983009808
        %v9475 = vunpack.c.0.s8 %v9474
        %v9476 = vlaneseq
        %v9477 = vshrl.u32 %v9476, 7
        %v9478 = vsub.s32 %v9475, %v9477
        %v9479 = vrot.slane %v9465, %v9478
        %v9480 = vcombine.high %v9472, %v9472
        %v9481 = vcombine.high %v9479, %v9479
        %v9482 = vcombine.high %v9458, %v9458
        %v9484 = vunpack.c.l.s4 1983009808
        %v9485 = vunpack.c.0.s8 %v9484
        %v9486 = vlaneseq
        %v9487 = vshrl.u32 %v9486, 7
        %v9488 = vsub.s32 %v9485, %v9487
        %v9489 = vrot.slane %v9458, %v9488
        %v9491 = vunpack.c.l.s4 1983009808
        %v9492 = vunpack.c.0.s8 %v9491
        %v9493 = vlaneseq
        %v9494 = vshrl.u32 %v9493, 7
        %v9495 = vsub.s32 %v9492, %v9494
        %v9496 = vrot.slane %v9482, %v9495
        %v9497 = vcombine.high %v9489, %v9489
        %v9498 = vcombine.high %v9496, %v9496
        %v9499 = vcombine.high %v9459, %v9459
        %v9501 = vunpack.c.l.s4 1983009808
        %v9502 = vunpack.c.0.s8 %v9501
        %v9503 = vlaneseq
        %v9504 = vshrl.u32 %v9503, 7
        %v9505 = vsub.s32 %v9502, %v9504
        %v9506 = vrot.slane %v9459, %v9505
        %v9508 = vunpack.c.l.s4 1983009808
        %v9509 = vunpack.c.0.s8 %v9508
        %v9510 = vlaneseq
        %v9511 = vshrl.u32 %v9510, 7
        %v9512 = vsub.s32 %v9509, %v9511
        %v9513 = vrot.slane %v9499, %v9512
        %v9514 = vcombine.high %v9506, %v9506
        %v9515 = vcombine.high %v9513, %v9513
        %v9516 = vcombine.high %v9460, %v9460
        %v9518 = vunpack.c.l.s4 1983009808
        %v9519 = vunpack.c.0.s8 %v9518
        %v9520 = vlaneseq
        %v9521 = vshrl.u32 %v9520, 7
        %v9522 = vsub.s32 %v9519, %v9521
        %v9523 = vrot.slane %v9460, %v9522
        %v9525 = vunpack.c.l.s4 1983009808
        %v9526 = vunpack.c.0.s8 %v9525
        %v9527 = vlaneseq
        %v9528 = vshrl.u32 %v9527, 7
        %v9529 = vsub.s32 %v9526, %v9528
        %v9530 = vrot.slane %v9516, %v9529
        %v9531 = vcombine.high %v9523, %v9523
        %v9532 = vcombine.high %v9530, %v9530
        %v9549 = vrot.slane %v9472, 7
        %v9550 = vrot.slane %v9549, 2
        %v9551 = vrot.slane %v9480, 7
        %v9552 = vrot.slane %v9551, 2
        %v9553 = vrot.slane %v9479, 7
        %v9554 = vrot.slane %v9553, 2
        %v9555 = vrot.slane %v9481, 7
        %v9556 = vrot.slane %v9555, 2
        %v9557 = vrot.slane %v9489, 7
        %v9558 = vrot.slane %v9557, 2
        %v9559 = vrot.slane %v9497, 7
        %v9560 = vrot.slane %v9559, 2
        %v9561 = vrot.slane %v9496, 7
        %v9562 = vrot.slane %v9561, 2
        %v9563 = vrot.slane %v9498, 7
        %v9564 = vrot.slane %v9563, 2
        %v9565 = vrot.slane %v9506, 7
        %v9566 = vrot.slane %v9565, 2
        %v9567 = vrot.slane %v9514, 7
        %v9568 = vrot.slane %v9567, 2
        %v9569 = vrot.slane %v9513, 7
        %v9570 = vrot.slane %v9569, 2
        %v9571 = vrot.slane %v9515, 7
        %v9572 = vrot.slane %v9571, 2
        %v9573 = vrot.slane %v9523, 7
        %v9574 = vrot.slane %v9573, 2
        %v9575 = vrot.slane %v9531, 7
        %v9576 = vrot.slane %v9575, 2
        %v9577 = vrot.slane %v9530, 7
        %v9578 = vrot.slane %v9577, 2
        %v9579 = vrot.slane %v9532, 7
        %v9580 = vrot.slane %v9579, 2
        %v9597 = vmax.f32 %v9472, %v9550
        %v9598 = vmax.f32 %v9480, %v9552
        %v9599 = vmax.f32 %v9479, %v9554
        %v9600 = vmax.f32 %v9481, %v9556
        %v9601 = vmax.f32 %v9489, %v9558
        %v9602 = vmax.f32 %v9497, %v9560
        %v9603 = vmax.f32 %v9496, %v9562
        %v9604 = vmax.f32 %v9498, %v9564
        %v9605 = vmax.f32 %v9506, %v9566
        %v9606 = vmax.f32 %v9514, %v9568
        %v9607 = vmax.f32 %v9513, %v9570
        %v9608 = vmax.f32 %v9515, %v9572
        %v9609 = vmax.f32 %v9523, %v9574
        %v9610 = vmax.f32 %v9531, %v9576
        %v9611 = vmax.f32 %v9530, %v9578
        %v9612 = vmax.f32 %v9532, %v9580
        %v9629 = vlaneseq
        %v9630 = vshrl.u32 %v9629, 7
        %v9631 = vsub.s32 0, %v9630
        %v9632 = vrot.slane %v9597, %v9631
        %v9633 = vlaneseq
        %v9634 = vshrl.u32 %v9633, 7
        %v9635 = vsub.s32 0, %v9634
        %v9636 = vrot.slane %v9598, %v9635
        %v9637 = vlaneseq
        %v9638 = vshrl.u32 %v9637, 7
        %v9639 = vsub.s32 0, %v9638
        %v9640 = vrot.slane %v9599, %v9639
        %v9641 = vlaneseq
        %v9642 = vshrl.u32 %v9641, 7
        %v9643 = vsub.s32 0, %v9642
        %v9644 = vrot.slane %v9600, %v9643
        %v9645 = vlaneseq
        %v9646 = vshrl.u32 %v9645, 7
        %v9647 = vsub.s32 0, %v9646
        %v9648 = vrot.slane %v9601, %v9647
        %v9649 = vlaneseq
        %v9650 = vshrl.u32 %v9649, 7
        %v9651 = vsub.s32 0, %v9650
        %v9652 = vrot.slane %v9602, %v9651
        %v9653 = vlaneseq
        %v9654 = vshrl.u32 %v9653, 7
        %v9655 = vsub.s32 0, %v9654
        %v9656 = vrot.slane %v9603, %v9655
        %v9657 = vlaneseq
        %v9658 = vshrl.u32 %v9657, 7
        %v9659 = vsub.s32 0, %v9658
        %v9660 = vrot.slane %v9604, %v9659
        %v9661 = vlaneseq
        %v9662 = vshrl.u32 %v9661, 7
        %v9663 = vsub.s32 0, %v9662
        %v9664 = vrot.slane %v9605, %v9663
        %v9665 = vlaneseq
        %v9666 = vshrl.u32 %v9665, 7
        %v9667 = vsub.s32 0, %v9666
        %v9668 = vrot.slane %v9606, %v9667
        %v9669 = vlaneseq
        %v9670 = vshrl.u32 %v9669, 7
        %v9671 = vsub.s32 0, %v9670
        %v9672 = vrot.slane %v9607, %v9671
        %v9673 = vlaneseq
        %v9674 = vshrl.u32 %v9673, 7
        %v9675 = vsub.s32 0, %v9674
        %v9676 = vrot.slane %v9608, %v9675
        %v9677 = vlaneseq
        %v9678 = vshrl.u32 %v9677, 7
        %v9679 = vsub.s32 0, %v9678
        %v9680 = vrot.slane %v9609, %v9679
        %v9681 = vlaneseq
        %v9682 = vshrl.u32 %v9681, 7
        %v9683 = vsub.s32 0, %v9682
        %v9684 = vrot.slane %v9610, %v9683
        %v9685 = vlaneseq
        %v9686 = vshrl.u32 %v9685, 7
        %v9687 = vsub.s32 0, %v9686
        %v9688 = vrot.slane %v9611, %v9687
        %v9689 = vlaneseq
        %v9690 = vshrl.u32 %v9689, 7
        %v9691 = vsub.s32 0, %v9690
        %v9692 = vrot.slane %v9612, %v9691
        %v9693 = vsel %vm7132, %v9636, %v9632
        %v9694 = vsel %vm7134, %v9640, %v9693
        %v9695 = vsel %vm7136, %v9644, %v9694
        %v9696 = vsel %vm7138, %v9648, %v9695
        %v9697 = vsel %vm7140, %v9652, %v9696
        %v9698 = vsel %vm7142, %v9656, %v9697
        %v9699 = vsel %vm7144, %v9660, %v9698
        %v9700 = vsel %vm7132, %v9668, %v9664
        %v9701 = vsel %vm7134, %v9672, %v9700
        %v9702 = vsel %vm7136, %v9676, %v9701
        %v9703 = vsel %vm7138, %v9680, %v9702
        %v9704 = vsel %vm7140, %v9684, %v9703
        %v9705 = vsel %vm7142, %v9688, %v9704
        %v9706 = vsel %vm7144, %v9692, %v9705
        %vm9709 = vcmask 130048
        %9710 = vst.msk [vmem:[%s355] sm:$0xff] %vm9709, %v9699
        %9711 = vst.msk [vmem:[%s355 + $0x8] sm:$0xff] %vm9709, %v9706
        %s9712 = sand.u32 %s227, 1
        %s9713 = scalar_lea.sflag [#allocation8], %s9712
        %s9714 = sand.u32 %s227, 1
        %s9715 = smul.addr %s9714, 16
        %s9716 = scalar_lea.vmem [#allocation11], %s9715
        // Predicated region
        $region65: #{tpu_custom_call.1} parent=55 // pred_check
          %p9717 = pneg %p237
        $region66: #{tpu_custom_call.1} parent=55 // pred_check_branch
          %9719 = sbr.rel (%p9717) target = $region68
        $region67: #{tpu_custom_call.1} parent=55 // pred_region
          %s9721 = ssub.s32 256, 256
          %9722 = vsyncadd %s9713, %s9721
          %s9723 = smul.addr %s25, 2
          %s9724 = smul.addr %s9723, 128
          %s9725 = scalar_lea.hbm %s9, %s9724
          %s9726 = sshll.u32 %s9716, 4
          %s9727 = int_to_ptr.vmem [resolvable:$true] %s9726
          %9732 = dma.vmem_to_hbm [thread:$0]  %s9727, 256, %s9725, %s9713, 128, 128, 8
        $region68: #{tpu_custom_call.1} parent=55 // pred_fallthru
          _
      $region56: #{tpu_custom_call.1} parent=5 // pred_fallthru
        _
      %p9733 = scmp.le.s32.totalorder 2, %s20
      // Predicated region
      $region69: #{tpu_custom_call.1} parent=5 // pred_check
        %p9734 = pneg %p9733
      $region70: #{tpu_custom_call.1} parent=5 // pred_check_branch
        %9736 = sbr.rel (%p9734) target = $region72
      $region71: #{tpu_custom_call.1} parent=5 // pred_region
        %s9737 = ssub.s32 %s20, 2
        // Predicated region
        $region73: #{tpu_custom_call.1} parent=71 // pred_check
          %p9738 = pneg %p243
        $region74: #{tpu_custom_call.1} parent=71 // pred_check_branch
          %9740 = sbr.rel (%p9738) target = $region76
        $region75: #{tpu_custom_call.1} parent=71 // pred_region
          %s9741 = sand.u32 %s228, 1
          %s9742 = scalar_lea.sflag [#allocation8], %s9741
          %s9743 = sand.u32 %s228, 1
          %s9744 = smul.addr %s9743, 16
          %s9745 = scalar_lea.vmem [#allocation11], %s9744
          %9746 = dma.done %s9742, 256
        $region76: #{tpu_custom_call.1} parent=71 // pred_fallthru
          _
      $region72: #{tpu_custom_call.1} parent=5 // pred_fallthru
        _
    $region6: #{tpu_custom_call.1} parent=1 // loop_footer
      %s24 = sadd.s32 1, %s20
    $region7: #{tpu_custom_call.1} parent=1 // loop_footer_branch
      %19 = sbr.rel target = $region3
    $region8: #{tpu_custom_call.1} parent=1 // loop_exit
      _
    %9747 = vsyncpa [#allocation7], 1
    %s9748 = scalar_lea.sflag [#allocation7], 1
    %9749 = vsyncpa %s9748, 1
    %9750 = vsyncpa [#allocation10], 1
    %9751 = vsyncpa [#allocation8], 1
    %s9752 = scalar_lea.sflag [#allocation8], 1
    %9753 = vsyncpa %s9752, 1

</llo_original>
